<compile_context>
chip_gen: v7x
topology: tpu7x:2x2x1
jax: 0.10.0
libtpu: 0.0.40
codegen_flags: <defaults>
</compile_context>

<pallas_src>
import functools
import math

import jax
import jax.numpy as jnp
from jax.experimental import pallas as pl
from jax.experimental.pallas import tpu as pltpu

_VMEM = pl.BlockSpec(memory_space=pltpu.MemorySpace.VMEM)


# ---------------------------------------------------------------------------
# In-kernel helpers (operate on values, not refs)
# ---------------------------------------------------------------------------

def _layer_norm(z, gamma, beta):
    # PyTorch LayerNorm: biased variance, eps=1e-5.
    mu = jnp.mean(z, axis=-1, keepdims=True)
    var = jnp.mean((z - mu) * (z - mu), axis=-1, keepdims=True)
    return (z - mu) * jax.lax.rsqrt(var + 1e-5) * gamma + beta


def _linear(x, w, b):
    return jnp.dot(x, w, preferred_element_type=jnp.float32) + b


def _attention_core(q2d, k2d, v2d, *, batch, seq_q, seq_kv, heads):
    """Multi-head scaled-dot-product attention on row-major (B*S, E) activations.

    Heads are handled by a small static unroll with batched einsums over the batch
    dimension; everything stays resident in vregs/VMEM.
    """
    e = q2d.shape[-1]
    dh = e // heads
    scale = 1.0 / math.sqrt(dh)
    q3 = q2d.reshape(batch, seq_q, e)
    k3 = k2d.reshape(batch, seq_kv, e)
    v3 = v2d.reshape(batch, seq_kv, e)
    outs = []
    for h in range(heads):  # static unroll (heads is a small Python int)
        lo = h * dh
        qh = q3[:, :, lo:lo + dh]
        kh = k3[:, :, lo:lo + dh]
        vh = v3[:, :, lo:lo + dh]
        s = jnp.einsum("bqd,bkd->bqk", qh, kh,
                       preferred_element_type=jnp.float32) * scale
        m = jnp.max(s, axis=-1, keepdims=True)
        p = jnp.exp(s - m)
        p = p * pl.reciprocal(jnp.sum(p, axis=-1, keepdims=True), approx=True)
        outs.append(jnp.einsum("bqk,bkd->bqd", p, vh,
                               preferred_element_type=jnp.float32))
    return jnp.concatenate(outs, axis=-1).reshape(batch * seq_q, e)


# ---------------------------------------------------------------------------
# Fused Pallas kernels
# ---------------------------------------------------------------------------

def _encoder_layer_kernel(x_ref, wqkv_ref, bqkv_ref, wo_ref, bo_ref,
                          n1w_ref, n1b_ref,
                          w1_ref, b1_ref, w2_ref, b2_ref,
                          n2w_ref, n2b_ref,
                          o_ref, *, heads, batch, seq):
    e = x_ref.shape[-1]
    x = x_ref[...]                                   # (B*S, E)

    # --- self-attention (fused QKV) ---
    qkv = _linear(x, wqkv_ref[...], bqkv_ref[...])   # (B*S, 3E)
    attn = _attention_core(qkv[:, :e], qkv[:, e:2 * e], qkv[:, 2 * e:],
                           batch=batch, seq_q=seq, seq_kv=seq, heads=heads)
    attn = _linear(attn, wo_ref[...], bo_ref[...])

    # --- add & norm 1 ---
    x1 = _layer_norm(x + attn, n1w_ref[...], n1b_ref[...])

    # --- feed-forward (ReLU) ---
    hmid = jnp.maximum(_linear(x1, w1_ref[...], b1_ref[...]), 0.0)
    ff = _linear(hmid, w2_ref[...], b2_ref[...])

    # --- add & norm 2 ---
    o_ref[...] = _layer_norm(x1 + ff, n2w_ref[...], n2b_ref[...])


def _decoder_layer_kernel(x_ref, mem_ref,
                          sa_wqkv_ref, sa_bqkv_ref, sa_wo_ref, sa_bo_ref,
                          n1w_ref, n1b_ref,
                          ca_wq_ref, ca_bq_ref, ca_wkv_ref, ca_bkv_ref,
                          ca_wo_ref, ca_bo_ref,
                          n2w_ref, n2b_ref,
                          w1_ref, b1_ref, w2_ref, b2_ref,
                          n3w_ref, n3b_ref,
                          o_ref, *, heads, batch, seq):
    e = x_ref.shape[-1]
    x = x_ref[...]                                   # (B*S, E)
    mem = mem_ref[...]                               # (B*S, E)

    # --- self-attention (unmasked, matches module usage) ---
    qkv = _linear(x, sa_wqkv_ref[...], sa_bqkv_ref[...])
    sa = _attention_core(qkv[:, :e], qkv[:, e:2 * e], qkv[:, 2 * e:],
                         batch=batch, seq_q=seq, seq_kv=seq, heads=heads)
    sa = _linear(sa, sa_wo_ref[...], sa_bo_ref[...])
    x1 = _layer_norm(x + sa, n1w_ref[...], n1b_ref[...])

    # --- cross-attention (fused KV) ---
    q = _linear(x1, ca_wq_ref[...], ca_bq_ref[...])
    kv = _linear(mem, ca_wkv_ref[...], ca_bkv_ref[...])
    ca = _attention_core(q, kv[:, :e], kv[:, e:],
                         batch=batch, seq_q=seq, seq_kv=seq, heads=heads)
    ca = _linear(ca, ca_wo_ref[...], ca_bo_ref[...])
    x2 = _layer_norm(x1 + ca, n2w_ref[...], n2b_ref[...])

    # --- feed-forward ---
    hmid = jnp.maximum(_linear(x2, w1_ref[...], b1_ref[...]), 0.0)
    ff = _linear(hmid, w2_ref[...], b2_ref[...])
    o_ref[...] = _layer_norm(x2 + ff, n3w_ref[...], n3b_ref[...])


def _latent_reparam_kernel(h_ref, w_ref, b_ref, eps_ref,
                           mean_ref, logvar_ref, z_ref):
    lat = mean_ref.shape[-1]
    latent = _linear(h_ref[...], w_ref[...], b_ref[...])   # (N, 2*lat)
    mean = latent[:, :lat]
    log_var = latent[:, lat:]
    mean_ref[...] = mean
    logvar_ref[...] = log_var
    z_ref[...] = mean + eps_ref[...] * jnp.exp(0.5 * log_var)


def _linear_kernel(x_ref, w_ref, b_ref, o_ref):
    o_ref[...] = _linear(x_ref[...], w_ref[...], b_ref[...])


# ---------------------------------------------------------------------------
# pallas_call wrappers (one call per fused block)
# ---------------------------------------------------------------------------

def encoder_layer_pallas(x2d, p, *, heads, batch, seq):
    n, e = x2d.shape
    kern = functools.partial(_encoder_layer_kernel, heads=heads, batch=batch, seq=seq)
    return pl.pallas_call(
        kern,
        out_shape=jax.ShapeDtypeStruct((n, e), jnp.float32),
        in_specs=[_VMEM] * 13,
        out_specs=_VMEM,
    )(x2d,
      p["sa"]["wqkv"], p["sa"]["bqkv"], p["sa"]["wo"], p["sa"]["bo"],
      p["norm1_w"], p["norm1_b"],
      p["lin1_w"], p["lin1_b"], p["lin2_w"], p["lin2_b"],
      p["norm2_w"], p["norm2_b"])


def decoder_layer_pallas(x2d, mem2d, p, *, heads, batch, seq):
    n, e = x2d.shape
    kern = functools.partial(_decoder_layer_kernel, heads=heads, batch=batch, seq=seq)
    return pl.pallas_call(
        kern,
        out_shape=jax.ShapeDtypeStruct((n, e), jnp.float32),
        in_specs=[_VMEM] * 22,
        out_specs=_VMEM,
    )(x2d, mem2d,
      p["sa"]["wqkv"], p["sa"]["bqkv"], p["sa"]["wo"], p["sa"]["bo"],
      p["norm1_w"], p["norm1_b"],
      p["ca"]["wq"], p["ca"]["bq"], p["ca"]["wkv"], p["ca"]["bkv"],
      p["ca"]["wo"], p["ca"]["bo"],
      p["norm2_w"], p["norm2_b"],
      p["lin1_w"], p["lin1_b"], p["lin2_w"], p["lin2_b"],
      p["norm3_w"], p["norm3_b"])


def latent_reparam_pallas(h2d, w, b, eps):
    n = h2d.shape[0]
    lat = w.shape[1] // 2
    shp = jax.ShapeDtypeStruct((n, lat), jnp.float32)
    return pl.pallas_call(
        _latent_reparam_kernel,
        out_shape=(shp, shp, shp),
        in_specs=[_VMEM] * 4,
        out_specs=(_VMEM, _VMEM, _VMEM),
    )(h2d, w, b, eps)


def linear_pallas(x2d, w, b):
    n = x2d.shape[0]
    dout = w.shape[1]
    return pl.pallas_call(
        _linear_kernel,
        out_shape=jax.ShapeDtypeStruct((n, dout), jnp.float32),
        in_specs=[_VMEM] * 3,
        out_specs=_VMEM,
    )(x2d, w, b)


# ---------------------------------------------------------------------------
# Forward pass
# ---------------------------------------------------------------------------

def transformer_vae_forward(x, params, eps_key, *, heads):
    # x: (S, B, E) seq-first, as in the PyTorch module.
    s, b, e = x.shape
    n = b * s
    lat = params["to_latent_w"].shape[1] // 2

    # Work in a (B*S, E) row layout (single transpose at entry/exit of the whole forward).
    h = x.transpose(1, 0, 2).reshape(n, e)

    # encode
    for lp in params["enc_layers"]:
        h = encoder_layer_pallas(h, lp, heads=heads, batch=b, seq=s)

    # to_latent + reparameterize (fused)
    eps = jax.random.normal(eps_key, (n, lat), dtype=jnp.float32)
    mean, log_var, z = latent_reparam_pallas(
        h, params["to_latent_w"], params["to_latent_b"], eps)

    # decode: decoder(z, z)
    d = z
    for lp in params["dec_layers"]:
        d = decoder_layer_pallas(d, z, lp, heads=heads, batch=b, seq=s)
    rec = linear_pallas(d, params["dec_out_w"], params["dec_out_b"])

    def unflat(t):
        return t.reshape(b, s, -1).transpose(1, 0, 2)

    return unflat(rec), unflat(mean), unflat(log_var)


# ---------------------------------------------------------------------------
# Deterministic parameter init (pre-transposed (Din, Dout) weights, (1, D) biases)
# ---------------------------------------------------------------------------

def init_params(key, input_dim, hidden_dim, latent_dim, n_layers):
    e, hd, lat = input_dim, hidden_dim, latent_dim
    assert lat == e, "PyTorch module only type-checks when latent_dim == input_dim"
    keys = iter(jax.random.split(key, 4096))

    def w(shape, scale=0.02):
        return jax.random.normal(next(keys), shape, jnp.float32) * scale

    def ones(d):
        return jnp.ones((1, d), jnp.float32)

    def zeros(d):
        return jnp.zeros((1, d), jnp.float32)

    def mha_self():
        return dict(wqkv=w((e, 3 * e)), bqkv=w((1, 3 * e)),
                    wo=w((e, e)), bo=w((1, e)))

    def mha_cross():
        return dict(wq=w((e, e)), bq=w((1, e)),
                    wkv=w((e, 2 * e)), bkv=w((1, 2 * e)),
                    wo=w((e, e)), bo=w((1, e)))

    def enc_layer_p():
        return dict(
            sa=mha_self(),
            lin1_w=w((e, hd)), lin1_b=w((1, hd)),
            lin2_w=w((hd, e)), lin2_b=w((1, e)),
            norm1_w=ones(e), norm1_b=zeros(e),
            norm2_w=ones(e), norm2_b=zeros(e),
        )

    def dec_layer_p():
        return dict(
            sa=mha_self(),
            ca=mha_cross(),
            lin1_w=w((e, hd)), lin1_b=w((1, hd)),
            lin2_w=w((hd, e)), lin2_b=w((1, e)),
            norm1_w=ones(e), norm1_b=zeros(e),
            norm2_w=ones(e), norm2_b=zeros(e),
            norm3_w=ones(e), norm3_b=zeros(e),
        )

    return dict(
        enc_layers=[enc_layer_p() for _ in range(n_layers)],
        to_latent_w=w((e, 2 * lat)), to_latent_b=w((1, 2 * lat)),
        dec_layers=[dec_layer_p() for _ in range(n_layers)],
        dec_out_w=w((e, e)), dec_out_b=w((1, e)),
    )


# ---------------------------------------------------------------------------
# Main
# ---------------------------------------------------------------------------

if __name__ == "__main__":
    SEQ, BATCH = 8, 2
    INPUT_DIM = 32
    HIDDEN_DIM = 64
    LATENT_DIM = 32      # must equal INPUT_DIM for the PyTorch module to be valid
    N_LAYERS = 2
    HEADS = 4

    root = jax.random.PRNGKey(0)
    k_params, k_x, k_eps = jax.random.split(root, 3)

    params = init_params(k_params, INPUT_DIM, HIDDEN_DIM, LATENT_DIM, N_LAYERS)
    x = jax.random.normal(k_x, (SEQ, BATCH, INPUT_DIM), dtype=jnp.float32)

    fwd = jax.jit(functools.partial(transformer_vae_forward, heads=HEADS))
    rec, mean, log_var = fwd(x, params, k_eps)
    jax.block_until_ready((rec, mean, log_var))

    assert rec.shape == (SEQ, BATCH, LATENT_DIM)
    assert mean.shape == (SEQ, BATCH, LATENT_DIM)
    assert log_var.shape == (SEQ, BATCH, LATENT_DIM)
    assert jnp.all(jnp.isfinite(rec)) and jnp.all(jnp.isfinite(mean)) and jnp.all(jnp.isfinite(log_var))

    print("KERNEL_OK")
</pallas_src>

<mosaic_0001>
module attributes {stable_mosaic.version = 11 : i64} {
  func.func @_decoder_layer_kernel(%arg0: memref<16x32xf32, #tpu.memory_space<vmem>>, %arg1: memref<16x32xf32, #tpu.memory_space<vmem>>, %arg2: memref<32x96xf32, #tpu.memory_space<vmem>>, %arg3: memref<1x96xf32, #tpu.memory_space<vmem>>, %arg4: memref<32x32xf32, #tpu.memory_space<vmem>>, %arg5: memref<1x32xf32, #tpu.memory_space<vmem>>, %arg6: memref<1x32xf32, #tpu.memory_space<vmem>>, %arg7: memref<1x32xf32, #tpu.memory_space<vmem>>, %arg8: memref<32x32xf32, #tpu.memory_space<vmem>>, %arg9: memref<1x32xf32, #tpu.memory_space<vmem>>, %arg10: memref<32x64xf32, #tpu.memory_space<vmem>>, %arg11: memref<1x64xf32, #tpu.memory_space<vmem>>, %arg12: memref<32x32xf32, #tpu.memory_space<vmem>>, %arg13: memref<1x32xf32, #tpu.memory_space<vmem>>, %arg14: memref<1x32xf32, #tpu.memory_space<vmem>>, %arg15: memref<1x32xf32, #tpu.memory_space<vmem>>, %arg16: memref<32x64xf32, #tpu.memory_space<vmem>>, %arg17: memref<1x64xf32, #tpu.memory_space<vmem>>, %arg18: memref<64x32xf32, #tpu.memory_space<vmem>>, %arg19: memref<1x32xf32, #tpu.memory_space<vmem>>, %arg20: memref<1x32xf32, #tpu.memory_space<vmem>>, %arg21: memref<1x32xf32, #tpu.memory_space<vmem>>, %arg22: memref<16x32xf32, #tpu.memory_space<vmem>>) attributes {dimension_semantics = [], scalar_prefetch = 0 : i64, scratch_operands = 0 : i64, tpu.core_type = #tpu.core_type<tc>} {
    %c0 = arith.constant 0 : index
    %c0_0 = arith.constant 0 : index
    %0 = vector.load %arg0[%c0, %c0_0] : memref<16x32xf32, #tpu.memory_space<vmem>>, vector<16x32xf32>
    %c0_1 = arith.constant 0 : index
    %c0_2 = arith.constant 0 : index
    %1 = vector.load %arg1[%c0_1, %c0_2] : memref<16x32xf32, #tpu.memory_space<vmem>>, vector<16x32xf32>
    %c0_3 = arith.constant 0 : index
    %c0_4 = arith.constant 0 : index
    %2 = vector.load %arg2[%c0_3, %c0_4] : memref<32x96xf32, #tpu.memory_space<vmem>>, vector<32x96xf32>
    %c0_5 = arith.constant 0 : index
    %c0_6 = arith.constant 0 : index
    %3 = vector.load %arg3[%c0_5, %c0_6] : memref<1x96xf32, #tpu.memory_space<vmem>>, vector<1x96xf32>
    %cst = arith.constant dense<0.000000e+00> : vector<16x96xf32>
    %4 = tpu.matmul %0, %2, %cst {dimension_numbers = #tpu.dot_dimension_numbers<[1], [0], [0], [1], [0, 0, 1, 1], [], []>} : vector<16x32xf32>, vector<32x96xf32>, vector<16x96xf32> -> vector<16x96xf32>
    %5 = vector.broadcast %3 : vector<1x96xf32> to vector<16x96xf32>
    %6 = arith.addf %4, %5 : vector<16x96xf32>
    %7 = vector.extract_strided_slice %6 {offsets = [0, 0], sizes = [16, 32], strides = [1, 1]} : vector<16x96xf32> to vector<16x32xf32>
    %8 = vector.extract_strided_slice %6 {offsets = [0, 32], sizes = [16, 32], strides = [1, 1]} : vector<16x96xf32> to vector<16x32xf32>
    %9 = vector.extract_strided_slice %6 {offsets = [0, 64], sizes = [16, 32], strides = [1, 1]} : vector<16x96xf32> to vector<16x32xf32>
    %10 = vector.shape_cast %7 : vector<16x32xf32> to vector<2x8x32xf32>
    %11 = vector.shape_cast %8 : vector<16x32xf32> to vector<2x8x32xf32>
    %12 = vector.shape_cast %9 : vector<16x32xf32> to vector<2x8x32xf32>
    %13 = vector.extract_strided_slice %10 {offsets = [0, 0, 0], sizes = [2, 8, 8], strides = [1, 1, 1]} : vector<2x8x32xf32> to vector<2x8x8xf32>
    %14 = vector.extract_strided_slice %11 {offsets = [0, 0, 0], sizes = [2, 8, 8], strides = [1, 1, 1]} : vector<2x8x32xf32> to vector<2x8x8xf32>
    %15 = vector.extract_strided_slice %12 {offsets = [0, 0, 0], sizes = [2, 8, 8], strides = [1, 1, 1]} : vector<2x8x32xf32> to vector<2x8x8xf32>
    "tpu.trace_start"() <{level = 10 : i32, message = "bqd,bkd->bqk"}> : () -> ()
    %cst_7 = arith.constant dense<0.000000e+00> : vector<2x8x8xf32>
    %16 = tpu.matmul %13, %14, %cst_7 {dimension_numbers = #tpu.dot_dimension_numbers<[2], [2], [1], [1], [0, 0, 0, 1, 1, 1], [0], [0]>} : vector<2x8x8xf32>, vector<2x8x8xf32>, vector<2x8x8xf32> -> vector<2x8x8xf32>
    "tpu.trace_stop"() : () -> ()
    %cst_8 = arith.constant 0.353553385 : f32
    %17 = vector.broadcast %cst_8 : f32 to vector<2x8x8xf32>
    %18 = arith.mulf %16, %17 : vector<2x8x8xf32>
    %cst_9 = arith.constant dense<0xFF800000> : vector<2x8xf32>
    %19 = vector.multi_reduction <maximumf>, %18, %cst_9 [2] : vector<2x8x8xf32> to vector<2x8xf32>
    %20 = vector.shape_cast %19 : vector<2x8xf32> to vector<2x8x1xf32>
    %21 = vector.broadcast %20 : vector<2x8x1xf32> to vector<2x8x8xf32>
    %22 = arith.subf %18, %21 : vector<2x8x8xf32>
    %23 = math.exp %22 : vector<2x8x8xf32>
    %cst_10 = arith.constant dense<0.000000e+00> : vector<2x8xf32>
    %24 = vector.multi_reduction <add>, %23, %cst_10 [2] : vector<2x8x8xf32> to vector<2x8xf32>
    %25 = vector.shape_cast %24 : vector<2x8xf32> to vector<2x8x1xf32>
    %26 = tpu.reciprocal %25 {approx = true} : vector<2x8x1xf32> -> vector<2x8x1xf32>
    %27 = vector.broadcast %26 : vector<2x8x1xf32> to vector<2x8x8xf32>
    %28 = arith.mulf %23, %27 : vector<2x8x8xf32>
    "tpu.trace_start"() <{level = 10 : i32, message = "bqk,bkd->bqd"}> : () -> ()
    %cst_11 = arith.constant dense<0.000000e+00> : vector<2x8x8xf32>
    %29 = tpu.matmul %28, %15, %cst_11 {dimension_numbers = #tpu.dot_dimension_numbers<[2], [1], [1], [2], [0, 0, 0, 1, 1, 2], [0], [0]>} : vector<2x8x8xf32>, vector<2x8x8xf32>, vector<2x8x8xf32> -> vector<2x8x8xf32>
    "tpu.trace_stop"() : () -> ()
    %30 = vector.extract_strided_slice %10 {offsets = [0, 0, 8], sizes = [2, 8, 8], strides = [1, 1, 1]} : vector<2x8x32xf32> to vector<2x8x8xf32>
    %31 = vector.extract_strided_slice %11 {offsets = [0, 0, 8], sizes = [2, 8, 8], strides = [1, 1, 1]} : vector<2x8x32xf32> to vector<2x8x8xf32>
    %32 = vector.extract_strided_slice %12 {offsets = [0, 0, 8], sizes = [2, 8, 8], strides = [1, 1, 1]} : vector<2x8x32xf32> to vector<2x8x8xf32>
    "tpu.trace_start"() <{level = 10 : i32, message = "bqd,bkd->bqk"}> : () -> ()
    %cst_12 = arith.constant dense<0.000000e+00> : vector<2x8x8xf32>
    %33 = tpu.matmul %30, %31, %cst_12 {dimension_numbers = #tpu.dot_dimension_numbers<[2], [2], [1], [1], [0, 0, 0, 1, 1, 1], [0], [0]>} : vector<2x8x8xf32>, vector<2x8x8xf32>, vector<2x8x8xf32> -> vector<2x8x8xf32>
    "tpu.trace_stop"() : () -> ()
    %cst_13 = arith.constant 0.353553385 : f32
    %34 = vector.broadcast %cst_13 : f32 to vector<2x8x8xf32>
    %35 = arith.mulf %33, %34 : vector<2x8x8xf32>
    %cst_14 = arith.constant dense<0xFF800000> : vector<2x8xf32>
    %36 = vector.multi_reduction <maximumf>, %35, %cst_14 [2] : vector<2x8x8xf32> to vector<2x8xf32>
    %37 = vector.shape_cast %36 : vector<2x8xf32> to vector<2x8x1xf32>
    %38 = vector.broadcast %37 : vector<2x8x1xf32> to vector<2x8x8xf32>
    %39 = arith.subf %35, %38 : vector<2x8x8xf32>
    %40 = math.exp %39 : vector<2x8x8xf32>
    %cst_15 = arith.constant dense<0.000000e+00> : vector<2x8xf32>
    %41 = vector.multi_reduction <add>, %40, %cst_15 [2] : vector<2x8x8xf32> to vector<2x8xf32>
    %42 = vector.shape_cast %41 : vector<2x8xf32> to vector<2x8x1xf32>
    %43 = tpu.reciprocal %42 {approx = true} : vector<2x8x1xf32> -> vector<2x8x1xf32>
    %44 = vector.broadcast %43 : vector<2x8x1xf32> to vector<2x8x8xf32>
    %45 = arith.mulf %40, %44 : vector<2x8x8xf32>
    "tpu.trace_start"() <{level = 10 : i32, message = "bqk,bkd->bqd"}> : () -> ()
    %cst_16 = arith.constant dense<0.000000e+00> : vector<2x8x8xf32>
    %46 = tpu.matmul %45, %32, %cst_16 {dimension_numbers = #tpu.dot_dimension_numbers<[2], [1], [1], [2], [0, 0, 0, 1, 1, 2], [0], [0]>} : vector<2x8x8xf32>, vector<2x8x8xf32>, vector<2x8x8xf32> -> vector<2x8x8xf32>
    "tpu.trace_stop"() : () -> ()
    %47 = vector.extract_strided_slice %10 {offsets = [0, 0, 16], sizes = [2, 8, 8], strides = [1, 1, 1]} : vector<2x8x32xf32> to vector<2x8x8xf32>
    %48 = vector.extract_strided_slice %11 {offsets = [0, 0, 16], sizes = [2, 8, 8], strides = [1, 1, 1]} : vector<2x8x32xf32> to vector<2x8x8xf32>
    %49 = vector.extract_strided_slice %12 {offsets = [0, 0, 16], sizes = [2, 8, 8], strides = [1, 1, 1]} : vector<2x8x32xf32> to vector<2x8x8xf32>
    "tpu.trace_start"() <{level = 10 : i32, message = "bqd,bkd->bqk"}> : () -> ()
    %cst_17 = arith.constant dense<0.000000e+00> : vector<2x8x8xf32>
    %50 = tpu.matmul %47, %48, %cst_17 {dimension_numbers = #tpu.dot_dimension_numbers<[2], [2], [1], [1], [0, 0, 0, 1, 1, 1], [0], [0]>} : vector<2x8x8xf32>, vector<2x8x8xf32>, vector<2x8x8xf32> -> vector<2x8x8xf32>
    "tpu.trace_stop"() : () -> ()
    %cst_18 = arith.constant 0.353553385 : f32
    %51 = vector.broadcast %cst_18 : f32 to vector<2x8x8xf32>
    %52 = arith.mulf %50, %51 : vector<2x8x8xf32>
    %cst_19 = arith.constant dense<0xFF800000> : vector<2x8xf32>
    %53 = vector.multi_reduction <maximumf>, %52, %cst_19 [2] : vector<2x8x8xf32> to vector<2x8xf32>
    %54 = vector.shape_cast %53 : vector<2x8xf32> to vector<2x8x1xf32>
    %55 = vector.broadcast %54 : vector<2x8x1xf32> to vector<2x8x8xf32>
    %56 = arith.subf %52, %55 : vector<2x8x8xf32>
    %57 = math.exp %56 : vector<2x8x8xf32>
    %cst_20 = arith.constant dense<0.000000e+00> : vector<2x8xf32>
    %58 = vector.multi_reduction <add>, %57, %cst_20 [2] : vector<2x8x8xf32> to vector<2x8xf32>
    %59 = vector.shape_cast %58 : vector<2x8xf32> to vector<2x8x1xf32>
    %60 = tpu.reciprocal %59 {approx = true} : vector<2x8x1xf32> -> vector<2x8x1xf32>
    %61 = vector.broadcast %60 : vector<2x8x1xf32> to vector<2x8x8xf32>
    %62 = arith.mulf %57, %61 : vector<2x8x8xf32>
    "tpu.trace_start"() <{level = 10 : i32, message = "bqk,bkd->bqd"}> : () -> ()
    %cst_21 = arith.constant dense<0.000000e+00> : vector<2x8x8xf32>
    %63 = tpu.matmul %62, %49, %cst_21 {dimension_numbers = #tpu.dot_dimension_numbers<[2], [1], [1], [2], [0, 0, 0, 1, 1, 2], [0], [0]>} : vector<2x8x8xf32>, vector<2x8x8xf32>, vector<2x8x8xf32> -> vector<2x8x8xf32>
    "tpu.trace_stop"() : () -> ()
    %64 = vector.extract_strided_slice %10 {offsets = [0, 0, 24], sizes = [2, 8, 8], strides = [1, 1, 1]} : vector<2x8x32xf32> to vector<2x8x8xf32>
    %65 = vector.extract_strided_slice %11 {offsets = [0, 0, 24], sizes = [2, 8, 8], strides = [1, 1, 1]} : vector<2x8x32xf32> to vector<2x8x8xf32>
    %66 = vector.extract_strided_slice %12 {offsets = [0, 0, 24], sizes = [2, 8, 8], strides = [1, 1, 1]} : vector<2x8x32xf32> to vector<2x8x8xf32>
    "tpu.trace_start"() <{level = 10 : i32, message = "bqd,bkd->bqk"}> : () -> ()
    %cst_22 = arith.constant dense<0.000000e+00> : vector<2x8x8xf32>
    %67 = tpu.matmul %64, %65, %cst_22 {dimension_numbers = #tpu.dot_dimension_numbers<[2], [2], [1], [1], [0, 0, 0, 1, 1, 1], [0], [0]>} : vector<2x8x8xf32>, vector<2x8x8xf32>, vector<2x8x8xf32> -> vector<2x8x8xf32>
    "tpu.trace_stop"() : () -> ()
    %cst_23 = arith.constant 0.353553385 : f32
    %68 = vector.broadcast %cst_23 : f32 to vector<2x8x8xf32>
    %69 = arith.mulf %67, %68 : vector<2x8x8xf32>
    %cst_24 = arith.constant dense<0xFF800000> : vector<2x8xf32>
    %70 = vector.multi_reduction <maximumf>, %69, %cst_24 [2] : vector<2x8x8xf32> to vector<2x8xf32>
    %71 = vector.shape_cast %70 : vector<2x8xf32> to vector<2x8x1xf32>
    %72 = vector.broadcast %71 : vector<2x8x1xf32> to vector<2x8x8xf32>
    %73 = arith.subf %69, %72 : vector<2x8x8xf32>
    %74 = math.exp %73 : vector<2x8x8xf32>
    %cst_25 = arith.constant dense<0.000000e+00> : vector<2x8xf32>
    %75 = vector.multi_reduction <add>, %74, %cst_25 [2] : vector<2x8x8xf32> to vector<2x8xf32>
    %76 = vector.shape_cast %75 : vector<2x8xf32> to vector<2x8x1xf32>
    %77 = tpu.reciprocal %76 {approx = true} : vector<2x8x1xf32> -> vector<2x8x1xf32>
    %78 = vector.broadcast %77 : vector<2x8x1xf32> to vector<2x8x8xf32>
    %79 = arith.mulf %74, %78 : vector<2x8x8xf32>
    "tpu.trace_start"() <{level = 10 : i32, message = "bqk,bkd->bqd"}> : () -> ()
    %cst_26 = arith.constant dense<0.000000e+00> : vector<2x8x8xf32>
    %80 = tpu.matmul %79, %66, %cst_26 {dimension_numbers = #tpu.dot_dimension_numbers<[2], [1], [1], [2], [0, 0, 0, 1, 1, 2], [0], [0]>} : vector<2x8x8xf32>, vector<2x8x8xf32>, vector<2x8x8xf32> -> vector<2x8x8xf32>
    "tpu.trace_stop"() : () -> ()
    %81 = tpu.concatenate %29, %46, %63, %80 in 2 : vector<2x8x8xf32>, vector<2x8x8xf32>, vector<2x8x8xf32>, vector<2x8x8xf32> -> vector<2x8x32xf32>
    %82 = vector.shape_cast %81 : vector<2x8x32xf32> to vector<16x32xf32>
    %c0_27 = arith.constant 0 : index
    %c0_28 = arith.constant 0 : index
    %83 = vector.load %arg4[%c0_27, %c0_28] : memref<32x32xf32, #tpu.memory_space<vmem>>, vector<32x32xf32>
    %c0_29 = arith.constant 0 : index
    %c0_30 = arith.constant 0 : index
    %84 = vector.load %arg5[%c0_29, %c0_30] : memref<1x32xf32, #tpu.memory_space<vmem>>, vector<1x32xf32>
    %cst_31 = arith.constant dense<0.000000e+00> : vector<16x32xf32>
    %85 = tpu.matmul %82, %83, %cst_31 {dimension_numbers = #tpu.dot_dimension_numbers<[1], [0], [0], [1], [0, 0, 1, 1], [], []>} : vector<16x32xf32>, vector<32x32xf32>, vector<16x32xf32> -> vector<16x32xf32>
    %86 = vector.broadcast %84 : vector<1x32xf32> to vector<16x32xf32>
    %87 = arith.addf %85, %86 : vector<16x32xf32>
    %88 = arith.addf %0, %87 : vector<16x32xf32>
    %c0_32 = arith.constant 0 : index
    %c0_33 = arith.constant 0 : index
    %89 = vector.load %arg6[%c0_32, %c0_33] : memref<1x32xf32, #tpu.memory_space<vmem>>, vector<1x32xf32>
    %c0_34 = arith.constant 0 : index
    %c0_35 = arith.constant 0 : index
    %90 = vector.load %arg7[%c0_34, %c0_35] : memref<1x32xf32, #tpu.memory_space<vmem>>, vector<1x32xf32>
    %cst_36 = arith.constant dense<0.000000e+00> : vector<16xf32>
    %91 = vector.multi_reduction <add>, %88, %cst_36 [1] : vector<16x32xf32> to vector<16xf32>
    %92 = vector.shape_cast %91 : vector<16xf32> to vector<16x1xf32>
    %cst_37 = arith.constant 3.200000e+01 : f32
    %93 = vector.broadcast %cst_37 : f32 to vector<16x1xf32>
    %94 = arith.divf %92, %93 : vector<16x1xf32>
    %95 = vector.broadcast %94 : vector<16x1xf32> to vector<16x32xf32>
    %96 = arith.subf %88, %95 : vector<16x32xf32>
    %97 = vector.broadcast %94 : vector<16x1xf32> to vector<16x32xf32>
    %98 = arith.subf %88, %97 : vector<16x32xf32>
    %99 = arith.mulf %96, %98 : vector<16x32xf32>
    %cst_38 = arith.constant dense<0.000000e+00> : vector<16xf32>
    %100 = vector.multi_reduction <add>, %99, %cst_38 [1] : vector<16x32xf32> to vector<16xf32>
    %101 = vector.shape_cast %100 : vector<16xf32> to vector<16x1xf32>
    %cst_39 = arith.constant 3.200000e+01 : f32
    %102 = vector.broadcast %cst_39 : f32 to vector<16x1xf32>
    %103 = arith.divf %101, %102 : vector<16x1xf32>
    %104 = vector.broadcast %94 : vector<16x1xf32> to vector<16x32xf32>
    %105 = arith.subf %88, %104 : vector<16x32xf32>
    %cst_40 = arith.constant 9.99999974E-6 : f32
    %106 = vector.broadcast %cst_40 : f32 to vector<16x1xf32>
    %107 = arith.addf %103, %106 : vector<16x1xf32>
    %108 = math.rsqrt %107 : vector<16x1xf32>
    %109 = vector.broadcast %108 : vector<16x1xf32> to vector<16x32xf32>
    %110 = arith.mulf %105, %109 : vector<16x32xf32>
    %111 = vector.broadcast %89 : vector<1x32xf32> to vector<16x32xf32>
    %112 = arith.mulf %110, %111 : vector<16x32xf32>
    %113 = vector.broadcast %90 : vector<1x32xf32> to vector<16x32xf32>
    %114 = arith.addf %112, %113 : vector<16x32xf32>
    %c0_41 = arith.constant 0 : index
    %c0_42 = arith.constant 0 : index
    %115 = vector.load %arg8[%c0_41, %c0_42] : memref<32x32xf32, #tpu.memory_space<vmem>>, vector<32x32xf32>
    %c0_43 = arith.constant 0 : index
    %c0_44 = arith.constant 0 : index
    %116 = vector.load %arg9[%c0_43, %c0_44] : memref<1x32xf32, #tpu.memory_space<vmem>>, vector<1x32xf32>
    %cst_45 = arith.constant dense<0.000000e+00> : vector<16x32xf32>
    %117 = tpu.matmul %114, %115, %cst_45 {dimension_numbers = #tpu.dot_dimension_numbers<[1], [0], [0], [1], [0, 0, 1, 1], [], []>} : vector<16x32xf32>, vector<32x32xf32>, vector<16x32xf32> -> vector<16x32xf32>
    %118 = vector.broadcast %116 : vector<1x32xf32> to vector<16x32xf32>
    %119 = arith.addf %117, %118 : vector<16x32xf32>
    %c0_46 = arith.constant 0 : index
    %c0_47 = arith.constant 0 : index
    %120 = vector.load %arg10[%c0_46, %c0_47] : memref<32x64xf32, #tpu.memory_space<vmem>>, vector<32x64xf32>
    %c0_48 = arith.constant 0 : index
    %c0_49 = arith.constant 0 : index
    %121 = vector.load %arg11[%c0_48, %c0_49] : memref<1x64xf32, #tpu.memory_space<vmem>>, vector<1x64xf32>
    %cst_50 = arith.constant dense<0.000000e+00> : vector<16x64xf32>
    %122 = tpu.matmul %1, %120, %cst_50 {dimension_numbers = #tpu.dot_dimension_numbers<[1], [0], [0], [1], [0, 0, 1, 1], [], []>} : vector<16x32xf32>, vector<32x64xf32>, vector<16x64xf32> -> vector<16x64xf32>
    %123 = vector.broadcast %121 : vector<1x64xf32> to vector<16x64xf32>
    %124 = arith.addf %122, %123 : vector<16x64xf32>
    %125 = vector.extract_strided_slice %124 {offsets = [0, 0], sizes = [16, 32], strides = [1, 1]} : vector<16x64xf32> to vector<16x32xf32>
    %126 = vector.extract_strided_slice %124 {offsets = [0, 32], sizes = [16, 32], strides = [1, 1]} : vector<16x64xf32> to vector<16x32xf32>
    %127 = vector.shape_cast %119 : vector<16x32xf32> to vector<2x8x32xf32>
    %128 = vector.shape_cast %125 : vector<16x32xf32> to vector<2x8x32xf32>
    %129 = vector.shape_cast %126 : vector<16x32xf32> to vector<2x8x32xf32>
    %130 = vector.extract_strided_slice %127 {offsets = [0, 0, 0], sizes = [2, 8, 8], strides = [1, 1, 1]} : vector<2x8x32xf32> to vector<2x8x8xf32>
    %131 = vector.extract_strided_slice %128 {offsets = [0, 0, 0], sizes = [2, 8, 8], strides = [1, 1, 1]} : vector<2x8x32xf32> to vector<2x8x8xf32>
    %132 = vector.extract_strided_slice %129 {offsets = [0, 0, 0], sizes = [2, 8, 8], strides = [1, 1, 1]} : vector<2x8x32xf32> to vector<2x8x8xf32>
    "tpu.trace_start"() <{level = 10 : i32, message = "bqd,bkd->bqk"}> : () -> ()
    %cst_51 = arith.constant dense<0.000000e+00> : vector<2x8x8xf32>
    %133 = tpu.matmul %130, %131, %cst_51 {dimension_numbers = #tpu.dot_dimension_numbers<[2], [2], [1], [1], [0, 0, 0, 1, 1, 1], [0], [0]>} : vector<2x8x8xf32>, vector<2x8x8xf32>, vector<2x8x8xf32> -> vector<2x8x8xf32>
    "tpu.trace_stop"() : () -> ()
    %cst_52 = arith.constant 0.353553385 : f32
    %134 = vector.broadcast %cst_52 : f32 to vector<2x8x8xf32>
    %135 = arith.mulf %133, %134 : vector<2x8x8xf32>
    %cst_53 = arith.constant dense<0xFF800000> : vector<2x8xf32>
    %136 = vector.multi_reduction <maximumf>, %135, %cst_53 [2] : vector<2x8x8xf32> to vector<2x8xf32>
    %137 = vector.shape_cast %136 : vector<2x8xf32> to vector<2x8x1xf32>
    %138 = vector.broadcast %137 : vector<2x8x1xf32> to vector<2x8x8xf32>
    %139 = arith.subf %135, %138 : vector<2x8x8xf32>
    %140 = math.exp %139 : vector<2x8x8xf32>
    %cst_54 = arith.constant dense<0.000000e+00> : vector<2x8xf32>
    %141 = vector.multi_reduction <add>, %140, %cst_54 [2] : vector<2x8x8xf32> to vector<2x8xf32>
    %142 = vector.shape_cast %141 : vector<2x8xf32> to vector<2x8x1xf32>
    %143 = tpu.reciprocal %142 {approx = true} : vector<2x8x1xf32> -> vector<2x8x1xf32>
    %144 = vector.broadcast %143 : vector<2x8x1xf32> to vector<2x8x8xf32>
    %145 = arith.mulf %140, %144 : vector<2x8x8xf32>
    "tpu.trace_start"() <{level = 10 : i32, message = "bqk,bkd->bqd"}> : () -> ()
    %cst_55 = arith.constant dense<0.000000e+00> : vector<2x8x8xf32>
    %146 = tpu.matmul %145, %132, %cst_55 {dimension_numbers = #tpu.dot_dimension_numbers<[2], [1], [1], [2], [0, 0, 0, 1, 1, 2], [0], [0]>} : vector<2x8x8xf32>, vector<2x8x8xf32>, vector<2x8x8xf32> -> vector<2x8x8xf32>
    "tpu.trace_stop"() : () -> ()
    %147 = vector.extract_strided_slice %127 {offsets = [0, 0, 8], sizes = [2, 8, 8], strides = [1, 1, 1]} : vector<2x8x32xf32> to vector<2x8x8xf32>
    %148 = vector.extract_strided_slice %128 {offsets = [0, 0, 8], sizes = [2, 8, 8], strides = [1, 1, 1]} : vector<2x8x32xf32> to vector<2x8x8xf32>
    %149 = vector.extract_strided_slice %129 {offsets = [0, 0, 8], sizes = [2, 8, 8], strides = [1, 1, 1]} : vector<2x8x32xf32> to vector<2x8x8xf32>
    "tpu.trace_start"() <{level = 10 : i32, message = "bqd,bkd->bqk"}> : () -> ()
    %cst_56 = arith.constant dense<0.000000e+00> : vector<2x8x8xf32>
    %150 = tpu.matmul %147, %148, %cst_56 {dimension_numbers = #tpu.dot_dimension_numbers<[2], [2], [1], [1], [0, 0, 0, 1, 1, 1], [0], [0]>} : vector<2x8x8xf32>, vector<2x8x8xf32>, vector<2x8x8xf32> -> vector<2x8x8xf32>
    "tpu.trace_stop"() : () -> ()
    %cst_57 = arith.constant 0.353553385 : f32
    %151 = vector.broadcast %cst_57 : f32 to vector<2x8x8xf32>
    %152 = arith.mulf %150, %151 : vector<2x8x8xf32>
    %cst_58 = arith.constant dense<0xFF800000> : vector<2x8xf32>
    %153 = vector.multi_reduction <maximumf>, %152, %cst_58 [2] : vector<2x8x8xf32> to vector<2x8xf32>
    %154 = vector.shape_cast %153 : vector<2x8xf32> to vector<2x8x1xf32>
    %155 = vector.broadcast %154 : vector<2x8x1xf32> to vector<2x8x8xf32>
    %156 = arith.subf %152, %155 : vector<2x8x8xf32>
    %157 = math.exp %156 : vector<2x8x8xf32>
    %cst_59 = arith.constant dense<0.000000e+00> : vector<2x8xf32>
    %158 = vector.multi_reduction <add>, %157, %cst_59 [2] : vector<2x8x8xf32> to vector<2x8xf32>
    %159 = vector.shape_cast %158 : vector<2x8xf32> to vector<2x8x1xf32>
    %160 = tpu.reciprocal %159 {approx = true} : vector<2x8x1xf32> -> vector<2x8x1xf32>
    %161 = vector.broadcast %160 : vector<2x8x1xf32> to vector<2x8x8xf32>
    %162 = arith.mulf %157, %161 : vector<2x8x8xf32>
    "tpu.trace_start"() <{level = 10 : i32, message = "bqk,bkd->bqd"}> : () -> ()
    %cst_60 = arith.constant dense<0.000000e+00> : vector<2x8x8xf32>
    %163 = tpu.matmul %162, %149, %cst_60 {dimension_numbers = #tpu.dot_dimension_numbers<[2], [1], [1], [2], [0, 0, 0, 1, 1, 2], [0], [0]>} : vector<2x8x8xf32>, vector<2x8x8xf32>, vector<2x8x8xf32> -> vector<2x8x8xf32>
    "tpu.trace_stop"() : () -> ()
    %164 = vector.extract_strided_slice %127 {offsets = [0, 0, 16], sizes = [2, 8, 8], strides = [1, 1, 1]} : vector<2x8x32xf32> to vector<2x8x8xf32>
    %165 = vector.extract_strided_slice %128 {offsets = [0, 0, 16], sizes = [2, 8, 8], strides = [1, 1, 1]} : vector<2x8x32xf32> to vector<2x8x8xf32>
    %166 = vector.extract_strided_slice %129 {offsets = [0, 0, 16], sizes = [2, 8, 8], strides = [1, 1, 1]} : vector<2x8x32xf32> to vector<2x8x8xf32>
    "tpu.trace_start"() <{level = 10 : i32, message = "bqd,bkd->bqk"}> : () -> ()
    %cst_61 = arith.constant dense<0.000000e+00> : vector<2x8x8xf32>
    %167 = tpu.matmul %164, %165, %cst_61 {dimension_numbers = #tpu.dot_dimension_numbers<[2], [2], [1], [1], [0, 0, 0, 1, 1, 1], [0], [0]>} : vector<2x8x8xf32>, vector<2x8x8xf32>, vector<2x8x8xf32> -> vector<2x8x8xf32>
    "tpu.trace_stop"() : () -> ()
    %cst_62 = arith.constant 0.353553385 : f32
    %168 = vector.broadcast %cst_62 : f32 to vector<2x8x8xf32>
    %169 = arith.mulf %167, %168 : vector<2x8x8xf32>
    %cst_63 = arith.constant dense<0xFF800000> : vector<2x8xf32>
    %170 = vector.multi_reduction <maximumf>, %169, %cst_63 [2] : vector<2x8x8xf32> to vector<2x8xf32>
    %171 = vector.shape_cast %170 : vector<2x8xf32> to vector<2x8x1xf32>
    %172 = vector.broadcast %171 : vector<2x8x1xf32> to vector<2x8x8xf32>
    %173 = arith.subf %169, %172 : vector<2x8x8xf32>
    %174 = math.exp %173 : vector<2x8x8xf32>
    %cst_64 = arith.constant dense<0.000000e+00> : vector<2x8xf32>
    %175 = vector.multi_reduction <add>, %174, %cst_64 [2] : vector<2x8x8xf32> to vector<2x8xf32>
    %176 = vector.shape_cast %175 : vector<2x8xf32> to vector<2x8x1xf32>
    %177 = tpu.reciprocal %176 {approx = true} : vector<2x8x1xf32> -> vector<2x8x1xf32>
    %178 = vector.broadcast %177 : vector<2x8x1xf32> to vector<2x8x8xf32>
    %179 = arith.mulf %174, %178 : vector<2x8x8xf32>
    "tpu.trace_start"() <{level = 10 : i32, message = "bqk,bkd->bqd"}> : () -> ()
    %cst_65 = arith.constant dense<0.000000e+00> : vector<2x8x8xf32>
    %180 = tpu.matmul %179, %166, %cst_65 {dimension_numbers = #tpu.dot_dimension_numbers<[2], [1], [1], [2], [0, 0, 0, 1, 1, 2], [0], [0]>} : vector<2x8x8xf32>, vector<2x8x8xf32>, vector<2x8x8xf32> -> vector<2x8x8xf32>
    "tpu.trace_stop"() : () -> ()
    %181 = vector.extract_strided_slice %127 {offsets = [0, 0, 24], sizes = [2, 8, 8], strides = [1, 1, 1]} : vector<2x8x32xf32> to vector<2x8x8xf32>
    %182 = vector.extract_strided_slice %128 {offsets = [0, 0, 24], sizes = [2, 8, 8], strides = [1, 1, 1]} : vector<2x8x32xf32> to vector<2x8x8xf32>
    %183 = vector.extract_strided_slice %129 {offsets = [0, 0, 24], sizes = [2, 8, 8], strides = [1, 1, 1]} : vector<2x8x32xf32> to vector<2x8x8xf32>
    "tpu.trace_start"() <{level = 10 : i32, message = "bqd,bkd->bqk"}> : () -> ()
    %cst_66 = arith.constant dense<0.000000e+00> : vector<2x8x8xf32>
    %184 = tpu.matmul %181, %182, %cst_66 {dimension_numbers = #tpu.dot_dimension_numbers<[2], [2], [1], [1], [0, 0, 0, 1, 1, 1], [0], [0]>} : vector<2x8x8xf32>, vector<2x8x8xf32>, vector<2x8x8xf32> -> vector<2x8x8xf32>
    "tpu.trace_stop"() : () -> ()
    %cst_67 = arith.constant 0.353553385 : f32
    %185 = vector.broadcast %cst_67 : f32 to vector<2x8x8xf32>
    %186 = arith.mulf %184, %185 : vector<2x8x8xf32>
    %cst_68 = arith.constant dense<0xFF800000> : vector<2x8xf32>
    %187 = vector.multi_reduction <maximumf>, %186, %cst_68 [2] : vector<2x8x8xf32> to vector<2x8xf32>
    %188 = vector.shape_cast %187 : vector<2x8xf32> to vector<2x8x1xf32>
    %189 = vector.broadcast %188 : vector<2x8x1xf32> to vector<2x8x8xf32>
    %190 = arith.subf %186, %189 : vector<2x8x8xf32>
    %191 = math.exp %190 : vector<2x8x8xf32>
    %cst_69 = arith.constant dense<0.000000e+00> : vector<2x8xf32>
    %192 = vector.multi_reduction <add>, %191, %cst_69 [2] : vector<2x8x8xf32> to vector<2x8xf32>
    %193 = vector.shape_cast %192 : vector<2x8xf32> to vector<2x8x1xf32>
    %194 = tpu.reciprocal %193 {approx = true} : vector<2x8x1xf32> -> vector<2x8x1xf32>
    %195 = vector.broadcast %194 : vector<2x8x1xf32> to vector<2x8x8xf32>
    %196 = arith.mulf %191, %195 : vector<2x8x8xf32>
    "tpu.trace_start"() <{level = 10 : i32, message = "bqk,bkd->bqd"}> : () -> ()
    %cst_70 = arith.constant dense<0.000000e+00> : vector<2x8x8xf32>
    %197 = tpu.matmul %196, %183, %cst_70 {dimension_numbers = #tpu.dot_dimension_numbers<[2], [1], [1], [2], [0, 0, 0, 1, 1, 2], [0], [0]>} : vector<2x8x8xf32>, vector<2x8x8xf32>, vector<2x8x8xf32> -> vector<2x8x8xf32>
    "tpu.trace_stop"() : () -> ()
    %198 = tpu.concatenate %146, %163, %180, %197 in 2 : vector<2x8x8xf32>, vector<2x8x8xf32>, vector<2x8x8xf32>, vector<2x8x8xf32> -> vector<2x8x32xf32>
    %199 = vector.shape_cast %198 : vector<2x8x32xf32> to vector<16x32xf32>
    %c0_71 = arith.constant 0 : index
    %c0_72 = arith.constant 0 : index
    %200 = vector.load %arg12[%c0_71, %c0_72] : memref<32x32xf32, #tpu.memory_space<vmem>>, vector<32x32xf32>
    %c0_73 = arith.constant 0 : index
    %c0_74 = arith.constant 0 : index
    %201 = vector.load %arg13[%c0_73, %c0_74] : memref<1x32xf32, #tpu.memory_space<vmem>>, vector<1x32xf32>
    %cst_75 = arith.constant dense<0.000000e+00> : vector<16x32xf32>
    %202 = tpu.matmul %199, %200, %cst_75 {dimension_numbers = #tpu.dot_dimension_numbers<[1], [0], [0], [1], [0, 0, 1, 1], [], []>} : vector<16x32xf32>, vector<32x32xf32>, vector<16x32xf32> -> vector<16x32xf32>
    %203 = vector.broadcast %201 : vector<1x32xf32> to vector<16x32xf32>
    %204 = arith.addf %202, %203 : vector<16x32xf32>
    %205 = arith.addf %114, %204 : vector<16x32xf32>
    %c0_76 = arith.constant 0 : index
    %c0_77 = arith.constant 0 : index
    %206 = vector.load %arg14[%c0_76, %c0_77] : memref<1x32xf32, #tpu.memory_space<vmem>>, vector<1x32xf32>
    %c0_78 = arith.constant 0 : index
    %c0_79 = arith.constant 0 : index
    %207 = vector.load %arg15[%c0_78, %c0_79] : memref<1x32xf32, #tpu.memory_space<vmem>>, vector<1x32xf32>
    %cst_80 = arith.constant dense<0.000000e+00> : vector<16xf32>
    %208 = vector.multi_reduction <add>, %205, %cst_80 [1] : vector<16x32xf32> to vector<16xf32>
    %209 = vector.shape_cast %208 : vector<16xf32> to vector<16x1xf32>
    %cst_81 = arith.constant 3.200000e+01 : f32
    %210 = vector.broadcast %cst_81 : f32 to vector<16x1xf32>
    %211 = arith.divf %209, %210 : vector<16x1xf32>
    %212 = vector.broadcast %211 : vector<16x1xf32> to vector<16x32xf32>
    %213 = arith.subf %205, %212 : vector<16x32xf32>
    %214 = vector.broadcast %211 : vector<16x1xf32> to vector<16x32xf32>
    %215 = arith.subf %205, %214 : vector<16x32xf32>
    %216 = arith.mulf %213, %215 : vector<16x32xf32>
    %cst_82 = arith.constant dense<0.000000e+00> : vector<16xf32>
    %217 = vector.multi_reduction <add>, %216, %cst_82 [1] : vector<16x32xf32> to vector<16xf32>
    %218 = vector.shape_cast %217 : vector<16xf32> to vector<16x1xf32>
    %cst_83 = arith.constant 3.200000e+01 : f32
    %219 = vector.broadcast %cst_83 : f32 to vector<16x1xf32>
    %220 = arith.divf %218, %219 : vector<16x1xf32>
    %221 = vector.broadcast %211 : vector<16x1xf32> to vector<16x32xf32>
    %222 = arith.subf %205, %221 : vector<16x32xf32>
    %cst_84 = arith.constant 9.99999974E-6 : f32
    %223 = vector.broadcast %cst_84 : f32 to vector<16x1xf32>
    %224 = arith.addf %220, %223 : vector<16x1xf32>
    %225 = math.rsqrt %224 : vector<16x1xf32>
    %226 = vector.broadcast %225 : vector<16x1xf32> to vector<16x32xf32>
    %227 = arith.mulf %222, %226 : vector<16x32xf32>
    %228 = vector.broadcast %206 : vector<1x32xf32> to vector<16x32xf32>
    %229 = arith.mulf %227, %228 : vector<16x32xf32>
    %230 = vector.broadcast %207 : vector<1x32xf32> to vector<16x32xf32>
    %231 = arith.addf %229, %230 : vector<16x32xf32>
    %c0_85 = arith.constant 0 : index
    %c0_86 = arith.constant 0 : index
    %232 = vector.load %arg16[%c0_85, %c0_86] : memref<32x64xf32, #tpu.memory_space<vmem>>, vector<32x64xf32>
    %c0_87 = arith.constant 0 : index
    %c0_88 = arith.constant 0 : index
    %233 = vector.load %arg17[%c0_87, %c0_88] : memref<1x64xf32, #tpu.memory_space<vmem>>, vector<1x64xf32>
    %cst_89 = arith.constant dense<0.000000e+00> : vector<16x64xf32>
    %234 = tpu.matmul %231, %232, %cst_89 {dimension_numbers = #tpu.dot_dimension_numbers<[1], [0], [0], [1], [0, 0, 1, 1], [], []>} : vector<16x32xf32>, vector<32x64xf32>, vector<16x64xf32> -> vector<16x64xf32>
    %235 = vector.broadcast %233 : vector<1x64xf32> to vector<16x64xf32>
    %236 = arith.addf %234, %235 : vector<16x64xf32>
    %cst_90 = arith.constant 0.000000e+00 : f32
    %237 = vector.broadcast %cst_90 : f32 to vector<16x64xf32>
    %238 = arith.maximumf %236, %237 : vector<16x64xf32>
    %c0_91 = arith.constant 0 : index
    %c0_92 = arith.constant 0 : index
    %239 = vector.load %arg18[%c0_91, %c0_92] : memref<64x32xf32, #tpu.memory_space<vmem>>, vector<64x32xf32>
    %c0_93 = arith.constant 0 : index
    %c0_94 = arith.constant 0 : index
    %240 = vector.load %arg19[%c0_93, %c0_94] : memref<1x32xf32, #tpu.memory_space<vmem>>, vector<1x32xf32>
    %cst_95 = arith.constant dense<0.000000e+00> : vector<16x32xf32>
    %241 = tpu.matmul %238, %239, %cst_95 {dimension_numbers = #tpu.dot_dimension_numbers<[1], [0], [0], [1], [0, 0, 1, 1], [], []>} : vector<16x64xf32>, vector<64x32xf32>, vector<16x32xf32> -> vector<16x32xf32>
    %242 = vector.broadcast %240 : vector<1x32xf32> to vector<16x32xf32>
    %243 = arith.addf %241, %242 : vector<16x32xf32>
    %244 = arith.addf %231, %243 : vector<16x32xf32>
    %c0_96 = arith.constant 0 : index
    %c0_97 = arith.constant 0 : index
    %245 = vector.load %arg20[%c0_96, %c0_97] : memref<1x32xf32, #tpu.memory_space<vmem>>, vector<1x32xf32>
    %c0_98 = arith.constant 0 : index
    %c0_99 = arith.constant 0 : index
    %246 = vector.load %arg21[%c0_98, %c0_99] : memref<1x32xf32, #tpu.memory_space<vmem>>, vector<1x32xf32>
    %cst_100 = arith.constant dense<0.000000e+00> : vector<16xf32>
    %247 = vector.multi_reduction <add>, %244, %cst_100 [1] : vector<16x32xf32> to vector<16xf32>
    %248 = vector.shape_cast %247 : vector<16xf32> to vector<16x1xf32>
    %cst_101 = arith.constant 3.200000e+01 : f32
    %249 = vector.broadcast %cst_101 : f32 to vector<16x1xf32>
    %250 = arith.divf %248, %249 : vector<16x1xf32>
    %251 = vector.broadcast %250 : vector<16x1xf32> to vector<16x32xf32>
    %252 = arith.subf %244, %251 : vector<16x32xf32>
    %253 = vector.broadcast %250 : vector<16x1xf32> to vector<16x32xf32>
    %254 = arith.subf %244, %253 : vector<16x32xf32>
    %255 = arith.mulf %252, %254 : vector<16x32xf32>
    %cst_102 = arith.constant dense<0.000000e+00> : vector<16xf32>
    %256 = vector.multi_reduction <add>, %255, %cst_102 [1] : vector<16x32xf32> to vector<16xf32>
    %257 = vector.shape_cast %256 : vector<16xf32> to vector<16x1xf32>
    %cst_103 = arith.constant 3.200000e+01 : f32
    %258 = vector.broadcast %cst_103 : f32 to vector<16x1xf32>
    %259 = arith.divf %257, %258 : vector<16x1xf32>
    %260 = vector.broadcast %250 : vector<16x1xf32> to vector<16x32xf32>
    %261 = arith.subf %244, %260 : vector<16x32xf32>
    %cst_104 = arith.constant 9.99999974E-6 : f32
    %262 = vector.broadcast %cst_104 : f32 to vector<16x1xf32>
    %263 = arith.addf %259, %262 : vector<16x1xf32>
    %264 = math.rsqrt %263 : vector<16x1xf32>
    %265 = vector.broadcast %264 : vector<16x1xf32> to vector<16x32xf32>
    %266 = arith.mulf %261, %265 : vector<16x32xf32>
    %267 = vector.broadcast %245 : vector<1x32xf32> to vector<16x32xf32>
    %268 = arith.mulf %266, %267 : vector<16x32xf32>
    %269 = vector.broadcast %246 : vector<1x32xf32> to vector<16x32xf32>
    %270 = arith.addf %268, %269 : vector<16x32xf32>
    %c0_105 = arith.constant 0 : index
    %c0_106 = arith.constant 0 : index
    %271 = vector.load %arg22[%c0_105, %c0_106] : memref<16x32xf32, #tpu.memory_space<vmem>>, vector<16x32xf32>
    tpu.vector_store %arg22[%c0_105, %c0_106], %270 {strides = array<i32>} : memref<16x32xf32, #tpu.memory_space<vmem>>, vector<16x32xf32>,
    return
  }
}

module attributes {stable_mosaic.version = 11 : i64} {
  func.func @_encoder_layer_kernel(%arg0: memref<16x32xf32, #tpu.memory_space<vmem>>, %arg1: memref<32x96xf32, #tpu.memory_space<vmem>>, %arg2: memref<1x96xf32, #tpu.memory_space<vmem>>, %arg3: memref<32x32xf32, #tpu.memory_space<vmem>>, %arg4: memref<1x32xf32, #tpu.memory_space<vmem>>, %arg5: memref<1x32xf32, #tpu.memory_space<vmem>>, %arg6: memref<1x32xf32, #tpu.memory_space<vmem>>, %arg7: memref<32x64xf32, #tpu.memory_space<vmem>>, %arg8: memref<1x64xf32, #tpu.memory_space<vmem>>, %arg9: memref<64x32xf32, #tpu.memory_space<vmem>>, %arg10: memref<1x32xf32, #tpu.memory_space<vmem>>, %arg11: memref<1x32xf32, #tpu.memory_space<vmem>>, %arg12: memref<1x32xf32, #tpu.memory_space<vmem>>, %arg13: memref<16x32xf32, #tpu.memory_space<vmem>>) attributes {dimension_semantics = [], scalar_prefetch = 0 : i64, scratch_operands = 0 : i64, tpu.core_type = #tpu.core_type<tc>} {
    %c0 = arith.constant 0 : index
    %c0_0 = arith.constant 0 : index
    %0 = vector.load %arg0[%c0, %c0_0] : memref<16x32xf32, #tpu.memory_space<vmem>>, vector<16x32xf32>
    %c0_1 = arith.constant 0 : index
    %c0_2 = arith.constant 0 : index
    %1 = vector.load %arg1[%c0_1, %c0_2] : memref<32x96xf32, #tpu.memory_space<vmem>>, vector<32x96xf32>
    %c0_3 = arith.constant 0 : index
    %c0_4 = arith.constant 0 : index
    %2 = vector.load %arg2[%c0_3, %c0_4] : memref<1x96xf32, #tpu.memory_space<vmem>>, vector<1x96xf32>
    %cst = arith.constant dense<0.000000e+00> : vector<16x96xf32>
    %3 = tpu.matmul %0, %1, %cst {dimension_numbers = #tpu.dot_dimension_numbers<[1], [0], [0], [1], [0, 0, 1, 1], [], []>} : vector<16x32xf32>, vector<32x96xf32>, vector<16x96xf32> -> vector<16x96xf32>
    %4 = vector.broadcast %2 : vector<1x96xf32> to vector<16x96xf32>
    %5 = arith.addf %3, %4 : vector<16x96xf32>
    %6 = vector.extract_strided_slice %5 {offsets = [0, 0], sizes = [16, 32], strides = [1, 1]} : vector<16x96xf32> to vector<16x32xf32>
    %7 = vector.extract_strided_slice %5 {offsets = [0, 32], sizes = [16, 32], strides = [1, 1]} : vector<16x96xf32> to vector<16x32xf32>
    %8 = vector.extract_strided_slice %5 {offsets = [0, 64], sizes = [16, 32], strides = [1, 1]} : vector<16x96xf32> to vector<16x32xf32>
    %9 = vector.shape_cast %6 : vector<16x32xf32> to vector<2x8x32xf32>
    %10 = vector.shape_cast %7 : vector<16x32xf32> to vector<2x8x32xf32>
    %11 = vector.shape_cast %8 : vector<16x32xf32> to vector<2x8x32xf32>
    %12 = vector.extract_strided_slice %9 {offsets = [0, 0, 0], sizes = [2, 8, 8], strides = [1, 1, 1]} : vector<2x8x32xf32> to vector<2x8x8xf32>
    %13 = vector.extract_strided_slice %10 {offsets = [0, 0, 0], sizes = [2, 8, 8], strides = [1, 1, 1]} : vector<2x8x32xf32> to vector<2x8x8xf32>
    %14 = vector.extract_strided_slice %11 {offsets = [0, 0, 0], sizes = [2, 8, 8], strides = [1, 1, 1]} : vector<2x8x32xf32> to vector<2x8x8xf32>
    "tpu.trace_start"() <{level = 10 : i32, message = "bqd,bkd->bqk"}> : () -> ()
    %cst_5 = arith.constant dense<0.000000e+00> : vector<2x8x8xf32>
    %15 = tpu.matmul %12, %13, %cst_5 {dimension_numbers = #tpu.dot_dimension_numbers<[2], [2], [1], [1], [0, 0, 0, 1, 1, 1], [0], [0]>} : vector<2x8x8xf32>, vector<2x8x8xf32>, vector<2x8x8xf32> -> vector<2x8x8xf32>
    "tpu.trace_stop"() : () -> ()
    %cst_6 = arith.constant 0.353553385 : f32
    %16 = vector.broadcast %cst_6 : f32 to vector<2x8x8xf32>
    %17 = arith.mulf %15, %16 : vector<2x8x8xf32>
    %cst_7 = arith.constant dense<0xFF800000> : vector<2x8xf32>
    %18 = vector.multi_reduction <maximumf>, %17, %cst_7 [2] : vector<2x8x8xf32> to vector<2x8xf32>
    %19 = vector.shape_cast %18 : vector<2x8xf32> to vector<2x8x1xf32>
    %20 = vector.broadcast %19 : vector<2x8x1xf32> to vector<2x8x8xf32>
    %21 = arith.subf %17, %20 : vector<2x8x8xf32>
    %22 = math.exp %21 : vector<2x8x8xf32>
    %cst_8 = arith.constant dense<0.000000e+00> : vector<2x8xf32>
    %23 = vector.multi_reduction <add>, %22, %cst_8 [2] : vector<2x8x8xf32> to vector<2x8xf32>
    %24 = vector.shape_cast %23 : vector<2x8xf32> to vector<2x8x1xf32>
    %25 = tpu.reciprocal %24 {approx = true} : vector<2x8x1xf32> -> vector<2x8x1xf32>
    %26 = vector.broadcast %25 : vector<2x8x1xf32> to vector<2x8x8xf32>
    %27 = arith.mulf %22, %26 : vector<2x8x8xf32>
    "tpu.trace_start"() <{level = 10 : i32, message = "bqk,bkd->bqd"}> : () -> ()
    %cst_9 = arith.constant dense<0.000000e+00> : vector<2x8x8xf32>
    %28 = tpu.matmul %27, %14, %cst_9 {dimension_numbers = #tpu.dot_dimension_numbers<[2], [1], [1], [2], [0, 0, 0, 1, 1, 2], [0], [0]>} : vector<2x8x8xf32>, vector<2x8x8xf32>, vector<2x8x8xf32> -> vector<2x8x8xf32>
    "tpu.trace_stop"() : () -> ()
    %29 = vector.extract_strided_slice %9 {offsets = [0, 0, 8], sizes = [2, 8, 8], strides = [1, 1, 1]} : vector<2x8x32xf32> to vector<2x8x8xf32>
    %30 = vector.extract_strided_slice %10 {offsets = [0, 0, 8], sizes = [2, 8, 8], strides = [1, 1, 1]} : vector<2x8x32xf32> to vector<2x8x8xf32>
    %31 = vector.extract_strided_slice %11 {offsets = [0, 0, 8], sizes = [2, 8, 8], strides = [1, 1, 1]} : vector<2x8x32xf32> to vector<2x8x8xf32>
    "tpu.trace_start"() <{level = 10 : i32, message = "bqd,bkd->bqk"}> : () -> ()
    %cst_10 = arith.constant dense<0.000000e+00> : vector<2x8x8xf32>
    %32 = tpu.matmul %29, %30, %cst_10 {dimension_numbers = #tpu.dot_dimension_numbers<[2], [2], [1], [1], [0, 0, 0, 1, 1, 1], [0], [0]>} : vector<2x8x8xf32>, vector<2x8x8xf32>, vector<2x8x8xf32> -> vector<2x8x8xf32>
    "tpu.trace_stop"() : () -> ()
    %cst_11 = arith.constant 0.353553385 : f32
    %33 = vector.broadcast %cst_11 : f32 to vector<2x8x8xf32>
    %34 = arith.mulf %32, %33 : vector<2x8x8xf32>
    %cst_12 = arith.constant dense<0xFF800000> : vector<2x8xf32>
    %35 = vector.multi_reduction <maximumf>, %34, %cst_12 [2] : vector<2x8x8xf32> to vector<2x8xf32>
    %36 = vector.shape_cast %35 : vector<2x8xf32> to vector<2x8x1xf32>
    %37 = vector.broadcast %36 : vector<2x8x1xf32> to vector<2x8x8xf32>
    %38 = arith.subf %34, %37 : vector<2x8x8xf32>
    %39 = math.exp %38 : vector<2x8x8xf32>
    %cst_13 = arith.constant dense<0.000000e+00> : vector<2x8xf32>
    %40 = vector.multi_reduction <add>, %39, %cst_13 [2] : vector<2x8x8xf32> to vector<2x8xf32>
    %41 = vector.shape_cast %40 : vector<2x8xf32> to vector<2x8x1xf32>
    %42 = tpu.reciprocal %41 {approx = true} : vector<2x8x1xf32> -> vector<2x8x1xf32>
    %43 = vector.broadcast %42 : vector<2x8x1xf32> to vector<2x8x8xf32>
    %44 = arith.mulf %39, %43 : vector<2x8x8xf32>
    "tpu.trace_start"() <{level = 10 : i32, message = "bqk,bkd->bqd"}> : () -> ()
    %cst_14 = arith.constant dense<0.000000e+00> : vector<2x8x8xf32>
    %45 = tpu.matmul %44, %31, %cst_14 {dimension_numbers = #tpu.dot_dimension_numbers<[2], [1], [1], [2], [0, 0, 0, 1, 1, 2], [0], [0]>} : vector<2x8x8xf32>, vector<2x8x8xf32>, vector<2x8x8xf32> -> vector<2x8x8xf32>
    "tpu.trace_stop"() : () -> ()
    %46 = vector.extract_strided_slice %9 {offsets = [0, 0, 16], sizes = [2, 8, 8], strides = [1, 1, 1]} : vector<2x8x32xf32> to vector<2x8x8xf32>
    %47 = vector.extract_strided_slice %10 {offsets = [0, 0, 16], sizes = [2, 8, 8], strides = [1, 1, 1]} : vector<2x8x32xf32> to vector<2x8x8xf32>
    %48 = vector.extract_strided_slice %11 {offsets = [0, 0, 16], sizes = [2, 8, 8], strides = [1, 1, 1]} : vector<2x8x32xf32> to vector<2x8x8xf32>
    "tpu.trace_start"() <{level = 10 : i32, message = "bqd,bkd->bqk"}> : () -> ()
    %cst_15 = arith.constant dense<0.000000e+00> : vector<2x8x8xf32>
    %49 = tpu.matmul %46, %47, %cst_15 {dimension_numbers = #tpu.dot_dimension_numbers<[2], [2], [1], [1], [0, 0, 0, 1, 1, 1], [0], [0]>} : vector<2x8x8xf32>, vector<2x8x8xf32>, vector<2x8x8xf32> -> vector<2x8x8xf32>
    "tpu.trace_stop"() : () -> ()
    %cst_16 = arith.constant 0.353553385 : f32
    %50 = vector.broadcast %cst_16 : f32 to vector<2x8x8xf32>
    %51 = arith.mulf %49, %50 : vector<2x8x8xf32>
    %cst_17 = arith.constant dense<0xFF800000> : vector<2x8xf32>
    %52 = vector.multi_reduction <maximumf>, %51, %cst_17 [2] : vector<2x8x8xf32> to vector<2x8xf32>
    %53 = vector.shape_cast %52 : vector<2x8xf32> to vector<2x8x1xf32>
    %54 = vector.broadcast %53 : vector<2x8x1xf32> to vector<2x8x8xf32>
    %55 = arith.subf %51, %54 : vector<2x8x8xf32>
    %56 = math.exp %55 : vector<2x8x8xf32>
    %cst_18 = arith.constant dense<0.000000e+00> : vector<2x8xf32>
    %57 = vector.multi_reduction <add>, %56, %cst_18 [2] : vector<2x8x8xf32> to vector<2x8xf32>
    %58 = vector.shape_cast %57 : vector<2x8xf32> to vector<2x8x1xf32>
    %59 = tpu.reciprocal %58 {approx = true} : vector<2x8x1xf32> -> vector<2x8x1xf32>
    %60 = vector.broadcast %59 : vector<2x8x1xf32> to vector<2x8x8xf32>
    %61 = arith.mulf %56, %60 : vector<2x8x8xf32>
    "tpu.trace_start"() <{level = 10 : i32, message = "bqk,bkd->bqd"}> : () -> ()
    %cst_19 = arith.constant dense<0.000000e+00> : vector<2x8x8xf32>
    %62 = tpu.matmul %61, %48, %cst_19 {dimension_numbers = #tpu.dot_dimension_numbers<[2], [1], [1], [2], [0, 0, 0, 1, 1, 2], [0], [0]>} : vector<2x8x8xf32>, vector<2x8x8xf32>, vector<2x8x8xf32> -> vector<2x8x8xf32>
    "tpu.trace_stop"() : () -> ()
    %63 = vector.extract_strided_slice %9 {offsets = [0, 0, 24], sizes = [2, 8, 8], strides = [1, 1, 1]} : vector<2x8x32xf32> to vector<2x8x8xf32>
    %64 = vector.extract_strided_slice %10 {offsets = [0, 0, 24], sizes = [2, 8, 8], strides = [1, 1, 1]} : vector<2x8x32xf32> to vector<2x8x8xf32>
    %65 = vector.extract_strided_slice %11 {offsets = [0, 0, 24], sizes = [2, 8, 8], strides = [1, 1, 1]} : vector<2x8x32xf32> to vector<2x8x8xf32>
    "tpu.trace_start"() <{level = 10 : i32, message = "bqd,bkd->bqk"}> : () -> ()
    %cst_20 = arith.constant dense<0.000000e+00> : vector<2x8x8xf32>
    %66 = tpu.matmul %63, %64, %cst_20 {dimension_numbers = #tpu.dot_dimension_numbers<[2], [2], [1], [1], [0, 0, 0, 1, 1, 1], [0], [0]>} : vector<2x8x8xf32>, vector<2x8x8xf32>, vector<2x8x8xf32> -> vector<2x8x8xf32>
    "tpu.trace_stop"() : () -> ()
    %cst_21 = arith.constant 0.353553385 : f32
    %67 = vector.broadcast %cst_21 : f32 to vector<2x8x8xf32>
    %68 = arith.mulf %66, %67 : vector<2x8x8xf32>
    %cst_22 = arith.constant dense<0xFF800000> : vector<2x8xf32>
    %69 = vector.multi_reduction <maximumf>, %68, %cst_22 [2] : vector<2x8x8xf32> to vector<2x8xf32>
    %70 = vector.shape_cast %69 : vector<2x8xf32> to vector<2x8x1xf32>
    %71 = vector.broadcast %70 : vector<2x8x1xf32> to vector<2x8x8xf32>
    %72 = arith.subf %68, %71 : vector<2x8x8xf32>
    %73 = math.exp %72 : vector<2x8x8xf32>
    %cst_23 = arith.constant dense<0.000000e+00> : vector<2x8xf32>
    %74 = vector.multi_reduction <add>, %73, %cst_23 [2] : vector<2x8x8xf32> to vector<2x8xf32>
    %75 = vector.shape_cast %74 : vector<2x8xf32> to vector<2x8x1xf32>
    %76 = tpu.reciprocal %75 {approx = true} : vector<2x8x1xf32> -> vector<2x8x1xf32>
    %77 = vector.broadcast %76 : vector<2x8x1xf32> to vector<2x8x8xf32>
    %78 = arith.mulf %73, %77 : vector<2x8x8xf32>
    "tpu.trace_start"() <{level = 10 : i32, message = "bqk,bkd->bqd"}> : () -> ()
    %cst_24 = arith.constant dense<0.000000e+00> : vector<2x8x8xf32>
    %79 = tpu.matmul %78, %65, %cst_24 {dimension_numbers = #tpu.dot_dimension_numbers<[2], [1], [1], [2], [0, 0, 0, 1, 1, 2], [0], [0]>} : vector<2x8x8xf32>, vector<2x8x8xf32>, vector<2x8x8xf32> -> vector<2x8x8xf32>
    "tpu.trace_stop"() : () -> ()
    %80 = tpu.concatenate %28, %45, %62, %79 in 2 : vector<2x8x8xf32>, vector<2x8x8xf32>, vector<2x8x8xf32>, vector<2x8x8xf32> -> vector<2x8x32xf32>
    %81 = vector.shape_cast %80 : vector<2x8x32xf32> to vector<16x32xf32>
    %c0_25 = arith.constant 0 : index
    %c0_26 = arith.constant 0 : index
    %82 = vector.load %arg3[%c0_25, %c0_26] : memref<32x32xf32, #tpu.memory_space<vmem>>, vector<32x32xf32>
    %c0_27 = arith.constant 0 : index
    %c0_28 = arith.constant 0 : index
    %83 = vector.load %arg4[%c0_27, %c0_28] : memref<1x32xf32, #tpu.memory_space<vmem>>, vector<1x32xf32>
    %cst_29 = arith.constant dense<0.000000e+00> : vector<16x32xf32>
    %84 = tpu.matmul %81, %82, %cst_29 {dimension_numbers = #tpu.dot_dimension_numbers<[1], [0], [0], [1], [0, 0, 1, 1], [], []>} : vector<16x32xf32>, vector<32x32xf32>, vector<16x32xf32> -> vector<16x32xf32>
    %85 = vector.broadcast %83 : vector<1x32xf32> to vector<16x32xf32>
    %86 = arith.addf %84, %85 : vector<16x32xf32>
    %87 = arith.addf %0, %86 : vector<16x32xf32>
    %c0_30 = arith.constant 0 : index
    %c0_31 = arith.constant 0 : index
    %88 = vector.load %arg5[%c0_30, %c0_31] : memref<1x32xf32, #tpu.memory_space<vmem>>, vector<1x32xf32>
    %c0_32 = arith.constant 0 : index
    %c0_33 = arith.constant 0 : index
    %89 = vector.load %arg6[%c0_32, %c0_33] : memref<1x32xf32, #tpu.memory_space<vmem>>, vector<1x32xf32>
    %cst_34 = arith.constant dense<0.000000e+00> : vector<16xf32>
    %90 = vector.multi_reduction <add>, %87, %cst_34 [1] : vector<16x32xf32> to vector<16xf32>
    %91 = vector.shape_cast %90 : vector<16xf32> to vector<16x1xf32>
    %cst_35 = arith.constant 3.200000e+01 : f32
    %92 = vector.broadcast %cst_35 : f32 to vector<16x1xf32>
    %93 = arith.divf %91, %92 : vector<16x1xf32>
    %94 = vector.broadcast %93 : vector<16x1xf32> to vector<16x32xf32>
    %95 = arith.subf %87, %94 : vector<16x32xf32>
    %96 = vector.broadcast %93 : vector<16x1xf32> to vector<16x32xf32>
    %97 = arith.subf %87, %96 : vector<16x32xf32>
    %98 = arith.mulf %95, %97 : vector<16x32xf32>
    %cst_36 = arith.constant dense<0.000000e+00> : vector<16xf32>
    %99 = vector.multi_reduction <add>, %98, %cst_36 [1] : vector<16x32xf32> to vector<16xf32>
    %100 = vector.shape_cast %99 : vector<16xf32> to vector<16x1xf32>
    %cst_37 = arith.constant 3.200000e+01 : f32
    %101 = vector.broadcast %cst_37 : f32 to vector<16x1xf32>
    %102 = arith.divf %100, %101 : vector<16x1xf32>
    %103 = vector.broadcast %93 : vector<16x1xf32> to vector<16x32xf32>
    %104 = arith.subf %87, %103 : vector<16x32xf32>
    %cst_38 = arith.constant 9.99999974E-6 : f32
    %105 = vector.broadcast %cst_38 : f32 to vector<16x1xf32>
    %106 = arith.addf %102, %105 : vector<16x1xf32>
    %107 = math.rsqrt %106 : vector<16x1xf32>
    %108 = vector.broadcast %107 : vector<16x1xf32> to vector<16x32xf32>
    %109 = arith.mulf %104, %108 : vector<16x32xf32>
    %110 = vector.broadcast %88 : vector<1x32xf32> to vector<16x32xf32>
    %111 = arith.mulf %109, %110 : vector<16x32xf32>
    %112 = vector.broadcast %89 : vector<1x32xf32> to vector<16x32xf32>
    %113 = arith.addf %111, %112 : vector<16x32xf32>
    %c0_39 = arith.constant 0 : index
    %c0_40 = arith.constant 0 : index
    %114 = vector.load %arg7[%c0_39, %c0_40] : memref<32x64xf32, #tpu.memory_space<vmem>>, vector<32x64xf32>
    %c0_41 = arith.constant 0 : index
    %c0_42 = arith.constant 0 : index
    %115 = vector.load %arg8[%c0_41, %c0_42] : memref<1x64xf32, #tpu.memory_space<vmem>>, vector<1x64xf32>
    %cst_43 = arith.constant dense<0.000000e+00> : vector<16x64xf32>
    %116 = tpu.matmul %113, %114, %cst_43 {dimension_numbers = #tpu.dot_dimension_numbers<[1], [0], [0], [1], [0, 0, 1, 1], [], []>} : vector<16x32xf32>, vector<32x64xf32>, vector<16x64xf32> -> vector<16x64xf32>
    %117 = vector.broadcast %115 : vector<1x64xf32> to vector<16x64xf32>
    %118 = arith.addf %116, %117 : vector<16x64xf32>
    %cst_44 = arith.constant 0.000000e+00 : f32
    %119 = vector.broadcast %cst_44 : f32 to vector<16x64xf32>
    %120 = arith.maximumf %118, %119 : vector<16x64xf32>
    %c0_45 = arith.constant 0 : index
    %c0_46 = arith.constant 0 : index
    %121 = vector.load %arg9[%c0_45, %c0_46] : memref<64x32xf32, #tpu.memory_space<vmem>>, vector<64x32xf32>
    %c0_47 = arith.constant 0 : index
    %c0_48 = arith.constant 0 : index
    %122 = vector.load %arg10[%c0_47, %c0_48] : memref<1x32xf32, #tpu.memory_space<vmem>>, vector<1x32xf32>
    %cst_49 = arith.constant dense<0.000000e+00> : vector<16x32xf32>
    %123 = tpu.matmul %120, %121, %cst_49 {dimension_numbers = #tpu.dot_dimension_numbers<[1], [0], [0], [1], [0, 0, 1, 1], [], []>} : vector<16x64xf32>, vector<64x32xf32>, vector<16x32xf32> -> vector<16x32xf32>
    %124 = vector.broadcast %122 : vector<1x32xf32> to vector<16x32xf32>
    %125 = arith.addf %123, %124 : vector<16x32xf32>
    %126 = arith.addf %113, %125 : vector<16x32xf32>
    %c0_50 = arith.constant 0 : index
    %c0_51 = arith.constant 0 : index
    %127 = vector.load %arg11[%c0_50, %c0_51] : memref<1x32xf32, #tpu.memory_space<vmem>>, vector<1x32xf32>
    %c0_52 = arith.constant 0 : index
    %c0_53 = arith.constant 0 : index
    %128 = vector.load %arg12[%c0_52, %c0_53] : memref<1x32xf32, #tpu.memory_space<vmem>>, vector<1x32xf32>
    %cst_54 = arith.constant dense<0.000000e+00> : vector<16xf32>
    %129 = vector.multi_reduction <add>, %126, %cst_54 [1] : vector<16x32xf32> to vector<16xf32>
    %130 = vector.shape_cast %129 : vector<16xf32> to vector<16x1xf32>
    %cst_55 = arith.constant 3.200000e+01 : f32
    %131 = vector.broadcast %cst_55 : f32 to vector<16x1xf32>
    %132 = arith.divf %130, %131 : vector<16x1xf32>
    %133 = vector.broadcast %132 : vector<16x1xf32> to vector<16x32xf32>
    %134 = arith.subf %126, %133 : vector<16x32xf32>
    %135 = vector.broadcast %132 : vector<16x1xf32> to vector<16x32xf32>
    %136 = arith.subf %126, %135 : vector<16x32xf32>
    %137 = arith.mulf %134, %136 : vector<16x32xf32>
    %cst_56 = arith.constant dense<0.000000e+00> : vector<16xf32>
    %138 = vector.multi_reduction <add>, %137, %cst_56 [1] : vector<16x32xf32> to vector<16xf32>
    %139 = vector.shape_cast %138 : vector<16xf32> to vector<16x1xf32>
    %cst_57 = arith.constant 3.200000e+01 : f32
    %140 = vector.broadcast %cst_57 : f32 to vector<16x1xf32>
    %141 = arith.divf %139, %140 : vector<16x1xf32>
    %142 = vector.broadcast %132 : vector<16x1xf32> to vector<16x32xf32>
    %143 = arith.subf %126, %142 : vector<16x32xf32>
    %cst_58 = arith.constant 9.99999974E-6 : f32
    %144 = vector.broadcast %cst_58 : f32 to vector<16x1xf32>
    %145 = arith.addf %141, %144 : vector<16x1xf32>
    %146 = math.rsqrt %145 : vector<16x1xf32>
    %147 = vector.broadcast %146 : vector<16x1xf32> to vector<16x32xf32>
    %148 = arith.mulf %143, %147 : vector<16x32xf32>
    %149 = vector.broadcast %127 : vector<1x32xf32> to vector<16x32xf32>
    %150 = arith.mulf %148, %149 : vector<16x32xf32>
    %151 = vector.broadcast %128 : vector<1x32xf32> to vector<16x32xf32>
    %152 = arith.addf %150, %151 : vector<16x32xf32>
    %c0_59 = arith.constant 0 : index
    %c0_60 = arith.constant 0 : index
    %153 = vector.load %arg13[%c0_59, %c0_60] : memref<16x32xf32, #tpu.memory_space<vmem>>, vector<16x32xf32>
    tpu.vector_store %arg13[%c0_59, %c0_60], %152 {strides = array<i32>} : memref<16x32xf32, #tpu.memory_space<vmem>>, vector<16x32xf32>,
    return
  }
}

module attributes {stable_mosaic.version = 11 : i64} {
  func.func @_latent_reparam_kernel(%arg0: memref<16x32xf32, #tpu.memory_space<vmem>>, %arg1: memref<32x64xf32, #tpu.memory_space<vmem>>, %arg2: memref<1x64xf32, #tpu.memory_space<vmem>>, %arg3: memref<16x32xf32, #tpu.memory_space<vmem>>, %arg4: memref<16x32xf32, #tpu.memory_space<vmem>>, %arg5: memref<16x32xf32, #tpu.memory_space<vmem>>, %arg6: memref<16x32xf32, #tpu.memory_space<vmem>>) attributes {dimension_semantics = [], scalar_prefetch = 0 : i64, scratch_operands = 0 : i64, tpu.core_type = #tpu.core_type<tc>} {
    %c0 = arith.constant 0 : index
    %c0_0 = arith.constant 0 : index
    %0 = vector.load %arg0[%c0, %c0_0] : memref<16x32xf32, #tpu.memory_space<vmem>>, vector<16x32xf32>
    %c0_1 = arith.constant 0 : index
    %c0_2 = arith.constant 0 : index
    %1 = vector.load %arg1[%c0_1, %c0_2] : memref<32x64xf32, #tpu.memory_space<vmem>>, vector<32x64xf32>
    %c0_3 = arith.constant 0 : index
    %c0_4 = arith.constant 0 : index
    %2 = vector.load %arg2[%c0_3, %c0_4] : memref<1x64xf32, #tpu.memory_space<vmem>>, vector<1x64xf32>
    %cst = arith.constant dense<0.000000e+00> : vector<16x64xf32>
    %3 = tpu.matmul %0, %1, %cst {dimension_numbers = #tpu.dot_dimension_numbers<[1], [0], [0], [1], [0, 0, 1, 1], [], []>} : vector<16x32xf32>, vector<32x64xf32>, vector<16x64xf32> -> vector<16x64xf32>
    %4 = vector.broadcast %2 : vector<1x64xf32> to vector<16x64xf32>
    %5 = arith.addf %3, %4 : vector<16x64xf32>
    %6 = vector.extract_strided_slice %5 {offsets = [0, 0], sizes = [16, 32], strides = [1, 1]} : vector<16x64xf32> to vector<16x32xf32>
    %7 = vector.extract_strided_slice %5 {offsets = [0, 32], sizes = [16, 32], strides = [1, 1]} : vector<16x64xf32> to vector<16x32xf32>
    %c0_5 = arith.constant 0 : index
    %c0_6 = arith.constant 0 : index
    %8 = vector.load %arg4[%c0_5, %c0_6] : memref<16x32xf32, #tpu.memory_space<vmem>>, vector<16x32xf32>
    tpu.vector_store %arg4[%c0_5, %c0_6], %6 {strides = array<i32>} : memref<16x32xf32, #tpu.memory_space<vmem>>, vector<16x32xf32>,
    %c0_7 = arith.constant 0 : index
    %c0_8 = arith.constant 0 : index
    %9 = vector.load %arg5[%c0_7, %c0_8] : memref<16x32xf32, #tpu.memory_space<vmem>>, vector<16x32xf32>
    tpu.vector_store %arg5[%c0_7, %c0_8], %7 {strides = array<i32>} : memref<16x32xf32, #tpu.memory_space<vmem>>, vector<16x32xf32>,
    %c0_9 = arith.constant 0 : index
    %c0_10 = arith.constant 0 : index
    %10 = vector.load %arg3[%c0_9, %c0_10] : memref<16x32xf32, #tpu.memory_space<vmem>>, vector<16x32xf32>
    %cst_11 = arith.constant 5.000000e-01 : f32
    %11 = vector.broadcast %cst_11 : f32 to vector<16x32xf32>
    %12 = arith.mulf %11, %7 : vector<16x32xf32>
    %13 = math.exp %12 : vector<16x32xf32>
    %14 = arith.mulf %10, %13 : vector<16x32xf32>
    %15 = arith.addf %6, %14 : vector<16x32xf32>
    %c0_12 = arith.constant 0 : index
    %c0_13 = arith.constant 0 : index
    %16 = vector.load %arg6[%c0_12, %c0_13] : memref<16x32xf32, #tpu.memory_space<vmem>>, vector<16x32xf32>
    tpu.vector_store %arg6[%c0_12, %c0_13], %15 {strides = array<i32>} : memref<16x32xf32, #tpu.memory_space<vmem>>, vector<16x32xf32>,
    return
  }
}

module attributes {stable_mosaic.version = 11 : i64} {
  func.func @_decoder_layer_kernel(%arg0: memref<16x32xf32, #tpu.memory_space<vmem>>, %arg1: memref<16x32xf32, #tpu.memory_space<vmem>>, %arg2: memref<32x96xf32, #tpu.memory_space<vmem>>, %arg3: memref<1x96xf32, #tpu.memory_space<vmem>>, %arg4: memref<32x32xf32, #tpu.memory_space<vmem>>, %arg5: memref<1x32xf32, #tpu.memory_space<vmem>>, %arg6: memref<1x32xf32, #tpu.memory_space<vmem>>, %arg7: memref<1x32xf32, #tpu.memory_space<vmem>>, %arg8: memref<32x32xf32, #tpu.memory_space<vmem>>, %arg9: memref<1x32xf32, #tpu.memory_space<vmem>>, %arg10: memref<32x64xf32, #tpu.memory_space<vmem>>, %arg11: memref<1x64xf32, #tpu.memory_space<vmem>>, %arg12: memref<32x32xf32, #tpu.memory_space<vmem>>, %arg13: memref<1x32xf32, #tpu.memory_space<vmem>>, %arg14: memref<1x32xf32, #tpu.memory_space<vmem>>, %arg15: memref<1x32xf32, #tpu.memory_space<vmem>>, %arg16: memref<32x64xf32, #tpu.memory_space<vmem>>, %arg17: memref<1x64xf32, #tpu.memory_space<vmem>>, %arg18: memref<64x32xf32, #tpu.memory_space<vmem>>, %arg19: memref<1x32xf32, #tpu.memory_space<vmem>>, %arg20: memref<1x32xf32, #tpu.memory_space<vmem>>, %arg21: memref<1x32xf32, #tpu.memory_space<vmem>>, %arg22: memref<16x32xf32, #tpu.memory_space<vmem>>) attributes {dimension_semantics = [], scalar_prefetch = 0 : i64, scratch_operands = 0 : i64, tpu.core_type = #tpu.core_type<tc>} {
    %c0 = arith.constant 0 : index
    %c0_0 = arith.constant 0 : index
    %0 = vector.load %arg0[%c0, %c0_0] : memref<16x32xf32, #tpu.memory_space<vmem>>, vector<16x32xf32>
    %c0_1 = arith.constant 0 : index
    %c0_2 = arith.constant 0 : index
    %1 = vector.load %arg1[%c0_1, %c0_2] : memref<16x32xf32, #tpu.memory_space<vmem>>, vector<16x32xf32>
    %c0_3 = arith.constant 0 : index
    %c0_4 = arith.constant 0 : index
    %2 = vector.load %arg2[%c0_3, %c0_4] : memref<32x96xf32, #tpu.memory_space<vmem>>, vector<32x96xf32>
    %c0_5 = arith.constant 0 : index
    %c0_6 = arith.constant 0 : index
    %3 = vector.load %arg3[%c0_5, %c0_6] : memref<1x96xf32, #tpu.memory_space<vmem>>, vector<1x96xf32>
    %cst = arith.constant dense<0.000000e+00> : vector<16x96xf32>
    %4 = tpu.matmul %0, %2, %cst {dimension_numbers = #tpu.dot_dimension_numbers<[1], [0], [0], [1], [0, 0, 1, 1], [], []>} : vector<16x32xf32>, vector<32x96xf32>, vector<16x96xf32> -> vector<16x96xf32>
    %5 = vector.broadcast %3 : vector<1x96xf32> to vector<16x96xf32>
    %6 = arith.addf %4, %5 : vector<16x96xf32>
    %7 = vector.extract_strided_slice %6 {offsets = [0, 0], sizes = [16, 32], strides = [1, 1]} : vector<16x96xf32> to vector<16x32xf32>
    %8 = vector.extract_strided_slice %6 {offsets = [0, 32], sizes = [16, 32], strides = [1, 1]} : vector<16x96xf32> to vector<16x32xf32>
    %9 = vector.extract_strided_slice %6 {offsets = [0, 64], sizes = [16, 32], strides = [1, 1]} : vector<16x96xf32> to vector<16x32xf32>
    %10 = vector.shape_cast %7 : vector<16x32xf32> to vector<2x8x32xf32>
    %11 = vector.shape_cast %8 : vector<16x32xf32> to vector<2x8x32xf32>
    %12 = vector.shape_cast %9 : vector<16x32xf32> to vector<2x8x32xf32>
    %13 = vector.extract_strided_slice %10 {offsets = [0, 0, 0], sizes = [2, 8, 8], strides = [1, 1, 1]} : vector<2x8x32xf32> to vector<2x8x8xf32>
    %14 = vector.extract_strided_slice %11 {offsets = [0, 0, 0], sizes = [2, 8, 8], strides = [1, 1, 1]} : vector<2x8x32xf32> to vector<2x8x8xf32>
    %15 = vector.extract_strided_slice %12 {offsets = [0, 0, 0], sizes = [2, 8, 8], strides = [1, 1, 1]} : vector<2x8x32xf32> to vector<2x8x8xf32>
    "tpu.trace_start"() <{level = 10 : i32, message = "bqd,bkd->bqk"}> : () -> ()
    %cst_7 = arith.constant dense<0.000000e+00> : vector<2x8x8xf32>
    %16 = tpu.matmul %13, %14, %cst_7 {dimension_numbers = #tpu.dot_dimension_numbers<[2], [2], [1], [1], [0, 0, 0, 1, 1, 1], [0], [0]>} : vector<2x8x8xf32>, vector<2x8x8xf32>, vector<2x8x8xf32> -> vector<2x8x8xf32>
    "tpu.trace_stop"() : () -> ()
    %cst_8 = arith.constant 0.353553385 : f32
    %17 = vector.broadcast %cst_8 : f32 to vector<2x8x8xf32>
    %18 = arith.mulf %16, %17 : vector<2x8x8xf32>
    %cst_9 = arith.constant dense<0xFF800000> : vector<2x8xf32>
    %19 = vector.multi_reduction <maximumf>, %18, %cst_9 [2] : vector<2x8x8xf32> to vector<2x8xf32>
    %20 = vector.shape_cast %19 : vector<2x8xf32> to vector<2x8x1xf32>
    %21 = vector.broadcast %20 : vector<2x8x1xf32> to vector<2x8x8xf32>
    %22 = arith.subf %18, %21 : vector<2x8x8xf32>
    %23 = math.exp %22 : vector<2x8x8xf32>
    %cst_10 = arith.constant dense<0.000000e+00> : vector<2x8xf32>
    %24 = vector.multi_reduction <add>, %23, %cst_10 [2] : vector<2x8x8xf32> to vector<2x8xf32>
    %25 = vector.shape_cast %24 : vector<2x8xf32> to vector<2x8x1xf32>
    %26 = tpu.reciprocal %25 {approx = true} : vector<2x8x1xf32> -> vector<2x8x1xf32>
    %27 = vector.broadcast %26 : vector<2x8x1xf32> to vector<2x8x8xf32>
    %28 = arith.mulf %23, %27 : vector<2x8x8xf32>
    "tpu.trace_start"() <{level = 10 : i32, message = "bqk,bkd->bqd"}> : () -> ()
    %cst_11 = arith.constant dense<0.000000e+00> : vector<2x8x8xf32>
    %29 = tpu.matmul %28, %15, %cst_11 {dimension_numbers = #tpu.dot_dimension_numbers<[2], [1], [1], [2], [0, 0, 0, 1, 1, 2], [0], [0]>} : vector<2x8x8xf32>, vector<2x8x8xf32>, vector<2x8x8xf32> -> vector<2x8x8xf32>
    "tpu.trace_stop"() : () -> ()
    %30 = vector.extract_strided_slice %10 {offsets = [0, 0, 8], sizes = [2, 8, 8], strides = [1, 1, 1]} : vector<2x8x32xf32> to vector<2x8x8xf32>
    %31 = vector.extract_strided_slice %11 {offsets = [0, 0, 8], sizes = [2, 8, 8], strides = [1, 1, 1]} : vector<2x8x32xf32> to vector<2x8x8xf32>
    %32 = vector.extract_strided_slice %12 {offsets = [0, 0, 8], sizes = [2, 8, 8], strides = [1, 1, 1]} : vector<2x8x32xf32> to vector<2x8x8xf32>
    "tpu.trace_start"() <{level = 10 : i32, message = "bqd,bkd->bqk"}> : () -> ()
    %cst_12 = arith.constant dense<0.000000e+00> : vector<2x8x8xf32>
    %33 = tpu.matmul %30, %31, %cst_12 {dimension_numbers = #tpu.dot_dimension_numbers<[2], [2], [1], [1], [0, 0, 0, 1, 1, 1], [0], [0]>} : vector<2x8x8xf32>, vector<2x8x8xf32>, vector<2x8x8xf32> -> vector<2x8x8xf32>
    "tpu.trace_stop"() : () -> ()
    %cst_13 = arith.constant 0.353553385 : f32
    %34 = vector.broadcast %cst_13 : f32 to vector<2x8x8xf32>
    %35 = arith.mulf %33, %34 : vector<2x8x8xf32>
    %cst_14 = arith.constant dense<0xFF800000> : vector<2x8xf32>
    %36 = vector.multi_reduction <maximumf>, %35, %cst_14 [2] : vector<2x8x8xf32> to vector<2x8xf32>
    %37 = vector.shape_cast %36 : vector<2x8xf32> to vector<2x8x1xf32>
    %38 = vector.broadcast %37 : vector<2x8x1xf32> to vector<2x8x8xf32>
    %39 = arith.subf %35, %38 : vector<2x8x8xf32>
    %40 = math.exp %39 : vector<2x8x8xf32>
    %cst_15 = arith.constant dense<0.000000e+00> : vector<2x8xf32>
    %41 = vector.multi_reduction <add>, %40, %cst_15 [2] : vector<2x8x8xf32> to vector<2x8xf32>
    %42 = vector.shape_cast %41 : vector<2x8xf32> to vector<2x8x1xf32>
    %43 = tpu.reciprocal %42 {approx = true} : vector<2x8x1xf32> -> vector<2x8x1xf32>
    %44 = vector.broadcast %43 : vector<2x8x1xf32> to vector<2x8x8xf32>
    %45 = arith.mulf %40, %44 : vector<2x8x8xf32>
    "tpu.trace_start"() <{level = 10 : i32, message = "bqk,bkd->bqd"}> : () -> ()
    %cst_16 = arith.constant dense<0.000000e+00> : vector<2x8x8xf32>
    %46 = tpu.matmul %45, %32, %cst_16 {dimension_numbers = #tpu.dot_dimension_numbers<[2], [1], [1], [2], [0, 0, 0, 1, 1, 2], [0], [0]>} : vector<2x8x8xf32>, vector<2x8x8xf32>, vector<2x8x8xf32> -> vector<2x8x8xf32>
    "tpu.trace_stop"() : () -> ()
    %47 = vector.extract_strided_slice %10 {offsets = [0, 0, 16], sizes = [2, 8, 8], strides = [1, 1, 1]} : vector<2x8x32xf32> to vector<2x8x8xf32>
    %48 = vector.extract_strided_slice %11 {offsets = [0, 0, 16], sizes = [2, 8, 8], strides = [1, 1, 1]} : vector<2x8x32xf32> to vector<2x8x8xf32>
    %49 = vector.extract_strided_slice %12 {offsets = [0, 0, 16], sizes = [2, 8, 8], strides = [1, 1, 1]} : vector<2x8x32xf32> to vector<2x8x8xf32>
    "tpu.trace_start"() <{level = 10 : i32, message = "bqd,bkd->bqk"}> : () -> ()
    %cst_17 = arith.constant dense<0.000000e+00> : vector<2x8x8xf32>
    %50 = tpu.matmul %47, %48, %cst_17 {dimension_numbers = #tpu.dot_dimension_numbers<[2], [2], [1], [1], [0, 0, 0, 1, 1, 1], [0], [0]>} : vector<2x8x8xf32>, vector<2x8x8xf32>, vector<2x8x8xf32> -> vector<2x8x8xf32>
    "tpu.trace_stop"() : () -> ()
    %cst_18 = arith.constant 0.353553385 : f32
    %51 = vector.broadcast %cst_18 : f32 to vector<2x8x8xf32>
    %52 = arith.mulf %50, %51 : vector<2x8x8xf32>
    %cst_19 = arith.constant dense<0xFF800000> : vector<2x8xf32>
    %53 = vector.multi_reduction <maximumf>, %52, %cst_19 [2] : vector<2x8x8xf32> to vector<2x8xf32>
    %54 = vector.shape_cast %53 : vector<2x8xf32> to vector<2x8x1xf32>
    %55 = vector.broadcast %54 : vector<2x8x1xf32> to vector<2x8x8xf32>
    %56 = arith.subf %52, %55 : vector<2x8x8xf32>
    %57 = math.exp %56 : vector<2x8x8xf32>
    %cst_20 = arith.constant dense<0.000000e+00> : vector<2x8xf32>
    %58 = vector.multi_reduction <add>, %57, %cst_20 [2] : vector<2x8x8xf32> to vector<2x8xf32>
    %59 = vector.shape_cast %58 : vector<2x8xf32> to vector<2x8x1xf32>
    %60 = tpu.reciprocal %59 {approx = true} : vector<2x8x1xf32> -> vector<2x8x1xf32>
    %61 = vector.broadcast %60 : vector<2x8x1xf32> to vector<2x8x8xf32>
    %62 = arith.mulf %57, %61 : vector<2x8x8xf32>
    "tpu.trace_start"() <{level = 10 : i32, message = "bqk,bkd->bqd"}> : () -> ()
    %cst_21 = arith.constant dense<0.000000e+00> : vector<2x8x8xf32>
    %63 = tpu.matmul %62, %49, %cst_21 {dimension_numbers = #tpu.dot_dimension_numbers<[2], [1], [1], [2], [0, 0, 0, 1, 1, 2], [0], [0]>} : vector<2x8x8xf32>, vector<2x8x8xf32>, vector<2x8x8xf32> -> vector<2x8x8xf32>
    "tpu.trace_stop"() : () -> ()
    %64 = vector.extract_strided_slice %10 {offsets = [0, 0, 24], sizes = [2, 8, 8], strides = [1, 1, 1]} : vector<2x8x32xf32> to vector<2x8x8xf32>
    %65 = vector.extract_strided_slice %11 {offsets = [0, 0, 24], sizes = [2, 8, 8], strides = [1, 1, 1]} : vector<2x8x32xf32> to vector<2x8x8xf32>
    %66 = vector.extract_strided_slice %12 {offsets = [0, 0, 24], sizes = [2, 8, 8], strides = [1, 1, 1]} : vector<2x8x32xf32> to vector<2x8x8xf32>
    "tpu.trace_start"() <{level = 10 : i32, message = "bqd,bkd->bqk"}> : () -> ()
    %cst_22 = arith.constant dense<0.000000e+00> : vector<2x8x8xf32>
    %67 = tpu.matmul %64, %65, %cst_22 {dimension_numbers = #tpu.dot_dimension_numbers<[2], [2], [1], [1], [0, 0, 0, 1, 1, 1], [0], [0]>} : vector<2x8x8xf32>, vector<2x8x8xf32>, vector<2x8x8xf32> -> vector<2x8x8xf32>
    "tpu.trace_stop"() : () -> ()
    %cst_23 = arith.constant 0.353553385 : f32
    %68 = vector.broadcast %cst_23 : f32 to vector<2x8x8xf32>
    %69 = arith.mulf %67, %68 : vector<2x8x8xf32>
    %cst_24 = arith.constant dense<0xFF800000> : vector<2x8xf32>
    %70 = vector.multi_reduction <maximumf>, %69, %cst_24 [2] : vector<2x8x8xf32> to vector<2x8xf32>
    %71 = vector.shape_cast %70 : vector<2x8xf32> to vector<2x8x1xf32>
    %72 = vector.broadcast %71 : vector<2x8x1xf32> to vector<2x8x8xf32>
    %73 = arith.subf %69, %72 : vector<2x8x8xf32>
    %74 = math.exp %73 : vector<2x8x8xf32>
    %cst_25 = arith.constant dense<0.000000e+00> : vector<2x8xf32>
    %75 = vector.multi_reduction <add>, %74, %cst_25 [2] : vector<2x8x8xf32> to vector<2x8xf32>
    %76 = vector.shape_cast %75 : vector<2x8xf32> to vector<2x8x1xf32>
    %77 = tpu.reciprocal %76 {approx = true} : vector<2x8x1xf32> -> vector<2x8x1xf32>
    %78 = vector.broadcast %77 : vector<2x8x1xf32> to vector<2x8x8xf32>
    %79 = arith.mulf %74, %78 : vector<2x8x8xf32>
    "tpu.trace_start"() <{level = 10 : i32, message = "bqk,bkd->bqd"}> : () -> ()
    %cst_26 = arith.constant dense<0.000000e+00> : vector<2x8x8xf32>
    %80 = tpu.matmul %79, %66, %cst_26 {dimension_numbers = #tpu.dot_dimension_numbers<[2], [1], [1], [2], [0, 0, 0, 1, 1, 2], [0], [0]>} : vector<2x8x8xf32>, vector<2x8x8xf32>, vector<2x8x8xf32> -> vector<2x8x8xf32>
    "tpu.trace_stop"() : () -> ()
    %81 = tpu.concatenate %29, %46, %63, %80 in 2 : vector<2x8x8xf32>, vector<2x8x8xf32>, vector<2x8x8xf32>, vector<2x8x8xf32> -> vector<2x8x32xf32>
    %82 = vector.shape_cast %81 : vector<2x8x32xf32> to vector<16x32xf32>
    %c0_27 = arith.constant 0 : index
    %c0_28 = arith.constant 0 : index
    %83 = vector.load %arg4[%c0_27, %c0_28] : memref<32x32xf32, #tpu.memory_space<vmem>>, vector<32x32xf32>
    %c0_29 = arith.constant 0 : index
    %c0_30 = arith.constant 0 : index
    %84 = vector.load %arg5[%c0_29, %c0_30] : memref<1x32xf32, #tpu.memory_space<vmem>>, vector<1x32xf32>
    %cst_31 = arith.constant dense<0.000000e+00> : vector<16x32xf32>
    %85 = tpu.matmul %82, %83, %cst_31 {dimension_numbers = #tpu.dot_dimension_numbers<[1], [0], [0], [1], [0, 0, 1, 1], [], []>} : vector<16x32xf32>, vector<32x32xf32>, vector<16x32xf32> -> vector<16x32xf32>
    %86 = vector.broadcast %84 : vector<1x32xf32> to vector<16x32xf32>
    %87 = arith.addf %85, %86 : vector<16x32xf32>
    %88 = arith.addf %0, %87 : vector<16x32xf32>
    %c0_32 = arith.constant 0 : index
    %c0_33 = arith.constant 0 : index
    %89 = vector.load %arg6[%c0_32, %c0_33] : memref<1x32xf32, #tpu.memory_space<vmem>>, vector<1x32xf32>
    %c0_34 = arith.constant 0 : index
    %c0_35 = arith.constant 0 : index
    %90 = vector.load %arg7[%c0_34, %c0_35] : memref<1x32xf32, #tpu.memory_space<vmem>>, vector<1x32xf32>
    %cst_36 = arith.constant dense<0.000000e+00> : vector<16xf32>
    %91 = vector.multi_reduction <add>, %88, %cst_36 [1] : vector<16x32xf32> to vector<16xf32>
    %92 = vector.shape_cast %91 : vector<16xf32> to vector<16x1xf32>
    %cst_37 = arith.constant 3.200000e+01 : f32
    %93 = vector.broadcast %cst_37 : f32 to vector<16x1xf32>
    %94 = arith.divf %92, %93 : vector<16x1xf32>
    %95 = vector.broadcast %94 : vector<16x1xf32> to vector<16x32xf32>
    %96 = arith.subf %88, %95 : vector<16x32xf32>
    %97 = vector.broadcast %94 : vector<16x1xf32> to vector<16x32xf32>
    %98 = arith.subf %88, %97 : vector<16x32xf32>
    %99 = arith.mulf %96, %98 : vector<16x32xf32>
    %cst_38 = arith.constant dense<0.000000e+00> : vector<16xf32>
    %100 = vector.multi_reduction <add>, %99, %cst_38 [1] : vector<16x32xf32> to vector<16xf32>
    %101 = vector.shape_cast %100 : vector<16xf32> to vector<16x1xf32>
    %cst_39 = arith.constant 3.200000e+01 : f32
    %102 = vector.broadcast %cst_39 : f32 to vector<16x1xf32>
    %103 = arith.divf %101, %102 : vector<16x1xf32>
    %104 = vector.broadcast %94 : vector<16x1xf32> to vector<16x32xf32>
    %105 = arith.subf %88, %104 : vector<16x32xf32>
    %cst_40 = arith.constant 9.99999974E-6 : f32
    %106 = vector.broadcast %cst_40 : f32 to vector<16x1xf32>
    %107 = arith.addf %103, %106 : vector<16x1xf32>
    %108 = math.rsqrt %107 : vector<16x1xf32>
    %109 = vector.broadcast %108 : vector<16x1xf32> to vector<16x32xf32>
    %110 = arith.mulf %105, %109 : vector<16x32xf32>
    %111 = vector.broadcast %89 : vector<1x32xf32> to vector<16x32xf32>
    %112 = arith.mulf %110, %111 : vector<16x32xf32>
    %113 = vector.broadcast %90 : vector<1x32xf32> to vector<16x32xf32>
    %114 = arith.addf %112, %113 : vector<16x32xf32>
    %c0_41 = arith.constant 0 : index
    %c0_42 = arith.constant 0 : index
    %115 = vector.load %arg8[%c0_41, %c0_42] : memref<32x32xf32, #tpu.memory_space<vmem>>, vector<32x32xf32>
    %c0_43 = arith.constant 0 : index
    %c0_44 = arith.constant 0 : index
    %116 = vector.load %arg9[%c0_43, %c0_44] : memref<1x32xf32, #tpu.memory_space<vmem>>, vector<1x32xf32>
    %cst_45 = arith.constant dense<0.000000e+00> : vector<16x32xf32>
    %117 = tpu.matmul %114, %115, %cst_45 {dimension_numbers = #tpu.dot_dimension_numbers<[1], [0], [0], [1], [0, 0, 1, 1], [], []>} : vector<16x32xf32>, vector<32x32xf32>, vector<16x32xf32> -> vector<16x32xf32>
    %118 = vector.broadcast %116 : vector<1x32xf32> to vector<16x32xf32>
    %119 = arith.addf %117, %118 : vector<16x32xf32>
    %c0_46 = arith.constant 0 : index
    %c0_47 = arith.constant 0 : index
    %120 = vector.load %arg10[%c0_46, %c0_47] : memref<32x64xf32, #tpu.memory_space<vmem>>, vector<32x64xf32>
    %c0_48 = arith.constant 0 : index
    %c0_49 = arith.constant 0 : index
    %121 = vector.load %arg11[%c0_48, %c0_49] : memref<1x64xf32, #tpu.memory_space<vmem>>, vector<1x64xf32>
    %cst_50 = arith.constant dense<0.000000e+00> : vector<16x64xf32>
    %122 = tpu.matmul %1, %120, %cst_50 {dimension_numbers = #tpu.dot_dimension_numbers<[1], [0], [0], [1], [0, 0, 1, 1], [], []>} : vector<16x32xf32>, vector<32x64xf32>, vector<16x64xf32> -> vector<16x64xf32>
    %123 = vector.broadcast %121 : vector<1x64xf32> to vector<16x64xf32>
    %124 = arith.addf %122, %123 : vector<16x64xf32>
    %125 = vector.extract_strided_slice %124 {offsets = [0, 0], sizes = [16, 32], strides = [1, 1]} : vector<16x64xf32> to vector<16x32xf32>
    %126 = vector.extract_strided_slice %124 {offsets = [0, 32], sizes = [16, 32], strides = [1, 1]} : vector<16x64xf32> to vector<16x32xf32>
    %127 = vector.shape_cast %119 : vector<16x32xf32> to vector<2x8x32xf32>
    %128 = vector.shape_cast %125 : vector<16x32xf32> to vector<2x8x32xf32>
    %129 = vector.shape_cast %126 : vector<16x32xf32> to vector<2x8x32xf32>
    %130 = vector.extract_strided_slice %127 {offsets = [0, 0, 0], sizes = [2, 8, 8], strides = [1, 1, 1]} : vector<2x8x32xf32> to vector<2x8x8xf32>
    %131 = vector.extract_strided_slice %128 {offsets = [0, 0, 0], sizes = [2, 8, 8], strides = [1, 1, 1]} : vector<2x8x32xf32> to vector<2x8x8xf32>
    %132 = vector.extract_strided_slice %129 {offsets = [0, 0, 0], sizes = [2, 8, 8], strides = [1, 1, 1]} : vector<2x8x32xf32> to vector<2x8x8xf32>
    "tpu.trace_start"() <{level = 10 : i32, message = "bqd,bkd->bqk"}> : () -> ()
    %cst_51 = arith.constant dense<0.000000e+00> : vector<2x8x8xf32>
    %133 = tpu.matmul %130, %131, %cst_51 {dimension_numbers = #tpu.dot_dimension_numbers<[2], [2], [1], [1], [0, 0, 0, 1, 1, 1], [0], [0]>} : vector<2x8x8xf32>, vector<2x8x8xf32>, vector<2x8x8xf32> -> vector<2x8x8xf32>
    "tpu.trace_stop"() : () -> ()
    %cst_52 = arith.constant 0.353553385 : f32
    %134 = vector.broadcast %cst_52 : f32 to vector<2x8x8xf32>
    %135 = arith.mulf %133, %134 : vector<2x8x8xf32>
    %cst_53 = arith.constant dense<0xFF800000> : vector<2x8xf32>
    %136 = vector.multi_reduction <maximumf>, %135, %cst_53 [2] : vector<2x8x8xf32> to vector<2x8xf32>
    %137 = vector.shape_cast %136 : vector<2x8xf32> to vector<2x8x1xf32>
    %138 = vector.broadcast %137 : vector<2x8x1xf32> to vector<2x8x8xf32>
    %139 = arith.subf %135, %138 : vector<2x8x8xf32>
    %140 = math.exp %139 : vector<2x8x8xf32>
    %cst_54 = arith.constant dense<0.000000e+00> : vector<2x8xf32>
    %141 = vector.multi_reduction <add>, %140, %cst_54 [2] : vector<2x8x8xf32> to vector<2x8xf32>
    %142 = vector.shape_cast %141 : vector<2x8xf32> to vector<2x8x1xf32>
    %143 = tpu.reciprocal %142 {approx = true} : vector<2x8x1xf32> -> vector<2x8x1xf32>
    %144 = vector.broadcast %143 : vector<2x8x1xf32> to vector<2x8x8xf32>
    %145 = arith.mulf %140, %144 : vector<2x8x8xf32>
    "tpu.trace_start"() <{level = 10 : i32, message = "bqk,bkd->bqd"}> : () -> ()
    %cst_55 = arith.constant dense<0.000000e+00> : vector<2x8x8xf32>
    %146 = tpu.matmul %145, %132, %cst_55 {dimension_numbers = #tpu.dot_dimension_numbers<[2], [1], [1], [2], [0, 0, 0, 1, 1, 2], [0], [0]>} : vector<2x8x8xf32>, vector<2x8x8xf32>, vector<2x8x8xf32> -> vector<2x8x8xf32>
    "tpu.trace_stop"() : () -> ()
    %147 = vector.extract_strided_slice %127 {offsets = [0, 0, 8], sizes = [2, 8, 8], strides = [1, 1, 1]} : vector<2x8x32xf32> to vector<2x8x8xf32>
    %148 = vector.extract_strided_slice %128 {offsets = [0, 0, 8], sizes = [2, 8, 8], strides = [1, 1, 1]} : vector<2x8x32xf32> to vector<2x8x8xf32>
    %149 = vector.extract_strided_slice %129 {offsets = [0, 0, 8], sizes = [2, 8, 8], strides = [1, 1, 1]} : vector<2x8x32xf32> to vector<2x8x8xf32>
    "tpu.trace_start"() <{level = 10 : i32, message = "bqd,bkd->bqk"}> : () -> ()
    %cst_56 = arith.constant dense<0.000000e+00> : vector<2x8x8xf32>
    %150 = tpu.matmul %147, %148, %cst_56 {dimension_numbers = #tpu.dot_dimension_numbers<[2], [2], [1], [1], [0, 0, 0, 1, 1, 1], [0], [0]>} : vector<2x8x8xf32>, vector<2x8x8xf32>, vector<2x8x8xf32> -> vector<2x8x8xf32>
    "tpu.trace_stop"() : () -> ()
    %cst_57 = arith.constant 0.353553385 : f32
    %151 = vector.broadcast %cst_57 : f32 to vector<2x8x8xf32>
    %152 = arith.mulf %150, %151 : vector<2x8x8xf32>
    %cst_58 = arith.constant dense<0xFF800000> : vector<2x8xf32>
    %153 = vector.multi_reduction <maximumf>, %152, %cst_58 [2] : vector<2x8x8xf32> to vector<2x8xf32>
    %154 = vector.shape_cast %153 : vector<2x8xf32> to vector<2x8x1xf32>
    %155 = vector.broadcast %154 : vector<2x8x1xf32> to vector<2x8x8xf32>
    %156 = arith.subf %152, %155 : vector<2x8x8xf32>
    %157 = math.exp %156 : vector<2x8x8xf32>
    %cst_59 = arith.constant dense<0.000000e+00> : vector<2x8xf32>
    %158 = vector.multi_reduction <add>, %157, %cst_59 [2] : vector<2x8x8xf32> to vector<2x8xf32>
    %159 = vector.shape_cast %158 : vector<2x8xf32> to vector<2x8x1xf32>
    %160 = tpu.reciprocal %159 {approx = true} : vector<2x8x1xf32> -> vector<2x8x1xf32>
    %161 = vector.broadcast %160 : vector<2x8x1xf32> to vector<2x8x8xf32>
    %162 = arith.mulf %157, %161 : vector<2x8x8xf32>
    "tpu.trace_start"() <{level = 10 : i32, message = "bqk,bkd->bqd"}> : () -> ()
    %cst_60 = arith.constant dense<0.000000e+00> : vector<2x8x8xf32>
    %163 = tpu.matmul %162, %149, %cst_60 {dimension_numbers = #tpu.dot_dimension_numbers<[2], [1], [1], [2], [0, 0, 0, 1, 1, 2], [0], [0]>} : vector<2x8x8xf32>, vector<2x8x8xf32>, vector<2x8x8xf32> -> vector<2x8x8xf32>
    "tpu.trace_stop"() : () -> ()
    %164 = vector.extract_strided_slice %127 {offsets = [0, 0, 16], sizes = [2, 8, 8], strides = [1, 1, 1]} : vector<2x8x32xf32> to vector<2x8x8xf32>
    %165 = vector.extract_strided_slice %128 {offsets = [0, 0, 16], sizes = [2, 8, 8], strides = [1, 1, 1]} : vector<2x8x32xf32> to vector<2x8x8xf32>
    %166 = vector.extract_strided_slice %129 {offsets = [0, 0, 16], sizes = [2, 8, 8], strides = [1, 1, 1]} : vector<2x8x32xf32> to vector<2x8x8xf32>
    "tpu.trace_start"() <{level = 10 : i32, message = "bqd,bkd->bqk"}> : () -> ()
    %cst_61 = arith.constant dense<0.000000e+00> : vector<2x8x8xf32>
    %167 = tpu.matmul %164, %165, %cst_61 {dimension_numbers = #tpu.dot_dimension_numbers<[2], [2], [1], [1], [0, 0, 0, 1, 1, 1], [0], [0]>} : vector<2x8x8xf32>, vector<2x8x8xf32>, vector<2x8x8xf32> -> vector<2x8x8xf32>
    "tpu.trace_stop"() : () -> ()
    %cst_62 = arith.constant 0.353553385 : f32
    %168 = vector.broadcast %cst_62 : f32 to vector<2x8x8xf32>
    %169 = arith.mulf %167, %168 : vector<2x8x8xf32>
    %cst_63 = arith.constant dense<0xFF800000> : vector<2x8xf32>
    %170 = vector.multi_reduction <maximumf>, %169, %cst_63 [2] : vector<2x8x8xf32> to vector<2x8xf32>
    %171 = vector.shape_cast %170 : vector<2x8xf32> to vector<2x8x1xf32>
    %172 = vector.broadcast %171 : vector<2x8x1xf32> to vector<2x8x8xf32>
    %173 = arith.subf %169, %172 : vector<2x8x8xf32>
    %174 = math.exp %173 : vector<2x8x8xf32>
    %cst_64 = arith.constant dense<0.000000e+00> : vector<2x8xf32>
    %175 = vector.multi_reduction <add>, %174, %cst_64 [2] : vector<2x8x8xf32> to vector<2x8xf32>
    %176 = vector.shape_cast %175 : vector<2x8xf32> to vector<2x8x1xf32>
    %177 = tpu.reciprocal %176 {approx = true} : vector<2x8x1xf32> -> vector<2x8x1xf32>
    %178 = vector.broadcast %177 : vector<2x8x1xf32> to vector<2x8x8xf32>
    %179 = arith.mulf %174, %178 : vector<2x8x8xf32>
    "tpu.trace_start"() <{level = 10 : i32, message = "bqk,bkd->bqd"}> : () -> ()
    %cst_65 = arith.constant dense<0.000000e+00> : vector<2x8x8xf32>
    %180 = tpu.matmul %179, %166, %cst_65 {dimension_numbers = #tpu.dot_dimension_numbers<[2], [1], [1], [2], [0, 0, 0, 1, 1, 2], [0], [0]>} : vector<2x8x8xf32>, vector<2x8x8xf32>, vector<2x8x8xf32> -> vector<2x8x8xf32>
    "tpu.trace_stop"() : () -> ()
    %181 = vector.extract_strided_slice %127 {offsets = [0, 0, 24], sizes = [2, 8, 8], strides = [1, 1, 1]} : vector<2x8x32xf32> to vector<2x8x8xf32>
    %182 = vector.extract_strided_slice %128 {offsets = [0, 0, 24], sizes = [2, 8, 8], strides = [1, 1, 1]} : vector<2x8x32xf32> to vector<2x8x8xf32>
    %183 = vector.extract_strided_slice %129 {offsets = [0, 0, 24], sizes = [2, 8, 8], strides = [1, 1, 1]} : vector<2x8x32xf32> to vector<2x8x8xf32>
    "tpu.trace_start"() <{level = 10 : i32, message = "bqd,bkd->bqk"}> : () -> ()
    %cst_66 = arith.constant dense<0.000000e+00> : vector<2x8x8xf32>
    %184 = tpu.matmul %181, %182, %cst_66 {dimension_numbers = #tpu.dot_dimension_numbers<[2], [2], [1], [1], [0, 0, 0, 1, 1, 1], [0], [0]>} : vector<2x8x8xf32>, vector<2x8x8xf32>, vector<2x8x8xf32> -> vector<2x8x8xf32>
    "tpu.trace_stop"() : () -> ()
    %cst_67 = arith.constant 0.353553385 : f32
    %185 = vector.broadcast %cst_67 : f32 to vector<2x8x8xf32>
    %186 = arith.mulf %184, %185 : vector<2x8x8xf32>
    %cst_68 = arith.constant dense<0xFF800000> : vector<2x8xf32>
    %187 = vector.multi_reduction <maximumf>, %186, %cst_68 [2] : vector<2x8x8xf32> to vector<2x8xf32>
    %188 = vector.shape_cast %187 : vector<2x8xf32> to vector<2x8x1xf32>
    %189 = vector.broadcast %188 : vector<2x8x1xf32> to vector<2x8x8xf32>
    %190 = arith.subf %186, %189 : vector<2x8x8xf32>
    %191 = math.exp %190 : vector<2x8x8xf32>
    %cst_69 = arith.constant dense<0.000000e+00> : vector<2x8xf32>
    %192 = vector.multi_reduction <add>, %191, %cst_69 [2] : vector<2x8x8xf32> to vector<2x8xf32>
    %193 = vector.shape_cast %192 : vector<2x8xf32> to vector<2x8x1xf32>
    %194 = tpu.reciprocal %193 {approx = true} : vector<2x8x1xf32> -> vector<2x8x1xf32>
    %195 = vector.broadcast %194 : vector<2x8x1xf32> to vector<2x8x8xf32>
    %196 = arith.mulf %191, %195 : vector<2x8x8xf32>
    "tpu.trace_start"() <{level = 10 : i32, message = "bqk,bkd->bqd"}> : () -> ()
    %cst_70 = arith.constant dense<0.000000e+00> : vector<2x8x8xf32>
    %197 = tpu.matmul %196, %183, %cst_70 {dimension_numbers = #tpu.dot_dimension_numbers<[2], [1], [1], [2], [0, 0, 0, 1, 1, 2], [0], [0]>} : vector<2x8x8xf32>, vector<2x8x8xf32>, vector<2x8x8xf32> -> vector<2x8x8xf32>
    "tpu.trace_stop"() : () -> ()
    %198 = tpu.concatenate %146, %163, %180, %197 in 2 : vector<2x8x8xf32>, vector<2x8x8xf32>, vector<2x8x8xf32>, vector<2x8x8xf32> -> vector<2x8x32xf32>
    %199 = vector.shape_cast %198 : vector<2x8x32xf32> to vector<16x32xf32>
    %c0_71 = arith.constant 0 : index
    %c0_72 = arith.constant 0 : index
    %200 = vector.load %arg12[%c0_71, %c0_72] : memref<32x32xf32, #tpu.memory_space<vmem>>, vector<32x32xf32>
    %c0_73 = arith.constant 0 : index
    %c0_74 = arith.constant 0 : index
    %201 = vector.load %arg13[%c0_73, %c0_74] : memref<1x32xf32, #tpu.memory_space<vmem>>, vector<1x32xf32>
    %cst_75 = arith.constant dense<0.000000e+00> : vector<16x32xf32>
    %202 = tpu.matmul %199, %200, %cst_75 {dimension_numbers = #tpu.dot_dimension_numbers<[1], [0], [0], [1], [0, 0, 1, 1], [], []>} : vector<16x32xf32>, vector<32x32xf32>, vector<16x32xf32> -> vector<16x32xf32>
    %203 = vector.broadcast %201 : vector<1x32xf32> to vector<16x32xf32>
    %204 = arith.addf %202, %203 : vector<16x32xf32>
    %205 = arith.addf %114, %204 : vector<16x32xf32>
    %c0_76 = arith.constant 0 : index
    %c0_77 = arith.constant 0 : index
    %206 = vector.load %arg14[%c0_76, %c0_77] : memref<1x32xf32, #tpu.memory_space<vmem>>, vector<1x32xf32>
    %c0_78 = arith.constant 0 : index
    %c0_79 = arith.constant 0 : index
    %207 = vector.load %arg15[%c0_78, %c0_79] : memref<1x32xf32, #tpu.memory_space<vmem>>, vector<1x32xf32>
    %cst_80 = arith.constant dense<0.000000e+00> : vector<16xf32>
    %208 = vector.multi_reduction <add>, %205, %cst_80 [1] : vector<16x32xf32> to vector<16xf32>
    %209 = vector.shape_cast %208 : vector<16xf32> to vector<16x1xf32>
    %cst_81 = arith.constant 3.200000e+01 : f32
    %210 = vector.broadcast %cst_81 : f32 to vector<16x1xf32>
    %211 = arith.divf %209, %210 : vector<16x1xf32>
    %212 = vector.broadcast %211 : vector<16x1xf32> to vector<16x32xf32>
    %213 = arith.subf %205, %212 : vector<16x32xf32>
    %214 = vector.broadcast %211 : vector<16x1xf32> to vector<16x32xf32>
    %215 = arith.subf %205, %214 : vector<16x32xf32>
    %216 = arith.mulf %213, %215 : vector<16x32xf32>
    %cst_82 = arith.constant dense<0.000000e+00> : vector<16xf32>
    %217 = vector.multi_reduction <add>, %216, %cst_82 [1] : vector<16x32xf32> to vector<16xf32>
    %218 = vector.shape_cast %217 : vector<16xf32> to vector<16x1xf32>
    %cst_83 = arith.constant 3.200000e+01 : f32
    %219 = vector.broadcast %cst_83 : f32 to vector<16x1xf32>
    %220 = arith.divf %218, %219 : vector<16x1xf32>
    %221 = vector.broadcast %211 : vector<16x1xf32> to vector<16x32xf32>
    %222 = arith.subf %205, %221 : vector<16x32xf32>
    %cst_84 = arith.constant 9.99999974E-6 : f32
    %223 = vector.broadcast %cst_84 : f32 to vector<16x1xf32>
    %224 = arith.addf %220, %223 : vector<16x1xf32>
    %225 = math.rsqrt %224 : vector<16x1xf32>
    %226 = vector.broadcast %225 : vector<16x1xf32> to vector<16x32xf32>
    %227 = arith.mulf %222, %226 : vector<16x32xf32>
    %228 = vector.broadcast %206 : vector<1x32xf32> to vector<16x32xf32>
    %229 = arith.mulf %227, %228 : vector<16x32xf32>
    %230 = vector.broadcast %207 : vector<1x32xf32> to vector<16x32xf32>
    %231 = arith.addf %229, %230 : vector<16x32xf32>
    %c0_85 = arith.constant 0 : index
    %c0_86 = arith.constant 0 : index
    %232 = vector.load %arg16[%c0_85, %c0_86] : memref<32x64xf32, #tpu.memory_space<vmem>>, vector<32x64xf32>
    %c0_87 = arith.constant 0 : index
    %c0_88 = arith.constant 0 : index
    %233 = vector.load %arg17[%c0_87, %c0_88] : memref<1x64xf32, #tpu.memory_space<vmem>>, vector<1x64xf32>
    %cst_89 = arith.constant dense<0.000000e+00> : vector<16x64xf32>
    %234 = tpu.matmul %231, %232, %cst_89 {dimension_numbers = #tpu.dot_dimension_numbers<[1], [0], [0], [1], [0, 0, 1, 1], [], []>} : vector<16x32xf32>, vector<32x64xf32>, vector<16x64xf32> -> vector<16x64xf32>
    %235 = vector.broadcast %233 : vector<1x64xf32> to vector<16x64xf32>
    %236 = arith.addf %234, %235 : vector<16x64xf32>
    %cst_90 = arith.constant 0.000000e+00 : f32
    %237 = vector.broadcast %cst_90 : f32 to vector<16x64xf32>
    %238 = arith.maximumf %236, %237 : vector<16x64xf32>
    %c0_91 = arith.constant 0 : index
    %c0_92 = arith.constant 0 : index
    %239 = vector.load %arg18[%c0_91, %c0_92] : memref<64x32xf32, #tpu.memory_space<vmem>>, vector<64x32xf32>
    %c0_93 = arith.constant 0 : index
    %c0_94 = arith.constant 0 : index
    %240 = vector.load %arg19[%c0_93, %c0_94] : memref<1x32xf32, #tpu.memory_space<vmem>>, vector<1x32xf32>
    %cst_95 = arith.constant dense<0.000000e+00> : vector<16x32xf32>
    %241 = tpu.matmul %238, %239, %cst_95 {dimension_numbers = #tpu.dot_dimension_numbers<[1], [0], [0], [1], [0, 0, 1, 1], [], []>} : vector<16x64xf32>, vector<64x32xf32>, vector<16x32xf32> -> vector<16x32xf32>
    %242 = vector.broadcast %240 : vector<1x32xf32> to vector<16x32xf32>
    %243 = arith.addf %241, %242 : vector<16x32xf32>
    %244 = arith.addf %231, %243 : vector<16x32xf32>
    %c0_96 = arith.constant 0 : index
    %c0_97 = arith.constant 0 : index
    %245 = vector.load %arg20[%c0_96, %c0_97] : memref<1x32xf32, #tpu.memory_space<vmem>>, vector<1x32xf32>
    %c0_98 = arith.constant 0 : index
    %c0_99 = arith.constant 0 : index
    %246 = vector.load %arg21[%c0_98, %c0_99] : memref<1x32xf32, #tpu.memory_space<vmem>>, vector<1x32xf32>
    %cst_100 = arith.constant dense<0.000000e+00> : vector<16xf32>
    %247 = vector.multi_reduction <add>, %244, %cst_100 [1] : vector<16x32xf32> to vector<16xf32>
    %248 = vector.shape_cast %247 : vector<16xf32> to vector<16x1xf32>
    %cst_101 = arith.constant 3.200000e+01 : f32
    %249 = vector.broadcast %cst_101 : f32 to vector<16x1xf32>
    %250 = arith.divf %248, %249 : vector<16x1xf32>
    %251 = vector.broadcast %250 : vector<16x1xf32> to vector<16x32xf32>
    %252 = arith.subf %244, %251 : vector<16x32xf32>
    %253 = vector.broadcast %250 : vector<16x1xf32> to vector<16x32xf32>
    %254 = arith.subf %244, %253 : vector<16x32xf32>
    %255 = arith.mulf %252, %254 : vector<16x32xf32>
    %cst_102 = arith.constant dense<0.000000e+00> : vector<16xf32>
    %256 = vector.multi_reduction <add>, %255, %cst_102 [1] : vector<16x32xf32> to vector<16xf32>
    %257 = vector.shape_cast %256 : vector<16xf32> to vector<16x1xf32>
    %cst_103 = arith.constant 3.200000e+01 : f32
    %258 = vector.broadcast %cst_103 : f32 to vector<16x1xf32>
    %259 = arith.divf %257, %258 : vector<16x1xf32>
    %260 = vector.broadcast %250 : vector<16x1xf32> to vector<16x32xf32>
    %261 = arith.subf %244, %260 : vector<16x32xf32>
    %cst_104 = arith.constant 9.99999974E-6 : f32
    %262 = vector.broadcast %cst_104 : f32 to vector<16x1xf32>
    %263 = arith.addf %259, %262 : vector<16x1xf32>
    %264 = math.rsqrt %263 : vector<16x1xf32>
    %265 = vector.broadcast %264 : vector<16x1xf32> to vector<16x32xf32>
    %266 = arith.mulf %261, %265 : vector<16x32xf32>
    %267 = vector.broadcast %245 : vector<1x32xf32> to vector<16x32xf32>
    %268 = arith.mulf %266, %267 : vector<16x32xf32>
    %269 = vector.broadcast %246 : vector<1x32xf32> to vector<16x32xf32>
    %270 = arith.addf %268, %269 : vector<16x32xf32>
    %c0_105 = arith.constant 0 : index
    %c0_106 = arith.constant 0 : index
    %271 = vector.load %arg22[%c0_105, %c0_106] : memref<16x32xf32, #tpu.memory_space<vmem>>, vector<16x32xf32>
    tpu.vector_store %arg22[%c0_105, %c0_106], %270 {strides = array<i32>} : memref<16x32xf32, #tpu.memory_space<vmem>>, vector<16x32xf32>,
    return
  }
}

module attributes {stable_mosaic.version = 11 : i64} {
  func.func @_linear_kernel(%arg0: memref<16x32xf32, #tpu.memory_space<vmem>>, %arg1: memref<32x32xf32, #tpu.memory_space<vmem>>, %arg2: memref<1x32xf32, #tpu.memory_space<vmem>>, %arg3: memref<16x32xf32, #tpu.memory_space<vmem>>) attributes {dimension_semantics = [], scalar_prefetch = 0 : i64, scratch_operands = 0 : i64, tpu.core_type = #tpu.core_type<tc>} {
    %c0 = arith.constant 0 : index
    %c0_0 = arith.constant 0 : index
    %0 = vector.load %arg0[%c0, %c0_0] : memref<16x32xf32, #tpu.memory_space<vmem>>, vector<16x32xf32>
    %c0_1 = arith.constant 0 : index
    %c0_2 = arith.constant 0 : index
    %1 = vector.load %arg1[%c0_1, %c0_2] : memref<32x32xf32, #tpu.memory_space<vmem>>, vector<32x32xf32>
    %c0_3 = arith.constant 0 : index
    %c0_4 = arith.constant 0 : index
    %2 = vector.load %arg2[%c0_3, %c0_4] : memref<1x32xf32, #tpu.memory_space<vmem>>, vector<1x32xf32>
    %cst = arith.constant dense<0.000000e+00> : vector<16x32xf32>
    %3 = tpu.matmul %0, %1, %cst {dimension_numbers = #tpu.dot_dimension_numbers<[1], [0], [0], [1], [0, 0, 1, 1], [], []>} : vector<16x32xf32>, vector<32x32xf32>, vector<16x32xf32> -> vector<16x32xf32>
    %4 = vector.broadcast %2 : vector<1x32xf32> to vector<16x32xf32>
    %5 = arith.addf %3, %4 : vector<16x32xf32>
    %c0_5 = arith.constant 0 : index
    %c0_6 = arith.constant 0 : index
    %6 = vector.load %arg3[%c0_5, %c0_6] : memref<16x32xf32, #tpu.memory_space<vmem>>, vector<16x32xf32>
    tpu.vector_store %arg3[%c0_5, %c0_6], %5 {strides = array<i32>} : memref<16x32xf32, #tpu.memory_space<vmem>>, vector<16x32xf32>,
    return
  }
}

</mosaic_0001>

<llo_original>
// kernel: transformer_vae_forward.8
$region0: #{transformer_vae_forward.8}
  #allocation0 [shape = 'u32[]', space=smem, size = 0x4, offset = 0x4, fixed_abs, tag = 'smem constant byte address 0x4 - core index']
  #allocation1 [shape = 'u32[144,128]{1,0:T(1,128)}', space=vmem, size = 0x12000, scoped, tag = 'internal scratch']
  %s0 = inlined_call_operand.vmem [shape: f32[16,32], index: 0, kind: input, shape index: {}]
  %s1 = inlined_call_operand.vmem [shape: f32[32,64], index: 1, kind: input, shape index: {}]
  %s2 = inlined_call_operand.vmem [shape: f32[1,64], index: 2, kind: input, shape index: {}]
  %s3 = inlined_call_operand.vmem [shape: f32[16,32], index: 3, kind: input, shape index: {}]
  %s4 = inlined_call_operand.vmem [shape: f32[16,32], index: 4, kind: output, shape index: {0}]
  %s5 = inlined_call_operand.vmem [shape: f32[16,32], index: 5, kind: output, shape index: {1}]
  %s6 = inlined_call_operand.vmem [shape: f32[16,32], index: 6, kind: output, shape index: {2}]
  %7 = xla_tuple %s4, %s5, %s6
  %s8 = sld [smem:[#allocation0]]
  $region42: #{transformer_vae_forward.8} parent=0
    _
  %s10 = ssub.s32 1, %s8
  %s11 = scalar_select 0, %s10, %s8
  // Predicated region
  $region2: #{transformer_vae_forward.8} parent=0 // pred_check
    _
  $region3: #{transformer_vae_forward.8} parent=0 // pred_check_branch
    %13 = sbr.rel (0) target = $region5
  $region4: #{transformer_vae_forward.8} parent=0 // pred_region
    _
  $region5: #{transformer_vae_forward.8} parent=0 // pred_fallthru
    _
  // Predicated region
  $region6: #{transformer_vae_forward.8} parent=0 // pred_check
    _
  $region7: #{transformer_vae_forward.8} parent=0 // pred_check_branch
    %15 = sbr.rel (0) target = $region9
  $region8: #{transformer_vae_forward.8} parent=0 // pred_region
    _
  $region9: #{transformer_vae_forward.8} parent=0 // pred_fallthru
    _
  // Predicated region
  $region10: #{transformer_vae_forward.8} parent=0 // pred_check
    _
  $region11: #{transformer_vae_forward.8} parent=0 // pred_check_branch
    %17 = sbr.rel (0) target = $region13
  $region12: #{transformer_vae_forward.8} parent=0 // pred_region
    _
  $region13: #{transformer_vae_forward.8} parent=0 // pred_fallthru
    _
  // Predicated region
  $region14: #{transformer_vae_forward.8} parent=0 // pred_check
    _
  $region15: #{transformer_vae_forward.8} parent=0 // pred_check_branch
    %19 = sbr.rel (0) target = $region17
  $region16: #{transformer_vae_forward.8} parent=0 // pred_region
    _
  $region17: #{transformer_vae_forward.8} parent=0 // pred_fallthru
    _
  %v20 = vld [vmem:[%s0] sm:$0xff]
  %v21 = vld [vmem:[%s0 + $0x8] sm:$0xff]
  %v22 = vld [vmem:[%s1] sm:$0xff]
  %v23 = vld [vmem:[%s1 + $0x8] sm:$0xff]
  %v24 = vld [vmem:[%s1 + $0x10] sm:$0xff]
  %v25 = vld [vmem:[%s1 + $0x18] sm:$0xff]
  %v26 = vld [vmem:[%s2] sm:$0x1]
  %v28 = vlaneseq
  %v29 = vshrl.u32 %v28, 7
  %v30 = vsub.s32 0, %v29
  %v31 = vrot.slane %v26, %v30
  %vm33 = vcmask 261120
  %v35 = vsel %vm33, %v20, 0
  %v38 = vsel %vm33, %v21, 0
  %40 = vmatprep.subr.mxu0 0.0
  %41 = vmatpush1.msra.mxu0 %v22
  %42 = vmatprep.subr.mxu0 0.0
  %43 = vmatpush1.msra.mxu0 %v23
  %44 = vmatprep.subr.mxu0 0.0
  %45 = vmatpush1.msra.mxu0 %v24
  %46 = vmatprep.subr.mxu0 0.0
  %47 = vmatpush1.msra.mxu0 %v25
  %48 = vmatprep.subr.mxu0 0.0
  %49 = vmatpush1.msra.mxu0 0.0
  %50 = vmatprep.subr.mxu0 0.0
  %51 = vmatpush1.msra.mxu0 0.0
  %52 = vmatprep.subr.mxu0 0.0
  %53 = vmatpush1.msra.mxu0 0.0
  %54 = vmatprep.subr.mxu0 0.0
  %55 = vmatpush1.msra.mxu0 0.0
  %56 = vmatprep.subr.mxu0 0.0
  %57 = vmatpush1.msra.mxu0 0.0
  %58 = vmatprep.subr.mxu0 0.0
  %59 = vmatpush1.msra.mxu0 0.0
  %60 = vmatprep.subr.mxu0 0.0
  %61 = vmatpush1.msra.mxu0 0.0
  %62 = vmatprep.subr.mxu0 0.0
  %63 = vmatpush1.msra.mxu0 0.0
  %64 = vmatprep.subr.mxu0 0.0
  %65 = vmatpush1.msra.mxu0 0.0
  %66 = vmatprep.subr.mxu0 0.0
  %67 = vmatpush1.msra.mxu0 0.0
  %68 = vmatprep.subr.mxu0 0.0
  %69 = vmatpush1.msra.mxu0 0.0
  %70 = vmatprep.subr.mxu0 0.0
  %71 = vmatpush1.msra.mxu0 0.0
  %72 = vmatprep.subr.mxu0 0.0
  %73 = vmatpush1.msra.mxu0 0.0
  %74 = vmatprep.subr.mxu0 0.0
  %75 = vmatpush1.msra.mxu0 0.0
  %76 = vmatprep.subr.mxu0 0.0
  %77 = vmatpush1.msra.mxu0 0.0
  %78 = vmatprep.subr.mxu0 0.0
  %79 = vmatpush1.msra.mxu0 0.0
  %80 = vmatprep.subr.mxu0 0.0
  %81 = vmatpush1.msra.mxu0 0.0
  %82 = vmatprep.subr.mxu0 0.0
  %83 = vmatpush1.msra.mxu0 0.0
  %84 = vmatprep.subr.mxu0 0.0
  %85 = vmatpush1.msra.mxu0 0.0
  %86 = vmatprep.subr.mxu0 0.0
  %87 = vmatpush1.msra.mxu0 0.0
  %88 = vmatprep.subr.mxu0 0.0
  %89 = vmatpush1.msra.mxu0 0.0
  %90 = vmatprep.subr.mxu0 0.0
  %91 = vmatpush1.msra.mxu0 0.0
  %92 = vmatprep.subr.mxu0 0.0
  %93 = vmatpush1.msra.mxu0 0.0
  %94 = vmatprep.subr.mxu0 0.0
  %95 = vmatpush1.msra.mxu0 0.0
  %96 = vmatprep.subr.mxu0 0.0
  %97 = vmatpush1.msra.mxu0 0.0
  %98 = vmatprep.subr.mxu0 0.0
  %99 = vmatpush1.msra.mxu0 0.0
  %100 = vmatprep.subr.mxu0 0.0
  %101 = vmatpush1.msra.mxu0 0.0
  %102 = vmatprep.subr.mxu0 0.0
  %103 = vmatpush1.msra.mxu0 0.0
  %104 = vmatprep.mubr.f32.mxu0 0.0
  %105 = vmatmul.mubr.f32.gmra.mrb[0].mxu0 %v35
  %v106 = vpop.f32.mrb[0].mxu0
  %v107 = vadd.f32 %v31, %v106
  %v108 = vpop.f32.mrb[0].mxu0
  %109 = vmatprep.mubr.f32.mxu0 0.0
  %110 = vmatmul.mubr.f32.gmra.mrb[0].mxu0 %v38
  %v111 = vpop.f32.mrb[0].mxu0
  %v112 = vadd.f32 %v31, %v111
  %v113 = vpop.f32.mrb[0].mxu0
  %114 = vdwg.mxu0
  %115 = vst.msk [vmem:[%s4] sm:$0xff] %vm33, %v107
  %116 = vst.msk [vmem:[%s4 + $0x8] sm:$0xff] %vm33, %v112
  %119 = vrot.lane.b32.xlu0 %v107, 96
  %v120 = vpop.permute.xlu0 %119
  %121 = vrot.lane.b32.xlu0 %v112, 96
  %v122 = vpop.permute.xlu0 %121
  %125 = vst.msk [vmem:[%s5] sm:$0xff] %vm33, %v120
  %126 = vst.msk [vmem:[%s5 + $0x8] sm:$0xff] %vm33, %v122
  %v127 = vld [vmem:[%s3] sm:$0xff]
  %v128 = vld [vmem:[%s3 + $0x8] sm:$0xff]
  %v129 = vmul.f32 %v107, 0.5
  %v130 = vmul.f32 %v112, 0.5
  %v131 = vmul.f32 %v129, 1.442695
  %v132 = vpow.pop %v131
  %v133 = vmul.f32 %v130, 1.442695
  %v134 = vpow.pop %v133
  %137 = vrot.lane.b32.xlu0 %v132, 96
  %v138 = vpop.permute.xlu0 %137
  %139 = vrot.lane.b32.xlu0 %v134, 96
  %v140 = vpop.permute.xlu0 %139
  %v143 = vmul.f32 %v127, %v138
  %v144 = vmul.f32 %v128, %v140
  %v145 = vadd.f32 %v107, %v143
  %v146 = vadd.f32 %v112, %v144
  %147 = vst.msk [vmem:[%s6] sm:$0xff] %vm33, %v145
  %148 = vst.msk [vmem:[%s6 + $0x8] sm:$0xff] %vm33, %v146
  // Predicated region
  $region18: #{transformer_vae_forward.8} parent=0 // pred_check
    _
  $region19: #{transformer_vae_forward.8} parent=0 // pred_check_branch
    %150 = sbr.rel (0) target = $region21
  $region20: #{transformer_vae_forward.8} parent=0 // pred_region
    _
  $region21: #{transformer_vae_forward.8} parent=0 // pred_fallthru
    _
  // Predicated region
  $region22: #{transformer_vae_forward.8} parent=0 // pred_check
    _
  $region23: #{transformer_vae_forward.8} parent=0 // pred_check_branch
    %152 = sbr.rel (0) target = $region25
  $region24: #{transformer_vae_forward.8} parent=0 // pred_region
    _
  $region25: #{transformer_vae_forward.8} parent=0 // pred_fallthru
    _
  // Predicated region
  $region26: #{transformer_vae_forward.8} parent=0 // pred_check
    _
  $region27: #{transformer_vae_forward.8} parent=0 // pred_check_branch
    %154 = sbr.rel (0) target = $region29
  $region28: #{transformer_vae_forward.8} parent=0 // pred_region
    _
  $region29: #{transformer_vae_forward.8} parent=0 // pred_fallthru
    _
  // Predicated region
  $region30: #{transformer_vae_forward.8} parent=0 // pred_check
    _
  $region31: #{transformer_vae_forward.8} parent=0 // pred_check_branch
    %156 = sbr.rel (0) target = $region33
  $region32: #{transformer_vae_forward.8} parent=0 // pred_region
    _
  $region33: #{transformer_vae_forward.8} parent=0 // pred_fallthru
    _
  // Predicated region
  $region34: #{transformer_vae_forward.8} parent=0 // pred_check
    _
  $region35: #{transformer_vae_forward.8} parent=0 // pred_check_branch
    %158 = sbr.rel (0) target = $region37
  $region36: #{transformer_vae_forward.8} parent=0 // pred_region
    _
  $region37: #{transformer_vae_forward.8} parent=0 // pred_fallthru
    _
  // Predicated region
  $region38: #{transformer_vae_forward.8} parent=0 // pred_check
    _
  $region39: #{transformer_vae_forward.8} parent=0 // pred_check_branch
    %160 = sbr.rel (0) target = $region41
  $region40: #{transformer_vae_forward.8} parent=0 // pred_region
    _
  $region41: #{transformer_vae_forward.8} parent=0 // pred_fallthru
    _

// kernel: transformer_vae_forward.6
$region0: #{transformer_vae_forward.6}
  #allocation0 [shape = 'u32[]', space=smem, size = 0x4, offset = 0x4, fixed_abs, tag = 'smem constant byte address 0x4 - core index']
  #allocation1 [shape = 'u32[144,128]{1,0:T(1,128)}', space=vmem, size = 0x12000, scoped, tag = 'internal scratch']
  %s0 = inlined_call_operand.vmem [shape: f32[16,32], index: 0, kind: input, shape index: {}]
  %s1 = inlined_call_operand.vmem [shape: f32[32,96], index: 1, kind: input, shape index: {}]
  %s2 = inlined_call_operand.vmem [shape: f32[1,96], index: 2, kind: input, shape index: {}]
  %s3 = inlined_call_operand.vmem [shape: f32[32,32], index: 3, kind: input, shape index: {}]
  %s4 = inlined_call_operand.vmem [shape: f32[1,32], index: 4, kind: input, shape index: {}]
  %s5 = inlined_call_operand.vmem [shape: f32[1,32], index: 5, kind: input, shape index: {}]
  %s6 = inlined_call_operand.vmem [shape: f32[1,32], index: 6, kind: input, shape index: {}]
  %s7 = inlined_call_operand.vmem [shape: f32[32,64], index: 7, kind: input, shape index: {}]
  %s8 = inlined_call_operand.vmem [shape: f32[1,64], index: 8, kind: input, shape index: {}]
  %s9 = inlined_call_operand.vmem [shape: f32[64,32], index: 9, kind: input, shape index: {}]
  %s10 = inlined_call_operand.vmem [shape: f32[1,32], index: 10, kind: input, shape index: {}]
  %s11 = inlined_call_operand.vmem [shape: f32[1,32], index: 11, kind: input, shape index: {}]
  %s12 = inlined_call_operand.vmem [shape: f32[1,32], index: 12, kind: input, shape index: {}]
  %s13 = inlined_call_operand.vmem [shape: f32[16,32], index: 13, kind: output, shape index: {}]
  %s14 = sld [smem:[#allocation0]]
  $region62: #{transformer_vae_forward.6} parent=0
    _
  %s16 = ssub.s32 1, %s14
  %s17 = scalar_select 0, %s16, %s14
  // Predicated region
  $region2: #{transformer_vae_forward.6} parent=0 // pred_check
    _
  $region3: #{transformer_vae_forward.6} parent=0 // pred_check_branch
    %19 = sbr.rel (0) target = $region5
  $region4: #{transformer_vae_forward.6} parent=0 // pred_region
    _
  $region5: #{transformer_vae_forward.6} parent=0 // pred_fallthru
    _
  // Predicated region
  $region6: #{transformer_vae_forward.6} parent=0 // pred_check
    _
  $region7: #{transformer_vae_forward.6} parent=0 // pred_check_branch
    %21 = sbr.rel (0) target = $region9
  $region8: #{transformer_vae_forward.6} parent=0 // pred_region
    _
  $region9: #{transformer_vae_forward.6} parent=0 // pred_fallthru
    _
  // Predicated region
  $region10: #{transformer_vae_forward.6} parent=0 // pred_check
    _
  $region11: #{transformer_vae_forward.6} parent=0 // pred_check_branch
    %23 = sbr.rel (0) target = $region13
  $region12: #{transformer_vae_forward.6} parent=0 // pred_region
    _
  $region13: #{transformer_vae_forward.6} parent=0 // pred_fallthru
    _
  // Predicated region
  $region14: #{transformer_vae_forward.6} parent=0 // pred_check
    _
  $region15: #{transformer_vae_forward.6} parent=0 // pred_check_branch
    %25 = sbr.rel (0) target = $region17
  $region16: #{transformer_vae_forward.6} parent=0 // pred_region
    _
  $region17: #{transformer_vae_forward.6} parent=0 // pred_fallthru
    _
  // Predicated region
  $region18: #{transformer_vae_forward.6} parent=0 // pred_check
    _
  $region19: #{transformer_vae_forward.6} parent=0 // pred_check_branch
    %27 = sbr.rel (0) target = $region21
  $region20: #{transformer_vae_forward.6} parent=0 // pred_region
    _
  $region21: #{transformer_vae_forward.6} parent=0 // pred_fallthru
    _
  // Predicated region
  $region22: #{transformer_vae_forward.6} parent=0 // pred_check
    _
  $region23: #{transformer_vae_forward.6} parent=0 // pred_check_branch
    %29 = sbr.rel (0) target = $region25
  $region24: #{transformer_vae_forward.6} parent=0 // pred_region
    _
  $region25: #{transformer_vae_forward.6} parent=0 // pred_fallthru
    _
  // Predicated region
  $region26: #{transformer_vae_forward.6} parent=0 // pred_check
    _
  $region27: #{transformer_vae_forward.6} parent=0 // pred_check_branch
    %31 = sbr.rel (0) target = $region29
  $region28: #{transformer_vae_forward.6} parent=0 // pred_region
    _
  $region29: #{transformer_vae_forward.6} parent=0 // pred_fallthru
    _
  // Predicated region
  $region30: #{transformer_vae_forward.6} parent=0 // pred_check
    _
  $region31: #{transformer_vae_forward.6} parent=0 // pred_check_branch
    %33 = sbr.rel (0) target = $region33
  $region32: #{transformer_vae_forward.6} parent=0 // pred_region
    _
  $region33: #{transformer_vae_forward.6} parent=0 // pred_fallthru
    _
  // Predicated region
  $region34: #{transformer_vae_forward.6} parent=0 // pred_check
    _
  $region35: #{transformer_vae_forward.6} parent=0 // pred_check_branch
    %35 = sbr.rel (0) target = $region37
  $region36: #{transformer_vae_forward.6} parent=0 // pred_region
    _
  $region37: #{transformer_vae_forward.6} parent=0 // pred_fallthru
    _
  // Predicated region
  $region38: #{transformer_vae_forward.6} parent=0 // pred_check
    _
  $region39: #{transformer_vae_forward.6} parent=0 // pred_check_branch
    %37 = sbr.rel (0) target = $region41
  $region40: #{transformer_vae_forward.6} parent=0 // pred_region
    _
  $region41: #{transformer_vae_forward.6} parent=0 // pred_fallthru
    _
  // Predicated region
  $region42: #{transformer_vae_forward.6} parent=0 // pred_check
    _
  $region43: #{transformer_vae_forward.6} parent=0 // pred_check_branch
    %39 = sbr.rel (0) target = $region45
  $region44: #{transformer_vae_forward.6} parent=0 // pred_region
    _
  $region45: #{transformer_vae_forward.6} parent=0 // pred_fallthru
    _
  // Predicated region
  $region46: #{transformer_vae_forward.6} parent=0 // pred_check
    _
  $region47: #{transformer_vae_forward.6} parent=0 // pred_check_branch
    %41 = sbr.rel (0) target = $region49
  $region48: #{transformer_vae_forward.6} parent=0 // pred_region
    _
  $region49: #{transformer_vae_forward.6} parent=0 // pred_fallthru
    _
  // Predicated region
  $region50: #{transformer_vae_forward.6} parent=0 // pred_check
    _
  $region51: #{transformer_vae_forward.6} parent=0 // pred_check_branch
    %43 = sbr.rel (0) target = $region53
  $region52: #{transformer_vae_forward.6} parent=0 // pred_region
    _
  $region53: #{transformer_vae_forward.6} parent=0 // pred_fallthru
    _
  %v44 = vld [vmem:[%s0] sm:$0xff]
  %v45 = vld [vmem:[%s0 + $0x8] sm:$0xff]
  %v46 = vld [vmem:[%s1] sm:$0xff]
  %v47 = vld [vmem:[%s1 + $0x8] sm:$0xff]
  %v48 = vld [vmem:[%s1 + $0x10] sm:$0xff]
  %v49 = vld [vmem:[%s1 + $0x18] sm:$0xff]
  %v50 = vld [vmem:[%s2] sm:$0x1]
  %v52 = vlaneseq
  %v53 = vshrl.u32 %v52, 7
  %v54 = vsub.s32 0, %v53
  %v55 = vrot.slane %v50, %v54
  %vm57 = vcmask 261120
  %v59 = vsel %vm57, %v44, 0
  %v62 = vsel %vm57, %v45, 0
  %64 = vmatprep.subr.mxu0 0.0
  %65 = vmatpush1.msra.mxu0 %v46
  %66 = vmatprep.subr.mxu0 0.0
  %67 = vmatpush1.msra.mxu0 %v47
  %68 = vmatprep.subr.mxu0 0.0
  %69 = vmatpush1.msra.mxu0 %v48
  %70 = vmatprep.subr.mxu0 0.0
  %71 = vmatpush1.msra.mxu0 %v49
  %72 = vmatprep.subr.mxu0 0.0
  %73 = vmatpush1.msra.mxu0 0.0
  %74 = vmatprep.subr.mxu0 0.0
  %75 = vmatpush1.msra.mxu0 0.0
  %76 = vmatprep.subr.mxu0 0.0
  %77 = vmatpush1.msra.mxu0 0.0
  %78 = vmatprep.subr.mxu0 0.0
  %79 = vmatpush1.msra.mxu0 0.0
  %80 = vmatprep.subr.mxu0 0.0
  %81 = vmatpush1.msra.mxu0 0.0
  %82 = vmatprep.subr.mxu0 0.0
  %83 = vmatpush1.msra.mxu0 0.0
  %84 = vmatprep.subr.mxu0 0.0
  %85 = vmatpush1.msra.mxu0 0.0
  %86 = vmatprep.subr.mxu0 0.0
  %87 = vmatpush1.msra.mxu0 0.0
  %88 = vmatprep.subr.mxu0 0.0
  %89 = vmatpush1.msra.mxu0 0.0
  %90 = vmatprep.subr.mxu0 0.0
  %91 = vmatpush1.msra.mxu0 0.0
  %92 = vmatprep.subr.mxu0 0.0
  %93 = vmatpush1.msra.mxu0 0.0
  %94 = vmatprep.subr.mxu0 0.0
  %95 = vmatpush1.msra.mxu0 0.0
  %96 = vmatprep.subr.mxu0 0.0
  %97 = vmatpush1.msra.mxu0 0.0
  %98 = vmatprep.subr.mxu0 0.0
  %99 = vmatpush1.msra.mxu0 0.0
  %100 = vmatprep.subr.mxu0 0.0
  %101 = vmatpush1.msra.mxu0 0.0
  %102 = vmatprep.subr.mxu0 0.0
  %103 = vmatpush1.msra.mxu0 0.0
  %104 = vmatprep.subr.mxu0 0.0
  %105 = vmatpush1.msra.mxu0 0.0
  %106 = vmatprep.subr.mxu0 0.0
  %107 = vmatpush1.msra.mxu0 0.0
  %108 = vmatprep.subr.mxu0 0.0
  %109 = vmatpush1.msra.mxu0 0.0
  %110 = vmatprep.subr.mxu0 0.0
  %111 = vmatpush1.msra.mxu0 0.0
  %112 = vmatprep.subr.mxu0 0.0
  %113 = vmatpush1.msra.mxu0 0.0
  %114 = vmatprep.subr.mxu0 0.0
  %115 = vmatpush1.msra.mxu0 0.0
  %116 = vmatprep.subr.mxu0 0.0
  %117 = vmatpush1.msra.mxu0 0.0
  %118 = vmatprep.subr.mxu0 0.0
  %119 = vmatpush1.msra.mxu0 0.0
  %120 = vmatprep.subr.mxu0 0.0
  %121 = vmatpush1.msra.mxu0 0.0
  %122 = vmatprep.subr.mxu0 0.0
  %123 = vmatpush1.msra.mxu0 0.0
  %124 = vmatprep.subr.mxu0 0.0
  %125 = vmatpush1.msra.mxu0 0.0
  %126 = vmatprep.subr.mxu0 0.0
  %127 = vmatpush1.msra.mxu0 0.0
  %128 = vmatprep.mubr.f32.mxu0 0.0
  %129 = vmatmul.mubr.f32.gmra.mrb[0].mxu0 %v59
  %v130 = vpop.f32.mrb[0].mxu0
  %v131 = vadd.f32 %v55, %v130
  %v132 = vpop.f32.mrb[0].mxu0
  %133 = vmatprep.mubr.f32.mxu0 0.0
  %134 = vmatmul.mubr.f32.gmra.mrb[0].mxu0 %v62
  %v135 = vpop.f32.mrb[0].mxu0
  %v136 = vadd.f32 %v55, %v135
  %v137 = vpop.f32.mrb[0].mxu0
  %138 = vdwg.mxu0
  %140 = vrot.lane.b32.xlu0 %v131, 96
  %v141 = vpop.permute.xlu0 %140
  %vm142 = vcmask 64512
  %v143 = vsel %vm142, %v131, 0
  %v145 = vsel %vm142, %v141, 0
  %147 = vmatprep.subr.mxu0 0.0
  %148 = vmatpush1.xpose.msra.mxu0 %v145
  %149 = vmatprep.subr.mxu0 0.0
  %150 = vmatpush1.xpose.msra.mxu0 0.0
  %151 = vmatprep.subr.mxu0 0.0
  %152 = vmatpush1.xpose.msra.mxu0 0.0
  %153 = vmatprep.subr.mxu0 0.0
  %154 = vmatpush1.xpose.msra.mxu0 0.0
  %155 = vmatprep.subr.mxu0 0.0
  %156 = vmatpush1.xpose.msra.mxu0 0.0
  %157 = vmatprep.subr.mxu0 0.0
  %158 = vmatpush1.xpose.msra.mxu0 0.0
  %159 = vmatprep.subr.mxu0 0.0
  %160 = vmatpush1.xpose.msra.mxu0 0.0
  %161 = vmatprep.subr.mxu0 0.0
  %162 = vmatpush1.xpose.msra.mxu0 0.0
  %163 = vmatprep.subr.mxu0 0.0
  %164 = vmatpush1.xpose.msra.mxu0 0.0
  %165 = vmatprep.subr.mxu0 0.0
  %166 = vmatpush1.xpose.msra.mxu0 0.0
  %167 = vmatprep.subr.mxu0 0.0
  %168 = vmatpush1.xpose.msra.mxu0 0.0
  %169 = vmatprep.subr.mxu0 0.0
  %170 = vmatpush1.xpose.msra.mxu0 0.0
  %171 = vmatprep.subr.mxu0 0.0
  %172 = vmatpush1.xpose.msra.mxu0 0.0
  %173 = vmatprep.subr.mxu0 0.0
  %174 = vmatpush1.xpose.msra.mxu0 0.0
  %175 = vmatprep.subr.mxu0 0.0
  %176 = vmatpush1.xpose.msra.mxu0 0.0
  %177 = vmatprep.subr.mxu0 0.0
  %178 = vmatpush1.xpose.msra.mxu0 0.0
  %179 = vmatprep.subr.mxu0 0.0
  %180 = vmatpush1.xpose.msra.mxu0 0.0
  %181 = vmatprep.subr.mxu0 0.0
  %182 = vmatpush1.xpose.msra.mxu0 0.0
  %183 = vmatprep.subr.mxu0 0.0
  %184 = vmatpush1.xpose.msra.mxu0 0.0
  %185 = vmatprep.subr.mxu0 0.0
  %186 = vmatpush1.xpose.msra.mxu0 0.0
  %187 = vmatprep.subr.mxu0 0.0
  %188 = vmatpush1.xpose.msra.mxu0 0.0
  %189 = vmatprep.subr.mxu0 0.0
  %190 = vmatpush1.xpose.msra.mxu0 0.0
  %191 = vmatprep.subr.mxu0 0.0
  %192 = vmatpush1.xpose.msra.mxu0 0.0
  %193 = vmatprep.subr.mxu0 0.0
  %194 = vmatpush1.xpose.msra.mxu0 0.0
  %195 = vmatprep.subr.mxu0 0.0
  %196 = vmatpush1.xpose.msra.mxu0 0.0
  %197 = vmatprep.subr.mxu0 0.0
  %198 = vmatpush1.xpose.msra.mxu0 0.0
  %199 = vmatprep.subr.mxu0 0.0
  %200 = vmatpush1.xpose.msra.mxu0 0.0
  %201 = vmatprep.subr.mxu0 0.0
  %202 = vmatpush1.xpose.msra.mxu0 0.0
  %203 = vmatprep.subr.mxu0 0.0
  %204 = vmatpush1.xpose.msra.mxu0 0.0
  %205 = vmatprep.subr.mxu0 0.0
  %206 = vmatpush1.xpose.msra.mxu0 0.0
  %207 = vmatprep.subr.mxu0 0.0
  %208 = vmatpush1.xpose.msra.mxu0 0.0
  %209 = vmatprep.subr.mxu0 0.0
  %210 = vmatpush1.xpose.msra.mxu0 0.0
  %211 = vmatprep.mubr.f32.mxu0 0.0
  %212 = vmatmul.mubr.f32.gmra.mrb[0].mxu0 %v143
  %v213 = vpop.f32.mrb[0].mxu0
  %v214 = vadd.f32 0.0, %v213
  %v215 = vpop.f32.mrb[0].mxu0
  %216 = vdwg.mxu0
  %218 = vrot.lane.b32.xlu0 %v136, 96
  %v219 = vpop.permute.xlu0 %218
  %v220 = vsel %vm142, %v136, 0
  %v222 = vsel %vm142, %v219, 0
  %224 = vmatprep.subr.mxu0 0.0
  %225 = vmatpush1.xpose.msra.mxu0 %v222
  %226 = vmatprep.subr.mxu0 0.0
  %227 = vmatpush1.xpose.msra.mxu0 0.0
  %228 = vmatprep.subr.mxu0 0.0
  %229 = vmatpush1.xpose.msra.mxu0 0.0
  %230 = vmatprep.subr.mxu0 0.0
  %231 = vmatpush1.xpose.msra.mxu0 0.0
  %232 = vmatprep.subr.mxu0 0.0
  %233 = vmatpush1.xpose.msra.mxu0 0.0
  %234 = vmatprep.subr.mxu0 0.0
  %235 = vmatpush1.xpose.msra.mxu0 0.0
  %236 = vmatprep.subr.mxu0 0.0
  %237 = vmatpush1.xpose.msra.mxu0 0.0
  %238 = vmatprep.subr.mxu0 0.0
  %239 = vmatpush1.xpose.msra.mxu0 0.0
  %240 = vmatprep.subr.mxu0 0.0
  %241 = vmatpush1.xpose.msra.mxu0 0.0
  %242 = vmatprep.subr.mxu0 0.0
  %243 = vmatpush1.xpose.msra.mxu0 0.0
  %244 = vmatprep.subr.mxu0 0.0
  %245 = vmatpush1.xpose.msra.mxu0 0.0
  %246 = vmatprep.subr.mxu0 0.0
  %247 = vmatpush1.xpose.msra.mxu0 0.0
  %248 = vmatprep.subr.mxu0 0.0
  %249 = vmatpush1.xpose.msra.mxu0 0.0
  %250 = vmatprep.subr.mxu0 0.0
  %251 = vmatpush1.xpose.msra.mxu0 0.0
  %252 = vmatprep.subr.mxu0 0.0
  %253 = vmatpush1.xpose.msra.mxu0 0.0
  %254 = vmatprep.subr.mxu0 0.0
  %255 = vmatpush1.xpose.msra.mxu0 0.0
  %256 = vmatprep.subr.mxu0 0.0
  %257 = vmatpush1.xpose.msra.mxu0 0.0
  %258 = vmatprep.subr.mxu0 0.0
  %259 = vmatpush1.xpose.msra.mxu0 0.0
  %260 = vmatprep.subr.mxu0 0.0
  %261 = vmatpush1.xpose.msra.mxu0 0.0
  %262 = vmatprep.subr.mxu0 0.0
  %263 = vmatpush1.xpose.msra.mxu0 0.0
  %264 = vmatprep.subr.mxu0 0.0
  %265 = vmatpush1.xpose.msra.mxu0 0.0
  %266 = vmatprep.subr.mxu0 0.0
  %267 = vmatpush1.xpose.msra.mxu0 0.0
  %268 = vmatprep.subr.mxu0 0.0
  %269 = vmatpush1.xpose.msra.mxu0 0.0
  %270 = vmatprep.subr.mxu0 0.0
  %271 = vmatpush1.xpose.msra.mxu0 0.0
  %272 = vmatprep.subr.mxu0 0.0
  %273 = vmatpush1.xpose.msra.mxu0 0.0
  %274 = vmatprep.subr.mxu0 0.0
  %275 = vmatpush1.xpose.msra.mxu0 0.0
  %276 = vmatprep.subr.mxu0 0.0
  %277 = vmatpush1.xpose.msra.mxu0 0.0
  %278 = vmatprep.subr.mxu0 0.0
  %279 = vmatpush1.xpose.msra.mxu0 0.0
  %280 = vmatprep.subr.mxu0 0.0
  %281 = vmatpush1.xpose.msra.mxu0 0.0
  %282 = vmatprep.subr.mxu0 0.0
  %283 = vmatpush1.xpose.msra.mxu0 0.0
  %284 = vmatprep.subr.mxu0 0.0
  %285 = vmatpush1.xpose.msra.mxu0 0.0
  %286 = vmatprep.subr.mxu0 0.0
  %287 = vmatpush1.xpose.msra.mxu0 0.0
  %288 = vmatprep.mubr.f32.mxu0 0.0
  %289 = vmatmul.mubr.f32.gmra.mrb[0].mxu0 %v220
  %v290 = vpop.f32.mrb[0].mxu0
  %v291 = vadd.f32 0.0, %v290
  %v292 = vpop.f32.mrb[0].mxu0
  %293 = vdwg.mxu0
  %v294 = vmul.f32 %v214, 0.35355338
  %v295 = vmul.f32 %v291, 0.35355338
  %v296 = vsel %vm142, %v294, -inf
  %297 = vmax.xlane.f32.xlu0 %v296
  %v298 = vpop.xlane.xlu0 %297
  %v299 = vsel %vm142, %v295, -inf
  %300 = vmax.xlane.f32.xlu0 %v299
  %v301 = vpop.xlane.xlu0 %300
  %v302 = vsub.f32 %v294, %v298
  %v303 = vsub.f32 %v295, %v301
  %v304 = vmul.f32 %v302, 1.442695
  %v305 = vpow.pop %v304
  %v306 = vmul.f32 %v303, 1.442695
  %v307 = vpow.pop %v306
  %v308 = vsel %vm142, %v305, 0.0
  %309 = vadd.xlane.f32.xlu0 %v308
  %v310 = vpop.xlane.xlu0 %309
  %v311 = vsel %vm142, %v307, 0.0
  %312 = vadd.xlane.f32.xlu0 %v311
  %v313 = vpop.xlane.xlu0 %312
  %v314 = vrcp.pop %v310
  %v315 = vrcp.pop %v313
  %v316 = vmul.f32 %v305, %v314
  %v317 = vmul.f32 %v307, %v315
  %318 = vrot.lane.b32.xlu0 %v131, 64
  %v319 = vpop.permute.xlu0 %318
  %v322 = vsel %vm142, %v316, 0
  %324 = vmatprep.subr.mxu0 0.0
  %325 = vmatpush1.msra.mxu0 %v319
  %326 = vmatprep.subr.mxu0 0.0
  %327 = vmatpush1.msra.mxu0 0.0
  %328 = vmatprep.subr.mxu0 0.0
  %329 = vmatpush1.msra.mxu0 0.0
  %330 = vmatprep.subr.mxu0 0.0
  %331 = vmatpush1.msra.mxu0 0.0
  %332 = vmatprep.subr.mxu0 0.0
  %333 = vmatpush1.msra.mxu0 0.0
  %334 = vmatprep.subr.mxu0 0.0
  %335 = vmatpush1.msra.mxu0 0.0
  %336 = vmatprep.subr.mxu0 0.0
  %337 = vmatpush1.msra.mxu0 0.0
  %338 = vmatprep.subr.mxu0 0.0
  %339 = vmatpush1.msra.mxu0 0.0
  %340 = vmatprep.subr.mxu0 0.0
  %341 = vmatpush1.msra.mxu0 0.0
  %342 = vmatprep.subr.mxu0 0.0
  %343 = vmatpush1.msra.mxu0 0.0
  %344 = vmatprep.subr.mxu0 0.0
  %345 = vmatpush1.msra.mxu0 0.0
  %346 = vmatprep.subr.mxu0 0.0
  %347 = vmatpush1.msra.mxu0 0.0
  %348 = vmatprep.subr.mxu0 0.0
  %349 = vmatpush1.msra.mxu0 0.0
  %350 = vmatprep.subr.mxu0 0.0
  %351 = vmatpush1.msra.mxu0 0.0
  %352 = vmatprep.subr.mxu0 0.0
  %353 = vmatpush1.msra.mxu0 0.0
  %354 = vmatprep.subr.mxu0 0.0
  %355 = vmatpush1.msra.mxu0 0.0
  %356 = vmatprep.subr.mxu0 0.0
  %357 = vmatpush1.msra.mxu0 0.0
  %358 = vmatprep.subr.mxu0 0.0
  %359 = vmatpush1.msra.mxu0 0.0
  %360 = vmatprep.subr.mxu0 0.0
  %361 = vmatpush1.msra.mxu0 0.0
  %362 = vmatprep.subr.mxu0 0.0
  %363 = vmatpush1.msra.mxu0 0.0
  %364 = vmatprep.subr.mxu0 0.0
  %365 = vmatpush1.msra.mxu0 0.0
  %366 = vmatprep.subr.mxu0 0.0
  %367 = vmatpush1.msra.mxu0 0.0
  %368 = vmatprep.subr.mxu0 0.0
  %369 = vmatpush1.msra.mxu0 0.0
  %370 = vmatprep.subr.mxu0 0.0
  %371 = vmatpush1.msra.mxu0 0.0
  %372 = vmatprep.subr.mxu0 0.0
  %373 = vmatpush1.msra.mxu0 0.0
  %374 = vmatprep.subr.mxu0 0.0
  %375 = vmatpush1.msra.mxu0 0.0
  %376 = vmatprep.subr.mxu0 0.0
  %377 = vmatpush1.msra.mxu0 0.0
  %378 = vmatprep.subr.mxu0 0.0
  %379 = vmatpush1.msra.mxu0 0.0
  %380 = vmatprep.subr.mxu0 0.0
  %381 = vmatpush1.msra.mxu0 0.0
  %382 = vmatprep.subr.mxu0 0.0
  %383 = vmatpush1.msra.mxu0 0.0
  %384 = vmatprep.subr.mxu0 0.0
  %385 = vmatpush1.msra.mxu0 0.0
  %386 = vmatprep.subr.mxu0 0.0
  %387 = vmatpush1.msra.mxu0 0.0
  %388 = vmatprep.mubr.f32.mxu0 0.0
  %389 = vmatmul.mubr.f32.gmra.mrb[0].mxu0 %v322
  %v390 = vpop.f32.mrb[0].mxu0
  %v391 = vadd.f32 0.0, %v390
  %v392 = vpop.f32.mrb[0].mxu0
  %393 = vdwg.mxu0
  %394 = vrot.lane.b32.xlu0 %v136, 64
  %v395 = vpop.permute.xlu0 %394
  %v398 = vsel %vm142, %v317, 0
  %400 = vmatprep.subr.mxu0 0.0
  %401 = vmatpush1.msra.mxu0 %v395
  %402 = vmatprep.subr.mxu0 0.0
  %403 = vmatpush1.msra.mxu0 0.0
  %404 = vmatprep.subr.mxu0 0.0
  %405 = vmatpush1.msra.mxu0 0.0
  %406 = vmatprep.subr.mxu0 0.0
  %407 = vmatpush1.msra.mxu0 0.0
  %408 = vmatprep.subr.mxu0 0.0
  %409 = vmatpush1.msra.mxu0 0.0
  %410 = vmatprep.subr.mxu0 0.0
  %411 = vmatpush1.msra.mxu0 0.0
  %412 = vmatprep.subr.mxu0 0.0
  %413 = vmatpush1.msra.mxu0 0.0
  %414 = vmatprep.subr.mxu0 0.0
  %415 = vmatpush1.msra.mxu0 0.0
  %416 = vmatprep.subr.mxu0 0.0
  %417 = vmatpush1.msra.mxu0 0.0
  %418 = vmatprep.subr.mxu0 0.0
  %419 = vmatpush1.msra.mxu0 0.0
  %420 = vmatprep.subr.mxu0 0.0
  %421 = vmatpush1.msra.mxu0 0.0
  %422 = vmatprep.subr.mxu0 0.0
  %423 = vmatpush1.msra.mxu0 0.0
  %424 = vmatprep.subr.mxu0 0.0
  %425 = vmatpush1.msra.mxu0 0.0
  %426 = vmatprep.subr.mxu0 0.0
  %427 = vmatpush1.msra.mxu0 0.0
  %428 = vmatprep.subr.mxu0 0.0
  %429 = vmatpush1.msra.mxu0 0.0
  %430 = vmatprep.subr.mxu0 0.0
  %431 = vmatpush1.msra.mxu0 0.0
  %432 = vmatprep.subr.mxu0 0.0
  %433 = vmatpush1.msra.mxu0 0.0
  %434 = vmatprep.subr.mxu0 0.0
  %435 = vmatpush1.msra.mxu0 0.0
  %436 = vmatprep.subr.mxu0 0.0
  %437 = vmatpush1.msra.mxu0 0.0
  %438 = vmatprep.subr.mxu0 0.0
  %439 = vmatpush1.msra.mxu0 0.0
  %440 = vmatprep.subr.mxu0 0.0
  %441 = vmatpush1.msra.mxu0 0.0
  %442 = vmatprep.subr.mxu0 0.0
  %443 = vmatpush1.msra.mxu0 0.0
  %444 = vmatprep.subr.mxu0 0.0
  %445 = vmatpush1.msra.mxu0 0.0
  %446 = vmatprep.subr.mxu0 0.0
  %447 = vmatpush1.msra.mxu0 0.0
  %448 = vmatprep.subr.mxu0 0.0
  %449 = vmatpush1.msra.mxu0 0.0
  %450 = vmatprep.subr.mxu0 0.0
  %451 = vmatpush1.msra.mxu0 0.0
  %452 = vmatprep.subr.mxu0 0.0
  %453 = vmatpush1.msra.mxu0 0.0
  %454 = vmatprep.subr.mxu0 0.0
  %455 = vmatpush1.msra.mxu0 0.0
  %456 = vmatprep.subr.mxu0 0.0
  %457 = vmatpush1.msra.mxu0 0.0
  %458 = vmatprep.subr.mxu0 0.0
  %459 = vmatpush1.msra.mxu0 0.0
  %460 = vmatprep.subr.mxu0 0.0
  %461 = vmatpush1.msra.mxu0 0.0
  %462 = vmatprep.subr.mxu0 0.0
  %463 = vmatpush1.msra.mxu0 0.0
  %464 = vmatprep.mubr.f32.mxu0 0.0
  %465 = vmatmul.mubr.f32.gmra.mrb[0].mxu0 %v398
  %v466 = vpop.f32.mrb[0].mxu0
  %v467 = vadd.f32 0.0, %v466
  %v468 = vpop.f32.mrb[0].mxu0
  %469 = vdwg.mxu0
  %470 = vrot.lane.b32.xlu0 %v131, 120
  %v471 = vpop.permute.xlu0 %470
  %472 = vrot.lane.b32.xlu0 %v131, 88
  %v473 = vpop.permute.xlu0 %472
  %v474 = vsel %vm142, %v471, 0
  %v476 = vsel %vm142, %v473, 0
  %478 = vmatprep.subr.mxu0 0.0
  %479 = vmatpush1.xpose.msra.mxu0 %v476
  %480 = vmatprep.subr.mxu0 0.0
  %481 = vmatpush1.xpose.msra.mxu0 0.0
  %482 = vmatprep.subr.mxu0 0.0
  %483 = vmatpush1.xpose.msra.mxu0 0.0
  %484 = vmatprep.subr.mxu0 0.0
  %485 = vmatpush1.xpose.msra.mxu0 0.0
  %486 = vmatprep.subr.mxu0 0.0
  %487 = vmatpush1.xpose.msra.mxu0 0.0
  %488 = vmatprep.subr.mxu0 0.0
  %489 = vmatpush1.xpose.msra.mxu0 0.0
  %490 = vmatprep.subr.mxu0 0.0
  %491 = vmatpush1.xpose.msra.mxu0 0.0
  %492 = vmatprep.subr.mxu0 0.0
  %493 = vmatpush1.xpose.msra.mxu0 0.0
  %494 = vmatprep.subr.mxu0 0.0
  %495 = vmatpush1.xpose.msra.mxu0 0.0
  %496 = vmatprep.subr.mxu0 0.0
  %497 = vmatpush1.xpose.msra.mxu0 0.0
  %498 = vmatprep.subr.mxu0 0.0
  %499 = vmatpush1.xpose.msra.mxu0 0.0
  %500 = vmatprep.subr.mxu0 0.0
  %501 = vmatpush1.xpose.msra.mxu0 0.0
  %502 = vmatprep.subr.mxu0 0.0
  %503 = vmatpush1.xpose.msra.mxu0 0.0
  %504 = vmatprep.subr.mxu0 0.0
  %505 = vmatpush1.xpose.msra.mxu0 0.0
  %506 = vmatprep.subr.mxu0 0.0
  %507 = vmatpush1.xpose.msra.mxu0 0.0
  %508 = vmatprep.subr.mxu0 0.0
  %509 = vmatpush1.xpose.msra.mxu0 0.0
  %510 = vmatprep.subr.mxu0 0.0
  %511 = vmatpush1.xpose.msra.mxu0 0.0
  %512 = vmatprep.subr.mxu0 0.0
  %513 = vmatpush1.xpose.msra.mxu0 0.0
  %514 = vmatprep.subr.mxu0 0.0
  %515 = vmatpush1.xpose.msra.mxu0 0.0
  %516 = vmatprep.subr.mxu0 0.0
  %517 = vmatpush1.xpose.msra.mxu0 0.0
  %518 = vmatprep.subr.mxu0 0.0
  %519 = vmatpush1.xpose.msra.mxu0 0.0
  %520 = vmatprep.subr.mxu0 0.0
  %521 = vmatpush1.xpose.msra.mxu0 0.0
  %522 = vmatprep.subr.mxu0 0.0
  %523 = vmatpush1.xpose.msra.mxu0 0.0
  %524 = vmatprep.subr.mxu0 0.0
  %525 = vmatpush1.xpose.msra.mxu0 0.0
  %526 = vmatprep.subr.mxu0 0.0
  %527 = vmatpush1.xpose.msra.mxu0 0.0
  %528 = vmatprep.subr.mxu0 0.0
  %529 = vmatpush1.xpose.msra.mxu0 0.0
  %530 = vmatprep.subr.mxu0 0.0
  %531 = vmatpush1.xpose.msra.mxu0 0.0
  %532 = vmatprep.subr.mxu0 0.0
  %533 = vmatpush1.xpose.msra.mxu0 0.0
  %534 = vmatprep.subr.mxu0 0.0
  %535 = vmatpush1.xpose.msra.mxu0 0.0
  %536 = vmatprep.subr.mxu0 0.0
  %537 = vmatpush1.xpose.msra.mxu0 0.0
  %538 = vmatprep.subr.mxu0 0.0
  %539 = vmatpush1.xpose.msra.mxu0 0.0
  %540 = vmatprep.subr.mxu0 0.0
  %541 = vmatpush1.xpose.msra.mxu0 0.0
  %542 = vmatprep.mubr.f32.mxu0 0.0
  %543 = vmatmul.mubr.f32.gmra.mrb[0].mxu0 %v474
  %v544 = vpop.f32.mrb[0].mxu0
  %v545 = vadd.f32 0.0, %v544
  %v546 = vpop.f32.mrb[0].mxu0
  %547 = vdwg.mxu0
  %548 = vrot.lane.b32.xlu0 %v136, 120
  %v549 = vpop.permute.xlu0 %548
  %550 = vrot.lane.b32.xlu0 %v136, 88
  %v551 = vpop.permute.xlu0 %550
  %v552 = vsel %vm142, %v549, 0
  %v554 = vsel %vm142, %v551, 0
  %556 = vmatprep.subr.mxu0 0.0
  %557 = vmatpush1.xpose.msra.mxu0 %v554
  %558 = vmatprep.subr.mxu0 0.0
  %559 = vmatpush1.xpose.msra.mxu0 0.0
  %560 = vmatprep.subr.mxu0 0.0
  %561 = vmatpush1.xpose.msra.mxu0 0.0
  %562 = vmatprep.subr.mxu0 0.0
  %563 = vmatpush1.xpose.msra.mxu0 0.0
  %564 = vmatprep.subr.mxu0 0.0
  %565 = vmatpush1.xpose.msra.mxu0 0.0
  %566 = vmatprep.subr.mxu0 0.0
  %567 = vmatpush1.xpose.msra.mxu0 0.0
  %568 = vmatprep.subr.mxu0 0.0
  %569 = vmatpush1.xpose.msra.mxu0 0.0
  %570 = vmatprep.subr.mxu0 0.0
  %571 = vmatpush1.xpose.msra.mxu0 0.0
  %572 = vmatprep.subr.mxu0 0.0
  %573 = vmatpush1.xpose.msra.mxu0 0.0
  %574 = vmatprep.subr.mxu0 0.0
  %575 = vmatpush1.xpose.msra.mxu0 0.0
  %576 = vmatprep.subr.mxu0 0.0
  %577 = vmatpush1.xpose.msra.mxu0 0.0
  %578 = vmatprep.subr.mxu0 0.0
  %579 = vmatpush1.xpose.msra.mxu0 0.0
  %580 = vmatprep.subr.mxu0 0.0
  %581 = vmatpush1.xpose.msra.mxu0 0.0
  %582 = vmatprep.subr.mxu0 0.0
  %583 = vmatpush1.xpose.msra.mxu0 0.0
  %584 = vmatprep.subr.mxu0 0.0
  %585 = vmatpush1.xpose.msra.mxu0 0.0
  %586 = vmatprep.subr.mxu0 0.0
  %587 = vmatpush1.xpose.msra.mxu0 0.0
  %588 = vmatprep.subr.mxu0 0.0
  %589 = vmatpush1.xpose.msra.mxu0 0.0
  %590 = vmatprep.subr.mxu0 0.0
  %591 = vmatpush1.xpose.msra.mxu0 0.0
  %592 = vmatprep.subr.mxu0 0.0
  %593 = vmatpush1.xpose.msra.mxu0 0.0
  %594 = vmatprep.subr.mxu0 0.0
  %595 = vmatpush1.xpose.msra.mxu0 0.0
  %596 = vmatprep.subr.mxu0 0.0
  %597 = vmatpush1.xpose.msra.mxu0 0.0
  %598 = vmatprep.subr.mxu0 0.0
  %599 = vmatpush1.xpose.msra.mxu0 0.0
  %600 = vmatprep.subr.mxu0 0.0
  %601 = vmatpush1.xpose.msra.mxu0 0.0
  %602 = vmatprep.subr.mxu0 0.0
  %603 = vmatpush1.xpose.msra.mxu0 0.0
  %604 = vmatprep.subr.mxu0 0.0
  %605 = vmatpush1.xpose.msra.mxu0 0.0
  %606 = vmatprep.subr.mxu0 0.0
  %607 = vmatpush1.xpose.msra.mxu0 0.0
  %608 = vmatprep.subr.mxu0 0.0
  %609 = vmatpush1.xpose.msra.mxu0 0.0
  %610 = vmatprep.subr.mxu0 0.0
  %611 = vmatpush1.xpose.msra.mxu0 0.0
  %612 = vmatprep.subr.mxu0 0.0
  %613 = vmatpush1.xpose.msra.mxu0 0.0
  %614 = vmatprep.subr.mxu0 0.0
  %615 = vmatpush1.xpose.msra.mxu0 0.0
  %616 = vmatprep.subr.mxu0 0.0
  %617 = vmatpush1.xpose.msra.mxu0 0.0
  %618 = vmatprep.subr.mxu0 0.0
  %619 = vmatpush1.xpose.msra.mxu0 0.0
  %620 = vmatprep.mubr.f32.mxu0 0.0
  %621 = vmatmul.mubr.f32.gmra.mrb[0].mxu0 %v552
  %v622 = vpop.f32.mrb[0].mxu0
  %v623 = vadd.f32 0.0, %v622
  %v624 = vpop.f32.mrb[0].mxu0
  %625 = vdwg.mxu0
  %v626 = vmul.f32 %v545, 0.35355338
  %v627 = vmul.f32 %v623, 0.35355338
  %v628 = vsel %vm142, %v626, -inf
  %629 = vmax.xlane.f32.xlu0 %v628
  %v630 = vpop.xlane.xlu0 %629
  %v631 = vsel %vm142, %v627, -inf
  %632 = vmax.xlane.f32.xlu0 %v631
  %v633 = vpop.xlane.xlu0 %632
  %v634 = vsub.f32 %v626, %v630
  %v635 = vsub.f32 %v627, %v633
  %v636 = vmul.f32 %v634, 1.442695
  %v637 = vpow.pop %v636
  %v638 = vmul.f32 %v635, 1.442695
  %v639 = vpow.pop %v638
  %v640 = vsel %vm142, %v637, 0.0
  %641 = vadd.xlane.f32.xlu0 %v640
  %v642 = vpop.xlane.xlu0 %641
  %v643 = vsel %vm142, %v639, 0.0
  %644 = vadd.xlane.f32.xlu0 %v643
  %v645 = vpop.xlane.xlu0 %644
  %v646 = vrcp.pop %v642
  %v647 = vrcp.pop %v645
  %v648 = vmul.f32 %v637, %v646
  %v649 = vmul.f32 %v639, %v647
  %650 = vrot.lane.b32.xlu0 %v131, 56
  %v651 = vpop.permute.xlu0 %650
  %v654 = vsel %vm142, %v648, 0
  %656 = vmatprep.subr.mxu0 0.0
  %657 = vmatpush1.msra.mxu0 %v651
  %658 = vmatprep.subr.mxu0 0.0
  %659 = vmatpush1.msra.mxu0 0.0
  %660 = vmatprep.subr.mxu0 0.0
  %661 = vmatpush1.msra.mxu0 0.0
  %662 = vmatprep.subr.mxu0 0.0
  %663 = vmatpush1.msra.mxu0 0.0
  %664 = vmatprep.subr.mxu0 0.0
  %665 = vmatpush1.msra.mxu0 0.0
  %666 = vmatprep.subr.mxu0 0.0
  %667 = vmatpush1.msra.mxu0 0.0
  %668 = vmatprep.subr.mxu0 0.0
  %669 = vmatpush1.msra.mxu0 0.0
  %670 = vmatprep.subr.mxu0 0.0
  %671 = vmatpush1.msra.mxu0 0.0
  %672 = vmatprep.subr.mxu0 0.0
  %673 = vmatpush1.msra.mxu0 0.0
  %674 = vmatprep.subr.mxu0 0.0
  %675 = vmatpush1.msra.mxu0 0.0
  %676 = vmatprep.subr.mxu0 0.0
  %677 = vmatpush1.msra.mxu0 0.0
  %678 = vmatprep.subr.mxu0 0.0
  %679 = vmatpush1.msra.mxu0 0.0
  %680 = vmatprep.subr.mxu0 0.0
  %681 = vmatpush1.msra.mxu0 0.0
  %682 = vmatprep.subr.mxu0 0.0
  %683 = vmatpush1.msra.mxu0 0.0
  %684 = vmatprep.subr.mxu0 0.0
  %685 = vmatpush1.msra.mxu0 0.0
  %686 = vmatprep.subr.mxu0 0.0
  %687 = vmatpush1.msra.mxu0 0.0
  %688 = vmatprep.subr.mxu0 0.0
  %689 = vmatpush1.msra.mxu0 0.0
  %690 = vmatprep.subr.mxu0 0.0
  %691 = vmatpush1.msra.mxu0 0.0
  %692 = vmatprep.subr.mxu0 0.0
  %693 = vmatpush1.msra.mxu0 0.0
  %694 = vmatprep.subr.mxu0 0.0
  %695 = vmatpush1.msra.mxu0 0.0
  %696 = vmatprep.subr.mxu0 0.0
  %697 = vmatpush1.msra.mxu0 0.0
  %698 = vmatprep.subr.mxu0 0.0
  %699 = vmatpush1.msra.mxu0 0.0
  %700 = vmatprep.subr.mxu0 0.0
  %701 = vmatpush1.msra.mxu0 0.0
  %702 = vmatprep.subr.mxu0 0.0
  %703 = vmatpush1.msra.mxu0 0.0
  %704 = vmatprep.subr.mxu0 0.0
  %705 = vmatpush1.msra.mxu0 0.0
  %706 = vmatprep.subr.mxu0 0.0
  %707 = vmatpush1.msra.mxu0 0.0
  %708 = vmatprep.subr.mxu0 0.0
  %709 = vmatpush1.msra.mxu0 0.0
  %710 = vmatprep.subr.mxu0 0.0
  %711 = vmatpush1.msra.mxu0 0.0
  %712 = vmatprep.subr.mxu0 0.0
  %713 = vmatpush1.msra.mxu0 0.0
  %714 = vmatprep.subr.mxu0 0.0
  %715 = vmatpush1.msra.mxu0 0.0
  %716 = vmatprep.subr.mxu0 0.0
  %717 = vmatpush1.msra.mxu0 0.0
  %718 = vmatprep.subr.mxu0 0.0
  %719 = vmatpush1.msra.mxu0 0.0
  %720 = vmatprep.mubr.f32.mxu0 0.0
  %721 = vmatmul.mubr.f32.gmra.mrb[0].mxu0 %v654
  %v722 = vpop.f32.mrb[0].mxu0
  %v723 = vadd.f32 0.0, %v722
  %v724 = vpop.f32.mrb[0].mxu0
  %725 = vdwg.mxu0
  %726 = vrot.lane.b32.xlu0 %v136, 56
  %v727 = vpop.permute.xlu0 %726
  %v730 = vsel %vm142, %v649, 0
  %732 = vmatprep.subr.mxu0 0.0
  %733 = vmatpush1.msra.mxu0 %v727
  %734 = vmatprep.subr.mxu0 0.0
  %735 = vmatpush1.msra.mxu0 0.0
  %736 = vmatprep.subr.mxu0 0.0
  %737 = vmatpush1.msra.mxu0 0.0
  %738 = vmatprep.subr.mxu0 0.0
  %739 = vmatpush1.msra.mxu0 0.0
  %740 = vmatprep.subr.mxu0 0.0
  %741 = vmatpush1.msra.mxu0 0.0
  %742 = vmatprep.subr.mxu0 0.0
  %743 = vmatpush1.msra.mxu0 0.0
  %744 = vmatprep.subr.mxu0 0.0
  %745 = vmatpush1.msra.mxu0 0.0
  %746 = vmatprep.subr.mxu0 0.0
  %747 = vmatpush1.msra.mxu0 0.0
  %748 = vmatprep.subr.mxu0 0.0
  %749 = vmatpush1.msra.mxu0 0.0
  %750 = vmatprep.subr.mxu0 0.0
  %751 = vmatpush1.msra.mxu0 0.0
  %752 = vmatprep.subr.mxu0 0.0
  %753 = vmatpush1.msra.mxu0 0.0
  %754 = vmatprep.subr.mxu0 0.0
  %755 = vmatpush1.msra.mxu0 0.0
  %756 = vmatprep.subr.mxu0 0.0
  %757 = vmatpush1.msra.mxu0 0.0
  %758 = vmatprep.subr.mxu0 0.0
  %759 = vmatpush1.msra.mxu0 0.0
  %760 = vmatprep.subr.mxu0 0.0
  %761 = vmatpush1.msra.mxu0 0.0
  %762 = vmatprep.subr.mxu0 0.0
  %763 = vmatpush1.msra.mxu0 0.0
  %764 = vmatprep.subr.mxu0 0.0
  %765 = vmatpush1.msra.mxu0 0.0
  %766 = vmatprep.subr.mxu0 0.0
  %767 = vmatpush1.msra.mxu0 0.0
  %768 = vmatprep.subr.mxu0 0.0
  %769 = vmatpush1.msra.mxu0 0.0
  %770 = vmatprep.subr.mxu0 0.0
  %771 = vmatpush1.msra.mxu0 0.0
  %772 = vmatprep.subr.mxu0 0.0
  %773 = vmatpush1.msra.mxu0 0.0
  %774 = vmatprep.subr.mxu0 0.0
  %775 = vmatpush1.msra.mxu0 0.0
  %776 = vmatprep.subr.mxu0 0.0
  %777 = vmatpush1.msra.mxu0 0.0
  %778 = vmatprep.subr.mxu0 0.0
  %779 = vmatpush1.msra.mxu0 0.0
  %780 = vmatprep.subr.mxu0 0.0
  %781 = vmatpush1.msra.mxu0 0.0
  %782 = vmatprep.subr.mxu0 0.0
  %783 = vmatpush1.msra.mxu0 0.0
  %784 = vmatprep.subr.mxu0 0.0
  %785 = vmatpush1.msra.mxu0 0.0
  %786 = vmatprep.subr.mxu0 0.0
  %787 = vmatpush1.msra.mxu0 0.0
  %788 = vmatprep.subr.mxu0 0.0
  %789 = vmatpush1.msra.mxu0 0.0
  %790 = vmatprep.subr.mxu0 0.0
  %791 = vmatpush1.msra.mxu0 0.0
  %792 = vmatprep.subr.mxu0 0.0
  %793 = vmatpush1.msra.mxu0 0.0
  %794 = vmatprep.subr.mxu0 0.0
  %795 = vmatpush1.msra.mxu0 0.0
  %796 = vmatprep.mubr.f32.mxu0 0.0
  %797 = vmatmul.mubr.f32.gmra.mrb[0].mxu0 %v730
  %v798 = vpop.f32.mrb[0].mxu0
  %v799 = vadd.f32 0.0, %v798
  %v800 = vpop.f32.mrb[0].mxu0
  %801 = vdwg.mxu0
  %802 = vrot.lane.b32.xlu0 %v131, 112
  %v803 = vpop.permute.xlu0 %802
  %804 = vrot.lane.b32.xlu0 %v131, 80
  %v805 = vpop.permute.xlu0 %804
  %v806 = vsel %vm142, %v803, 0
  %v808 = vsel %vm142, %v805, 0
  %810 = vmatprep.subr.mxu0 0.0
  %811 = vmatpush1.xpose.msra.mxu0 %v808
  %812 = vmatprep.subr.mxu0 0.0
  %813 = vmatpush1.xpose.msra.mxu0 0.0
  %814 = vmatprep.subr.mxu0 0.0
  %815 = vmatpush1.xpose.msra.mxu0 0.0
  %816 = vmatprep.subr.mxu0 0.0
  %817 = vmatpush1.xpose.msra.mxu0 0.0
  %818 = vmatprep.subr.mxu0 0.0
  %819 = vmatpush1.xpose.msra.mxu0 0.0
  %820 = vmatprep.subr.mxu0 0.0
  %821 = vmatpush1.xpose.msra.mxu0 0.0
  %822 = vmatprep.subr.mxu0 0.0
  %823 = vmatpush1.xpose.msra.mxu0 0.0
  %824 = vmatprep.subr.mxu0 0.0
  %825 = vmatpush1.xpose.msra.mxu0 0.0
  %826 = vmatprep.subr.mxu0 0.0
  %827 = vmatpush1.xpose.msra.mxu0 0.0
  %828 = vmatprep.subr.mxu0 0.0
  %829 = vmatpush1.xpose.msra.mxu0 0.0
  %830 = vmatprep.subr.mxu0 0.0
  %831 = vmatpush1.xpose.msra.mxu0 0.0
  %832 = vmatprep.subr.mxu0 0.0
  %833 = vmatpush1.xpose.msra.mxu0 0.0
  %834 = vmatprep.subr.mxu0 0.0
  %835 = vmatpush1.xpose.msra.mxu0 0.0
  %836 = vmatprep.subr.mxu0 0.0
  %837 = vmatpush1.xpose.msra.mxu0 0.0
  %838 = vmatprep.subr.mxu0 0.0
  %839 = vmatpush1.xpose.msra.mxu0 0.0
  %840 = vmatprep.subr.mxu0 0.0
  %841 = vmatpush1.xpose.msra.mxu0 0.0
  %842 = vmatprep.subr.mxu0 0.0
  %843 = vmatpush1.xpose.msra.mxu0 0.0
  %844 = vmatprep.subr.mxu0 0.0
  %845 = vmatpush1.xpose.msra.mxu0 0.0
  %846 = vmatprep.subr.mxu0 0.0
  %847 = vmatpush1.xpose.msra.mxu0 0.0
  %848 = vmatprep.subr.mxu0 0.0
  %849 = vmatpush1.xpose.msra.mxu0 0.0
  %850 = vmatprep.subr.mxu0 0.0
  %851 = vmatpush1.xpose.msra.mxu0 0.0
  %852 = vmatprep.subr.mxu0 0.0
  %853 = vmatpush1.xpose.msra.mxu0 0.0
  %854 = vmatprep.subr.mxu0 0.0
  %855 = vmatpush1.xpose.msra.mxu0 0.0
  %856 = vmatprep.subr.mxu0 0.0
  %857 = vmatpush1.xpose.msra.mxu0 0.0
  %858 = vmatprep.subr.mxu0 0.0
  %859 = vmatpush1.xpose.msra.mxu0 0.0
  %860 = vmatprep.subr.mxu0 0.0
  %861 = vmatpush1.xpose.msra.mxu0 0.0
  %862 = vmatprep.subr.mxu0 0.0
  %863 = vmatpush1.xpose.msra.mxu0 0.0
  %864 = vmatprep.subr.mxu0 0.0
  %865 = vmatpush1.xpose.msra.mxu0 0.0
  %866 = vmatprep.subr.mxu0 0.0
  %867 = vmatpush1.xpose.msra.mxu0 0.0
  %868 = vmatprep.subr.mxu0 0.0
  %869 = vmatpush1.xpose.msra.mxu0 0.0
  %870 = vmatprep.subr.mxu0 0.0
  %871 = vmatpush1.xpose.msra.mxu0 0.0
  %872 = vmatprep.subr.mxu0 0.0
  %873 = vmatpush1.xpose.msra.mxu0 0.0
  %874 = vmatprep.mubr.f32.mxu0 0.0
  %875 = vmatmul.mubr.f32.gmra.mrb[0].mxu0 %v806
  %v876 = vpop.f32.mrb[0].mxu0
  %v877 = vadd.f32 0.0, %v876
  %v878 = vpop.f32.mrb[0].mxu0
  %879 = vdwg.mxu0
  %880 = vrot.lane.b32.xlu0 %v136, 112
  %v881 = vpop.permute.xlu0 %880
  %882 = vrot.lane.b32.xlu0 %v136, 80
  %v883 = vpop.permute.xlu0 %882
  %v884 = vsel %vm142, %v881, 0
  %v886 = vsel %vm142, %v883, 0
  %888 = vmatprep.subr.mxu0 0.0
  %889 = vmatpush1.xpose.msra.mxu0 %v886
  %890 = vmatprep.subr.mxu0 0.0
  %891 = vmatpush1.xpose.msra.mxu0 0.0
  %892 = vmatprep.subr.mxu0 0.0
  %893 = vmatpush1.xpose.msra.mxu0 0.0
  %894 = vmatprep.subr.mxu0 0.0
  %895 = vmatpush1.xpose.msra.mxu0 0.0
  %896 = vmatprep.subr.mxu0 0.0
  %897 = vmatpush1.xpose.msra.mxu0 0.0
  %898 = vmatprep.subr.mxu0 0.0
  %899 = vmatpush1.xpose.msra.mxu0 0.0
  %900 = vmatprep.subr.mxu0 0.0
  %901 = vmatpush1.xpose.msra.mxu0 0.0
  %902 = vmatprep.subr.mxu0 0.0
  %903 = vmatpush1.xpose.msra.mxu0 0.0
  %904 = vmatprep.subr.mxu0 0.0
  %905 = vmatpush1.xpose.msra.mxu0 0.0
  %906 = vmatprep.subr.mxu0 0.0
  %907 = vmatpush1.xpose.msra.mxu0 0.0
  %908 = vmatprep.subr.mxu0 0.0
  %909 = vmatpush1.xpose.msra.mxu0 0.0
  %910 = vmatprep.subr.mxu0 0.0
  %911 = vmatpush1.xpose.msra.mxu0 0.0
  %912 = vmatprep.subr.mxu0 0.0
  %913 = vmatpush1.xpose.msra.mxu0 0.0
  %914 = vmatprep.subr.mxu0 0.0
  %915 = vmatpush1.xpose.msra.mxu0 0.0
  %916 = vmatprep.subr.mxu0 0.0
  %917 = vmatpush1.xpose.msra.mxu0 0.0
  %918 = vmatprep.subr.mxu0 0.0
  %919 = vmatpush1.xpose.msra.mxu0 0.0
  %920 = vmatprep.subr.mxu0 0.0
  %921 = vmatpush1.xpose.msra.mxu0 0.0
  %922 = vmatprep.subr.mxu0 0.0
  %923 = vmatpush1.xpose.msra.mxu0 0.0
  %924 = vmatprep.subr.mxu0 0.0
  %925 = vmatpush1.xpose.msra.mxu0 0.0
  %926 = vmatprep.subr.mxu0 0.0
  %927 = vmatpush1.xpose.msra.mxu0 0.0
  %928 = vmatprep.subr.mxu0 0.0
  %929 = vmatpush1.xpose.msra.mxu0 0.0
  %930 = vmatprep.subr.mxu0 0.0
  %931 = vmatpush1.xpose.msra.mxu0 0.0
  %932 = vmatprep.subr.mxu0 0.0
  %933 = vmatpush1.xpose.msra.mxu0 0.0
  %934 = vmatprep.subr.mxu0 0.0
  %935 = vmatpush1.xpose.msra.mxu0 0.0
  %936 = vmatprep.subr.mxu0 0.0
  %937 = vmatpush1.xpose.msra.mxu0 0.0
  %938 = vmatprep.subr.mxu0 0.0
  %939 = vmatpush1.xpose.msra.mxu0 0.0
  %940 = vmatprep.subr.mxu0 0.0
  %941 = vmatpush1.xpose.msra.mxu0 0.0
  %942 = vmatprep.subr.mxu0 0.0
  %943 = vmatpush1.xpose.msra.mxu0 0.0
  %944 = vmatprep.subr.mxu0 0.0
  %945 = vmatpush1.xpose.msra.mxu0 0.0
  %946 = vmatprep.subr.mxu0 0.0
  %947 = vmatpush1.xpose.msra.mxu0 0.0
  %948 = vmatprep.subr.mxu0 0.0
  %949 = vmatpush1.xpose.msra.mxu0 0.0
  %950 = vmatprep.subr.mxu0 0.0
  %951 = vmatpush1.xpose.msra.mxu0 0.0
  %952 = vmatprep.mubr.f32.mxu0 0.0
  %953 = vmatmul.mubr.f32.gmra.mrb[0].mxu0 %v884
  %v954 = vpop.f32.mrb[0].mxu0
  %v955 = vadd.f32 0.0, %v954
  %v956 = vpop.f32.mrb[0].mxu0
  %957 = vdwg.mxu0
  %v958 = vmul.f32 %v877, 0.35355338
  %v959 = vmul.f32 %v955, 0.35355338
  %v960 = vsel %vm142, %v958, -inf
  %961 = vmax.xlane.f32.xlu0 %v960
  %v962 = vpop.xlane.xlu0 %961
  %v963 = vsel %vm142, %v959, -inf
  %964 = vmax.xlane.f32.xlu0 %v963
  %v965 = vpop.xlane.xlu0 %964
  %v966 = vsub.f32 %v958, %v962
  %v967 = vsub.f32 %v959, %v965
  %v968 = vmul.f32 %v966, 1.442695
  %v969 = vpow.pop %v968
  %v970 = vmul.f32 %v967, 1.442695
  %v971 = vpow.pop %v970
  %v972 = vsel %vm142, %v969, 0.0
  %973 = vadd.xlane.f32.xlu0 %v972
  %v974 = vpop.xlane.xlu0 %973
  %v975 = vsel %vm142, %v971, 0.0
  %976 = vadd.xlane.f32.xlu0 %v975
  %v977 = vpop.xlane.xlu0 %976
  %v978 = vrcp.pop %v974
  %v979 = vrcp.pop %v977
  %v980 = vmul.f32 %v969, %v978
  %v981 = vmul.f32 %v971, %v979
  %982 = vrot.lane.b32.xlu0 %v131, 48
  %v983 = vpop.permute.xlu0 %982
  %v986 = vsel %vm142, %v980, 0
  %988 = vmatprep.subr.mxu0 0.0
  %989 = vmatpush1.msra.mxu0 %v983
  %990 = vmatprep.subr.mxu0 0.0
  %991 = vmatpush1.msra.mxu0 0.0
  %992 = vmatprep.subr.mxu0 0.0
  %993 = vmatpush1.msra.mxu0 0.0
  %994 = vmatprep.subr.mxu0 0.0
  %995 = vmatpush1.msra.mxu0 0.0
  %996 = vmatprep.subr.mxu0 0.0
  %997 = vmatpush1.msra.mxu0 0.0
  %998 = vmatprep.subr.mxu0 0.0
  %999 = vmatpush1.msra.mxu0 0.0
  %1000 = vmatprep.subr.mxu0 0.0
  %1001 = vmatpush1.msra.mxu0 0.0
  %1002 = vmatprep.subr.mxu0 0.0
  %1003 = vmatpush1.msra.mxu0 0.0
  %1004 = vmatprep.subr.mxu0 0.0
  %1005 = vmatpush1.msra.mxu0 0.0
  %1006 = vmatprep.subr.mxu0 0.0
  %1007 = vmatpush1.msra.mxu0 0.0
  %1008 = vmatprep.subr.mxu0 0.0
  %1009 = vmatpush1.msra.mxu0 0.0
  %1010 = vmatprep.subr.mxu0 0.0
  %1011 = vmatpush1.msra.mxu0 0.0
  %1012 = vmatprep.subr.mxu0 0.0
  %1013 = vmatpush1.msra.mxu0 0.0
  %1014 = vmatprep.subr.mxu0 0.0
  %1015 = vmatpush1.msra.mxu0 0.0
  %1016 = vmatprep.subr.mxu0 0.0
  %1017 = vmatpush1.msra.mxu0 0.0
  %1018 = vmatprep.subr.mxu0 0.0
  %1019 = vmatpush1.msra.mxu0 0.0
  %1020 = vmatprep.subr.mxu0 0.0
  %1021 = vmatpush1.msra.mxu0 0.0
  %1022 = vmatprep.subr.mxu0 0.0
  %1023 = vmatpush1.msra.mxu0 0.0
  %1024 = vmatprep.subr.mxu0 0.0
  %1025 = vmatpush1.msra.mxu0 0.0
  %1026 = vmatprep.subr.mxu0 0.0
  %1027 = vmatpush1.msra.mxu0 0.0
  %1028 = vmatprep.subr.mxu0 0.0
  %1029 = vmatpush1.msra.mxu0 0.0
  %1030 = vmatprep.subr.mxu0 0.0
  %1031 = vmatpush1.msra.mxu0 0.0
  %1032 = vmatprep.subr.mxu0 0.0
  %1033 = vmatpush1.msra.mxu0 0.0
  %1034 = vmatprep.subr.mxu0 0.0
  %1035 = vmatpush1.msra.mxu0 0.0
  %1036 = vmatprep.subr.mxu0 0.0
  %1037 = vmatpush1.msra.mxu0 0.0
  %1038 = vmatprep.subr.mxu0 0.0
  %1039 = vmatpush1.msra.mxu0 0.0
  %1040 = vmatprep.subr.mxu0 0.0
  %1041 = vmatpush1.msra.mxu0 0.0
  %1042 = vmatprep.subr.mxu0 0.0
  %1043 = vmatpush1.msra.mxu0 0.0
  %1044 = vmatprep.subr.mxu0 0.0
  %1045 = vmatpush1.msra.mxu0 0.0
  %1046 = vmatprep.subr.mxu0 0.0
  %1047 = vmatpush1.msra.mxu0 0.0
  %1048 = vmatprep.subr.mxu0 0.0
  %1049 = vmatpush1.msra.mxu0 0.0
  %1050 = vmatprep.subr.mxu0 0.0
  %1051 = vmatpush1.msra.mxu0 0.0
  %1052 = vmatprep.mubr.f32.mxu0 0.0
  %1053 = vmatmul.mubr.f32.gmra.mrb[0].mxu0 %v986
  %v1054 = vpop.f32.mrb[0].mxu0
  %v1055 = vadd.f32 0.0, %v1054
  %v1056 = vpop.f32.mrb[0].mxu0
  %1057 = vdwg.mxu0
  %1058 = vrot.lane.b32.xlu0 %v136, 48
  %v1059 = vpop.permute.xlu0 %1058
  %v1062 = vsel %vm142, %v981, 0
  %1064 = vmatprep.subr.mxu0 0.0
  %1065 = vmatpush1.msra.mxu0 %v1059
  %1066 = vmatprep.subr.mxu0 0.0
  %1067 = vmatpush1.msra.mxu0 0.0
  %1068 = vmatprep.subr.mxu0 0.0
  %1069 = vmatpush1.msra.mxu0 0.0
  %1070 = vmatprep.subr.mxu0 0.0
  %1071 = vmatpush1.msra.mxu0 0.0
  %1072 = vmatprep.subr.mxu0 0.0
  %1073 = vmatpush1.msra.mxu0 0.0
  %1074 = vmatprep.subr.mxu0 0.0
  %1075 = vmatpush1.msra.mxu0 0.0
  %1076 = vmatprep.subr.mxu0 0.0
  %1077 = vmatpush1.msra.mxu0 0.0
  %1078 = vmatprep.subr.mxu0 0.0
  %1079 = vmatpush1.msra.mxu0 0.0
  %1080 = vmatprep.subr.mxu0 0.0
  %1081 = vmatpush1.msra.mxu0 0.0
  %1082 = vmatprep.subr.mxu0 0.0
  %1083 = vmatpush1.msra.mxu0 0.0
  %1084 = vmatprep.subr.mxu0 0.0
  %1085 = vmatpush1.msra.mxu0 0.0
  %1086 = vmatprep.subr.mxu0 0.0
  %1087 = vmatpush1.msra.mxu0 0.0
  %1088 = vmatprep.subr.mxu0 0.0
  %1089 = vmatpush1.msra.mxu0 0.0
  %1090 = vmatprep.subr.mxu0 0.0
  %1091 = vmatpush1.msra.mxu0 0.0
  %1092 = vmatprep.subr.mxu0 0.0
  %1093 = vmatpush1.msra.mxu0 0.0
  %1094 = vmatprep.subr.mxu0 0.0
  %1095 = vmatpush1.msra.mxu0 0.0
  %1096 = vmatprep.subr.mxu0 0.0
  %1097 = vmatpush1.msra.mxu0 0.0
  %1098 = vmatprep.subr.mxu0 0.0
  %1099 = vmatpush1.msra.mxu0 0.0
  %1100 = vmatprep.subr.mxu0 0.0
  %1101 = vmatpush1.msra.mxu0 0.0
  %1102 = vmatprep.subr.mxu0 0.0
  %1103 = vmatpush1.msra.mxu0 0.0
  %1104 = vmatprep.subr.mxu0 0.0
  %1105 = vmatpush1.msra.mxu0 0.0
  %1106 = vmatprep.subr.mxu0 0.0
  %1107 = vmatpush1.msra.mxu0 0.0
  %1108 = vmatprep.subr.mxu0 0.0
  %1109 = vmatpush1.msra.mxu0 0.0
  %1110 = vmatprep.subr.mxu0 0.0
  %1111 = vmatpush1.msra.mxu0 0.0
  %1112 = vmatprep.subr.mxu0 0.0
  %1113 = vmatpush1.msra.mxu0 0.0
  %1114 = vmatprep.subr.mxu0 0.0
  %1115 = vmatpush1.msra.mxu0 0.0
  %1116 = vmatprep.subr.mxu0 0.0
  %1117 = vmatpush1.msra.mxu0 0.0
  %1118 = vmatprep.subr.mxu0 0.0
  %1119 = vmatpush1.msra.mxu0 0.0
  %1120 = vmatprep.subr.mxu0 0.0
  %1121 = vmatpush1.msra.mxu0 0.0
  %1122 = vmatprep.subr.mxu0 0.0
  %1123 = vmatpush1.msra.mxu0 0.0
  %1124 = vmatprep.subr.mxu0 0.0
  %1125 = vmatpush1.msra.mxu0 0.0
  %1126 = vmatprep.subr.mxu0 0.0
  %1127 = vmatpush1.msra.mxu0 0.0
  %1128 = vmatprep.mubr.f32.mxu0 0.0
  %1129 = vmatmul.mubr.f32.gmra.mrb[0].mxu0 %v1062
  %v1130 = vpop.f32.mrb[0].mxu0
  %v1131 = vadd.f32 0.0, %v1130
  %v1132 = vpop.f32.mrb[0].mxu0
  %1133 = vdwg.mxu0
  %1134 = vrot.lane.b32.xlu0 %v131, 104
  %v1135 = vpop.permute.xlu0 %1134
  %1136 = vrot.lane.b32.xlu0 %v131, 72
  %v1137 = vpop.permute.xlu0 %1136
  %v1138 = vsel %vm142, %v1135, 0
  %v1140 = vsel %vm142, %v1137, 0
  %1142 = vmatprep.subr.mxu0 0.0
  %1143 = vmatpush1.xpose.msra.mxu0 %v1140
  %1144 = vmatprep.subr.mxu0 0.0
  %1145 = vmatpush1.xpose.msra.mxu0 0.0
  %1146 = vmatprep.subr.mxu0 0.0
  %1147 = vmatpush1.xpose.msra.mxu0 0.0
  %1148 = vmatprep.subr.mxu0 0.0
  %1149 = vmatpush1.xpose.msra.mxu0 0.0
  %1150 = vmatprep.subr.mxu0 0.0
  %1151 = vmatpush1.xpose.msra.mxu0 0.0
  %1152 = vmatprep.subr.mxu0 0.0
  %1153 = vmatpush1.xpose.msra.mxu0 0.0
  %1154 = vmatprep.subr.mxu0 0.0
  %1155 = vmatpush1.xpose.msra.mxu0 0.0
  %1156 = vmatprep.subr.mxu0 0.0
  %1157 = vmatpush1.xpose.msra.mxu0 0.0
  %1158 = vmatprep.subr.mxu0 0.0
  %1159 = vmatpush1.xpose.msra.mxu0 0.0
  %1160 = vmatprep.subr.mxu0 0.0
  %1161 = vmatpush1.xpose.msra.mxu0 0.0
  %1162 = vmatprep.subr.mxu0 0.0
  %1163 = vmatpush1.xpose.msra.mxu0 0.0
  %1164 = vmatprep.subr.mxu0 0.0
  %1165 = vmatpush1.xpose.msra.mxu0 0.0
  %1166 = vmatprep.subr.mxu0 0.0
  %1167 = vmatpush1.xpose.msra.mxu0 0.0
  %1168 = vmatprep.subr.mxu0 0.0
  %1169 = vmatpush1.xpose.msra.mxu0 0.0
  %1170 = vmatprep.subr.mxu0 0.0
  %1171 = vmatpush1.xpose.msra.mxu0 0.0
  %1172 = vmatprep.subr.mxu0 0.0
  %1173 = vmatpush1.xpose.msra.mxu0 0.0
  %1174 = vmatprep.subr.mxu0 0.0
  %1175 = vmatpush1.xpose.msra.mxu0 0.0
  %1176 = vmatprep.subr.mxu0 0.0
  %1177 = vmatpush1.xpose.msra.mxu0 0.0
  %1178 = vmatprep.subr.mxu0 0.0
  %1179 = vmatpush1.xpose.msra.mxu0 0.0
  %1180 = vmatprep.subr.mxu0 0.0
  %1181 = vmatpush1.xpose.msra.mxu0 0.0
  %1182 = vmatprep.subr.mxu0 0.0
  %1183 = vmatpush1.xpose.msra.mxu0 0.0
  %1184 = vmatprep.subr.mxu0 0.0
  %1185 = vmatpush1.xpose.msra.mxu0 0.0
  %1186 = vmatprep.subr.mxu0 0.0
  %1187 = vmatpush1.xpose.msra.mxu0 0.0
  %1188 = vmatprep.subr.mxu0 0.0
  %1189 = vmatpush1.xpose.msra.mxu0 0.0
  %1190 = vmatprep.subr.mxu0 0.0
  %1191 = vmatpush1.xpose.msra.mxu0 0.0
  %1192 = vmatprep.subr.mxu0 0.0
  %1193 = vmatpush1.xpose.msra.mxu0 0.0
  %1194 = vmatprep.subr.mxu0 0.0
  %1195 = vmatpush1.xpose.msra.mxu0 0.0
  %1196 = vmatprep.subr.mxu0 0.0
  %1197 = vmatpush1.xpose.msra.mxu0 0.0
  %1198 = vmatprep.subr.mxu0 0.0
  %1199 = vmatpush1.xpose.msra.mxu0 0.0
  %1200 = vmatprep.subr.mxu0 0.0
  %1201 = vmatpush1.xpose.msra.mxu0 0.0
  %1202 = vmatprep.subr.mxu0 0.0
  %1203 = vmatpush1.xpose.msra.mxu0 0.0
  %1204 = vmatprep.subr.mxu0 0.0
  %1205 = vmatpush1.xpose.msra.mxu0 0.0
  %1206 = vmatprep.mubr.f32.mxu0 0.0
  %1207 = vmatmul.mubr.f32.gmra.mrb[0].mxu0 %v1138
  %v1208 = vpop.f32.mrb[0].mxu0
  %v1209 = vadd.f32 0.0, %v1208
  %v1210 = vpop.f32.mrb[0].mxu0
  %1211 = vdwg.mxu0
  %1212 = vrot.lane.b32.xlu0 %v136, 104
  %v1213 = vpop.permute.xlu0 %1212
  %1214 = vrot.lane.b32.xlu0 %v136, 72
  %v1215 = vpop.permute.xlu0 %1214
  %v1216 = vsel %vm142, %v1213, 0
  %v1218 = vsel %vm142, %v1215, 0
  %1220 = vmatprep.subr.mxu0 0.0
  %1221 = vmatpush1.xpose.msra.mxu0 %v1218
  %1222 = vmatprep.subr.mxu0 0.0
  %1223 = vmatpush1.xpose.msra.mxu0 0.0
  %1224 = vmatprep.subr.mxu0 0.0
  %1225 = vmatpush1.xpose.msra.mxu0 0.0
  %1226 = vmatprep.subr.mxu0 0.0
  %1227 = vmatpush1.xpose.msra.mxu0 0.0
  %1228 = vmatprep.subr.mxu0 0.0
  %1229 = vmatpush1.xpose.msra.mxu0 0.0
  %1230 = vmatprep.subr.mxu0 0.0
  %1231 = vmatpush1.xpose.msra.mxu0 0.0
  %1232 = vmatprep.subr.mxu0 0.0
  %1233 = vmatpush1.xpose.msra.mxu0 0.0
  %1234 = vmatprep.subr.mxu0 0.0
  %1235 = vmatpush1.xpose.msra.mxu0 0.0
  %1236 = vmatprep.subr.mxu0 0.0
  %1237 = vmatpush1.xpose.msra.mxu0 0.0
  %1238 = vmatprep.subr.mxu0 0.0
  %1239 = vmatpush1.xpose.msra.mxu0 0.0
  %1240 = vmatprep.subr.mxu0 0.0
  %1241 = vmatpush1.xpose.msra.mxu0 0.0
  %1242 = vmatprep.subr.mxu0 0.0
  %1243 = vmatpush1.xpose.msra.mxu0 0.0
  %1244 = vmatprep.subr.mxu0 0.0
  %1245 = vmatpush1.xpose.msra.mxu0 0.0
  %1246 = vmatprep.subr.mxu0 0.0
  %1247 = vmatpush1.xpose.msra.mxu0 0.0
  %1248 = vmatprep.subr.mxu0 0.0
  %1249 = vmatpush1.xpose.msra.mxu0 0.0
  %1250 = vmatprep.subr.mxu0 0.0
  %1251 = vmatpush1.xpose.msra.mxu0 0.0
  %1252 = vmatprep.subr.mxu0 0.0
  %1253 = vmatpush1.xpose.msra.mxu0 0.0
  %1254 = vmatprep.subr.mxu0 0.0
  %1255 = vmatpush1.xpose.msra.mxu0 0.0
  %1256 = vmatprep.subr.mxu0 0.0
  %1257 = vmatpush1.xpose.msra.mxu0 0.0
  %1258 = vmatprep.subr.mxu0 0.0
  %1259 = vmatpush1.xpose.msra.mxu0 0.0
  %1260 = vmatprep.subr.mxu0 0.0
  %1261 = vmatpush1.xpose.msra.mxu0 0.0
  %1262 = vmatprep.subr.mxu0 0.0
  %1263 = vmatpush1.xpose.msra.mxu0 0.0
  %1264 = vmatprep.subr.mxu0 0.0
  %1265 = vmatpush1.xpose.msra.mxu0 0.0
  %1266 = vmatprep.subr.mxu0 0.0
  %1267 = vmatpush1.xpose.msra.mxu0 0.0
  %1268 = vmatprep.subr.mxu0 0.0
  %1269 = vmatpush1.xpose.msra.mxu0 0.0
  %1270 = vmatprep.subr.mxu0 0.0
  %1271 = vmatpush1.xpose.msra.mxu0 0.0
  %1272 = vmatprep.subr.mxu0 0.0
  %1273 = vmatpush1.xpose.msra.mxu0 0.0
  %1274 = vmatprep.subr.mxu0 0.0
  %1275 = vmatpush1.xpose.msra.mxu0 0.0
  %1276 = vmatprep.subr.mxu0 0.0
  %1277 = vmatpush1.xpose.msra.mxu0 0.0
  %1278 = vmatprep.subr.mxu0 0.0
  %1279 = vmatpush1.xpose.msra.mxu0 0.0
  %1280 = vmatprep.subr.mxu0 0.0
  %1281 = vmatpush1.xpose.msra.mxu0 0.0
  %1282 = vmatprep.subr.mxu0 0.0
  %1283 = vmatpush1.xpose.msra.mxu0 0.0
  %1284 = vmatprep.mubr.f32.mxu0 0.0
  %1285 = vmatmul.mubr.f32.gmra.mrb[0].mxu0 %v1216
  %v1286 = vpop.f32.mrb[0].mxu0
  %v1287 = vadd.f32 0.0, %v1286
  %v1288 = vpop.f32.mrb[0].mxu0
  %1289 = vdwg.mxu0
  %v1290 = vmul.f32 %v1209, 0.35355338
  %v1291 = vmul.f32 %v1287, 0.35355338
  %v1292 = vsel %vm142, %v1290, -inf
  %1293 = vmax.xlane.f32.xlu0 %v1292
  %v1294 = vpop.xlane.xlu0 %1293
  %v1295 = vsel %vm142, %v1291, -inf
  %1296 = vmax.xlane.f32.xlu0 %v1295
  %v1297 = vpop.xlane.xlu0 %1296
  %v1298 = vsub.f32 %v1290, %v1294
  %v1299 = vsub.f32 %v1291, %v1297
  %v1300 = vmul.f32 %v1298, 1.442695
  %v1301 = vpow.pop %v1300
  %v1302 = vmul.f32 %v1299, 1.442695
  %v1303 = vpow.pop %v1302
  %v1304 = vsel %vm142, %v1301, 0.0
  %1305 = vadd.xlane.f32.xlu0 %v1304
  %v1306 = vpop.xlane.xlu0 %1305
  %v1307 = vsel %vm142, %v1303, 0.0
  %1308 = vadd.xlane.f32.xlu0 %v1307
  %v1309 = vpop.xlane.xlu0 %1308
  %v1310 = vrcp.pop %v1306
  %v1311 = vrcp.pop %v1309
  %v1312 = vmul.f32 %v1301, %v1310
  %v1313 = vmul.f32 %v1303, %v1311
  %1314 = vrot.lane.b32.xlu0 %v131, 40
  %v1315 = vpop.permute.xlu0 %1314
  %v1318 = vsel %vm142, %v1312, 0
  %1320 = vmatprep.subr.mxu0 0.0
  %1321 = vmatpush1.msra.mxu0 %v1315
  %1322 = vmatprep.subr.mxu0 0.0
  %1323 = vmatpush1.msra.mxu0 0.0
  %1324 = vmatprep.subr.mxu0 0.0
  %1325 = vmatpush1.msra.mxu0 0.0
  %1326 = vmatprep.subr.mxu0 0.0
  %1327 = vmatpush1.msra.mxu0 0.0
  %1328 = vmatprep.subr.mxu0 0.0
  %1329 = vmatpush1.msra.mxu0 0.0
  %1330 = vmatprep.subr.mxu0 0.0
  %1331 = vmatpush1.msra.mxu0 0.0
  %1332 = vmatprep.subr.mxu0 0.0
  %1333 = vmatpush1.msra.mxu0 0.0
  %1334 = vmatprep.subr.mxu0 0.0
  %1335 = vmatpush1.msra.mxu0 0.0
  %1336 = vmatprep.subr.mxu0 0.0
  %1337 = vmatpush1.msra.mxu0 0.0
  %1338 = vmatprep.subr.mxu0 0.0
  %1339 = vmatpush1.msra.mxu0 0.0
  %1340 = vmatprep.subr.mxu0 0.0
  %1341 = vmatpush1.msra.mxu0 0.0
  %1342 = vmatprep.subr.mxu0 0.0
  %1343 = vmatpush1.msra.mxu0 0.0
  %1344 = vmatprep.subr.mxu0 0.0
  %1345 = vmatpush1.msra.mxu0 0.0
  %1346 = vmatprep.subr.mxu0 0.0
  %1347 = vmatpush1.msra.mxu0 0.0
  %1348 = vmatprep.subr.mxu0 0.0
  %1349 = vmatpush1.msra.mxu0 0.0
  %1350 = vmatprep.subr.mxu0 0.0
  %1351 = vmatpush1.msra.mxu0 0.0
  %1352 = vmatprep.subr.mxu0 0.0
  %1353 = vmatpush1.msra.mxu0 0.0
  %1354 = vmatprep.subr.mxu0 0.0
  %1355 = vmatpush1.msra.mxu0 0.0
  %1356 = vmatprep.subr.mxu0 0.0
  %1357 = vmatpush1.msra.mxu0 0.0
  %1358 = vmatprep.subr.mxu0 0.0
  %1359 = vmatpush1.msra.mxu0 0.0
  %1360 = vmatprep.subr.mxu0 0.0
  %1361 = vmatpush1.msra.mxu0 0.0
  %1362 = vmatprep.subr.mxu0 0.0
  %1363 = vmatpush1.msra.mxu0 0.0
  %1364 = vmatprep.subr.mxu0 0.0
  %1365 = vmatpush1.msra.mxu0 0.0
  %1366 = vmatprep.subr.mxu0 0.0
  %1367 = vmatpush1.msra.mxu0 0.0
  %1368 = vmatprep.subr.mxu0 0.0
  %1369 = vmatpush1.msra.mxu0 0.0
  %1370 = vmatprep.subr.mxu0 0.0
  %1371 = vmatpush1.msra.mxu0 0.0
  %1372 = vmatprep.subr.mxu0 0.0
  %1373 = vmatpush1.msra.mxu0 0.0
  %1374 = vmatprep.subr.mxu0 0.0
  %1375 = vmatpush1.msra.mxu0 0.0
  %1376 = vmatprep.subr.mxu0 0.0
  %1377 = vmatpush1.msra.mxu0 0.0
  %1378 = vmatprep.subr.mxu0 0.0
  %1379 = vmatpush1.msra.mxu0 0.0
  %1380 = vmatprep.subr.mxu0 0.0
  %1381 = vmatpush1.msra.mxu0 0.0
  %1382 = vmatprep.subr.mxu0 0.0
  %1383 = vmatpush1.msra.mxu0 0.0
  %1384 = vmatprep.mubr.f32.mxu0 0.0
  %1385 = vmatmul.mubr.f32.gmra.mrb[0].mxu0 %v1318
  %v1386 = vpop.f32.mrb[0].mxu0
  %v1387 = vadd.f32 0.0, %v1386
  %v1388 = vpop.f32.mrb[0].mxu0
  %1389 = vdwg.mxu0
  %1390 = vrot.lane.b32.xlu0 %v136, 40
  %v1391 = vpop.permute.xlu0 %1390
  %v1394 = vsel %vm142, %v1313, 0
  %1396 = vmatprep.subr.mxu0 0.0
  %1397 = vmatpush1.msra.mxu0 %v1391
  %1398 = vmatprep.subr.mxu0 0.0
  %1399 = vmatpush1.msra.mxu0 0.0
  %1400 = vmatprep.subr.mxu0 0.0
  %1401 = vmatpush1.msra.mxu0 0.0
  %1402 = vmatprep.subr.mxu0 0.0
  %1403 = vmatpush1.msra.mxu0 0.0
  %1404 = vmatprep.subr.mxu0 0.0
  %1405 = vmatpush1.msra.mxu0 0.0
  %1406 = vmatprep.subr.mxu0 0.0
  %1407 = vmatpush1.msra.mxu0 0.0
  %1408 = vmatprep.subr.mxu0 0.0
  %1409 = vmatpush1.msra.mxu0 0.0
  %1410 = vmatprep.subr.mxu0 0.0
  %1411 = vmatpush1.msra.mxu0 0.0
  %1412 = vmatprep.subr.mxu0 0.0
  %1413 = vmatpush1.msra.mxu0 0.0
  %1414 = vmatprep.subr.mxu0 0.0
  %1415 = vmatpush1.msra.mxu0 0.0
  %1416 = vmatprep.subr.mxu0 0.0
  %1417 = vmatpush1.msra.mxu0 0.0
  %1418 = vmatprep.subr.mxu0 0.0
  %1419 = vmatpush1.msra.mxu0 0.0
  %1420 = vmatprep.subr.mxu0 0.0
  %1421 = vmatpush1.msra.mxu0 0.0
  %1422 = vmatprep.subr.mxu0 0.0
  %1423 = vmatpush1.msra.mxu0 0.0
  %1424 = vmatprep.subr.mxu0 0.0
  %1425 = vmatpush1.msra.mxu0 0.0
  %1426 = vmatprep.subr.mxu0 0.0
  %1427 = vmatpush1.msra.mxu0 0.0
  %1428 = vmatprep.subr.mxu0 0.0
  %1429 = vmatpush1.msra.mxu0 0.0
  %1430 = vmatprep.subr.mxu0 0.0
  %1431 = vmatpush1.msra.mxu0 0.0
  %1432 = vmatprep.subr.mxu0 0.0
  %1433 = vmatpush1.msra.mxu0 0.0
  %1434 = vmatprep.subr.mxu0 0.0
  %1435 = vmatpush1.msra.mxu0 0.0
  %1436 = vmatprep.subr.mxu0 0.0
  %1437 = vmatpush1.msra.mxu0 0.0
  %1438 = vmatprep.subr.mxu0 0.0
  %1439 = vmatpush1.msra.mxu0 0.0
  %1440 = vmatprep.subr.mxu0 0.0
  %1441 = vmatpush1.msra.mxu0 0.0
  %1442 = vmatprep.subr.mxu0 0.0
  %1443 = vmatpush1.msra.mxu0 0.0
  %1444 = vmatprep.subr.mxu0 0.0
  %1445 = vmatpush1.msra.mxu0 0.0
  %1446 = vmatprep.subr.mxu0 0.0
  %1447 = vmatpush1.msra.mxu0 0.0
  %1448 = vmatprep.subr.mxu0 0.0
  %1449 = vmatpush1.msra.mxu0 0.0
  %1450 = vmatprep.subr.mxu0 0.0
  %1451 = vmatpush1.msra.mxu0 0.0
  %1452 = vmatprep.subr.mxu0 0.0
  %1453 = vmatpush1.msra.mxu0 0.0
  %1454 = vmatprep.subr.mxu0 0.0
  %1455 = vmatpush1.msra.mxu0 0.0
  %1456 = vmatprep.subr.mxu0 0.0
  %1457 = vmatpush1.msra.mxu0 0.0
  %1458 = vmatprep.subr.mxu0 0.0
  %1459 = vmatpush1.msra.mxu0 0.0
  %1460 = vmatprep.mubr.f32.mxu0 0.0
  %1461 = vmatmul.mubr.f32.gmra.mrb[0].mxu0 %v1394
  %v1462 = vpop.f32.mrb[0].mxu0
  %v1463 = vadd.f32 0.0, %v1462
  %v1464 = vpop.f32.mrb[0].mxu0
  %1465 = vdwg.mxu0
  %1468 = vrot.lane.b32.xlu0 %v723, 8
  %v1469 = vpop.permute.xlu0 %1468
  %1470 = vrot.lane.b32.xlu0 %v799, 8
  %v1471 = vpop.permute.xlu0 %1470
  %1476 = vrot.lane.b32.xlu0 %v1055, 16
  %v1477 = vpop.permute.xlu0 %1476
  %1478 = vrot.lane.b32.xlu0 %v1131, 16
  %v1479 = vpop.permute.xlu0 %1478
  %1484 = vrot.lane.b32.xlu0 %v1387, 24
  %v1485 = vpop.permute.xlu0 %1484
  %1486 = vrot.lane.b32.xlu0 %v1463, 24
  %v1487 = vpop.permute.xlu0 %1486
  %v1490 = vsel %vm142, %v391, %v1469
  %v1491 = vsel %vm142, %v467, %v1471
  %vm1492 = vcmask 130048
  %v1493 = vsel %vm1492, %v1490, %v1477
  %v1494 = vsel %vm1492, %v1491, %v1479
  %vm1495 = vcmask 195584
  %v1496 = vsel %vm1495, %v1493, %v1485
  %v1497 = vsel %vm1495, %v1494, %v1487
  %v1498 = vld [vmem:[%s3] sm:$0xff]
  %v1499 = vld [vmem:[%s3 + $0x8] sm:$0xff]
  %v1500 = vld [vmem:[%s3 + $0x10] sm:$0xff]
  %v1501 = vld [vmem:[%s3 + $0x18] sm:$0xff]
  %v1502 = vld [vmem:[%s4] sm:$0x1]
  %v1504 = vlaneseq
  %v1505 = vshrl.u32 %v1504, 7
  %v1506 = vsub.s32 0, %v1505
  %v1507 = vrot.slane %v1502, %v1506
  %v1510 = vsel %vm57, %v1496, 0
  %v1513 = vsel %vm57, %v1497, 0
  %1515 = vmatprep.subr.mxu0 0.0
  %1516 = vmatpush1.msra.mxu0 %v1498
  %1517 = vmatprep.subr.mxu0 0.0
  %1518 = vmatpush1.msra.mxu0 %v1499
  %1519 = vmatprep.subr.mxu0 0.0
  %1520 = vmatpush1.msra.mxu0 %v1500
  %1521 = vmatprep.subr.mxu0 0.0
  %1522 = vmatpush1.msra.mxu0 %v1501
  %1523 = vmatprep.subr.mxu0 0.0
  %1524 = vmatpush1.msra.mxu0 0.0
  %1525 = vmatprep.subr.mxu0 0.0
  %1526 = vmatpush1.msra.mxu0 0.0
  %1527 = vmatprep.subr.mxu0 0.0
  %1528 = vmatpush1.msra.mxu0 0.0
  %1529 = vmatprep.subr.mxu0 0.0
  %1530 = vmatpush1.msra.mxu0 0.0
  %1531 = vmatprep.subr.mxu0 0.0
  %1532 = vmatpush1.msra.mxu0 0.0
  %1533 = vmatprep.subr.mxu0 0.0
  %1534 = vmatpush1.msra.mxu0 0.0
  %1535 = vmatprep.subr.mxu0 0.0
  %1536 = vmatpush1.msra.mxu0 0.0
  %1537 = vmatprep.subr.mxu0 0.0
  %1538 = vmatpush1.msra.mxu0 0.0
  %1539 = vmatprep.subr.mxu0 0.0
  %1540 = vmatpush1.msra.mxu0 0.0
  %1541 = vmatprep.subr.mxu0 0.0
  %1542 = vmatpush1.msra.mxu0 0.0
  %1543 = vmatprep.subr.mxu0 0.0
  %1544 = vmatpush1.msra.mxu0 0.0
  %1545 = vmatprep.subr.mxu0 0.0
  %1546 = vmatpush1.msra.mxu0 0.0
  %1547 = vmatprep.subr.mxu0 0.0
  %1548 = vmatpush1.msra.mxu0 0.0
  %1549 = vmatprep.subr.mxu0 0.0
  %1550 = vmatpush1.msra.mxu0 0.0
  %1551 = vmatprep.subr.mxu0 0.0
  %1552 = vmatpush1.msra.mxu0 0.0
  %1553 = vmatprep.subr.mxu0 0.0
  %1554 = vmatpush1.msra.mxu0 0.0
  %1555 = vmatprep.subr.mxu0 0.0
  %1556 = vmatpush1.msra.mxu0 0.0
  %1557 = vmatprep.subr.mxu0 0.0
  %1558 = vmatpush1.msra.mxu0 0.0
  %1559 = vmatprep.subr.mxu0 0.0
  %1560 = vmatpush1.msra.mxu0 0.0
  %1561 = vmatprep.subr.mxu0 0.0
  %1562 = vmatpush1.msra.mxu0 0.0
  %1563 = vmatprep.subr.mxu0 0.0
  %1564 = vmatpush1.msra.mxu0 0.0
  %1565 = vmatprep.subr.mxu0 0.0
  %1566 = vmatpush1.msra.mxu0 0.0
  %1567 = vmatprep.subr.mxu0 0.0
  %1568 = vmatpush1.msra.mxu0 0.0
  %1569 = vmatprep.subr.mxu0 0.0
  %1570 = vmatpush1.msra.mxu0 0.0
  %1571 = vmatprep.subr.mxu0 0.0
  %1572 = vmatpush1.msra.mxu0 0.0
  %1573 = vmatprep.subr.mxu0 0.0
  %1574 = vmatpush1.msra.mxu0 0.0
  %1575 = vmatprep.subr.mxu0 0.0
  %1576 = vmatpush1.msra.mxu0 0.0
  %1577 = vmatprep.subr.mxu0 0.0
  %1578 = vmatpush1.msra.mxu0 0.0
  %1579 = vmatprep.mubr.f32.mxu0 0.0
  %1580 = vmatmul.mubr.f32.gmra.mrb[0].mxu0 %v1510
  %v1581 = vpop.f32.mrb[0].mxu0
  %v1582 = vadd.f32 %v1507, %v1581
  %v1583 = vpop.f32.mrb[0].mxu0
  %1584 = vmatprep.mubr.f32.mxu0 0.0
  %1585 = vmatmul.mubr.f32.gmra.mrb[0].mxu0 %v1513
  %v1586 = vpop.f32.mrb[0].mxu0
  %v1587 = vadd.f32 %v1507, %v1586
  %v1588 = vpop.f32.mrb[0].mxu0
  %1589 = vdwg.mxu0
  %v1590 = vadd.f32 %v44, %v1582
  %v1591 = vadd.f32 %v45, %v1587
  %v1592 = vld [vmem:[%s5] sm:$0x1]
  %v1593 = vld [vmem:[%s6] sm:$0x1]
  %v1594 = vsel %vm57, %v1590, 0.0
  %1595 = vadd.xlane.f32.xlu0 %v1594
  %v1596 = vpop.xlane.xlu0 %1595
  %v1597 = vsel %vm57, %v1591, 0.0
  %1598 = vadd.xlane.f32.xlu0 %v1597
  %v1599 = vpop.xlane.xlu0 %1598
  %v1600 = vrcp.pop 32.0
  %v1601 = vmul.f32 %v1596, %v1600
  %v1602 = vmul.f32 %v1599, %v1600
  %v1603 = vsub.f32 %v1590, %v1601
  %v1604 = vsub.f32 %v1591, %v1602
  %v1605 = vmul.f32 %v1603, %v1603
  %v1606 = vmul.f32 %v1604, %v1604
  %v1607 = vsel %vm57, %v1605, 0.0
  %1608 = vadd.xlane.f32.xlu0 %v1607
  %v1609 = vpop.xlane.xlu0 %1608
  %v1610 = vsel %vm57, %v1606, 0.0
  %1611 = vadd.xlane.f32.xlu0 %v1610
  %v1612 = vpop.xlane.xlu0 %1611
  %v1613 = vmul.f32 %v1609, %v1600
  %v1614 = vmul.f32 %v1612, %v1600
  %v1615 = vadd.f32 %v1613, 1e-05
  %v1616 = vadd.f32 %v1614, 1e-05
  %v1617 = vrsqrt.pop %v1615
  %v1618 = vrsqrt.pop %v1616
  %v1619 = vmul.f32 %v1603, %v1617
  %v1620 = vmul.f32 %v1604, %v1618
  %v1622 = vlaneseq
  %v1623 = vshrl.u32 %v1622, 7
  %v1624 = vsub.s32 0, %v1623
  %v1625 = vrot.slane %v1592, %v1624
  %v1627 = vmul.f32 %v1619, %v1625
  %v1628 = vmul.f32 %v1620, %v1625
  %v1630 = vlaneseq
  %v1631 = vshrl.u32 %v1630, 7
  %v1632 = vsub.s32 0, %v1631
  %v1633 = vrot.slane %v1593, %v1632
  %v1635 = vadd.f32 %v1627, %v1633
  %v1636 = vadd.f32 %v1628, %v1633
  %v1637 = vld [vmem:[%s7] sm:$0xff]
  %v1638 = vld [vmem:[%s7 + $0x8] sm:$0xff]
  %v1639 = vld [vmem:[%s7 + $0x10] sm:$0xff]
  %v1640 = vld [vmem:[%s7 + $0x18] sm:$0xff]
  %v1641 = vld [vmem:[%s8] sm:$0x1]
  %v1643 = vlaneseq
  %v1644 = vshrl.u32 %v1643, 7
  %v1645 = vsub.s32 0, %v1644
  %v1646 = vrot.slane %v1641, %v1645
  %v1649 = vsel %vm57, %v1635, 0
  %v1652 = vsel %vm57, %v1636, 0
  %1654 = vmatprep.subr.mxu0 0.0
  %1655 = vmatpush1.msra.mxu0 %v1637
  %1656 = vmatprep.subr.mxu0 0.0
  %1657 = vmatpush1.msra.mxu0 %v1638
  %1658 = vmatprep.subr.mxu0 0.0
  %1659 = vmatpush1.msra.mxu0 %v1639
  %1660 = vmatprep.subr.mxu0 0.0
  %1661 = vmatpush1.msra.mxu0 %v1640
  %1662 = vmatprep.subr.mxu0 0.0
  %1663 = vmatpush1.msra.mxu0 0.0
  %1664 = vmatprep.subr.mxu0 0.0
  %1665 = vmatpush1.msra.mxu0 0.0
  %1666 = vmatprep.subr.mxu0 0.0
  %1667 = vmatpush1.msra.mxu0 0.0
  %1668 = vmatprep.subr.mxu0 0.0
  %1669 = vmatpush1.msra.mxu0 0.0
  %1670 = vmatprep.subr.mxu0 0.0
  %1671 = vmatpush1.msra.mxu0 0.0
  %1672 = vmatprep.subr.mxu0 0.0
  %1673 = vmatpush1.msra.mxu0 0.0
  %1674 = vmatprep.subr.mxu0 0.0
  %1675 = vmatpush1.msra.mxu0 0.0
  %1676 = vmatprep.subr.mxu0 0.0
  %1677 = vmatpush1.msra.mxu0 0.0
  %1678 = vmatprep.subr.mxu0 0.0
  %1679 = vmatpush1.msra.mxu0 0.0
  %1680 = vmatprep.subr.mxu0 0.0
  %1681 = vmatpush1.msra.mxu0 0.0
  %1682 = vmatprep.subr.mxu0 0.0
  %1683 = vmatpush1.msra.mxu0 0.0
  %1684 = vmatprep.subr.mxu0 0.0
  %1685 = vmatpush1.msra.mxu0 0.0
  %1686 = vmatprep.subr.mxu0 0.0
  %1687 = vmatpush1.msra.mxu0 0.0
  %1688 = vmatprep.subr.mxu0 0.0
  %1689 = vmatpush1.msra.mxu0 0.0
  %1690 = vmatprep.subr.mxu0 0.0
  %1691 = vmatpush1.msra.mxu0 0.0
  %1692 = vmatprep.subr.mxu0 0.0
  %1693 = vmatpush1.msra.mxu0 0.0
  %1694 = vmatprep.subr.mxu0 0.0
  %1695 = vmatpush1.msra.mxu0 0.0
  %1696 = vmatprep.subr.mxu0 0.0
  %1697 = vmatpush1.msra.mxu0 0.0
  %1698 = vmatprep.subr.mxu0 0.0
  %1699 = vmatpush1.msra.mxu0 0.0
  %1700 = vmatprep.subr.mxu0 0.0
  %1701 = vmatpush1.msra.mxu0 0.0
  %1702 = vmatprep.subr.mxu0 0.0
  %1703 = vmatpush1.msra.mxu0 0.0
  %1704 = vmatprep.subr.mxu0 0.0
  %1705 = vmatpush1.msra.mxu0 0.0
  %1706 = vmatprep.subr.mxu0 0.0
  %1707 = vmatpush1.msra.mxu0 0.0
  %1708 = vmatprep.subr.mxu0 0.0
  %1709 = vmatpush1.msra.mxu0 0.0
  %1710 = vmatprep.subr.mxu0 0.0
  %1711 = vmatpush1.msra.mxu0 0.0
  %1712 = vmatprep.subr.mxu0 0.0
  %1713 = vmatpush1.msra.mxu0 0.0
  %1714 = vmatprep.subr.mxu0 0.0
  %1715 = vmatpush1.msra.mxu0 0.0
  %1716 = vmatprep.subr.mxu0 0.0
  %1717 = vmatpush1.msra.mxu0 0.0
  %1718 = vmatprep.mubr.f32.mxu0 0.0
  %1719 = vmatmul.mubr.f32.gmra.mrb[0].mxu0 %v1649
  %v1720 = vpop.f32.mrb[0].mxu0
  %v1721 = vadd.f32 %v1646, %v1720
  %v1722 = vpop.f32.mrb[0].mxu0
  %1723 = vmatprep.mubr.f32.mxu0 0.0
  %1724 = vmatmul.mubr.f32.gmra.mrb[0].mxu0 %v1652
  %v1725 = vpop.f32.mrb[0].mxu0
  %v1726 = vadd.f32 %v1646, %v1725
  %v1727 = vpop.f32.mrb[0].mxu0
  %1728 = vdwg.mxu0
  %v1729 = vmax.f32 %v1721, 0.0
  %v1730 = vmax.f32 %v1726, 0.0
  %v1731 = vld [vmem:[%s9] sm:$0xff]
  %v1732 = vld [vmem:[%s9 + $0x8] sm:$0xff]
  %v1733 = vld [vmem:[%s9 + $0x10] sm:$0xff]
  %v1734 = vld [vmem:[%s9 + $0x18] sm:$0xff]
  %v1735 = vld [vmem:[%s9 + $0x20] sm:$0xff]
  %v1736 = vld [vmem:[%s9 + $0x28] sm:$0xff]
  %v1737 = vld [vmem:[%s9 + $0x30] sm:$0xff]
  %v1738 = vld [vmem:[%s9 + $0x38] sm:$0xff]
  %v1739 = vld [vmem:[%s10] sm:$0x1]
  %v1741 = vlaneseq
  %v1742 = vshrl.u32 %v1741, 7
  %v1743 = vsub.s32 0, %v1742
  %v1744 = vrot.slane %v1739, %v1743
  %vm1746 = vcmask 523264
  %v1748 = vsel %vm1746, %v1729, 0
  %v1751 = vsel %vm1746, %v1730, 0
  %1753 = vmatprep.subr.mxu0 0.0
  %1754 = vmatpush1.msra.mxu0 %v1731
  %1755 = vmatprep.subr.mxu0 0.0
  %1756 = vmatpush1.msra.mxu0 %v1732
  %1757 = vmatprep.subr.mxu0 0.0
  %1758 = vmatpush1.msra.mxu0 %v1733
  %1759 = vmatprep.subr.mxu0 0.0
  %1760 = vmatpush1.msra.mxu0 %v1734
  %1761 = vmatprep.subr.mxu0 0.0
  %1762 = vmatpush1.msra.mxu0 %v1735
  %1763 = vmatprep.subr.mxu0 0.0
  %1764 = vmatpush1.msra.mxu0 %v1736
  %1765 = vmatprep.subr.mxu0 0.0
  %1766 = vmatpush1.msra.mxu0 %v1737
  %1767 = vmatprep.subr.mxu0 0.0
  %1768 = vmatpush1.msra.mxu0 %v1738
  %1769 = vmatprep.subr.mxu0 0.0
  %1770 = vmatpush1.msra.mxu0 0.0
  %1771 = vmatprep.subr.mxu0 0.0
  %1772 = vmatpush1.msra.mxu0 0.0
  %1773 = vmatprep.subr.mxu0 0.0
  %1774 = vmatpush1.msra.mxu0 0.0
  %1775 = vmatprep.subr.mxu0 0.0
  %1776 = vmatpush1.msra.mxu0 0.0
  %1777 = vmatprep.subr.mxu0 0.0
  %1778 = vmatpush1.msra.mxu0 0.0
  %1779 = vmatprep.subr.mxu0 0.0
  %1780 = vmatpush1.msra.mxu0 0.0
  %1781 = vmatprep.subr.mxu0 0.0
  %1782 = vmatpush1.msra.mxu0 0.0
  %1783 = vmatprep.subr.mxu0 0.0
  %1784 = vmatpush1.msra.mxu0 0.0
  %1785 = vmatprep.subr.mxu0 0.0
  %1786 = vmatpush1.msra.mxu0 0.0
  %1787 = vmatprep.subr.mxu0 0.0
  %1788 = vmatpush1.msra.mxu0 0.0
  %1789 = vmatprep.subr.mxu0 0.0
  %1790 = vmatpush1.msra.mxu0 0.0
  %1791 = vmatprep.subr.mxu0 0.0
  %1792 = vmatpush1.msra.mxu0 0.0
  %1793 = vmatprep.subr.mxu0 0.0
  %1794 = vmatpush1.msra.mxu0 0.0
  %1795 = vmatprep.subr.mxu0 0.0
  %1796 = vmatpush1.msra.mxu0 0.0
  %1797 = vmatprep.subr.mxu0 0.0
  %1798 = vmatpush1.msra.mxu0 0.0
  %1799 = vmatprep.subr.mxu0 0.0
  %1800 = vmatpush1.msra.mxu0 0.0
  %1801 = vmatprep.subr.mxu0 0.0
  %1802 = vmatpush1.msra.mxu0 0.0
  %1803 = vmatprep.subr.mxu0 0.0
  %1804 = vmatpush1.msra.mxu0 0.0
  %1805 = vmatprep.subr.mxu0 0.0
  %1806 = vmatpush1.msra.mxu0 0.0
  %1807 = vmatprep.subr.mxu0 0.0
  %1808 = vmatpush1.msra.mxu0 0.0
  %1809 = vmatprep.subr.mxu0 0.0
  %1810 = vmatpush1.msra.mxu0 0.0
  %1811 = vmatprep.subr.mxu0 0.0
  %1812 = vmatpush1.msra.mxu0 0.0
  %1813 = vmatprep.subr.mxu0 0.0
  %1814 = vmatpush1.msra.mxu0 0.0
  %1815 = vmatprep.subr.mxu0 0.0
  %1816 = vmatpush1.msra.mxu0 0.0
  %1817 = vmatprep.mubr.f32.mxu0 0.0
  %1818 = vmatmul.mubr.f32.gmra.mrb[0].mxu0 %v1748
  %v1819 = vpop.f32.mrb[0].mxu0
  %v1820 = vadd.f32 %v1744, %v1819
  %v1821 = vpop.f32.mrb[0].mxu0
  %1822 = vmatprep.mubr.f32.mxu0 0.0
  %1823 = vmatmul.mubr.f32.gmra.mrb[0].mxu0 %v1751
  %v1824 = vpop.f32.mrb[0].mxu0
  %v1825 = vadd.f32 %v1744, %v1824
  %v1826 = vpop.f32.mrb[0].mxu0
  %1827 = vdwg.mxu0
  %v1828 = vadd.f32 %v1635, %v1820
  %v1829 = vadd.f32 %v1636, %v1825
  %v1830 = vld [vmem:[%s11] sm:$0x1]
  %v1831 = vld [vmem:[%s12] sm:$0x1]
  %v1832 = vsel %vm57, %v1828, 0.0
  %1833 = vadd.xlane.f32.xlu0 %v1832
  %v1834 = vpop.xlane.xlu0 %1833
  %v1835 = vsel %vm57, %v1829, 0.0
  %1836 = vadd.xlane.f32.xlu0 %v1835
  %v1837 = vpop.xlane.xlu0 %1836
  %v1838 = vmul.f32 %v1834, %v1600
  %v1839 = vmul.f32 %v1837, %v1600
  %v1840 = vsub.f32 %v1828, %v1838
  %v1841 = vsub.f32 %v1829, %v1839
  %v1842 = vmul.f32 %v1840, %v1840
  %v1843 = vmul.f32 %v1841, %v1841
  %v1844 = vsel %vm57, %v1842, 0.0
  %1845 = vadd.xlane.f32.xlu0 %v1844
  %v1846 = vpop.xlane.xlu0 %1845
  %v1847 = vsel %vm57, %v1843, 0.0
  %1848 = vadd.xlane.f32.xlu0 %v1847
  %v1849 = vpop.xlane.xlu0 %1848
  %v1850 = vmul.f32 %v1846, %v1600
  %v1851 = vmul.f32 %v1849, %v1600
  %v1852 = vadd.f32 %v1850, 1e-05
  %v1853 = vadd.f32 %v1851, 1e-05
  %v1854 = vrsqrt.pop %v1852
  %v1855 = vrsqrt.pop %v1853
  %v1856 = vmul.f32 %v1840, %v1854
  %v1857 = vmul.f32 %v1841, %v1855
  %v1859 = vlaneseq
  %v1860 = vshrl.u32 %v1859, 7
  %v1861 = vsub.s32 0, %v1860
  %v1862 = vrot.slane %v1830, %v1861
  %v1864 = vmul.f32 %v1856, %v1862
  %v1865 = vmul.f32 %v1857, %v1862
  %v1867 = vlaneseq
  %v1868 = vshrl.u32 %v1867, 7
  %v1869 = vsub.s32 0, %v1868
  %v1870 = vrot.slane %v1831, %v1869
  %v1872 = vadd.f32 %v1864, %v1870
  %v1873 = vadd.f32 %v1865, %v1870
  %1874 = vst.msk [vmem:[%s13] sm:$0xff] %vm57, %v1872
  %1875 = vst.msk [vmem:[%s13 + $0x8] sm:$0xff] %vm57, %v1873
  // Predicated region
  $region54: #{transformer_vae_forward.6} parent=0 // pred_check
    _
  $region55: #{transformer_vae_forward.6} parent=0 // pred_check_branch
    %1877 = sbr.rel (0) target = $region57
  $region56: #{transformer_vae_forward.6} parent=0 // pred_region
    _
  $region57: #{transformer_vae_forward.6} parent=0 // pred_fallthru
    _
  // Predicated region
  $region58: #{transformer_vae_forward.6} parent=0 // pred_check
    _
  $region59: #{transformer_vae_forward.6} parent=0 // pred_check_branch
    %1879 = sbr.rel (0) target = $region61
  $region60: #{transformer_vae_forward.6} parent=0 // pred_region
    _
  $region61: #{transformer_vae_forward.6} parent=0 // pred_fallthru
    _

// kernel: transformer_vae_forward.11
$region0: #{transformer_vae_forward.11}
  #allocation0 [shape = 'u32[]', space=smem, size = 0x4, offset = 0x4, fixed_abs, tag = 'smem constant byte address 0x4 - core index']
  #allocation1 [shape = 'u32[144,128]{1,0:T(1,128)}', space=vmem, size = 0x12000, scoped, tag = 'internal scratch']
  %s0 = inlined_call_operand.vmem [shape: f32[16,32], index: 0, kind: input, shape index: {}]
  %s1 = inlined_call_operand.vmem [shape: f32[32,32], index: 1, kind: input, shape index: {}]
  %s2 = inlined_call_operand.vmem [shape: f32[1,32], index: 2, kind: input, shape index: {}]
  %s3 = inlined_call_operand.vmem [shape: f32[16,32], index: 3, kind: output, shape index: {}]
  %s4 = sld [smem:[#allocation0]]
  $region22: #{transformer_vae_forward.11} parent=0
    _
  %s6 = ssub.s32 1, %s4
  %s7 = scalar_select 0, %s6, %s4
  // Predicated region
  $region2: #{transformer_vae_forward.11} parent=0 // pred_check
    _
  $region3: #{transformer_vae_forward.11} parent=0 // pred_check_branch
    %9 = sbr.rel (0) target = $region5
  $region4: #{transformer_vae_forward.11} parent=0 // pred_region
    _
  $region5: #{transformer_vae_forward.11} parent=0 // pred_fallthru
    _
  // Predicated region
  $region6: #{transformer_vae_forward.11} parent=0 // pred_check
    _
  $region7: #{transformer_vae_forward.11} parent=0 // pred_check_branch
    %11 = sbr.rel (0) target = $region9
  $region8: #{transformer_vae_forward.11} parent=0 // pred_region
    _
  $region9: #{transformer_vae_forward.11} parent=0 // pred_fallthru
    _
  // Predicated region
  $region10: #{transformer_vae_forward.11} parent=0 // pred_check
    _
  $region11: #{transformer_vae_forward.11} parent=0 // pred_check_branch
    %13 = sbr.rel (0) target = $region13
  $region12: #{transformer_vae_forward.11} parent=0 // pred_region
    _
  $region13: #{transformer_vae_forward.11} parent=0 // pred_fallthru
    _
  %v14 = vld [vmem:[%s0] sm:$0xff]
  %v15 = vld [vmem:[%s0 + $0x8] sm:$0xff]
  %v16 = vld [vmem:[%s1] sm:$0xff]
  %v17 = vld [vmem:[%s1 + $0x8] sm:$0xff]
  %v18 = vld [vmem:[%s1 + $0x10] sm:$0xff]
  %v19 = vld [vmem:[%s1 + $0x18] sm:$0xff]
  %v20 = vld [vmem:[%s2] sm:$0x1]
  %v22 = vlaneseq
  %v23 = vshrl.u32 %v22, 7
  %v24 = vsub.s32 0, %v23
  %v25 = vrot.slane %v20, %v24
  %vm27 = vcmask 261120
  %v29 = vsel %vm27, %v14, 0
  %v32 = vsel %vm27, %v15, 0
  %34 = vmatprep.subr.mxu0 0.0
  %35 = vmatpush1.msra.mxu0 %v16
  %36 = vmatprep.subr.mxu0 0.0
  %37 = vmatpush1.msra.mxu0 %v17
  %38 = vmatprep.subr.mxu0 0.0
  %39 = vmatpush1.msra.mxu0 %v18
  %40 = vmatprep.subr.mxu0 0.0
  %41 = vmatpush1.msra.mxu0 %v19
  %42 = vmatprep.subr.mxu0 0.0
  %43 = vmatpush1.msra.mxu0 0.0
  %44 = vmatprep.subr.mxu0 0.0
  %45 = vmatpush1.msra.mxu0 0.0
  %46 = vmatprep.subr.mxu0 0.0
  %47 = vmatpush1.msra.mxu0 0.0
  %48 = vmatprep.subr.mxu0 0.0
  %49 = vmatpush1.msra.mxu0 0.0
  %50 = vmatprep.subr.mxu0 0.0
  %51 = vmatpush1.msra.mxu0 0.0
  %52 = vmatprep.subr.mxu0 0.0
  %53 = vmatpush1.msra.mxu0 0.0
  %54 = vmatprep.subr.mxu0 0.0
  %55 = vmatpush1.msra.mxu0 0.0
  %56 = vmatprep.subr.mxu0 0.0
  %57 = vmatpush1.msra.mxu0 0.0
  %58 = vmatprep.subr.mxu0 0.0
  %59 = vmatpush1.msra.mxu0 0.0
  %60 = vmatprep.subr.mxu0 0.0
  %61 = vmatpush1.msra.mxu0 0.0
  %62 = vmatprep.subr.mxu0 0.0
  %63 = vmatpush1.msra.mxu0 0.0
  %64 = vmatprep.subr.mxu0 0.0
  %65 = vmatpush1.msra.mxu0 0.0
  %66 = vmatprep.subr.mxu0 0.0
  %67 = vmatpush1.msra.mxu0 0.0
  %68 = vmatprep.subr.mxu0 0.0
  %69 = vmatpush1.msra.mxu0 0.0
  %70 = vmatprep.subr.mxu0 0.0
  %71 = vmatpush1.msra.mxu0 0.0
  %72 = vmatprep.subr.mxu0 0.0
  %73 = vmatpush1.msra.mxu0 0.0
  %74 = vmatprep.subr.mxu0 0.0
  %75 = vmatpush1.msra.mxu0 0.0
  %76 = vmatprep.subr.mxu0 0.0
  %77 = vmatpush1.msra.mxu0 0.0
  %78 = vmatprep.subr.mxu0 0.0
  %79 = vmatpush1.msra.mxu0 0.0
  %80 = vmatprep.subr.mxu0 0.0
  %81 = vmatpush1.msra.mxu0 0.0
  %82 = vmatprep.subr.mxu0 0.0
  %83 = vmatpush1.msra.mxu0 0.0
  %84 = vmatprep.subr.mxu0 0.0
  %85 = vmatpush1.msra.mxu0 0.0
  %86 = vmatprep.subr.mxu0 0.0
  %87 = vmatpush1.msra.mxu0 0.0
  %88 = vmatprep.subr.mxu0 0.0
  %89 = vmatpush1.msra.mxu0 0.0
  %90 = vmatprep.subr.mxu0 0.0
  %91 = vmatpush1.msra.mxu0 0.0
  %92 = vmatprep.subr.mxu0 0.0
  %93 = vmatpush1.msra.mxu0 0.0
  %94 = vmatprep.subr.mxu0 0.0
  %95 = vmatpush1.msra.mxu0 0.0
  %96 = vmatprep.subr.mxu0 0.0
  %97 = vmatpush1.msra.mxu0 0.0
  %98 = vmatprep.mubr.f32.mxu0 0.0
  %99 = vmatmul.mubr.f32.gmra.mrb[0].mxu0 %v29
  %v100 = vpop.f32.mrb[0].mxu0
  %v101 = vadd.f32 %v25, %v100
  %v102 = vpop.f32.mrb[0].mxu0
  %103 = vmatprep.mubr.f32.mxu0 0.0
  %104 = vmatmul.mubr.f32.gmra.mrb[0].mxu0 %v32
  %v105 = vpop.f32.mrb[0].mxu0
  %v106 = vadd.f32 %v25, %v105
  %v107 = vpop.f32.mrb[0].mxu0
  %108 = vdwg.mxu0
  %109 = vst.msk [vmem:[%s3] sm:$0xff] %vm27, %v101
  %110 = vst.msk [vmem:[%s3 + $0x8] sm:$0xff] %vm27, %v106
  // Predicated region
  $region14: #{transformer_vae_forward.11} parent=0 // pred_check
    _
  $region15: #{transformer_vae_forward.11} parent=0 // pred_check_branch
    %112 = sbr.rel (0) target = $region17
  $region16: #{transformer_vae_forward.11} parent=0 // pred_region
    _
  $region17: #{transformer_vae_forward.11} parent=0 // pred_fallthru
    _
  // Predicated region
  $region18: #{transformer_vae_forward.11} parent=0 // pred_check
    _
  $region19: #{transformer_vae_forward.11} parent=0 // pred_check_branch
    %114 = sbr.rel (0) target = $region21
  $region20: #{transformer_vae_forward.11} parent=0 // pred_region
    _
  $region21: #{transformer_vae_forward.11} parent=0 // pred_fallthru
    _

// kernel: transformer_vae_forward.10
$region0: #{transformer_vae_forward.10}
  #allocation0 [shape = 'u32[]', space=smem, size = 0x4, offset = 0x4, fixed_abs, tag = 'smem constant byte address 0x4 - core index']
  #allocation1 [shape = 'u32[144,128]{1,0:T(1,128)}', space=vmem, size = 0x12000, scoped, tag = 'internal scratch']
  %s0 = inlined_call_operand.vmem [shape: f32[16,32], index: 0, kind: input, shape index: {}]
  %s1 = inlined_call_operand.vmem [shape: f32[16,32], index: 1, kind: input, shape index: {}]
  %s2 = inlined_call_operand.vmem [shape: f32[32,96], index: 2, kind: input, shape index: {}]
  %s3 = inlined_call_operand.vmem [shape: f32[1,96], index: 3, kind: input, shape index: {}]
  %s4 = inlined_call_operand.vmem [shape: f32[32,32], index: 4, kind: input, shape index: {}]
  %s5 = inlined_call_operand.vmem [shape: f32[1,32], index: 5, kind: input, shape index: {}]
  %s6 = inlined_call_operand.vmem [shape: f32[1,32], index: 6, kind: input, shape index: {}]
  %s7 = inlined_call_operand.vmem [shape: f32[1,32], index: 7, kind: input, shape index: {}]
  %s8 = inlined_call_operand.vmem [shape: f32[32,32], index: 8, kind: input, shape index: {}]
  %s9 = inlined_call_operand.vmem [shape: f32[1,32], index: 9, kind: input, shape index: {}]
  %s10 = inlined_call_operand.vmem [shape: f32[32,64], index: 10, kind: input, shape index: {}]
  %s11 = inlined_call_operand.vmem [shape: f32[1,64], index: 11, kind: input, shape index: {}]
  %s12 = inlined_call_operand.vmem [shape: f32[32,32], index: 12, kind: input, shape index: {}]
  %s13 = inlined_call_operand.vmem [shape: f32[1,32], index: 13, kind: input, shape index: {}]
  %s14 = inlined_call_operand.vmem [shape: f32[1,32], index: 14, kind: input, shape index: {}]
  %s15 = inlined_call_operand.vmem [shape: f32[1,32], index: 15, kind: input, shape index: {}]
  %s16 = inlined_call_operand.vmem [shape: f32[32,64], index: 16, kind: input, shape index: {}]
  %s17 = inlined_call_operand.vmem [shape: f32[1,64], index: 17, kind: input, shape index: {}]
  %s18 = inlined_call_operand.vmem [shape: f32[64,32], index: 18, kind: input, shape index: {}]
  %s19 = inlined_call_operand.vmem [shape: f32[1,32], index: 19, kind: input, shape index: {}]
  %s20 = inlined_call_operand.vmem [shape: f32[1,32], index: 20, kind: input, shape index: {}]
  %s21 = inlined_call_operand.hbm [shape: f32[1,32], index: 21, kind: input, shape index: {}]
  %s22 = inlined_call_operand.vmem [shape: f32[16,32], index: 22, kind: output, shape index: {}]
  %s23 = sld [smem:[#allocation0]]
  $region102: #{transformer_vae_forward.10} parent=0
    _
  %s25 = ssub.s32 1, %s23
  %s26 = scalar_select 0, %s25, %s23
  $region1: #{transformer_vae_forward.10} parent=0
    #allocation2 [shape = 'u8[512]{0}', space=vmem, size = 0x400, scoped, tag = 'input window, operand 21, single buffered']
    #allocation3 [shape = 's32[1]{0}', space=sflag, size = 0x4, scoped, tag = 'scoped memory for transformer_vae_forward.10']
    %27 = vsyncpa [#allocation3], 0
    // Predicated region
    $region2: #{transformer_vae_forward.10} parent=1 // pred_check
      _
    $region3: #{transformer_vae_forward.10} parent=1 // pred_check_branch
      %29 = sbr.rel (0) target = $region5
    $region4: #{transformer_vae_forward.10} parent=1 // pred_region
      _
    $region5: #{transformer_vae_forward.10} parent=1 // pred_fallthru
      _
    // Predicated region
    $region6: #{transformer_vae_forward.10} parent=1 // pred_check
      _
    $region7: #{transformer_vae_forward.10} parent=1 // pred_check_branch
      %31 = sbr.rel (0) target = $region9
    $region8: #{transformer_vae_forward.10} parent=1 // pred_region
      _
    $region9: #{transformer_vae_forward.10} parent=1 // pred_fallthru
      _
    // Predicated region
    $region10: #{transformer_vae_forward.10} parent=1 // pred_check
      _
    $region11: #{transformer_vae_forward.10} parent=1 // pred_check_branch
      %33 = sbr.rel (0) target = $region13
    $region12: #{transformer_vae_forward.10} parent=1 // pred_region
      _
    $region13: #{transformer_vae_forward.10} parent=1 // pred_fallthru
      _
    // Predicated region
    $region14: #{transformer_vae_forward.10} parent=1 // pred_check
      _
    $region15: #{transformer_vae_forward.10} parent=1 // pred_check_branch
      %35 = sbr.rel (0) target = $region17
    $region16: #{transformer_vae_forward.10} parent=1 // pred_region
      _
    $region17: #{transformer_vae_forward.10} parent=1 // pred_fallthru
      _
    // Predicated region
    $region18: #{transformer_vae_forward.10} parent=1 // pred_check
      _
    $region19: #{transformer_vae_forward.10} parent=1 // pred_check_branch
      %37 = sbr.rel (0) target = $region21
    $region20: #{transformer_vae_forward.10} parent=1 // pred_region
      _
    $region21: #{transformer_vae_forward.10} parent=1 // pred_fallthru
      _
    // Predicated region
    $region22: #{transformer_vae_forward.10} parent=1 // pred_check
      _
    $region23: #{transformer_vae_forward.10} parent=1 // pred_check_branch
      %39 = sbr.rel (0) target = $region25
    $region24: #{transformer_vae_forward.10} parent=1 // pred_region
      _
    $region25: #{transformer_vae_forward.10} parent=1 // pred_fallthru
      _
    // Predicated region
    $region26: #{transformer_vae_forward.10} parent=1 // pred_check
      _
    $region27: #{transformer_vae_forward.10} parent=1 // pred_check_branch
      %41 = sbr.rel (0) target = $region29
    $region28: #{transformer_vae_forward.10} parent=1 // pred_region
      _
    $region29: #{transformer_vae_forward.10} parent=1 // pred_fallthru
      _
    // Predicated region
    $region30: #{transformer_vae_forward.10} parent=1 // pred_check
      _
    $region31: #{transformer_vae_forward.10} parent=1 // pred_check_branch
      %43 = sbr.rel (0) target = $region33
    $region32: #{transformer_vae_forward.10} parent=1 // pred_region
      _
    $region33: #{transformer_vae_forward.10} parent=1 // pred_fallthru
      _
    // Predicated region
    $region34: #{transformer_vae_forward.10} parent=1 // pred_check
      _
    $region35: #{transformer_vae_forward.10} parent=1 // pred_check_branch
      %45 = sbr.rel (0) target = $region37
    $region36: #{transformer_vae_forward.10} parent=1 // pred_region
      _
    $region37: #{transformer_vae_forward.10} parent=1 // pred_fallthru
      _
    // Predicated region
    $region38: #{transformer_vae_forward.10} parent=1 // pred_check
      _
    $region39: #{transformer_vae_forward.10} parent=1 // pred_check_branch
      %47 = sbr.rel (0) target = $region41
    $region40: #{transformer_vae_forward.10} parent=1 // pred_region
      _
    $region41: #{transformer_vae_forward.10} parent=1 // pred_fallthru
      _
    // Predicated region
    $region42: #{transformer_vae_forward.10} parent=1 // pred_check
      _
    $region43: #{transformer_vae_forward.10} parent=1 // pred_check_branch
      %49 = sbr.rel (0) target = $region45
    $region44: #{transformer_vae_forward.10} parent=1 // pred_region
      _
    $region45: #{transformer_vae_forward.10} parent=1 // pred_fallthru
      _
    // Predicated region
    $region46: #{transformer_vae_forward.10} parent=1 // pred_check
      _
    $region47: #{transformer_vae_forward.10} parent=1 // pred_check_branch
      %51 = sbr.rel (0) target = $region49
    $region48: #{transformer_vae_forward.10} parent=1 // pred_region
      _
    $region49: #{transformer_vae_forward.10} parent=1 // pred_fallthru
      _
    // Predicated region
    $region50: #{transformer_vae_forward.10} parent=1 // pred_check
      _
    $region51: #{transformer_vae_forward.10} parent=1 // pred_check_branch
      %53 = sbr.rel (0) target = $region53
    $region52: #{transformer_vae_forward.10} parent=1 // pred_region
      _
    $region53: #{transformer_vae_forward.10} parent=1 // pred_fallthru
      _
    // Predicated region
    $region54: #{transformer_vae_forward.10} parent=1 // pred_check
      _
    $region55: #{transformer_vae_forward.10} parent=1 // pred_check_branch
      %55 = sbr.rel (0) target = $region57
    $region56: #{transformer_vae_forward.10} parent=1 // pred_region
      _
    $region57: #{transformer_vae_forward.10} parent=1 // pred_fallthru
      _
    // Predicated region
    $region58: #{transformer_vae_forward.10} parent=1 // pred_check
      _
    $region59: #{transformer_vae_forward.10} parent=1 // pred_check_branch
      %57 = sbr.rel (0) target = $region61
    $region60: #{transformer_vae_forward.10} parent=1 // pred_region
      _
    $region61: #{transformer_vae_forward.10} parent=1 // pred_fallthru
      _
    // Predicated region
    $region62: #{transformer_vae_forward.10} parent=1 // pred_check
      _
    $region63: #{transformer_vae_forward.10} parent=1 // pred_check_branch
      %59 = sbr.rel (0) target = $region65
    $region64: #{transformer_vae_forward.10} parent=1 // pred_region
      _
    $region65: #{transformer_vae_forward.10} parent=1 // pred_fallthru
      _
    // Predicated region
    $region66: #{transformer_vae_forward.10} parent=1 // pred_check
      _
    $region67: #{transformer_vae_forward.10} parent=1 // pred_check_branch
      %61 = sbr.rel (0) target = $region69
    $region68: #{transformer_vae_forward.10} parent=1 // pred_region
      _
    $region69: #{transformer_vae_forward.10} parent=1 // pred_fallthru
      _
    // Predicated region
    $region70: #{transformer_vae_forward.10} parent=1 // pred_check
      _
    $region71: #{transformer_vae_forward.10} parent=1 // pred_check_branch
      %63 = sbr.rel (0) target = $region73
    $region72: #{transformer_vae_forward.10} parent=1 // pred_region
      _
    $region73: #{transformer_vae_forward.10} parent=1 // pred_fallthru
      _
    // Predicated region
    $region74: #{transformer_vae_forward.10} parent=1 // pred_check
      _
    $region75: #{transformer_vae_forward.10} parent=1 // pred_check_branch
      %65 = sbr.rel (0) target = $region77
    $region76: #{transformer_vae_forward.10} parent=1 // pred_region
      _
    $region77: #{transformer_vae_forward.10} parent=1 // pred_fallthru
      _
    // Predicated region
    $region78: #{transformer_vae_forward.10} parent=1 // pred_check
      _
    $region79: #{transformer_vae_forward.10} parent=1 // pred_check_branch
      %67 = sbr.rel (0) target = $region81
    $region80: #{transformer_vae_forward.10} parent=1 // pred_region
      _
    $region81: #{transformer_vae_forward.10} parent=1 // pred_fallthru
      _
    // Predicated region
    $region82: #{transformer_vae_forward.10} parent=1 // pred_check
      _
    $region83: #{transformer_vae_forward.10} parent=1 // pred_check_branch
      %69 = sbr.rel (0) target = $region85
    $region84: #{transformer_vae_forward.10} parent=1 // pred_region
      _
    $region85: #{transformer_vae_forward.10} parent=1 // pred_fallthru
      _
    // Predicated region
    $region86: #{transformer_vae_forward.10} parent=1 // pred_check
      _
    $region87: #{transformer_vae_forward.10} parent=1 // pred_check_branch
      %71 = sbr.rel (0) target = $region89
    $region88: #{transformer_vae_forward.10} parent=1 // pred_region
      %s73 = ssub.s32 16, 16
      %74 = vsyncadd [#allocation3], %s73
      %s76 = sshll.u32 [#allocation2], 4
      %s77 = int_to_ptr.vmem [resolvable:$true] %s76
      %79 = dma.hbm_to_vmem [thread:$0]  %s21, 16, %s77, [#allocation3]
    $region89: #{transformer_vae_forward.10} parent=1 // pred_fallthru
      _
    // Predicated region
    $region90: #{transformer_vae_forward.10} parent=1 // pred_check
      _
    $region91: #{transformer_vae_forward.10} parent=1 // pred_check_branch
      %81 = sbr.rel (0) target = $region93
    $region92: #{transformer_vae_forward.10} parent=1 // pred_region
      %82 = dma.done [#allocation3], 16
    $region93: #{transformer_vae_forward.10} parent=1 // pred_fallthru
      _
    %v83 = vld [vmem:[%s0] sm:$0xff]
    %v84 = vld [vmem:[%s0 + $0x8] sm:$0xff]
    %v85 = vld [vmem:[%s1] sm:$0xff]
    %v86 = vld [vmem:[%s1 + $0x8] sm:$0xff]
    %v87 = vld [vmem:[%s2] sm:$0xff]
    %v88 = vld [vmem:[%s2 + $0x8] sm:$0xff]
    %v89 = vld [vmem:[%s2 + $0x10] sm:$0xff]
    %v90 = vld [vmem:[%s2 + $0x18] sm:$0xff]
    %v91 = vld [vmem:[%s3] sm:$0x1]
    %v93 = vlaneseq
    %v94 = vshrl.u32 %v93, 7
    %v95 = vsub.s32 0, %v94
    %v96 = vrot.slane %v91, %v95
    %vm98 = vcmask 261120
    %v100 = vsel %vm98, %v83, 0
    %v103 = vsel %vm98, %v84, 0
    %105 = vmatprep.subr.mxu0 0.0
    %106 = vmatpush1.msra.mxu0 %v87
    %107 = vmatprep.subr.mxu0 0.0
    %108 = vmatpush1.msra.mxu0 %v88
    %109 = vmatprep.subr.mxu0 0.0
    %110 = vmatpush1.msra.mxu0 %v89
    %111 = vmatprep.subr.mxu0 0.0
    %112 = vmatpush1.msra.mxu0 %v90
    %113 = vmatprep.subr.mxu0 0.0
    %114 = vmatpush1.msra.mxu0 0.0
    %115 = vmatprep.subr.mxu0 0.0
    %116 = vmatpush1.msra.mxu0 0.0
    %117 = vmatprep.subr.mxu0 0.0
    %118 = vmatpush1.msra.mxu0 0.0
    %119 = vmatprep.subr.mxu0 0.0
    %120 = vmatpush1.msra.mxu0 0.0
    %121 = vmatprep.subr.mxu0 0.0
    %122 = vmatpush1.msra.mxu0 0.0
    %123 = vmatprep.subr.mxu0 0.0
    %124 = vmatpush1.msra.mxu0 0.0
    %125 = vmatprep.subr.mxu0 0.0
    %126 = vmatpush1.msra.mxu0 0.0
    %127 = vmatprep.subr.mxu0 0.0
    %128 = vmatpush1.msra.mxu0 0.0
    %129 = vmatprep.subr.mxu0 0.0
    %130 = vmatpush1.msra.mxu0 0.0
    %131 = vmatprep.subr.mxu0 0.0
    %132 = vmatpush1.msra.mxu0 0.0
    %133 = vmatprep.subr.mxu0 0.0
    %134 = vmatpush1.msra.mxu0 0.0
    %135 = vmatprep.subr.mxu0 0.0
    %136 = vmatpush1.msra.mxu0 0.0
    %137 = vmatprep.subr.mxu0 0.0
    %138 = vmatpush1.msra.mxu0 0.0
    %139 = vmatprep.subr.mxu0 0.0
    %140 = vmatpush1.msra.mxu0 0.0
    %141 = vmatprep.subr.mxu0 0.0
    %142 = vmatpush1.msra.mxu0 0.0
    %143 = vmatprep.subr.mxu0 0.0
    %144 = vmatpush1.msra.mxu0 0.0
    %145 = vmatprep.subr.mxu0 0.0
    %146 = vmatpush1.msra.mxu0 0.0
    %147 = vmatprep.subr.mxu0 0.0
    %148 = vmatpush1.msra.mxu0 0.0
    %149 = vmatprep.subr.mxu0 0.0
    %150 = vmatpush1.msra.mxu0 0.0
    %151 = vmatprep.subr.mxu0 0.0
    %152 = vmatpush1.msra.mxu0 0.0
    %153 = vmatprep.subr.mxu0 0.0
    %154 = vmatpush1.msra.mxu0 0.0
    %155 = vmatprep.subr.mxu0 0.0
    %156 = vmatpush1.msra.mxu0 0.0
    %157 = vmatprep.subr.mxu0 0.0
    %158 = vmatpush1.msra.mxu0 0.0
    %159 = vmatprep.subr.mxu0 0.0
    %160 = vmatpush1.msra.mxu0 0.0
    %161 = vmatprep.subr.mxu0 0.0
    %162 = vmatpush1.msra.mxu0 0.0
    %163 = vmatprep.subr.mxu0 0.0
    %164 = vmatpush1.msra.mxu0 0.0
    %165 = vmatprep.subr.mxu0 0.0
    %166 = vmatpush1.msra.mxu0 0.0
    %167 = vmatprep.subr.mxu0 0.0
    %168 = vmatpush1.msra.mxu0 0.0
    %169 = vmatprep.mubr.f32.mxu0 0.0
    %170 = vmatmul.mubr.f32.gmra.mrb[0].mxu0 %v100
    %v171 = vpop.f32.mrb[0].mxu0
    %v172 = vadd.f32 %v96, %v171
    %v173 = vpop.f32.mrb[0].mxu0
    %174 = vmatprep.mubr.f32.mxu0 0.0
    %175 = vmatmul.mubr.f32.gmra.mrb[0].mxu0 %v103
    %v176 = vpop.f32.mrb[0].mxu0
    %v177 = vadd.f32 %v96, %v176
    %v178 = vpop.f32.mrb[0].mxu0
    %179 = vdwg.mxu0
    %181 = vrot.lane.b32.xlu0 %v172, 96
    %v182 = vpop.permute.xlu0 %181
    %vm183 = vcmask 64512
    %v184 = vsel %vm183, %v172, 0
    %v186 = vsel %vm183, %v182, 0
    %188 = vmatprep.subr.mxu0 0.0
    %189 = vmatpush1.xpose.msra.mxu0 %v186
    %190 = vmatprep.subr.mxu0 0.0
    %191 = vmatpush1.xpose.msra.mxu0 0.0
    %192 = vmatprep.subr.mxu0 0.0
    %193 = vmatpush1.xpose.msra.mxu0 0.0
    %194 = vmatprep.subr.mxu0 0.0
    %195 = vmatpush1.xpose.msra.mxu0 0.0
    %196 = vmatprep.subr.mxu0 0.0
    %197 = vmatpush1.xpose.msra.mxu0 0.0
    %198 = vmatprep.subr.mxu0 0.0
    %199 = vmatpush1.xpose.msra.mxu0 0.0
    %200 = vmatprep.subr.mxu0 0.0
    %201 = vmatpush1.xpose.msra.mxu0 0.0
    %202 = vmatprep.subr.mxu0 0.0
    %203 = vmatpush1.xpose.msra.mxu0 0.0
    %204 = vmatprep.subr.mxu0 0.0
    %205 = vmatpush1.xpose.msra.mxu0 0.0
    %206 = vmatprep.subr.mxu0 0.0
    %207 = vmatpush1.xpose.msra.mxu0 0.0
    %208 = vmatprep.subr.mxu0 0.0
    %209 = vmatpush1.xpose.msra.mxu0 0.0
    %210 = vmatprep.subr.mxu0 0.0
    %211 = vmatpush1.xpose.msra.mxu0 0.0
    %212 = vmatprep.subr.mxu0 0.0
    %213 = vmatpush1.xpose.msra.mxu0 0.0
    %214 = vmatprep.subr.mxu0 0.0
    %215 = vmatpush1.xpose.msra.mxu0 0.0
    %216 = vmatprep.subr.mxu0 0.0
    %217 = vmatpush1.xpose.msra.mxu0 0.0
    %218 = vmatprep.subr.mxu0 0.0
    %219 = vmatpush1.xpose.msra.mxu0 0.0
    %220 = vmatprep.subr.mxu0 0.0
    %221 = vmatpush1.xpose.msra.mxu0 0.0
    %222 = vmatprep.subr.mxu0 0.0
    %223 = vmatpush1.xpose.msra.mxu0 0.0
    %224 = vmatprep.subr.mxu0 0.0
    %225 = vmatpush1.xpose.msra.mxu0 0.0
    %226 = vmatprep.subr.mxu0 0.0
    %227 = vmatpush1.xpose.msra.mxu0 0.0
    %228 = vmatprep.subr.mxu0 0.0
    %229 = vmatpush1.xpose.msra.mxu0 0.0
    %230 = vmatprep.subr.mxu0 0.0
    %231 = vmatpush1.xpose.msra.mxu0 0.0
    %232 = vmatprep.subr.mxu0 0.0
    %233 = vmatpush1.xpose.msra.mxu0 0.0
    %234 = vmatprep.subr.mxu0 0.0
    %235 = vmatpush1.xpose.msra.mxu0 0.0
    %236 = vmatprep.subr.mxu0 0.0
    %237 = vmatpush1.xpose.msra.mxu0 0.0
    %238 = vmatprep.subr.mxu0 0.0
    %239 = vmatpush1.xpose.msra.mxu0 0.0
    %240 = vmatprep.subr.mxu0 0.0
    %241 = vmatpush1.xpose.msra.mxu0 0.0
    %242 = vmatprep.subr.mxu0 0.0
    %243 = vmatpush1.xpose.msra.mxu0 0.0
    %244 = vmatprep.subr.mxu0 0.0
    %245 = vmatpush1.xpose.msra.mxu0 0.0
    %246 = vmatprep.subr.mxu0 0.0
    %247 = vmatpush1.xpose.msra.mxu0 0.0
    %248 = vmatprep.subr.mxu0 0.0
    %249 = vmatpush1.xpose.msra.mxu0 0.0
    %250 = vmatprep.subr.mxu0 0.0
    %251 = vmatpush1.xpose.msra.mxu0 0.0
    %252 = vmatprep.mubr.f32.mxu0 0.0
    %253 = vmatmul.mubr.f32.gmra.mrb[0].mxu0 %v184
    %v254 = vpop.f32.mrb[0].mxu0
    %v255 = vadd.f32 0.0, %v254
    %v256 = vpop.f32.mrb[0].mxu0
    %257 = vdwg.mxu0
    %259 = vrot.lane.b32.xlu0 %v177, 96
    %v260 = vpop.permute.xlu0 %259
    %v261 = vsel %vm183, %v177, 0
    %v263 = vsel %vm183, %v260, 0
    %265 = vmatprep.subr.mxu0 0.0
    %266 = vmatpush1.xpose.msra.mxu0 %v263
    %267 = vmatprep.subr.mxu0 0.0
    %268 = vmatpush1.xpose.msra.mxu0 0.0
    %269 = vmatprep.subr.mxu0 0.0
    %270 = vmatpush1.xpose.msra.mxu0 0.0
    %271 = vmatprep.subr.mxu0 0.0
    %272 = vmatpush1.xpose.msra.mxu0 0.0
    %273 = vmatprep.subr.mxu0 0.0
    %274 = vmatpush1.xpose.msra.mxu0 0.0
    %275 = vmatprep.subr.mxu0 0.0
    %276 = vmatpush1.xpose.msra.mxu0 0.0
    %277 = vmatprep.subr.mxu0 0.0
    %278 = vmatpush1.xpose.msra.mxu0 0.0
    %279 = vmatprep.subr.mxu0 0.0
    %280 = vmatpush1.xpose.msra.mxu0 0.0
    %281 = vmatprep.subr.mxu0 0.0
    %282 = vmatpush1.xpose.msra.mxu0 0.0
    %283 = vmatprep.subr.mxu0 0.0
    %284 = vmatpush1.xpose.msra.mxu0 0.0
    %285 = vmatprep.subr.mxu0 0.0
    %286 = vmatpush1.xpose.msra.mxu0 0.0
    %287 = vmatprep.subr.mxu0 0.0
    %288 = vmatpush1.xpose.msra.mxu0 0.0
    %289 = vmatprep.subr.mxu0 0.0
    %290 = vmatpush1.xpose.msra.mxu0 0.0
    %291 = vmatprep.subr.mxu0 0.0
    %292 = vmatpush1.xpose.msra.mxu0 0.0
    %293 = vmatprep.subr.mxu0 0.0
    %294 = vmatpush1.xpose.msra.mxu0 0.0
    %295 = vmatprep.subr.mxu0 0.0
    %296 = vmatpush1.xpose.msra.mxu0 0.0
    %297 = vmatprep.subr.mxu0 0.0
    %298 = vmatpush1.xpose.msra.mxu0 0.0
    %299 = vmatprep.subr.mxu0 0.0
    %300 = vmatpush1.xpose.msra.mxu0 0.0
    %301 = vmatprep.subr.mxu0 0.0
    %302 = vmatpush1.xpose.msra.mxu0 0.0
    %303 = vmatprep.subr.mxu0 0.0
    %304 = vmatpush1.xpose.msra.mxu0 0.0
    %305 = vmatprep.subr.mxu0 0.0
    %306 = vmatpush1.xpose.msra.mxu0 0.0
    %307 = vmatprep.subr.mxu0 0.0
    %308 = vmatpush1.xpose.msra.mxu0 0.0
    %309 = vmatprep.subr.mxu0 0.0
    %310 = vmatpush1.xpose.msra.mxu0 0.0
    %311 = vmatprep.subr.mxu0 0.0
    %312 = vmatpush1.xpose.msra.mxu0 0.0
    %313 = vmatprep.subr.mxu0 0.0
    %314 = vmatpush1.xpose.msra.mxu0 0.0
    %315 = vmatprep.subr.mxu0 0.0
    %316 = vmatpush1.xpose.msra.mxu0 0.0
    %317 = vmatprep.subr.mxu0 0.0
    %318 = vmatpush1.xpose.msra.mxu0 0.0
    %319 = vmatprep.subr.mxu0 0.0
    %320 = vmatpush1.xpose.msra.mxu0 0.0
    %321 = vmatprep.subr.mxu0 0.0
    %322 = vmatpush1.xpose.msra.mxu0 0.0
    %323 = vmatprep.subr.mxu0 0.0
    %324 = vmatpush1.xpose.msra.mxu0 0.0
    %325 = vmatprep.subr.mxu0 0.0
    %326 = vmatpush1.xpose.msra.mxu0 0.0
    %327 = vmatprep.subr.mxu0 0.0
    %328 = vmatpush1.xpose.msra.mxu0 0.0
    %329 = vmatprep.mubr.f32.mxu0 0.0
    %330 = vmatmul.mubr.f32.gmra.mrb[0].mxu0 %v261
    %v331 = vpop.f32.mrb[0].mxu0
    %v332 = vadd.f32 0.0, %v331
    %v333 = vpop.f32.mrb[0].mxu0
    %334 = vdwg.mxu0
    %v335 = vmul.f32 %v255, 0.35355338
    %v336 = vmul.f32 %v332, 0.35355338
    %v337 = vsel %vm183, %v335, -inf
    %338 = vmax.xlane.f32.xlu0 %v337
    %v339 = vpop.xlane.xlu0 %338
    %v340 = vsel %vm183, %v336, -inf
    %341 = vmax.xlane.f32.xlu0 %v340
    %v342 = vpop.xlane.xlu0 %341
    %v343 = vsub.f32 %v335, %v339
    %v344 = vsub.f32 %v336, %v342
    %v345 = vmul.f32 %v343, 1.442695
    %v346 = vpow.pop %v345
    %v347 = vmul.f32 %v344, 1.442695
    %v348 = vpow.pop %v347
    %v349 = vsel %vm183, %v346, 0.0
    %350 = vadd.xlane.f32.xlu0 %v349
    %v351 = vpop.xlane.xlu0 %350
    %v352 = vsel %vm183, %v348, 0.0
    %353 = vadd.xlane.f32.xlu0 %v352
    %v354 = vpop.xlane.xlu0 %353
    %v355 = vrcp.pop %v351
    %v356 = vrcp.pop %v354
    %v357 = vmul.f32 %v346, %v355
    %v358 = vmul.f32 %v348, %v356
    %359 = vrot.lane.b32.xlu0 %v172, 64
    %v360 = vpop.permute.xlu0 %359
    %v363 = vsel %vm183, %v357, 0
    %365 = vmatprep.subr.mxu0 0.0
    %366 = vmatpush1.msra.mxu0 %v360
    %367 = vmatprep.subr.mxu0 0.0
    %368 = vmatpush1.msra.mxu0 0.0
    %369 = vmatprep.subr.mxu0 0.0
    %370 = vmatpush1.msra.mxu0 0.0
    %371 = vmatprep.subr.mxu0 0.0
    %372 = vmatpush1.msra.mxu0 0.0
    %373 = vmatprep.subr.mxu0 0.0
    %374 = vmatpush1.msra.mxu0 0.0
    %375 = vmatprep.subr.mxu0 0.0
    %376 = vmatpush1.msra.mxu0 0.0
    %377 = vmatprep.subr.mxu0 0.0
    %378 = vmatpush1.msra.mxu0 0.0
    %379 = vmatprep.subr.mxu0 0.0
    %380 = vmatpush1.msra.mxu0 0.0
    %381 = vmatprep.subr.mxu0 0.0
    %382 = vmatpush1.msra.mxu0 0.0
    %383 = vmatprep.subr.mxu0 0.0
    %384 = vmatpush1.msra.mxu0 0.0
    %385 = vmatprep.subr.mxu0 0.0
    %386 = vmatpush1.msra.mxu0 0.0
    %387 = vmatprep.subr.mxu0 0.0
    %388 = vmatpush1.msra.mxu0 0.0
    %389 = vmatprep.subr.mxu0 0.0
    %390 = vmatpush1.msra.mxu0 0.0
    %391 = vmatprep.subr.mxu0 0.0
    %392 = vmatpush1.msra.mxu0 0.0
    %393 = vmatprep.subr.mxu0 0.0
    %394 = vmatpush1.msra.mxu0 0.0
    %395 = vmatprep.subr.mxu0 0.0
    %396 = vmatpush1.msra.mxu0 0.0
    %397 = vmatprep.subr.mxu0 0.0
    %398 = vmatpush1.msra.mxu0 0.0
    %399 = vmatprep.subr.mxu0 0.0
    %400 = vmatpush1.msra.mxu0 0.0
    %401 = vmatprep.subr.mxu0 0.0
    %402 = vmatpush1.msra.mxu0 0.0
    %403 = vmatprep.subr.mxu0 0.0
    %404 = vmatpush1.msra.mxu0 0.0
    %405 = vmatprep.subr.mxu0 0.0
    %406 = vmatpush1.msra.mxu0 0.0
    %407 = vmatprep.subr.mxu0 0.0
    %408 = vmatpush1.msra.mxu0 0.0
    %409 = vmatprep.subr.mxu0 0.0
    %410 = vmatpush1.msra.mxu0 0.0
    %411 = vmatprep.subr.mxu0 0.0
    %412 = vmatpush1.msra.mxu0 0.0
    %413 = vmatprep.subr.mxu0 0.0
    %414 = vmatpush1.msra.mxu0 0.0
    %415 = vmatprep.subr.mxu0 0.0
    %416 = vmatpush1.msra.mxu0 0.0
    %417 = vmatprep.subr.mxu0 0.0
    %418 = vmatpush1.msra.mxu0 0.0
    %419 = vmatprep.subr.mxu0 0.0
    %420 = vmatpush1.msra.mxu0 0.0
    %421 = vmatprep.subr.mxu0 0.0
    %422 = vmatpush1.msra.mxu0 0.0
    %423 = vmatprep.subr.mxu0 0.0
    %424 = vmatpush1.msra.mxu0 0.0
    %425 = vmatprep.subr.mxu0 0.0
    %426 = vmatpush1.msra.mxu0 0.0
    %427 = vmatprep.subr.mxu0 0.0
    %428 = vmatpush1.msra.mxu0 0.0
    %429 = vmatprep.mubr.f32.mxu0 0.0
    %430 = vmatmul.mubr.f32.gmra.mrb[0].mxu0 %v363
    %v431 = vpop.f32.mrb[0].mxu0
    %v432 = vadd.f32 0.0, %v431
    %v433 = vpop.f32.mrb[0].mxu0
    %434 = vdwg.mxu0
    %435 = vrot.lane.b32.xlu0 %v177, 64
    %v436 = vpop.permute.xlu0 %435
    %v439 = vsel %vm183, %v358, 0
    %441 = vmatprep.subr.mxu0 0.0
    %442 = vmatpush1.msra.mxu0 %v436
    %443 = vmatprep.subr.mxu0 0.0
    %444 = vmatpush1.msra.mxu0 0.0
    %445 = vmatprep.subr.mxu0 0.0
    %446 = vmatpush1.msra.mxu0 0.0
    %447 = vmatprep.subr.mxu0 0.0
    %448 = vmatpush1.msra.mxu0 0.0
    %449 = vmatprep.subr.mxu0 0.0
    %450 = vmatpush1.msra.mxu0 0.0
    %451 = vmatprep.subr.mxu0 0.0
    %452 = vmatpush1.msra.mxu0 0.0
    %453 = vmatprep.subr.mxu0 0.0
    %454 = vmatpush1.msra.mxu0 0.0
    %455 = vmatprep.subr.mxu0 0.0
    %456 = vmatpush1.msra.mxu0 0.0
    %457 = vmatprep.subr.mxu0 0.0
    %458 = vmatpush1.msra.mxu0 0.0
    %459 = vmatprep.subr.mxu0 0.0
    %460 = vmatpush1.msra.mxu0 0.0
    %461 = vmatprep.subr.mxu0 0.0
    %462 = vmatpush1.msra.mxu0 0.0
    %463 = vmatprep.subr.mxu0 0.0
    %464 = vmatpush1.msra.mxu0 0.0
    %465 = vmatprep.subr.mxu0 0.0
    %466 = vmatpush1.msra.mxu0 0.0
    %467 = vmatprep.subr.mxu0 0.0
    %468 = vmatpush1.msra.mxu0 0.0
    %469 = vmatprep.subr.mxu0 0.0
    %470 = vmatpush1.msra.mxu0 0.0
    %471 = vmatprep.subr.mxu0 0.0
    %472 = vmatpush1.msra.mxu0 0.0
    %473 = vmatprep.subr.mxu0 0.0
    %474 = vmatpush1.msra.mxu0 0.0
    %475 = vmatprep.subr.mxu0 0.0
    %476 = vmatpush1.msra.mxu0 0.0
    %477 = vmatprep.subr.mxu0 0.0
    %478 = vmatpush1.msra.mxu0 0.0
    %479 = vmatprep.subr.mxu0 0.0
    %480 = vmatpush1.msra.mxu0 0.0
    %481 = vmatprep.subr.mxu0 0.0
    %482 = vmatpush1.msra.mxu0 0.0
    %483 = vmatprep.subr.mxu0 0.0
    %484 = vmatpush1.msra.mxu0 0.0
    %485 = vmatprep.subr.mxu0 0.0
    %486 = vmatpush1.msra.mxu0 0.0
    %487 = vmatprep.subr.mxu0 0.0
    %488 = vmatpush1.msra.mxu0 0.0
    %489 = vmatprep.subr.mxu0 0.0
    %490 = vmatpush1.msra.mxu0 0.0
    %491 = vmatprep.subr.mxu0 0.0
    %492 = vmatpush1.msra.mxu0 0.0
    %493 = vmatprep.subr.mxu0 0.0
    %494 = vmatpush1.msra.mxu0 0.0
    %495 = vmatprep.subr.mxu0 0.0
    %496 = vmatpush1.msra.mxu0 0.0
    %497 = vmatprep.subr.mxu0 0.0
    %498 = vmatpush1.msra.mxu0 0.0
    %499 = vmatprep.subr.mxu0 0.0
    %500 = vmatpush1.msra.mxu0 0.0
    %501 = vmatprep.subr.mxu0 0.0
    %502 = vmatpush1.msra.mxu0 0.0
    %503 = vmatprep.subr.mxu0 0.0
    %504 = vmatpush1.msra.mxu0 0.0
    %505 = vmatprep.mubr.f32.mxu0 0.0
    %506 = vmatmul.mubr.f32.gmra.mrb[0].mxu0 %v439
    %v507 = vpop.f32.mrb[0].mxu0
    %v508 = vadd.f32 0.0, %v507
    %v509 = vpop.f32.mrb[0].mxu0
    %510 = vdwg.mxu0
    %511 = vrot.lane.b32.xlu0 %v172, 120
    %v512 = vpop.permute.xlu0 %511
    %513 = vrot.lane.b32.xlu0 %v172, 88
    %v514 = vpop.permute.xlu0 %513
    %v515 = vsel %vm183, %v512, 0
    %v517 = vsel %vm183, %v514, 0
    %519 = vmatprep.subr.mxu0 0.0
    %520 = vmatpush1.xpose.msra.mxu0 %v517
    %521 = vmatprep.subr.mxu0 0.0
    %522 = vmatpush1.xpose.msra.mxu0 0.0
    %523 = vmatprep.subr.mxu0 0.0
    %524 = vmatpush1.xpose.msra.mxu0 0.0
    %525 = vmatprep.subr.mxu0 0.0
    %526 = vmatpush1.xpose.msra.mxu0 0.0
    %527 = vmatprep.subr.mxu0 0.0
    %528 = vmatpush1.xpose.msra.mxu0 0.0
    %529 = vmatprep.subr.mxu0 0.0
    %530 = vmatpush1.xpose.msra.mxu0 0.0
    %531 = vmatprep.subr.mxu0 0.0
    %532 = vmatpush1.xpose.msra.mxu0 0.0
    %533 = vmatprep.subr.mxu0 0.0
    %534 = vmatpush1.xpose.msra.mxu0 0.0
    %535 = vmatprep.subr.mxu0 0.0
    %536 = vmatpush1.xpose.msra.mxu0 0.0
    %537 = vmatprep.subr.mxu0 0.0
    %538 = vmatpush1.xpose.msra.mxu0 0.0
    %539 = vmatprep.subr.mxu0 0.0
    %540 = vmatpush1.xpose.msra.mxu0 0.0
    %541 = vmatprep.subr.mxu0 0.0
    %542 = vmatpush1.xpose.msra.mxu0 0.0
    %543 = vmatprep.subr.mxu0 0.0
    %544 = vmatpush1.xpose.msra.mxu0 0.0
    %545 = vmatprep.subr.mxu0 0.0
    %546 = vmatpush1.xpose.msra.mxu0 0.0
    %547 = vmatprep.subr.mxu0 0.0
    %548 = vmatpush1.xpose.msra.mxu0 0.0
    %549 = vmatprep.subr.mxu0 0.0
    %550 = vmatpush1.xpose.msra.mxu0 0.0
    %551 = vmatprep.subr.mxu0 0.0
    %552 = vmatpush1.xpose.msra.mxu0 0.0
    %553 = vmatprep.subr.mxu0 0.0
    %554 = vmatpush1.xpose.msra.mxu0 0.0
    %555 = vmatprep.subr.mxu0 0.0
    %556 = vmatpush1.xpose.msra.mxu0 0.0
    %557 = vmatprep.subr.mxu0 0.0
    %558 = vmatpush1.xpose.msra.mxu0 0.0
    %559 = vmatprep.subr.mxu0 0.0
    %560 = vmatpush1.xpose.msra.mxu0 0.0
    %561 = vmatprep.subr.mxu0 0.0
    %562 = vmatpush1.xpose.msra.mxu0 0.0
    %563 = vmatprep.subr.mxu0 0.0
    %564 = vmatpush1.xpose.msra.mxu0 0.0
    %565 = vmatprep.subr.mxu0 0.0
    %566 = vmatpush1.xpose.msra.mxu0 0.0
    %567 = vmatprep.subr.mxu0 0.0
    %568 = vmatpush1.xpose.msra.mxu0 0.0
    %569 = vmatprep.subr.mxu0 0.0
    %570 = vmatpush1.xpose.msra.mxu0 0.0
    %571 = vmatprep.subr.mxu0 0.0
    %572 = vmatpush1.xpose.msra.mxu0 0.0
    %573 = vmatprep.subr.mxu0 0.0
    %574 = vmatpush1.xpose.msra.mxu0 0.0
    %575 = vmatprep.subr.mxu0 0.0
    %576 = vmatpush1.xpose.msra.mxu0 0.0
    %577 = vmatprep.subr.mxu0 0.0
    %578 = vmatpush1.xpose.msra.mxu0 0.0
    %579 = vmatprep.subr.mxu0 0.0
    %580 = vmatpush1.xpose.msra.mxu0 0.0
    %581 = vmatprep.subr.mxu0 0.0
    %582 = vmatpush1.xpose.msra.mxu0 0.0
    %583 = vmatprep.mubr.f32.mxu0 0.0
    %584 = vmatmul.mubr.f32.gmra.mrb[0].mxu0 %v515
    %v585 = vpop.f32.mrb[0].mxu0
    %v586 = vadd.f32 0.0, %v585
    %v587 = vpop.f32.mrb[0].mxu0
    %588 = vdwg.mxu0
    %589 = vrot.lane.b32.xlu0 %v177, 120
    %v590 = vpop.permute.xlu0 %589
    %591 = vrot.lane.b32.xlu0 %v177, 88
    %v592 = vpop.permute.xlu0 %591
    %v593 = vsel %vm183, %v590, 0
    %v595 = vsel %vm183, %v592, 0
    %597 = vmatprep.subr.mxu0 0.0
    %598 = vmatpush1.xpose.msra.mxu0 %v595
    %599 = vmatprep.subr.mxu0 0.0
    %600 = vmatpush1.xpose.msra.mxu0 0.0
    %601 = vmatprep.subr.mxu0 0.0
    %602 = vmatpush1.xpose.msra.mxu0 0.0
    %603 = vmatprep.subr.mxu0 0.0
    %604 = vmatpush1.xpose.msra.mxu0 0.0
    %605 = vmatprep.subr.mxu0 0.0
    %606 = vmatpush1.xpose.msra.mxu0 0.0
    %607 = vmatprep.subr.mxu0 0.0
    %608 = vmatpush1.xpose.msra.mxu0 0.0
    %609 = vmatprep.subr.mxu0 0.0
    %610 = vmatpush1.xpose.msra.mxu0 0.0
    %611 = vmatprep.subr.mxu0 0.0
    %612 = vmatpush1.xpose.msra.mxu0 0.0
    %613 = vmatprep.subr.mxu0 0.0
    %614 = vmatpush1.xpose.msra.mxu0 0.0
    %615 = vmatprep.subr.mxu0 0.0
    %616 = vmatpush1.xpose.msra.mxu0 0.0
    %617 = vmatprep.subr.mxu0 0.0
    %618 = vmatpush1.xpose.msra.mxu0 0.0
    %619 = vmatprep.subr.mxu0 0.0
    %620 = vmatpush1.xpose.msra.mxu0 0.0
    %621 = vmatprep.subr.mxu0 0.0
    %622 = vmatpush1.xpose.msra.mxu0 0.0
    %623 = vmatprep.subr.mxu0 0.0
    %624 = vmatpush1.xpose.msra.mxu0 0.0
    %625 = vmatprep.subr.mxu0 0.0
    %626 = vmatpush1.xpose.msra.mxu0 0.0
    %627 = vmatprep.subr.mxu0 0.0
    %628 = vmatpush1.xpose.msra.mxu0 0.0
    %629 = vmatprep.subr.mxu0 0.0
    %630 = vmatpush1.xpose.msra.mxu0 0.0
    %631 = vmatprep.subr.mxu0 0.0
    %632 = vmatpush1.xpose.msra.mxu0 0.0
    %633 = vmatprep.subr.mxu0 0.0
    %634 = vmatpush1.xpose.msra.mxu0 0.0
    %635 = vmatprep.subr.mxu0 0.0
    %636 = vmatpush1.xpose.msra.mxu0 0.0
    %637 = vmatprep.subr.mxu0 0.0
    %638 = vmatpush1.xpose.msra.mxu0 0.0
    %639 = vmatprep.subr.mxu0 0.0
    %640 = vmatpush1.xpose.msra.mxu0 0.0
    %641 = vmatprep.subr.mxu0 0.0
    %642 = vmatpush1.xpose.msra.mxu0 0.0
    %643 = vmatprep.subr.mxu0 0.0
    %644 = vmatpush1.xpose.msra.mxu0 0.0
    %645 = vmatprep.subr.mxu0 0.0
    %646 = vmatpush1.xpose.msra.mxu0 0.0
    %647 = vmatprep.subr.mxu0 0.0
    %648 = vmatpush1.xpose.msra.mxu0 0.0
    %649 = vmatprep.subr.mxu0 0.0
    %650 = vmatpush1.xpose.msra.mxu0 0.0
    %651 = vmatprep.subr.mxu0 0.0
    %652 = vmatpush1.xpose.msra.mxu0 0.0
    %653 = vmatprep.subr.mxu0 0.0
    %654 = vmatpush1.xpose.msra.mxu0 0.0
    %655 = vmatprep.subr.mxu0 0.0
    %656 = vmatpush1.xpose.msra.mxu0 0.0
    %657 = vmatprep.subr.mxu0 0.0
    %658 = vmatpush1.xpose.msra.mxu0 0.0
    %659 = vmatprep.subr.mxu0 0.0
    %660 = vmatpush1.xpose.msra.mxu0 0.0
    %661 = vmatprep.mubr.f32.mxu0 0.0
    %662 = vmatmul.mubr.f32.gmra.mrb[0].mxu0 %v593
    %v663 = vpop.f32.mrb[0].mxu0
    %v664 = vadd.f32 0.0, %v663
    %v665 = vpop.f32.mrb[0].mxu0
    %666 = vdwg.mxu0
    %v667 = vmul.f32 %v586, 0.35355338
    %v668 = vmul.f32 %v664, 0.35355338
    %v669 = vsel %vm183, %v667, -inf
    %670 = vmax.xlane.f32.xlu0 %v669
    %v671 = vpop.xlane.xlu0 %670
    %v672 = vsel %vm183, %v668, -inf
    %673 = vmax.xlane.f32.xlu0 %v672
    %v674 = vpop.xlane.xlu0 %673
    %v675 = vsub.f32 %v667, %v671
    %v676 = vsub.f32 %v668, %v674
    %v677 = vmul.f32 %v675, 1.442695
    %v678 = vpow.pop %v677
    %v679 = vmul.f32 %v676, 1.442695
    %v680 = vpow.pop %v679
    %v681 = vsel %vm183, %v678, 0.0
    %682 = vadd.xlane.f32.xlu0 %v681
    %v683 = vpop.xlane.xlu0 %682
    %v684 = vsel %vm183, %v680, 0.0
    %685 = vadd.xlane.f32.xlu0 %v684
    %v686 = vpop.xlane.xlu0 %685
    %v687 = vrcp.pop %v683
    %v688 = vrcp.pop %v686
    %v689 = vmul.f32 %v678, %v687
    %v690 = vmul.f32 %v680, %v688
    %691 = vrot.lane.b32.xlu0 %v172, 56
    %v692 = vpop.permute.xlu0 %691
    %v695 = vsel %vm183, %v689, 0
    %697 = vmatprep.subr.mxu0 0.0
    %698 = vmatpush1.msra.mxu0 %v692
    %699 = vmatprep.subr.mxu0 0.0
    %700 = vmatpush1.msra.mxu0 0.0
    %701 = vmatprep.subr.mxu0 0.0
    %702 = vmatpush1.msra.mxu0 0.0
    %703 = vmatprep.subr.mxu0 0.0
    %704 = vmatpush1.msra.mxu0 0.0
    %705 = vmatprep.subr.mxu0 0.0
    %706 = vmatpush1.msra.mxu0 0.0
    %707 = vmatprep.subr.mxu0 0.0
    %708 = vmatpush1.msra.mxu0 0.0
    %709 = vmatprep.subr.mxu0 0.0
    %710 = vmatpush1.msra.mxu0 0.0
    %711 = vmatprep.subr.mxu0 0.0
    %712 = vmatpush1.msra.mxu0 0.0
    %713 = vmatprep.subr.mxu0 0.0
    %714 = vmatpush1.msra.mxu0 0.0
    %715 = vmatprep.subr.mxu0 0.0
    %716 = vmatpush1.msra.mxu0 0.0
    %717 = vmatprep.subr.mxu0 0.0
    %718 = vmatpush1.msra.mxu0 0.0
    %719 = vmatprep.subr.mxu0 0.0
    %720 = vmatpush1.msra.mxu0 0.0
    %721 = vmatprep.subr.mxu0 0.0
    %722 = vmatpush1.msra.mxu0 0.0
    %723 = vmatprep.subr.mxu0 0.0
    %724 = vmatpush1.msra.mxu0 0.0
    %725 = vmatprep.subr.mxu0 0.0
    %726 = vmatpush1.msra.mxu0 0.0
    %727 = vmatprep.subr.mxu0 0.0
    %728 = vmatpush1.msra.mxu0 0.0
    %729 = vmatprep.subr.mxu0 0.0
    %730 = vmatpush1.msra.mxu0 0.0
    %731 = vmatprep.subr.mxu0 0.0
    %732 = vmatpush1.msra.mxu0 0.0
    %733 = vmatprep.subr.mxu0 0.0
    %734 = vmatpush1.msra.mxu0 0.0
    %735 = vmatprep.subr.mxu0 0.0
    %736 = vmatpush1.msra.mxu0 0.0
    %737 = vmatprep.subr.mxu0 0.0
    %738 = vmatpush1.msra.mxu0 0.0
    %739 = vmatprep.subr.mxu0 0.0
    %740 = vmatpush1.msra.mxu0 0.0
    %741 = vmatprep.subr.mxu0 0.0
    %742 = vmatpush1.msra.mxu0 0.0
    %743 = vmatprep.subr.mxu0 0.0
    %744 = vmatpush1.msra.mxu0 0.0
    %745 = vmatprep.subr.mxu0 0.0
    %746 = vmatpush1.msra.mxu0 0.0
    %747 = vmatprep.subr.mxu0 0.0
    %748 = vmatpush1.msra.mxu0 0.0
    %749 = vmatprep.subr.mxu0 0.0
    %750 = vmatpush1.msra.mxu0 0.0
    %751 = vmatprep.subr.mxu0 0.0
    %752 = vmatpush1.msra.mxu0 0.0
    %753 = vmatprep.subr.mxu0 0.0
    %754 = vmatpush1.msra.mxu0 0.0
    %755 = vmatprep.subr.mxu0 0.0
    %756 = vmatpush1.msra.mxu0 0.0
    %757 = vmatprep.subr.mxu0 0.0
    %758 = vmatpush1.msra.mxu0 0.0
    %759 = vmatprep.subr.mxu0 0.0
    %760 = vmatpush1.msra.mxu0 0.0
    %761 = vmatprep.mubr.f32.mxu0 0.0
    %762 = vmatmul.mubr.f32.gmra.mrb[0].mxu0 %v695
    %v763 = vpop.f32.mrb[0].mxu0
    %v764 = vadd.f32 0.0, %v763
    %v765 = vpop.f32.mrb[0].mxu0
    %766 = vdwg.mxu0
    %767 = vrot.lane.b32.xlu0 %v177, 56
    %v768 = vpop.permute.xlu0 %767
    %v771 = vsel %vm183, %v690, 0
    %773 = vmatprep.subr.mxu0 0.0
    %774 = vmatpush1.msra.mxu0 %v768
    %775 = vmatprep.subr.mxu0 0.0
    %776 = vmatpush1.msra.mxu0 0.0
    %777 = vmatprep.subr.mxu0 0.0
    %778 = vmatpush1.msra.mxu0 0.0
    %779 = vmatprep.subr.mxu0 0.0
    %780 = vmatpush1.msra.mxu0 0.0
    %781 = vmatprep.subr.mxu0 0.0
    %782 = vmatpush1.msra.mxu0 0.0
    %783 = vmatprep.subr.mxu0 0.0
    %784 = vmatpush1.msra.mxu0 0.0
    %785 = vmatprep.subr.mxu0 0.0
    %786 = vmatpush1.msra.mxu0 0.0
    %787 = vmatprep.subr.mxu0 0.0
    %788 = vmatpush1.msra.mxu0 0.0
    %789 = vmatprep.subr.mxu0 0.0
    %790 = vmatpush1.msra.mxu0 0.0
    %791 = vmatprep.subr.mxu0 0.0
    %792 = vmatpush1.msra.mxu0 0.0
    %793 = vmatprep.subr.mxu0 0.0
    %794 = vmatpush1.msra.mxu0 0.0
    %795 = vmatprep.subr.mxu0 0.0
    %796 = vmatpush1.msra.mxu0 0.0
    %797 = vmatprep.subr.mxu0 0.0
    %798 = vmatpush1.msra.mxu0 0.0
    %799 = vmatprep.subr.mxu0 0.0
    %800 = vmatpush1.msra.mxu0 0.0
    %801 = vmatprep.subr.mxu0 0.0
    %802 = vmatpush1.msra.mxu0 0.0
    %803 = vmatprep.subr.mxu0 0.0
    %804 = vmatpush1.msra.mxu0 0.0
    %805 = vmatprep.subr.mxu0 0.0
    %806 = vmatpush1.msra.mxu0 0.0
    %807 = vmatprep.subr.mxu0 0.0
    %808 = vmatpush1.msra.mxu0 0.0
    %809 = vmatprep.subr.mxu0 0.0
    %810 = vmatpush1.msra.mxu0 0.0
    %811 = vmatprep.subr.mxu0 0.0
    %812 = vmatpush1.msra.mxu0 0.0
    %813 = vmatprep.subr.mxu0 0.0
    %814 = vmatpush1.msra.mxu0 0.0
    %815 = vmatprep.subr.mxu0 0.0
    %816 = vmatpush1.msra.mxu0 0.0
    %817 = vmatprep.subr.mxu0 0.0
    %818 = vmatpush1.msra.mxu0 0.0
    %819 = vmatprep.subr.mxu0 0.0
    %820 = vmatpush1.msra.mxu0 0.0
    %821 = vmatprep.subr.mxu0 0.0
    %822 = vmatpush1.msra.mxu0 0.0
    %823 = vmatprep.subr.mxu0 0.0
    %824 = vmatpush1.msra.mxu0 0.0
    %825 = vmatprep.subr.mxu0 0.0
    %826 = vmatpush1.msra.mxu0 0.0
    %827 = vmatprep.subr.mxu0 0.0
    %828 = vmatpush1.msra.mxu0 0.0
    %829 = vmatprep.subr.mxu0 0.0
    %830 = vmatpush1.msra.mxu0 0.0
    %831 = vmatprep.subr.mxu0 0.0
    %832 = vmatpush1.msra.mxu0 0.0
    %833 = vmatprep.subr.mxu0 0.0
    %834 = vmatpush1.msra.mxu0 0.0
    %835 = vmatprep.subr.mxu0 0.0
    %836 = vmatpush1.msra.mxu0 0.0
    %837 = vmatprep.mubr.f32.mxu0 0.0
    %838 = vmatmul.mubr.f32.gmra.mrb[0].mxu0 %v771
    %v839 = vpop.f32.mrb[0].mxu0
    %v840 = vadd.f32 0.0, %v839
    %v841 = vpop.f32.mrb[0].mxu0
    %842 = vdwg.mxu0
    %843 = vrot.lane.b32.xlu0 %v172, 112
    %v844 = vpop.permute.xlu0 %843
    %845 = vrot.lane.b32.xlu0 %v172, 80
    %v846 = vpop.permute.xlu0 %845
    %v847 = vsel %vm183, %v844, 0
    %v849 = vsel %vm183, %v846, 0
    %851 = vmatprep.subr.mxu0 0.0
    %852 = vmatpush1.xpose.msra.mxu0 %v849
    %853 = vmatprep.subr.mxu0 0.0
    %854 = vmatpush1.xpose.msra.mxu0 0.0
    %855 = vmatprep.subr.mxu0 0.0
    %856 = vmatpush1.xpose.msra.mxu0 0.0
    %857 = vmatprep.subr.mxu0 0.0
    %858 = vmatpush1.xpose.msra.mxu0 0.0
    %859 = vmatprep.subr.mxu0 0.0
    %860 = vmatpush1.xpose.msra.mxu0 0.0
    %861 = vmatprep.subr.mxu0 0.0
    %862 = vmatpush1.xpose.msra.mxu0 0.0
    %863 = vmatprep.subr.mxu0 0.0
    %864 = vmatpush1.xpose.msra.mxu0 0.0
    %865 = vmatprep.subr.mxu0 0.0
    %866 = vmatpush1.xpose.msra.mxu0 0.0
    %867 = vmatprep.subr.mxu0 0.0
    %868 = vmatpush1.xpose.msra.mxu0 0.0
    %869 = vmatprep.subr.mxu0 0.0
    %870 = vmatpush1.xpose.msra.mxu0 0.0
    %871 = vmatprep.subr.mxu0 0.0
    %872 = vmatpush1.xpose.msra.mxu0 0.0
    %873 = vmatprep.subr.mxu0 0.0
    %874 = vmatpush1.xpose.msra.mxu0 0.0
    %875 = vmatprep.subr.mxu0 0.0
    %876 = vmatpush1.xpose.msra.mxu0 0.0
    %877 = vmatprep.subr.mxu0 0.0
    %878 = vmatpush1.xpose.msra.mxu0 0.0
    %879 = vmatprep.subr.mxu0 0.0
    %880 = vmatpush1.xpose.msra.mxu0 0.0
    %881 = vmatprep.subr.mxu0 0.0
    %882 = vmatpush1.xpose.msra.mxu0 0.0
    %883 = vmatprep.subr.mxu0 0.0
    %884 = vmatpush1.xpose.msra.mxu0 0.0
    %885 = vmatprep.subr.mxu0 0.0
    %886 = vmatpush1.xpose.msra.mxu0 0.0
    %887 = vmatprep.subr.mxu0 0.0
    %888 = vmatpush1.xpose.msra.mxu0 0.0
    %889 = vmatprep.subr.mxu0 0.0
    %890 = vmatpush1.xpose.msra.mxu0 0.0
    %891 = vmatprep.subr.mxu0 0.0
    %892 = vmatpush1.xpose.msra.mxu0 0.0
    %893 = vmatprep.subr.mxu0 0.0
    %894 = vmatpush1.xpose.msra.mxu0 0.0
    %895 = vmatprep.subr.mxu0 0.0
    %896 = vmatpush1.xpose.msra.mxu0 0.0
    %897 = vmatprep.subr.mxu0 0.0
    %898 = vmatpush1.xpose.msra.mxu0 0.0
    %899 = vmatprep.subr.mxu0 0.0
    %900 = vmatpush1.xpose.msra.mxu0 0.0
    %901 = vmatprep.subr.mxu0 0.0
    %902 = vmatpush1.xpose.msra.mxu0 0.0
    %903 = vmatprep.subr.mxu0 0.0
    %904 = vmatpush1.xpose.msra.mxu0 0.0
    %905 = vmatprep.subr.mxu0 0.0
    %906 = vmatpush1.xpose.msra.mxu0 0.0
    %907 = vmatprep.subr.mxu0 0.0
    %908 = vmatpush1.xpose.msra.mxu0 0.0
    %909 = vmatprep.subr.mxu0 0.0
    %910 = vmatpush1.xpose.msra.mxu0 0.0
    %911 = vmatprep.subr.mxu0 0.0
    %912 = vmatpush1.xpose.msra.mxu0 0.0
    %913 = vmatprep.subr.mxu0 0.0
    %914 = vmatpush1.xpose.msra.mxu0 0.0
    %915 = vmatprep.mubr.f32.mxu0 0.0
    %916 = vmatmul.mubr.f32.gmra.mrb[0].mxu0 %v847
    %v917 = vpop.f32.mrb[0].mxu0
    %v918 = vadd.f32 0.0, %v917
    %v919 = vpop.f32.mrb[0].mxu0
    %920 = vdwg.mxu0
    %921 = vrot.lane.b32.xlu0 %v177, 112
    %v922 = vpop.permute.xlu0 %921
    %923 = vrot.lane.b32.xlu0 %v177, 80
    %v924 = vpop.permute.xlu0 %923
    %v925 = vsel %vm183, %v922, 0
    %v927 = vsel %vm183, %v924, 0
    %929 = vmatprep.subr.mxu0 0.0
    %930 = vmatpush1.xpose.msra.mxu0 %v927
    %931 = vmatprep.subr.mxu0 0.0
    %932 = vmatpush1.xpose.msra.mxu0 0.0
    %933 = vmatprep.subr.mxu0 0.0
    %934 = vmatpush1.xpose.msra.mxu0 0.0
    %935 = vmatprep.subr.mxu0 0.0
    %936 = vmatpush1.xpose.msra.mxu0 0.0
    %937 = vmatprep.subr.mxu0 0.0
    %938 = vmatpush1.xpose.msra.mxu0 0.0
    %939 = vmatprep.subr.mxu0 0.0
    %940 = vmatpush1.xpose.msra.mxu0 0.0
    %941 = vmatprep.subr.mxu0 0.0
    %942 = vmatpush1.xpose.msra.mxu0 0.0
    %943 = vmatprep.subr.mxu0 0.0
    %944 = vmatpush1.xpose.msra.mxu0 0.0
    %945 = vmatprep.subr.mxu0 0.0
    %946 = vmatpush1.xpose.msra.mxu0 0.0
    %947 = vmatprep.subr.mxu0 0.0
    %948 = vmatpush1.xpose.msra.mxu0 0.0
    %949 = vmatprep.subr.mxu0 0.0
    %950 = vmatpush1.xpose.msra.mxu0 0.0
    %951 = vmatprep.subr.mxu0 0.0
    %952 = vmatpush1.xpose.msra.mxu0 0.0
    %953 = vmatprep.subr.mxu0 0.0
    %954 = vmatpush1.xpose.msra.mxu0 0.0
    %955 = vmatprep.subr.mxu0 0.0
    %956 = vmatpush1.xpose.msra.mxu0 0.0
    %957 = vmatprep.subr.mxu0 0.0
    %958 = vmatpush1.xpose.msra.mxu0 0.0
    %959 = vmatprep.subr.mxu0 0.0
    %960 = vmatpush1.xpose.msra.mxu0 0.0
    %961 = vmatprep.subr.mxu0 0.0
    %962 = vmatpush1.xpose.msra.mxu0 0.0
    %963 = vmatprep.subr.mxu0 0.0
    %964 = vmatpush1.xpose.msra.mxu0 0.0
    %965 = vmatprep.subr.mxu0 0.0
    %966 = vmatpush1.xpose.msra.mxu0 0.0
    %967 = vmatprep.subr.mxu0 0.0
    %968 = vmatpush1.xpose.msra.mxu0 0.0
    %969 = vmatprep.subr.mxu0 0.0
    %970 = vmatpush1.xpose.msra.mxu0 0.0
    %971 = vmatprep.subr.mxu0 0.0
    %972 = vmatpush1.xpose.msra.mxu0 0.0
    %973 = vmatprep.subr.mxu0 0.0
    %974 = vmatpush1.xpose.msra.mxu0 0.0
    %975 = vmatprep.subr.mxu0 0.0
    %976 = vmatpush1.xpose.msra.mxu0 0.0
    %977 = vmatprep.subr.mxu0 0.0
    %978 = vmatpush1.xpose.msra.mxu0 0.0
    %979 = vmatprep.subr.mxu0 0.0
    %980 = vmatpush1.xpose.msra.mxu0 0.0
    %981 = vmatprep.subr.mxu0 0.0
    %982 = vmatpush1.xpose.msra.mxu0 0.0
    %983 = vmatprep.subr.mxu0 0.0
    %984 = vmatpush1.xpose.msra.mxu0 0.0
    %985 = vmatprep.subr.mxu0 0.0
    %986 = vmatpush1.xpose.msra.mxu0 0.0
    %987 = vmatprep.subr.mxu0 0.0
    %988 = vmatpush1.xpose.msra.mxu0 0.0
    %989 = vmatprep.subr.mxu0 0.0
    %990 = vmatpush1.xpose.msra.mxu0 0.0
    %991 = vmatprep.subr.mxu0 0.0
    %992 = vmatpush1.xpose.msra.mxu0 0.0
    %993 = vmatprep.mubr.f32.mxu0 0.0
    %994 = vmatmul.mubr.f32.gmra.mrb[0].mxu0 %v925
    %v995 = vpop.f32.mrb[0].mxu0
    %v996 = vadd.f32 0.0, %v995
    %v997 = vpop.f32.mrb[0].mxu0
    %998 = vdwg.mxu0
    %v999 = vmul.f32 %v918, 0.35355338
    %v1000 = vmul.f32 %v996, 0.35355338
    %v1001 = vsel %vm183, %v999, -inf
    %1002 = vmax.xlane.f32.xlu0 %v1001
    %v1003 = vpop.xlane.xlu0 %1002
    %v1004 = vsel %vm183, %v1000, -inf
    %1005 = vmax.xlane.f32.xlu0 %v1004
    %v1006 = vpop.xlane.xlu0 %1005
    %v1007 = vsub.f32 %v999, %v1003
    %v1008 = vsub.f32 %v1000, %v1006
    %v1009 = vmul.f32 %v1007, 1.442695
    %v1010 = vpow.pop %v1009
    %v1011 = vmul.f32 %v1008, 1.442695
    %v1012 = vpow.pop %v1011
    %v1013 = vsel %vm183, %v1010, 0.0
    %1014 = vadd.xlane.f32.xlu0 %v1013
    %v1015 = vpop.xlane.xlu0 %1014
    %v1016 = vsel %vm183, %v1012, 0.0
    %1017 = vadd.xlane.f32.xlu0 %v1016
    %v1018 = vpop.xlane.xlu0 %1017
    %v1019 = vrcp.pop %v1015
    %v1020 = vrcp.pop %v1018
    %v1021 = vmul.f32 %v1010, %v1019
    %v1022 = vmul.f32 %v1012, %v1020
    %1023 = vrot.lane.b32.xlu0 %v172, 48
    %v1024 = vpop.permute.xlu0 %1023
    %v1027 = vsel %vm183, %v1021, 0
    %1029 = vmatprep.subr.mxu0 0.0
    %1030 = vmatpush1.msra.mxu0 %v1024
    %1031 = vmatprep.subr.mxu0 0.0
    %1032 = vmatpush1.msra.mxu0 0.0
    %1033 = vmatprep.subr.mxu0 0.0
    %1034 = vmatpush1.msra.mxu0 0.0
    %1035 = vmatprep.subr.mxu0 0.0
    %1036 = vmatpush1.msra.mxu0 0.0
    %1037 = vmatprep.subr.mxu0 0.0
    %1038 = vmatpush1.msra.mxu0 0.0
    %1039 = vmatprep.subr.mxu0 0.0
    %1040 = vmatpush1.msra.mxu0 0.0
    %1041 = vmatprep.subr.mxu0 0.0
    %1042 = vmatpush1.msra.mxu0 0.0
    %1043 = vmatprep.subr.mxu0 0.0
    %1044 = vmatpush1.msra.mxu0 0.0
    %1045 = vmatprep.subr.mxu0 0.0
    %1046 = vmatpush1.msra.mxu0 0.0
    %1047 = vmatprep.subr.mxu0 0.0
    %1048 = vmatpush1.msra.mxu0 0.0
    %1049 = vmatprep.subr.mxu0 0.0
    %1050 = vmatpush1.msra.mxu0 0.0
    %1051 = vmatprep.subr.mxu0 0.0
    %1052 = vmatpush1.msra.mxu0 0.0
    %1053 = vmatprep.subr.mxu0 0.0
    %1054 = vmatpush1.msra.mxu0 0.0
    %1055 = vmatprep.subr.mxu0 0.0
    %1056 = vmatpush1.msra.mxu0 0.0
    %1057 = vmatprep.subr.mxu0 0.0
    %1058 = vmatpush1.msra.mxu0 0.0
    %1059 = vmatprep.subr.mxu0 0.0
    %1060 = vmatpush1.msra.mxu0 0.0
    %1061 = vmatprep.subr.mxu0 0.0
    %1062 = vmatpush1.msra.mxu0 0.0
    %1063 = vmatprep.subr.mxu0 0.0
    %1064 = vmatpush1.msra.mxu0 0.0
    %1065 = vmatprep.subr.mxu0 0.0
    %1066 = vmatpush1.msra.mxu0 0.0
    %1067 = vmatprep.subr.mxu0 0.0
    %1068 = vmatpush1.msra.mxu0 0.0
    %1069 = vmatprep.subr.mxu0 0.0
    %1070 = vmatpush1.msra.mxu0 0.0
    %1071 = vmatprep.subr.mxu0 0.0
    %1072 = vmatpush1.msra.mxu0 0.0
    %1073 = vmatprep.subr.mxu0 0.0
    %1074 = vmatpush1.msra.mxu0 0.0
    %1075 = vmatprep.subr.mxu0 0.0
    %1076 = vmatpush1.msra.mxu0 0.0
    %1077 = vmatprep.subr.mxu0 0.0
    %1078 = vmatpush1.msra.mxu0 0.0
    %1079 = vmatprep.subr.mxu0 0.0
    %1080 = vmatpush1.msra.mxu0 0.0
    %1081 = vmatprep.subr.mxu0 0.0
    %1082 = vmatpush1.msra.mxu0 0.0
    %1083 = vmatprep.subr.mxu0 0.0
    %1084 = vmatpush1.msra.mxu0 0.0
    %1085 = vmatprep.subr.mxu0 0.0
    %1086 = vmatpush1.msra.mxu0 0.0
    %1087 = vmatprep.subr.mxu0 0.0
    %1088 = vmatpush1.msra.mxu0 0.0
    %1089 = vmatprep.subr.mxu0 0.0
    %1090 = vmatpush1.msra.mxu0 0.0
    %1091 = vmatprep.subr.mxu0 0.0
    %1092 = vmatpush1.msra.mxu0 0.0
    %1093 = vmatprep.mubr.f32.mxu0 0.0
    %1094 = vmatmul.mubr.f32.gmra.mrb[0].mxu0 %v1027
    %v1095 = vpop.f32.mrb[0].mxu0
    %v1096 = vadd.f32 0.0, %v1095
    %v1097 = vpop.f32.mrb[0].mxu0
    %1098 = vdwg.mxu0
    %1099 = vrot.lane.b32.xlu0 %v177, 48
    %v1100 = vpop.permute.xlu0 %1099
    %v1103 = vsel %vm183, %v1022, 0
    %1105 = vmatprep.subr.mxu0 0.0
    %1106 = vmatpush1.msra.mxu0 %v1100
    %1107 = vmatprep.subr.mxu0 0.0
    %1108 = vmatpush1.msra.mxu0 0.0
    %1109 = vmatprep.subr.mxu0 0.0
    %1110 = vmatpush1.msra.mxu0 0.0
    %1111 = vmatprep.subr.mxu0 0.0
    %1112 = vmatpush1.msra.mxu0 0.0
    %1113 = vmatprep.subr.mxu0 0.0
    %1114 = vmatpush1.msra.mxu0 0.0
    %1115 = vmatprep.subr.mxu0 0.0
    %1116 = vmatpush1.msra.mxu0 0.0
    %1117 = vmatprep.subr.mxu0 0.0
    %1118 = vmatpush1.msra.mxu0 0.0
    %1119 = vmatprep.subr.mxu0 0.0
    %1120 = vmatpush1.msra.mxu0 0.0
    %1121 = vmatprep.subr.mxu0 0.0
    %1122 = vmatpush1.msra.mxu0 0.0
    %1123 = vmatprep.subr.mxu0 0.0
    %1124 = vmatpush1.msra.mxu0 0.0
    %1125 = vmatprep.subr.mxu0 0.0
    %1126 = vmatpush1.msra.mxu0 0.0
    %1127 = vmatprep.subr.mxu0 0.0
    %1128 = vmatpush1.msra.mxu0 0.0
    %1129 = vmatprep.subr.mxu0 0.0
    %1130 = vmatpush1.msra.mxu0 0.0
    %1131 = vmatprep.subr.mxu0 0.0
    %1132 = vmatpush1.msra.mxu0 0.0
    %1133 = vmatprep.subr.mxu0 0.0
    %1134 = vmatpush1.msra.mxu0 0.0
    %1135 = vmatprep.subr.mxu0 0.0
    %1136 = vmatpush1.msra.mxu0 0.0
    %1137 = vmatprep.subr.mxu0 0.0
    %1138 = vmatpush1.msra.mxu0 0.0
    %1139 = vmatprep.subr.mxu0 0.0
    %1140 = vmatpush1.msra.mxu0 0.0
    %1141 = vmatprep.subr.mxu0 0.0
    %1142 = vmatpush1.msra.mxu0 0.0
    %1143 = vmatprep.subr.mxu0 0.0
    %1144 = vmatpush1.msra.mxu0 0.0
    %1145 = vmatprep.subr.mxu0 0.0
    %1146 = vmatpush1.msra.mxu0 0.0
    %1147 = vmatprep.subr.mxu0 0.0
    %1148 = vmatpush1.msra.mxu0 0.0
    %1149 = vmatprep.subr.mxu0 0.0
    %1150 = vmatpush1.msra.mxu0 0.0
    %1151 = vmatprep.subr.mxu0 0.0
    %1152 = vmatpush1.msra.mxu0 0.0
    %1153 = vmatprep.subr.mxu0 0.0
    %1154 = vmatpush1.msra.mxu0 0.0
    %1155 = vmatprep.subr.mxu0 0.0
    %1156 = vmatpush1.msra.mxu0 0.0
    %1157 = vmatprep.subr.mxu0 0.0
    %1158 = vmatpush1.msra.mxu0 0.0
    %1159 = vmatprep.subr.mxu0 0.0
    %1160 = vmatpush1.msra.mxu0 0.0
    %1161 = vmatprep.subr.mxu0 0.0
    %1162 = vmatpush1.msra.mxu0 0.0
    %1163 = vmatprep.subr.mxu0 0.0
    %1164 = vmatpush1.msra.mxu0 0.0
    %1165 = vmatprep.subr.mxu0 0.0
    %1166 = vmatpush1.msra.mxu0 0.0
    %1167 = vmatprep.subr.mxu0 0.0
    %1168 = vmatpush1.msra.mxu0 0.0
    %1169 = vmatprep.mubr.f32.mxu0 0.0
    %1170 = vmatmul.mubr.f32.gmra.mrb[0].mxu0 %v1103
    %v1171 = vpop.f32.mrb[0].mxu0
    %v1172 = vadd.f32 0.0, %v1171
    %v1173 = vpop.f32.mrb[0].mxu0
    %1174 = vdwg.mxu0
    %1175 = vrot.lane.b32.xlu0 %v172, 104
    %v1176 = vpop.permute.xlu0 %1175
    %1177 = vrot.lane.b32.xlu0 %v172, 72
    %v1178 = vpop.permute.xlu0 %1177
    %v1179 = vsel %vm183, %v1176, 0
    %v1181 = vsel %vm183, %v1178, 0
    %1183 = vmatprep.subr.mxu0 0.0
    %1184 = vmatpush1.xpose.msra.mxu0 %v1181
    %1185 = vmatprep.subr.mxu0 0.0
    %1186 = vmatpush1.xpose.msra.mxu0 0.0
    %1187 = vmatprep.subr.mxu0 0.0
    %1188 = vmatpush1.xpose.msra.mxu0 0.0
    %1189 = vmatprep.subr.mxu0 0.0
    %1190 = vmatpush1.xpose.msra.mxu0 0.0
    %1191 = vmatprep.subr.mxu0 0.0
    %1192 = vmatpush1.xpose.msra.mxu0 0.0
    %1193 = vmatprep.subr.mxu0 0.0
    %1194 = vmatpush1.xpose.msra.mxu0 0.0
    %1195 = vmatprep.subr.mxu0 0.0
    %1196 = vmatpush1.xpose.msra.mxu0 0.0
    %1197 = vmatprep.subr.mxu0 0.0
    %1198 = vmatpush1.xpose.msra.mxu0 0.0
    %1199 = vmatprep.subr.mxu0 0.0
    %1200 = vmatpush1.xpose.msra.mxu0 0.0
    %1201 = vmatprep.subr.mxu0 0.0
    %1202 = vmatpush1.xpose.msra.mxu0 0.0
    %1203 = vmatprep.subr.mxu0 0.0
    %1204 = vmatpush1.xpose.msra.mxu0 0.0
    %1205 = vmatprep.subr.mxu0 0.0
    %1206 = vmatpush1.xpose.msra.mxu0 0.0
    %1207 = vmatprep.subr.mxu0 0.0
    %1208 = vmatpush1.xpose.msra.mxu0 0.0
    %1209 = vmatprep.subr.mxu0 0.0
    %1210 = vmatpush1.xpose.msra.mxu0 0.0
    %1211 = vmatprep.subr.mxu0 0.0
    %1212 = vmatpush1.xpose.msra.mxu0 0.0
    %1213 = vmatprep.subr.mxu0 0.0
    %1214 = vmatpush1.xpose.msra.mxu0 0.0
    %1215 = vmatprep.subr.mxu0 0.0
    %1216 = vmatpush1.xpose.msra.mxu0 0.0
    %1217 = vmatprep.subr.mxu0 0.0
    %1218 = vmatpush1.xpose.msra.mxu0 0.0
    %1219 = vmatprep.subr.mxu0 0.0
    %1220 = vmatpush1.xpose.msra.mxu0 0.0
    %1221 = vmatprep.subr.mxu0 0.0
    %1222 = vmatpush1.xpose.msra.mxu0 0.0
    %1223 = vmatprep.subr.mxu0 0.0
    %1224 = vmatpush1.xpose.msra.mxu0 0.0
    %1225 = vmatprep.subr.mxu0 0.0
    %1226 = vmatpush1.xpose.msra.mxu0 0.0
    %1227 = vmatprep.subr.mxu0 0.0
    %1228 = vmatpush1.xpose.msra.mxu0 0.0
    %1229 = vmatprep.subr.mxu0 0.0
    %1230 = vmatpush1.xpose.msra.mxu0 0.0
    %1231 = vmatprep.subr.mxu0 0.0
    %1232 = vmatpush1.xpose.msra.mxu0 0.0
    %1233 = vmatprep.subr.mxu0 0.0
    %1234 = vmatpush1.xpose.msra.mxu0 0.0
    %1235 = vmatprep.subr.mxu0 0.0
    %1236 = vmatpush1.xpose.msra.mxu0 0.0
    %1237 = vmatprep.subr.mxu0 0.0
    %1238 = vmatpush1.xpose.msra.mxu0 0.0
    %1239 = vmatprep.subr.mxu0 0.0
    %1240 = vmatpush1.xpose.msra.mxu0 0.0
    %1241 = vmatprep.subr.mxu0 0.0
    %1242 = vmatpush1.xpose.msra.mxu0 0.0
    %1243 = vmatprep.subr.mxu0 0.0
    %1244 = vmatpush1.xpose.msra.mxu0 0.0
    %1245 = vmatprep.subr.mxu0 0.0
    %1246 = vmatpush1.xpose.msra.mxu0 0.0
    %1247 = vmatprep.mubr.f32.mxu0 0.0
    %1248 = vmatmul.mubr.f32.gmra.mrb[0].mxu0 %v1179
    %v1249 = vpop.f32.mrb[0].mxu0
    %v1250 = vadd.f32 0.0, %v1249
    %v1251 = vpop.f32.mrb[0].mxu0
    %1252 = vdwg.mxu0
    %1253 = vrot.lane.b32.xlu0 %v177, 104
    %v1254 = vpop.permute.xlu0 %1253
    %1255 = vrot.lane.b32.xlu0 %v177, 72
    %v1256 = vpop.permute.xlu0 %1255
    %v1257 = vsel %vm183, %v1254, 0
    %v1259 = vsel %vm183, %v1256, 0
    %1261 = vmatprep.subr.mxu0 0.0
    %1262 = vmatpush1.xpose.msra.mxu0 %v1259
    %1263 = vmatprep.subr.mxu0 0.0
    %1264 = vmatpush1.xpose.msra.mxu0 0.0
    %1265 = vmatprep.subr.mxu0 0.0
    %1266 = vmatpush1.xpose.msra.mxu0 0.0
    %1267 = vmatprep.subr.mxu0 0.0
    %1268 = vmatpush1.xpose.msra.mxu0 0.0
    %1269 = vmatprep.subr.mxu0 0.0
    %1270 = vmatpush1.xpose.msra.mxu0 0.0
    %1271 = vmatprep.subr.mxu0 0.0
    %1272 = vmatpush1.xpose.msra.mxu0 0.0
    %1273 = vmatprep.subr.mxu0 0.0
    %1274 = vmatpush1.xpose.msra.mxu0 0.0
    %1275 = vmatprep.subr.mxu0 0.0
    %1276 = vmatpush1.xpose.msra.mxu0 0.0
    %1277 = vmatprep.subr.mxu0 0.0
    %1278 = vmatpush1.xpose.msra.mxu0 0.0
    %1279 = vmatprep.subr.mxu0 0.0
    %1280 = vmatpush1.xpose.msra.mxu0 0.0
    %1281 = vmatprep.subr.mxu0 0.0
    %1282 = vmatpush1.xpose.msra.mxu0 0.0
    %1283 = vmatprep.subr.mxu0 0.0
    %1284 = vmatpush1.xpose.msra.mxu0 0.0
    %1285 = vmatprep.subr.mxu0 0.0
    %1286 = vmatpush1.xpose.msra.mxu0 0.0
    %1287 = vmatprep.subr.mxu0 0.0
    %1288 = vmatpush1.xpose.msra.mxu0 0.0
    %1289 = vmatprep.subr.mxu0 0.0
    %1290 = vmatpush1.xpose.msra.mxu0 0.0
    %1291 = vmatprep.subr.mxu0 0.0
    %1292 = vmatpush1.xpose.msra.mxu0 0.0
    %1293 = vmatprep.subr.mxu0 0.0
    %1294 = vmatpush1.xpose.msra.mxu0 0.0
    %1295 = vmatprep.subr.mxu0 0.0
    %1296 = vmatpush1.xpose.msra.mxu0 0.0
    %1297 = vmatprep.subr.mxu0 0.0
    %1298 = vmatpush1.xpose.msra.mxu0 0.0
    %1299 = vmatprep.subr.mxu0 0.0
    %1300 = vmatpush1.xpose.msra.mxu0 0.0
    %1301 = vmatprep.subr.mxu0 0.0
    %1302 = vmatpush1.xpose.msra.mxu0 0.0
    %1303 = vmatprep.subr.mxu0 0.0
    %1304 = vmatpush1.xpose.msra.mxu0 0.0
    %1305 = vmatprep.subr.mxu0 0.0
    %1306 = vmatpush1.xpose.msra.mxu0 0.0
    %1307 = vmatprep.subr.mxu0 0.0
    %1308 = vmatpush1.xpose.msra.mxu0 0.0
    %1309 = vmatprep.subr.mxu0 0.0
    %1310 = vmatpush1.xpose.msra.mxu0 0.0
    %1311 = vmatprep.subr.mxu0 0.0
    %1312 = vmatpush1.xpose.msra.mxu0 0.0
    %1313 = vmatprep.subr.mxu0 0.0
    %1314 = vmatpush1.xpose.msra.mxu0 0.0
    %1315 = vmatprep.subr.mxu0 0.0
    %1316 = vmatpush1.xpose.msra.mxu0 0.0
    %1317 = vmatprep.subr.mxu0 0.0
    %1318 = vmatpush1.xpose.msra.mxu0 0.0
    %1319 = vmatprep.subr.mxu0 0.0
    %1320 = vmatpush1.xpose.msra.mxu0 0.0
    %1321 = vmatprep.subr.mxu0 0.0
    %1322 = vmatpush1.xpose.msra.mxu0 0.0
    %1323 = vmatprep.subr.mxu0 0.0
    %1324 = vmatpush1.xpose.msra.mxu0 0.0
    %1325 = vmatprep.mubr.f32.mxu0 0.0
    %1326 = vmatmul.mubr.f32.gmra.mrb[0].mxu0 %v1257
    %v1327 = vpop.f32.mrb[0].mxu0
    %v1328 = vadd.f32 0.0, %v1327
    %v1329 = vpop.f32.mrb[0].mxu0
    %1330 = vdwg.mxu0
    %v1331 = vmul.f32 %v1250, 0.35355338
    %v1332 = vmul.f32 %v1328, 0.35355338
    %v1333 = vsel %vm183, %v1331, -inf
    %1334 = vmax.xlane.f32.xlu0 %v1333
    %v1335 = vpop.xlane.xlu0 %1334
    %v1336 = vsel %vm183, %v1332, -inf
    %1337 = vmax.xlane.f32.xlu0 %v1336
    %v1338 = vpop.xlane.xlu0 %1337
    %v1339 = vsub.f32 %v1331, %v1335
    %v1340 = vsub.f32 %v1332, %v1338
    %v1341 = vmul.f32 %v1339, 1.442695
    %v1342 = vpow.pop %v1341
    %v1343 = vmul.f32 %v1340, 1.442695
    %v1344 = vpow.pop %v1343
    %v1345 = vsel %vm183, %v1342, 0.0
    %1346 = vadd.xlane.f32.xlu0 %v1345
    %v1347 = vpop.xlane.xlu0 %1346
    %v1348 = vsel %vm183, %v1344, 0.0
    %1349 = vadd.xlane.f32.xlu0 %v1348
    %v1350 = vpop.xlane.xlu0 %1349
    %v1351 = vrcp.pop %v1347
    %v1352 = vrcp.pop %v1350
    %v1353 = vmul.f32 %v1342, %v1351
    %v1354 = vmul.f32 %v1344, %v1352
    %1355 = vrot.lane.b32.xlu0 %v172, 40
    %v1356 = vpop.permute.xlu0 %1355
    %v1359 = vsel %vm183, %v1353, 0
    %1361 = vmatprep.subr.mxu0 0.0
    %1362 = vmatpush1.msra.mxu0 %v1356
    %1363 = vmatprep.subr.mxu0 0.0
    %1364 = vmatpush1.msra.mxu0 0.0
    %1365 = vmatprep.subr.mxu0 0.0
    %1366 = vmatpush1.msra.mxu0 0.0
    %1367 = vmatprep.subr.mxu0 0.0
    %1368 = vmatpush1.msra.mxu0 0.0
    %1369 = vmatprep.subr.mxu0 0.0
    %1370 = vmatpush1.msra.mxu0 0.0
    %1371 = vmatprep.subr.mxu0 0.0
    %1372 = vmatpush1.msra.mxu0 0.0
    %1373 = vmatprep.subr.mxu0 0.0
    %1374 = vmatpush1.msra.mxu0 0.0
    %1375 = vmatprep.subr.mxu0 0.0
    %1376 = vmatpush1.msra.mxu0 0.0
    %1377 = vmatprep.subr.mxu0 0.0
    %1378 = vmatpush1.msra.mxu0 0.0
    %1379 = vmatprep.subr.mxu0 0.0
    %1380 = vmatpush1.msra.mxu0 0.0
    %1381 = vmatprep.subr.mxu0 0.0
    %1382 = vmatpush1.msra.mxu0 0.0
    %1383 = vmatprep.subr.mxu0 0.0
    %1384 = vmatpush1.msra.mxu0 0.0
    %1385 = vmatprep.subr.mxu0 0.0
    %1386 = vmatpush1.msra.mxu0 0.0
    %1387 = vmatprep.subr.mxu0 0.0
    %1388 = vmatpush1.msra.mxu0 0.0
    %1389 = vmatprep.subr.mxu0 0.0
    %1390 = vmatpush1.msra.mxu0 0.0
    %1391 = vmatprep.subr.mxu0 0.0
    %1392 = vmatpush1.msra.mxu0 0.0
    %1393 = vmatprep.subr.mxu0 0.0
    %1394 = vmatpush1.msra.mxu0 0.0
    %1395 = vmatprep.subr.mxu0 0.0
    %1396 = vmatpush1.msra.mxu0 0.0
    %1397 = vmatprep.subr.mxu0 0.0
    %1398 = vmatpush1.msra.mxu0 0.0
    %1399 = vmatprep.subr.mxu0 0.0
    %1400 = vmatpush1.msra.mxu0 0.0
    %1401 = vmatprep.subr.mxu0 0.0
    %1402 = vmatpush1.msra.mxu0 0.0
    %1403 = vmatprep.subr.mxu0 0.0
    %1404 = vmatpush1.msra.mxu0 0.0
    %1405 = vmatprep.subr.mxu0 0.0
    %1406 = vmatpush1.msra.mxu0 0.0
    %1407 = vmatprep.subr.mxu0 0.0
    %1408 = vmatpush1.msra.mxu0 0.0
    %1409 = vmatprep.subr.mxu0 0.0
    %1410 = vmatpush1.msra.mxu0 0.0
    %1411 = vmatprep.subr.mxu0 0.0
    %1412 = vmatpush1.msra.mxu0 0.0
    %1413 = vmatprep.subr.mxu0 0.0
    %1414 = vmatpush1.msra.mxu0 0.0
    %1415 = vmatprep.subr.mxu0 0.0
    %1416 = vmatpush1.msra.mxu0 0.0
    %1417 = vmatprep.subr.mxu0 0.0
    %1418 = vmatpush1.msra.mxu0 0.0
    %1419 = vmatprep.subr.mxu0 0.0
    %1420 = vmatpush1.msra.mxu0 0.0
    %1421 = vmatprep.subr.mxu0 0.0
    %1422 = vmatpush1.msra.mxu0 0.0
    %1423 = vmatprep.subr.mxu0 0.0
    %1424 = vmatpush1.msra.mxu0 0.0
    %1425 = vmatprep.mubr.f32.mxu0 0.0
    %1426 = vmatmul.mubr.f32.gmra.mrb[0].mxu0 %v1359
    %v1427 = vpop.f32.mrb[0].mxu0
    %v1428 = vadd.f32 0.0, %v1427
    %v1429 = vpop.f32.mrb[0].mxu0
    %1430 = vdwg.mxu0
    %1431 = vrot.lane.b32.xlu0 %v177, 40
    %v1432 = vpop.permute.xlu0 %1431
    %v1435 = vsel %vm183, %v1354, 0
    %1437 = vmatprep.subr.mxu0 0.0
    %1438 = vmatpush1.msra.mxu0 %v1432
    %1439 = vmatprep.subr.mxu0 0.0
    %1440 = vmatpush1.msra.mxu0 0.0
    %1441 = vmatprep.subr.mxu0 0.0
    %1442 = vmatpush1.msra.mxu0 0.0
    %1443 = vmatprep.subr.mxu0 0.0
    %1444 = vmatpush1.msra.mxu0 0.0
    %1445 = vmatprep.subr.mxu0 0.0
    %1446 = vmatpush1.msra.mxu0 0.0
    %1447 = vmatprep.subr.mxu0 0.0
    %1448 = vmatpush1.msra.mxu0 0.0
    %1449 = vmatprep.subr.mxu0 0.0
    %1450 = vmatpush1.msra.mxu0 0.0
    %1451 = vmatprep.subr.mxu0 0.0
    %1452 = vmatpush1.msra.mxu0 0.0
    %1453 = vmatprep.subr.mxu0 0.0
    %1454 = vmatpush1.msra.mxu0 0.0
    %1455 = vmatprep.subr.mxu0 0.0
    %1456 = vmatpush1.msra.mxu0 0.0
    %1457 = vmatprep.subr.mxu0 0.0
    %1458 = vmatpush1.msra.mxu0 0.0
    %1459 = vmatprep.subr.mxu0 0.0
    %1460 = vmatpush1.msra.mxu0 0.0
    %1461 = vmatprep.subr.mxu0 0.0
    %1462 = vmatpush1.msra.mxu0 0.0
    %1463 = vmatprep.subr.mxu0 0.0
    %1464 = vmatpush1.msra.mxu0 0.0
    %1465 = vmatprep.subr.mxu0 0.0
    %1466 = vmatpush1.msra.mxu0 0.0
    %1467 = vmatprep.subr.mxu0 0.0
    %1468 = vmatpush1.msra.mxu0 0.0
    %1469 = vmatprep.subr.mxu0 0.0
    %1470 = vmatpush1.msra.mxu0 0.0
    %1471 = vmatprep.subr.mxu0 0.0
    %1472 = vmatpush1.msra.mxu0 0.0
    %1473 = vmatprep.subr.mxu0 0.0
    %1474 = vmatpush1.msra.mxu0 0.0
    %1475 = vmatprep.subr.mxu0 0.0
    %1476 = vmatpush1.msra.mxu0 0.0
    %1477 = vmatprep.subr.mxu0 0.0
    %1478 = vmatpush1.msra.mxu0 0.0
    %1479 = vmatprep.subr.mxu0 0.0
    %1480 = vmatpush1.msra.mxu0 0.0
    %1481 = vmatprep.subr.mxu0 0.0
    %1482 = vmatpush1.msra.mxu0 0.0
    %1483 = vmatprep.subr.mxu0 0.0
    %1484 = vmatpush1.msra.mxu0 0.0
    %1485 = vmatprep.subr.mxu0 0.0
    %1486 = vmatpush1.msra.mxu0 0.0
    %1487 = vmatprep.subr.mxu0 0.0
    %1488 = vmatpush1.msra.mxu0 0.0
    %1489 = vmatprep.subr.mxu0 0.0
    %1490 = vmatpush1.msra.mxu0 0.0
    %1491 = vmatprep.subr.mxu0 0.0
    %1492 = vmatpush1.msra.mxu0 0.0
    %1493 = vmatprep.subr.mxu0 0.0
    %1494 = vmatpush1.msra.mxu0 0.0
    %1495 = vmatprep.subr.mxu0 0.0
    %1496 = vmatpush1.msra.mxu0 0.0
    %1497 = vmatprep.subr.mxu0 0.0
    %1498 = vmatpush1.msra.mxu0 0.0
    %1499 = vmatprep.subr.mxu0 0.0
    %1500 = vmatpush1.msra.mxu0 0.0
    %1501 = vmatprep.mubr.f32.mxu0 0.0
    %1502 = vmatmul.mubr.f32.gmra.mrb[0].mxu0 %v1435
    %v1503 = vpop.f32.mrb[0].mxu0
    %v1504 = vadd.f32 0.0, %v1503
    %v1505 = vpop.f32.mrb[0].mxu0
    %1506 = vdwg.mxu0
    %1509 = vrot.lane.b32.xlu0 %v764, 8
    %v1510 = vpop.permute.xlu0 %1509
    %1511 = vrot.lane.b32.xlu0 %v840, 8
    %v1512 = vpop.permute.xlu0 %1511
    %1517 = vrot.lane.b32.xlu0 %v1096, 16
    %v1518 = vpop.permute.xlu0 %1517
    %1519 = vrot.lane.b32.xlu0 %v1172, 16
    %v1520 = vpop.permute.xlu0 %1519
    %1525 = vrot.lane.b32.xlu0 %v1428, 24
    %v1526 = vpop.permute.xlu0 %1525
    %1527 = vrot.lane.b32.xlu0 %v1504, 24
    %v1528 = vpop.permute.xlu0 %1527
    %v1531 = vsel %vm183, %v432, %v1510
    %v1532 = vsel %vm183, %v508, %v1512
    %vm1533 = vcmask 130048
    %v1534 = vsel %vm1533, %v1531, %v1518
    %v1535 = vsel %vm1533, %v1532, %v1520
    %vm1536 = vcmask 195584
    %v1537 = vsel %vm1536, %v1534, %v1526
    %v1538 = vsel %vm1536, %v1535, %v1528
    %v1539 = vld [vmem:[%s4] sm:$0xff]
    %v1540 = vld [vmem:[%s4 + $0x8] sm:$0xff]
    %v1541 = vld [vmem:[%s4 + $0x10] sm:$0xff]
    %v1542 = vld [vmem:[%s4 + $0x18] sm:$0xff]
    %v1543 = vld [vmem:[%s5] sm:$0x1]
    %v1545 = vlaneseq
    %v1546 = vshrl.u32 %v1545, 7
    %v1547 = vsub.s32 0, %v1546
    %v1548 = vrot.slane %v1543, %v1547
    %v1551 = vsel %vm98, %v1537, 0
    %v1554 = vsel %vm98, %v1538, 0
    %1556 = vmatprep.subr.mxu0 0.0
    %1557 = vmatpush1.msra.mxu0 %v1539
    %1558 = vmatprep.subr.mxu0 0.0
    %1559 = vmatpush1.msra.mxu0 %v1540
    %1560 = vmatprep.subr.mxu0 0.0
    %1561 = vmatpush1.msra.mxu0 %v1541
    %1562 = vmatprep.subr.mxu0 0.0
    %1563 = vmatpush1.msra.mxu0 %v1542
    %1564 = vmatprep.subr.mxu0 0.0
    %1565 = vmatpush1.msra.mxu0 0.0
    %1566 = vmatprep.subr.mxu0 0.0
    %1567 = vmatpush1.msra.mxu0 0.0
    %1568 = vmatprep.subr.mxu0 0.0
    %1569 = vmatpush1.msra.mxu0 0.0
    %1570 = vmatprep.subr.mxu0 0.0
    %1571 = vmatpush1.msra.mxu0 0.0
    %1572 = vmatprep.subr.mxu0 0.0
    %1573 = vmatpush1.msra.mxu0 0.0
    %1574 = vmatprep.subr.mxu0 0.0
    %1575 = vmatpush1.msra.mxu0 0.0
    %1576 = vmatprep.subr.mxu0 0.0
    %1577 = vmatpush1.msra.mxu0 0.0
    %1578 = vmatprep.subr.mxu0 0.0
    %1579 = vmatpush1.msra.mxu0 0.0
    %1580 = vmatprep.subr.mxu0 0.0
    %1581 = vmatpush1.msra.mxu0 0.0
    %1582 = vmatprep.subr.mxu0 0.0
    %1583 = vmatpush1.msra.mxu0 0.0
    %1584 = vmatprep.subr.mxu0 0.0
    %1585 = vmatpush1.msra.mxu0 0.0
    %1586 = vmatprep.subr.mxu0 0.0
    %1587 = vmatpush1.msra.mxu0 0.0
    %1588 = vmatprep.subr.mxu0 0.0
    %1589 = vmatpush1.msra.mxu0 0.0
    %1590 = vmatprep.subr.mxu0 0.0
    %1591 = vmatpush1.msra.mxu0 0.0
    %1592 = vmatprep.subr.mxu0 0.0
    %1593 = vmatpush1.msra.mxu0 0.0
    %1594 = vmatprep.subr.mxu0 0.0
    %1595 = vmatpush1.msra.mxu0 0.0
    %1596 = vmatprep.subr.mxu0 0.0
    %1597 = vmatpush1.msra.mxu0 0.0
    %1598 = vmatprep.subr.mxu0 0.0
    %1599 = vmatpush1.msra.mxu0 0.0
    %1600 = vmatprep.subr.mxu0 0.0
    %1601 = vmatpush1.msra.mxu0 0.0
    %1602 = vmatprep.subr.mxu0 0.0
    %1603 = vmatpush1.msra.mxu0 0.0
    %1604 = vmatprep.subr.mxu0 0.0
    %1605 = vmatpush1.msra.mxu0 0.0
    %1606 = vmatprep.subr.mxu0 0.0
    %1607 = vmatpush1.msra.mxu0 0.0
    %1608 = vmatprep.subr.mxu0 0.0
    %1609 = vmatpush1.msra.mxu0 0.0
    %1610 = vmatprep.subr.mxu0 0.0
    %1611 = vmatpush1.msra.mxu0 0.0
    %1612 = vmatprep.subr.mxu0 0.0
    %1613 = vmatpush1.msra.mxu0 0.0
    %1614 = vmatprep.subr.mxu0 0.0
    %1615 = vmatpush1.msra.mxu0 0.0
    %1616 = vmatprep.subr.mxu0 0.0
    %1617 = vmatpush1.msra.mxu0 0.0
    %1618 = vmatprep.subr.mxu0 0.0
    %1619 = vmatpush1.msra.mxu0 0.0
    %1620 = vmatprep.mubr.f32.mxu0 0.0
    %1621 = vmatmul.mubr.f32.gmra.mrb[0].mxu0 %v1551
    %v1622 = vpop.f32.mrb[0].mxu0
    %v1623 = vadd.f32 %v1548, %v1622
    %v1624 = vpop.f32.mrb[0].mxu0
    %1625 = vmatprep.mubr.f32.mxu0 0.0
    %1626 = vmatmul.mubr.f32.gmra.mrb[0].mxu0 %v1554
    %v1627 = vpop.f32.mrb[0].mxu0
    %v1628 = vadd.f32 %v1548, %v1627
    %v1629 = vpop.f32.mrb[0].mxu0
    %1630 = vdwg.mxu0
    %v1631 = vadd.f32 %v83, %v1623
    %v1632 = vadd.f32 %v84, %v1628
    %v1633 = vld [vmem:[%s6] sm:$0x1]
    %v1634 = vld [vmem:[%s7] sm:$0x1]
    %v1635 = vsel %vm98, %v1631, 0.0
    %1636 = vadd.xlane.f32.xlu0 %v1635
    %v1637 = vpop.xlane.xlu0 %1636
    %v1638 = vsel %vm98, %v1632, 0.0
    %1639 = vadd.xlane.f32.xlu0 %v1638
    %v1640 = vpop.xlane.xlu0 %1639
    %v1641 = vrcp.pop 32.0
    %v1642 = vmul.f32 %v1637, %v1641
    %v1643 = vmul.f32 %v1640, %v1641
    %v1644 = vsub.f32 %v1631, %v1642
    %v1645 = vsub.f32 %v1632, %v1643
    %v1646 = vmul.f32 %v1644, %v1644
    %v1647 = vmul.f32 %v1645, %v1645
    %v1648 = vsel %vm98, %v1646, 0.0
    %1649 = vadd.xlane.f32.xlu0 %v1648
    %v1650 = vpop.xlane.xlu0 %1649
    %v1651 = vsel %vm98, %v1647, 0.0
    %1652 = vadd.xlane.f32.xlu0 %v1651
    %v1653 = vpop.xlane.xlu0 %1652
    %v1654 = vmul.f32 %v1650, %v1641
    %v1655 = vmul.f32 %v1653, %v1641
    %v1656 = vadd.f32 %v1654, 1e-05
    %v1657 = vadd.f32 %v1655, 1e-05
    %v1658 = vrsqrt.pop %v1656
    %v1659 = vrsqrt.pop %v1657
    %v1660 = vmul.f32 %v1644, %v1658
    %v1661 = vmul.f32 %v1645, %v1659
    %v1663 = vlaneseq
    %v1664 = vshrl.u32 %v1663, 7
    %v1665 = vsub.s32 0, %v1664
    %v1666 = vrot.slane %v1633, %v1665
    %v1668 = vmul.f32 %v1660, %v1666
    %v1669 = vmul.f32 %v1661, %v1666
    %v1671 = vlaneseq
    %v1672 = vshrl.u32 %v1671, 7
    %v1673 = vsub.s32 0, %v1672
    %v1674 = vrot.slane %v1634, %v1673
    %v1676 = vadd.f32 %v1668, %v1674
    %v1677 = vadd.f32 %v1669, %v1674
    %v1678 = vld [vmem:[%s8] sm:$0xff]
    %v1679 = vld [vmem:[%s8 + $0x8] sm:$0xff]
    %v1680 = vld [vmem:[%s8 + $0x10] sm:$0xff]
    %v1681 = vld [vmem:[%s8 + $0x18] sm:$0xff]
    %v1682 = vld [vmem:[%s9] sm:$0x1]
    %v1684 = vlaneseq
    %v1685 = vshrl.u32 %v1684, 7
    %v1686 = vsub.s32 0, %v1685
    %v1687 = vrot.slane %v1682, %v1686
    %v1690 = vsel %vm98, %v1676, 0
    %v1693 = vsel %vm98, %v1677, 0
    %1695 = vmatprep.subr.mxu0 0.0
    %1696 = vmatpush1.msra.mxu0 %v1678
    %1697 = vmatprep.subr.mxu0 0.0
    %1698 = vmatpush1.msra.mxu0 %v1679
    %1699 = vmatprep.subr.mxu0 0.0
    %1700 = vmatpush1.msra.mxu0 %v1680
    %1701 = vmatprep.subr.mxu0 0.0
    %1702 = vmatpush1.msra.mxu0 %v1681
    %1703 = vmatprep.subr.mxu0 0.0
    %1704 = vmatpush1.msra.mxu0 0.0
    %1705 = vmatprep.subr.mxu0 0.0
    %1706 = vmatpush1.msra.mxu0 0.0
    %1707 = vmatprep.subr.mxu0 0.0
    %1708 = vmatpush1.msra.mxu0 0.0
    %1709 = vmatprep.subr.mxu0 0.0
    %1710 = vmatpush1.msra.mxu0 0.0
    %1711 = vmatprep.subr.mxu0 0.0
    %1712 = vmatpush1.msra.mxu0 0.0
    %1713 = vmatprep.subr.mxu0 0.0
    %1714 = vmatpush1.msra.mxu0 0.0
    %1715 = vmatprep.subr.mxu0 0.0
    %1716 = vmatpush1.msra.mxu0 0.0
    %1717 = vmatprep.subr.mxu0 0.0
    %1718 = vmatpush1.msra.mxu0 0.0
    %1719 = vmatprep.subr.mxu0 0.0
    %1720 = vmatpush1.msra.mxu0 0.0
    %1721 = vmatprep.subr.mxu0 0.0
    %1722 = vmatpush1.msra.mxu0 0.0
    %1723 = vmatprep.subr.mxu0 0.0
    %1724 = vmatpush1.msra.mxu0 0.0
    %1725 = vmatprep.subr.mxu0 0.0
    %1726 = vmatpush1.msra.mxu0 0.0
    %1727 = vmatprep.subr.mxu0 0.0
    %1728 = vmatpush1.msra.mxu0 0.0
    %1729 = vmatprep.subr.mxu0 0.0
    %1730 = vmatpush1.msra.mxu0 0.0
    %1731 = vmatprep.subr.mxu0 0.0
    %1732 = vmatpush1.msra.mxu0 0.0
    %1733 = vmatprep.subr.mxu0 0.0
    %1734 = vmatpush1.msra.mxu0 0.0
    %1735 = vmatprep.subr.mxu0 0.0
    %1736 = vmatpush1.msra.mxu0 0.0
    %1737 = vmatprep.subr.mxu0 0.0
    %1738 = vmatpush1.msra.mxu0 0.0
    %1739 = vmatprep.subr.mxu0 0.0
    %1740 = vmatpush1.msra.mxu0 0.0
    %1741 = vmatprep.subr.mxu0 0.0
    %1742 = vmatpush1.msra.mxu0 0.0
    %1743 = vmatprep.subr.mxu0 0.0
    %1744 = vmatpush1.msra.mxu0 0.0
    %1745 = vmatprep.subr.mxu0 0.0
    %1746 = vmatpush1.msra.mxu0 0.0
    %1747 = vmatprep.subr.mxu0 0.0
    %1748 = vmatpush1.msra.mxu0 0.0
    %1749 = vmatprep.subr.mxu0 0.0
    %1750 = vmatpush1.msra.mxu0 0.0
    %1751 = vmatprep.subr.mxu0 0.0
    %1752 = vmatpush1.msra.mxu0 0.0
    %1753 = vmatprep.subr.mxu0 0.0
    %1754 = vmatpush1.msra.mxu0 0.0
    %1755 = vmatprep.subr.mxu0 0.0
    %1756 = vmatpush1.msra.mxu0 0.0
    %1757 = vmatprep.subr.mxu0 0.0
    %1758 = vmatpush1.msra.mxu0 0.0
    %1759 = vmatprep.mubr.f32.mxu0 0.0
    %1760 = vmatmul.mubr.f32.gmra.mrb[0].mxu0 %v1690
    %v1761 = vpop.f32.mrb[0].mxu0
    %v1762 = vadd.f32 %v1687, %v1761
    %v1763 = vpop.f32.mrb[0].mxu0
    %1764 = vmatprep.mubr.f32.mxu0 0.0
    %1765 = vmatmul.mubr.f32.gmra.mrb[0].mxu0 %v1693
    %v1766 = vpop.f32.mrb[0].mxu0
    %v1767 = vadd.f32 %v1687, %v1766
    %v1768 = vpop.f32.mrb[0].mxu0
    %1769 = vdwg.mxu0
    %v1770 = vld [vmem:[%s10] sm:$0xff]
    %v1771 = vld [vmem:[%s10 + $0x8] sm:$0xff]
    %v1772 = vld [vmem:[%s10 + $0x10] sm:$0xff]
    %v1773 = vld [vmem:[%s10 + $0x18] sm:$0xff]
    %v1774 = vld [vmem:[%s11] sm:$0x1]
    %v1776 = vlaneseq
    %v1777 = vshrl.u32 %v1776, 7
    %v1778 = vsub.s32 0, %v1777
    %v1779 = vrot.slane %v1774, %v1778
    %v1782 = vsel %vm98, %v85, 0
    %v1785 = vsel %vm98, %v86, 0
    %1787 = vmatprep.subr.mxu0 0.0
    %1788 = vmatpush1.msra.mxu0 %v1770
    %1789 = vmatprep.subr.mxu0 0.0
    %1790 = vmatpush1.msra.mxu0 %v1771
    %1791 = vmatprep.subr.mxu0 0.0
    %1792 = vmatpush1.msra.mxu0 %v1772
    %1793 = vmatprep.subr.mxu0 0.0
    %1794 = vmatpush1.msra.mxu0 %v1773
    %1795 = vmatprep.subr.mxu0 0.0
    %1796 = vmatpush1.msra.mxu0 0.0
    %1797 = vmatprep.subr.mxu0 0.0
    %1798 = vmatpush1.msra.mxu0 0.0
    %1799 = vmatprep.subr.mxu0 0.0
    %1800 = vmatpush1.msra.mxu0 0.0
    %1801 = vmatprep.subr.mxu0 0.0
    %1802 = vmatpush1.msra.mxu0 0.0
    %1803 = vmatprep.subr.mxu0 0.0
    %1804 = vmatpush1.msra.mxu0 0.0
    %1805 = vmatprep.subr.mxu0 0.0
    %1806 = vmatpush1.msra.mxu0 0.0
    %1807 = vmatprep.subr.mxu0 0.0
    %1808 = vmatpush1.msra.mxu0 0.0
    %1809 = vmatprep.subr.mxu0 0.0
    %1810 = vmatpush1.msra.mxu0 0.0
    %1811 = vmatprep.subr.mxu0 0.0
    %1812 = vmatpush1.msra.mxu0 0.0
    %1813 = vmatprep.subr.mxu0 0.0
    %1814 = vmatpush1.msra.mxu0 0.0
    %1815 = vmatprep.subr.mxu0 0.0
    %1816 = vmatpush1.msra.mxu0 0.0
    %1817 = vmatprep.subr.mxu0 0.0
    %1818 = vmatpush1.msra.mxu0 0.0
    %1819 = vmatprep.subr.mxu0 0.0
    %1820 = vmatpush1.msra.mxu0 0.0
    %1821 = vmatprep.subr.mxu0 0.0
    %1822 = vmatpush1.msra.mxu0 0.0
    %1823 = vmatprep.subr.mxu0 0.0
    %1824 = vmatpush1.msra.mxu0 0.0
    %1825 = vmatprep.subr.mxu0 0.0
    %1826 = vmatpush1.msra.mxu0 0.0
    %1827 = vmatprep.subr.mxu0 0.0
    %1828 = vmatpush1.msra.mxu0 0.0
    %1829 = vmatprep.subr.mxu0 0.0
    %1830 = vmatpush1.msra.mxu0 0.0
    %1831 = vmatprep.subr.mxu0 0.0
    %1832 = vmatpush1.msra.mxu0 0.0
    %1833 = vmatprep.subr.mxu0 0.0
    %1834 = vmatpush1.msra.mxu0 0.0
    %1835 = vmatprep.subr.mxu0 0.0
    %1836 = vmatpush1.msra.mxu0 0.0
    %1837 = vmatprep.subr.mxu0 0.0
    %1838 = vmatpush1.msra.mxu0 0.0
    %1839 = vmatprep.subr.mxu0 0.0
    %1840 = vmatpush1.msra.mxu0 0.0
    %1841 = vmatprep.subr.mxu0 0.0
    %1842 = vmatpush1.msra.mxu0 0.0
    %1843 = vmatprep.subr.mxu0 0.0
    %1844 = vmatpush1.msra.mxu0 0.0
    %1845 = vmatprep.subr.mxu0 0.0
    %1846 = vmatpush1.msra.mxu0 0.0
    %1847 = vmatprep.subr.mxu0 0.0
    %1848 = vmatpush1.msra.mxu0 0.0
    %1849 = vmatprep.subr.mxu0 0.0
    %1850 = vmatpush1.msra.mxu0 0.0
    %1851 = vmatprep.mubr.f32.mxu0 0.0
    %1852 = vmatmul.mubr.f32.gmra.mrb[0].mxu0 %v1782
    %v1853 = vpop.f32.mrb[0].mxu0
    %v1854 = vadd.f32 %v1779, %v1853
    %v1855 = vpop.f32.mrb[0].mxu0
    %1856 = vmatprep.mubr.f32.mxu0 0.0
    %1857 = vmatmul.mubr.f32.gmra.mrb[0].mxu0 %v1785
    %v1858 = vpop.f32.mrb[0].mxu0
    %v1859 = vadd.f32 %v1779, %v1858
    %v1860 = vpop.f32.mrb[0].mxu0
    %1861 = vdwg.mxu0
    %v1863 = vsel %vm183, %v1762, 0
    %v1866 = vsel %vm183, %v1854, 0
    %1868 = vmatprep.subr.mxu0 0.0
    %1869 = vmatpush1.xpose.msra.mxu0 %v1866
    %1870 = vmatprep.subr.mxu0 0.0
    %1871 = vmatpush1.xpose.msra.mxu0 0.0
    %1872 = vmatprep.subr.mxu0 0.0
    %1873 = vmatpush1.xpose.msra.mxu0 0.0
    %1874 = vmatprep.subr.mxu0 0.0
    %1875 = vmatpush1.xpose.msra.mxu0 0.0
    %1876 = vmatprep.subr.mxu0 0.0
    %1877 = vmatpush1.xpose.msra.mxu0 0.0
    %1878 = vmatprep.subr.mxu0 0.0
    %1879 = vmatpush1.xpose.msra.mxu0 0.0
    %1880 = vmatprep.subr.mxu0 0.0
    %1881 = vmatpush1.xpose.msra.mxu0 0.0
    %1882 = vmatprep.subr.mxu0 0.0
    %1883 = vmatpush1.xpose.msra.mxu0 0.0
    %1884 = vmatprep.subr.mxu0 0.0
    %1885 = vmatpush1.xpose.msra.mxu0 0.0
    %1886 = vmatprep.subr.mxu0 0.0
    %1887 = vmatpush1.xpose.msra.mxu0 0.0
    %1888 = vmatprep.subr.mxu0 0.0
    %1889 = vmatpush1.xpose.msra.mxu0 0.0
    %1890 = vmatprep.subr.mxu0 0.0
    %1891 = vmatpush1.xpose.msra.mxu0 0.0
    %1892 = vmatprep.subr.mxu0 0.0
    %1893 = vmatpush1.xpose.msra.mxu0 0.0
    %1894 = vmatprep.subr.mxu0 0.0
    %1895 = vmatpush1.xpose.msra.mxu0 0.0
    %1896 = vmatprep.subr.mxu0 0.0
    %1897 = vmatpush1.xpose.msra.mxu0 0.0
    %1898 = vmatprep.subr.mxu0 0.0
    %1899 = vmatpush1.xpose.msra.mxu0 0.0
    %1900 = vmatprep.subr.mxu0 0.0
    %1901 = vmatpush1.xpose.msra.mxu0 0.0
    %1902 = vmatprep.subr.mxu0 0.0
    %1903 = vmatpush1.xpose.msra.mxu0 0.0
    %1904 = vmatprep.subr.mxu0 0.0
    %1905 = vmatpush1.xpose.msra.mxu0 0.0
    %1906 = vmatprep.subr.mxu0 0.0
    %1907 = vmatpush1.xpose.msra.mxu0 0.0
    %1908 = vmatprep.subr.mxu0 0.0
    %1909 = vmatpush1.xpose.msra.mxu0 0.0
    %1910 = vmatprep.subr.mxu0 0.0
    %1911 = vmatpush1.xpose.msra.mxu0 0.0
    %1912 = vmatprep.subr.mxu0 0.0
    %1913 = vmatpush1.xpose.msra.mxu0 0.0
    %1914 = vmatprep.subr.mxu0 0.0
    %1915 = vmatpush1.xpose.msra.mxu0 0.0
    %1916 = vmatprep.subr.mxu0 0.0
    %1917 = vmatpush1.xpose.msra.mxu0 0.0
    %1918 = vmatprep.subr.mxu0 0.0
    %1919 = vmatpush1.xpose.msra.mxu0 0.0
    %1920 = vmatprep.subr.mxu0 0.0
    %1921 = vmatpush1.xpose.msra.mxu0 0.0
    %1922 = vmatprep.subr.mxu0 0.0
    %1923 = vmatpush1.xpose.msra.mxu0 0.0
    %1924 = vmatprep.subr.mxu0 0.0
    %1925 = vmatpush1.xpose.msra.mxu0 0.0
    %1926 = vmatprep.subr.mxu0 0.0
    %1927 = vmatpush1.xpose.msra.mxu0 0.0
    %1928 = vmatprep.subr.mxu0 0.0
    %1929 = vmatpush1.xpose.msra.mxu0 0.0
    %1930 = vmatprep.subr.mxu0 0.0
    %1931 = vmatpush1.xpose.msra.mxu0 0.0
    %1932 = vmatprep.mubr.f32.mxu0 0.0
    %1933 = vmatmul.mubr.f32.gmra.mrb[0].mxu0 %v1863
    %v1934 = vpop.f32.mrb[0].mxu0
    %v1935 = vadd.f32 0.0, %v1934
    %v1936 = vpop.f32.mrb[0].mxu0
    %1937 = vdwg.mxu0
    %v1939 = vsel %vm183, %v1767, 0
    %v1942 = vsel %vm183, %v1859, 0
    %1944 = vmatprep.subr.mxu0 0.0
    %1945 = vmatpush1.xpose.msra.mxu0 %v1942
    %1946 = vmatprep.subr.mxu0 0.0
    %1947 = vmatpush1.xpose.msra.mxu0 0.0
    %1948 = vmatprep.subr.mxu0 0.0
    %1949 = vmatpush1.xpose.msra.mxu0 0.0
    %1950 = vmatprep.subr.mxu0 0.0
    %1951 = vmatpush1.xpose.msra.mxu0 0.0
    %1952 = vmatprep.subr.mxu0 0.0
    %1953 = vmatpush1.xpose.msra.mxu0 0.0
    %1954 = vmatprep.subr.mxu0 0.0
    %1955 = vmatpush1.xpose.msra.mxu0 0.0
    %1956 = vmatprep.subr.mxu0 0.0
    %1957 = vmatpush1.xpose.msra.mxu0 0.0
    %1958 = vmatprep.subr.mxu0 0.0
    %1959 = vmatpush1.xpose.msra.mxu0 0.0
    %1960 = vmatprep.subr.mxu0 0.0
    %1961 = vmatpush1.xpose.msra.mxu0 0.0
    %1962 = vmatprep.subr.mxu0 0.0
    %1963 = vmatpush1.xpose.msra.mxu0 0.0
    %1964 = vmatprep.subr.mxu0 0.0
    %1965 = vmatpush1.xpose.msra.mxu0 0.0
    %1966 = vmatprep.subr.mxu0 0.0
    %1967 = vmatpush1.xpose.msra.mxu0 0.0
    %1968 = vmatprep.subr.mxu0 0.0
    %1969 = vmatpush1.xpose.msra.mxu0 0.0
    %1970 = vmatprep.subr.mxu0 0.0
    %1971 = vmatpush1.xpose.msra.mxu0 0.0
    %1972 = vmatprep.subr.mxu0 0.0
    %1973 = vmatpush1.xpose.msra.mxu0 0.0
    %1974 = vmatprep.subr.mxu0 0.0
    %1975 = vmatpush1.xpose.msra.mxu0 0.0
    %1976 = vmatprep.subr.mxu0 0.0
    %1977 = vmatpush1.xpose.msra.mxu0 0.0
    %1978 = vmatprep.subr.mxu0 0.0
    %1979 = vmatpush1.xpose.msra.mxu0 0.0
    %1980 = vmatprep.subr.mxu0 0.0
    %1981 = vmatpush1.xpose.msra.mxu0 0.0
    %1982 = vmatprep.subr.mxu0 0.0
    %1983 = vmatpush1.xpose.msra.mxu0 0.0
    %1984 = vmatprep.subr.mxu0 0.0
    %1985 = vmatpush1.xpose.msra.mxu0 0.0
    %1986 = vmatprep.subr.mxu0 0.0
    %1987 = vmatpush1.xpose.msra.mxu0 0.0
    %1988 = vmatprep.subr.mxu0 0.0
    %1989 = vmatpush1.xpose.msra.mxu0 0.0
    %1990 = vmatprep.subr.mxu0 0.0
    %1991 = vmatpush1.xpose.msra.mxu0 0.0
    %1992 = vmatprep.subr.mxu0 0.0
    %1993 = vmatpush1.xpose.msra.mxu0 0.0
    %1994 = vmatprep.subr.mxu0 0.0
    %1995 = vmatpush1.xpose.msra.mxu0 0.0
    %1996 = vmatprep.subr.mxu0 0.0
    %1997 = vmatpush1.xpose.msra.mxu0 0.0
    %1998 = vmatprep.subr.mxu0 0.0
    %1999 = vmatpush1.xpose.msra.mxu0 0.0
    %2000 = vmatprep.subr.mxu0 0.0
    %2001 = vmatpush1.xpose.msra.mxu0 0.0
    %2002 = vmatprep.subr.mxu0 0.0
    %2003 = vmatpush1.xpose.msra.mxu0 0.0
    %2004 = vmatprep.subr.mxu0 0.0
    %2005 = vmatpush1.xpose.msra.mxu0 0.0
    %2006 = vmatprep.subr.mxu0 0.0
    %2007 = vmatpush1.xpose.msra.mxu0 0.0
    %2008 = vmatprep.mubr.f32.mxu0 0.0
    %2009 = vmatmul.mubr.f32.gmra.mrb[0].mxu0 %v1939
    %v2010 = vpop.f32.mrb[0].mxu0
    %v2011 = vadd.f32 0.0, %v2010
    %v2012 = vpop.f32.mrb[0].mxu0
    %2013 = vdwg.mxu0
    %v2014 = vmul.f32 %v1935, 0.35355338
    %v2015 = vmul.f32 %v2011, 0.35355338
    %v2016 = vsel %vm183, %v2014, -inf
    %2017 = vmax.xlane.f32.xlu0 %v2016
    %v2018 = vpop.xlane.xlu0 %2017
    %v2019 = vsel %vm183, %v2015, -inf
    %2020 = vmax.xlane.f32.xlu0 %v2019
    %v2021 = vpop.xlane.xlu0 %2020
    %v2022 = vsub.f32 %v2014, %v2018
    %v2023 = vsub.f32 %v2015, %v2021
    %v2024 = vmul.f32 %v2022, 1.442695
    %v2025 = vpow.pop %v2024
    %v2026 = vmul.f32 %v2023, 1.442695
    %v2027 = vpow.pop %v2026
    %v2028 = vsel %vm183, %v2025, 0.0
    %2029 = vadd.xlane.f32.xlu0 %v2028
    %v2030 = vpop.xlane.xlu0 %2029
    %v2031 = vsel %vm183, %v2027, 0.0
    %2032 = vadd.xlane.f32.xlu0 %v2031
    %v2033 = vpop.xlane.xlu0 %2032
    %v2034 = vrcp.pop %v2030
    %v2035 = vrcp.pop %v2033
    %v2036 = vmul.f32 %v2025, %v2034
    %v2037 = vmul.f32 %v2027, %v2035
    %2038 = vrot.lane.b32.xlu0 %v1854, 96
    %v2039 = vpop.permute.xlu0 %2038
    %v2042 = vsel %vm183, %v2036, 0
    %2044 = vmatprep.subr.mxu0 0.0
    %2045 = vmatpush1.msra.mxu0 %v2039
    %2046 = vmatprep.subr.mxu0 0.0
    %2047 = vmatpush1.msra.mxu0 0.0
    %2048 = vmatprep.subr.mxu0 0.0
    %2049 = vmatpush1.msra.mxu0 0.0
    %2050 = vmatprep.subr.mxu0 0.0
    %2051 = vmatpush1.msra.mxu0 0.0
    %2052 = vmatprep.subr.mxu0 0.0
    %2053 = vmatpush1.msra.mxu0 0.0
    %2054 = vmatprep.subr.mxu0 0.0
    %2055 = vmatpush1.msra.mxu0 0.0
    %2056 = vmatprep.subr.mxu0 0.0
    %2057 = vmatpush1.msra.mxu0 0.0
    %2058 = vmatprep.subr.mxu0 0.0
    %2059 = vmatpush1.msra.mxu0 0.0
    %2060 = vmatprep.subr.mxu0 0.0
    %2061 = vmatpush1.msra.mxu0 0.0
    %2062 = vmatprep.subr.mxu0 0.0
    %2063 = vmatpush1.msra.mxu0 0.0
    %2064 = vmatprep.subr.mxu0 0.0
    %2065 = vmatpush1.msra.mxu0 0.0
    %2066 = vmatprep.subr.mxu0 0.0
    %2067 = vmatpush1.msra.mxu0 0.0
    %2068 = vmatprep.subr.mxu0 0.0
    %2069 = vmatpush1.msra.mxu0 0.0
    %2070 = vmatprep.subr.mxu0 0.0
    %2071 = vmatpush1.msra.mxu0 0.0
    %2072 = vmatprep.subr.mxu0 0.0
    %2073 = vmatpush1.msra.mxu0 0.0
    %2074 = vmatprep.subr.mxu0 0.0
    %2075 = vmatpush1.msra.mxu0 0.0
    %2076 = vmatprep.subr.mxu0 0.0
    %2077 = vmatpush1.msra.mxu0 0.0
    %2078 = vmatprep.subr.mxu0 0.0
    %2079 = vmatpush1.msra.mxu0 0.0
    %2080 = vmatprep.subr.mxu0 0.0
    %2081 = vmatpush1.msra.mxu0 0.0
    %2082 = vmatprep.subr.mxu0 0.0
    %2083 = vmatpush1.msra.mxu0 0.0
    %2084 = vmatprep.subr.mxu0 0.0
    %2085 = vmatpush1.msra.mxu0 0.0
    %2086 = vmatprep.subr.mxu0 0.0
    %2087 = vmatpush1.msra.mxu0 0.0
    %2088 = vmatprep.subr.mxu0 0.0
    %2089 = vmatpush1.msra.mxu0 0.0
    %2090 = vmatprep.subr.mxu0 0.0
    %2091 = vmatpush1.msra.mxu0 0.0
    %2092 = vmatprep.subr.mxu0 0.0
    %2093 = vmatpush1.msra.mxu0 0.0
    %2094 = vmatprep.subr.mxu0 0.0
    %2095 = vmatpush1.msra.mxu0 0.0
    %2096 = vmatprep.subr.mxu0 0.0
    %2097 = vmatpush1.msra.mxu0 0.0
    %2098 = vmatprep.subr.mxu0 0.0
    %2099 = vmatpush1.msra.mxu0 0.0
    %2100 = vmatprep.subr.mxu0 0.0
    %2101 = vmatpush1.msra.mxu0 0.0
    %2102 = vmatprep.subr.mxu0 0.0
    %2103 = vmatpush1.msra.mxu0 0.0
    %2104 = vmatprep.subr.mxu0 0.0
    %2105 = vmatpush1.msra.mxu0 0.0
    %2106 = vmatprep.subr.mxu0 0.0
    %2107 = vmatpush1.msra.mxu0 0.0
    %2108 = vmatprep.mubr.f32.mxu0 0.0
    %2109 = vmatmul.mubr.f32.gmra.mrb[0].mxu0 %v2042
    %v2110 = vpop.f32.mrb[0].mxu0
    %v2111 = vadd.f32 0.0, %v2110
    %v2112 = vpop.f32.mrb[0].mxu0
    %2113 = vdwg.mxu0
    %2114 = vrot.lane.b32.xlu0 %v1859, 96
    %v2115 = vpop.permute.xlu0 %2114
    %v2118 = vsel %vm183, %v2037, 0
    %2120 = vmatprep.subr.mxu0 0.0
    %2121 = vmatpush1.msra.mxu0 %v2115
    %2122 = vmatprep.subr.mxu0 0.0
    %2123 = vmatpush1.msra.mxu0 0.0
    %2124 = vmatprep.subr.mxu0 0.0
    %2125 = vmatpush1.msra.mxu0 0.0
    %2126 = vmatprep.subr.mxu0 0.0
    %2127 = vmatpush1.msra.mxu0 0.0
    %2128 = vmatprep.subr.mxu0 0.0
    %2129 = vmatpush1.msra.mxu0 0.0
    %2130 = vmatprep.subr.mxu0 0.0
    %2131 = vmatpush1.msra.mxu0 0.0
    %2132 = vmatprep.subr.mxu0 0.0
    %2133 = vmatpush1.msra.mxu0 0.0
    %2134 = vmatprep.subr.mxu0 0.0
    %2135 = vmatpush1.msra.mxu0 0.0
    %2136 = vmatprep.subr.mxu0 0.0
    %2137 = vmatpush1.msra.mxu0 0.0
    %2138 = vmatprep.subr.mxu0 0.0
    %2139 = vmatpush1.msra.mxu0 0.0
    %2140 = vmatprep.subr.mxu0 0.0
    %2141 = vmatpush1.msra.mxu0 0.0
    %2142 = vmatprep.subr.mxu0 0.0
    %2143 = vmatpush1.msra.mxu0 0.0
    %2144 = vmatprep.subr.mxu0 0.0
    %2145 = vmatpush1.msra.mxu0 0.0
    %2146 = vmatprep.subr.mxu0 0.0
    %2147 = vmatpush1.msra.mxu0 0.0
    %2148 = vmatprep.subr.mxu0 0.0
    %2149 = vmatpush1.msra.mxu0 0.0
    %2150 = vmatprep.subr.mxu0 0.0
    %2151 = vmatpush1.msra.mxu0 0.0
    %2152 = vmatprep.subr.mxu0 0.0
    %2153 = vmatpush1.msra.mxu0 0.0
    %2154 = vmatprep.subr.mxu0 0.0
    %2155 = vmatpush1.msra.mxu0 0.0
    %2156 = vmatprep.subr.mxu0 0.0
    %2157 = vmatpush1.msra.mxu0 0.0
    %2158 = vmatprep.subr.mxu0 0.0
    %2159 = vmatpush1.msra.mxu0 0.0
    %2160 = vmatprep.subr.mxu0 0.0
    %2161 = vmatpush1.msra.mxu0 0.0
    %2162 = vmatprep.subr.mxu0 0.0
    %2163 = vmatpush1.msra.mxu0 0.0
    %2164 = vmatprep.subr.mxu0 0.0
    %2165 = vmatpush1.msra.mxu0 0.0
    %2166 = vmatprep.subr.mxu0 0.0
    %2167 = vmatpush1.msra.mxu0 0.0
    %2168 = vmatprep.subr.mxu0 0.0
    %2169 = vmatpush1.msra.mxu0 0.0
    %2170 = vmatprep.subr.mxu0 0.0
    %2171 = vmatpush1.msra.mxu0 0.0
    %2172 = vmatprep.subr.mxu0 0.0
    %2173 = vmatpush1.msra.mxu0 0.0
    %2174 = vmatprep.subr.mxu0 0.0
    %2175 = vmatpush1.msra.mxu0 0.0
    %2176 = vmatprep.subr.mxu0 0.0
    %2177 = vmatpush1.msra.mxu0 0.0
    %2178 = vmatprep.subr.mxu0 0.0
    %2179 = vmatpush1.msra.mxu0 0.0
    %2180 = vmatprep.subr.mxu0 0.0
    %2181 = vmatpush1.msra.mxu0 0.0
    %2182 = vmatprep.subr.mxu0 0.0
    %2183 = vmatpush1.msra.mxu0 0.0
    %2184 = vmatprep.mubr.f32.mxu0 0.0
    %2185 = vmatmul.mubr.f32.gmra.mrb[0].mxu0 %v2118
    %v2186 = vpop.f32.mrb[0].mxu0
    %v2187 = vadd.f32 0.0, %v2186
    %v2188 = vpop.f32.mrb[0].mxu0
    %2189 = vdwg.mxu0
    %2190 = vrot.lane.b32.xlu0 %v1762, 120
    %v2191 = vpop.permute.xlu0 %2190
    %2192 = vrot.lane.b32.xlu0 %v1854, 120
    %v2193 = vpop.permute.xlu0 %2192
    %v2194 = vsel %vm183, %v2191, 0
    %v2196 = vsel %vm183, %v2193, 0
    %2198 = vmatprep.subr.mxu0 0.0
    %2199 = vmatpush1.xpose.msra.mxu0 %v2196
    %2200 = vmatprep.subr.mxu0 0.0
    %2201 = vmatpush1.xpose.msra.mxu0 0.0
    %2202 = vmatprep.subr.mxu0 0.0
    %2203 = vmatpush1.xpose.msra.mxu0 0.0
    %2204 = vmatprep.subr.mxu0 0.0
    %2205 = vmatpush1.xpose.msra.mxu0 0.0
    %2206 = vmatprep.subr.mxu0 0.0
    %2207 = vmatpush1.xpose.msra.mxu0 0.0
    %2208 = vmatprep.subr.mxu0 0.0
    %2209 = vmatpush1.xpose.msra.mxu0 0.0
    %2210 = vmatprep.subr.mxu0 0.0
    %2211 = vmatpush1.xpose.msra.mxu0 0.0
    %2212 = vmatprep.subr.mxu0 0.0
    %2213 = vmatpush1.xpose.msra.mxu0 0.0
    %2214 = vmatprep.subr.mxu0 0.0
    %2215 = vmatpush1.xpose.msra.mxu0 0.0
    %2216 = vmatprep.subr.mxu0 0.0
    %2217 = vmatpush1.xpose.msra.mxu0 0.0
    %2218 = vmatprep.subr.mxu0 0.0
    %2219 = vmatpush1.xpose.msra.mxu0 0.0
    %2220 = vmatprep.subr.mxu0 0.0
    %2221 = vmatpush1.xpose.msra.mxu0 0.0
    %2222 = vmatprep.subr.mxu0 0.0
    %2223 = vmatpush1.xpose.msra.mxu0 0.0
    %2224 = vmatprep.subr.mxu0 0.0
    %2225 = vmatpush1.xpose.msra.mxu0 0.0
    %2226 = vmatprep.subr.mxu0 0.0
    %2227 = vmatpush1.xpose.msra.mxu0 0.0
    %2228 = vmatprep.subr.mxu0 0.0
    %2229 = vmatpush1.xpose.msra.mxu0 0.0
    %2230 = vmatprep.subr.mxu0 0.0
    %2231 = vmatpush1.xpose.msra.mxu0 0.0
    %2232 = vmatprep.subr.mxu0 0.0
    %2233 = vmatpush1.xpose.msra.mxu0 0.0
    %2234 = vmatprep.subr.mxu0 0.0
    %2235 = vmatpush1.xpose.msra.mxu0 0.0
    %2236 = vmatprep.subr.mxu0 0.0
    %2237 = vmatpush1.xpose.msra.mxu0 0.0
    %2238 = vmatprep.subr.mxu0 0.0
    %2239 = vmatpush1.xpose.msra.mxu0 0.0
    %2240 = vmatprep.subr.mxu0 0.0
    %2241 = vmatpush1.xpose.msra.mxu0 0.0
    %2242 = vmatprep.subr.mxu0 0.0
    %2243 = vmatpush1.xpose.msra.mxu0 0.0
    %2244 = vmatprep.subr.mxu0 0.0
    %2245 = vmatpush1.xpose.msra.mxu0 0.0
    %2246 = vmatprep.subr.mxu0 0.0
    %2247 = vmatpush1.xpose.msra.mxu0 0.0
    %2248 = vmatprep.subr.mxu0 0.0
    %2249 = vmatpush1.xpose.msra.mxu0 0.0
    %2250 = vmatprep.subr.mxu0 0.0
    %2251 = vmatpush1.xpose.msra.mxu0 0.0
    %2252 = vmatprep.subr.mxu0 0.0
    %2253 = vmatpush1.xpose.msra.mxu0 0.0
    %2254 = vmatprep.subr.mxu0 0.0
    %2255 = vmatpush1.xpose.msra.mxu0 0.0
    %2256 = vmatprep.subr.mxu0 0.0
    %2257 = vmatpush1.xpose.msra.mxu0 0.0
    %2258 = vmatprep.subr.mxu0 0.0
    %2259 = vmatpush1.xpose.msra.mxu0 0.0
    %2260 = vmatprep.subr.mxu0 0.0
    %2261 = vmatpush1.xpose.msra.mxu0 0.0
    %2262 = vmatprep.mubr.f32.mxu0 0.0
    %2263 = vmatmul.mubr.f32.gmra.mrb[0].mxu0 %v2194
    %v2264 = vpop.f32.mrb[0].mxu0
    %v2265 = vadd.f32 0.0, %v2264
    %v2266 = vpop.f32.mrb[0].mxu0
    %2267 = vdwg.mxu0
    %2268 = vrot.lane.b32.xlu0 %v1767, 120
    %v2269 = vpop.permute.xlu0 %2268
    %2270 = vrot.lane.b32.xlu0 %v1859, 120
    %v2271 = vpop.permute.xlu0 %2270
    %v2272 = vsel %vm183, %v2269, 0
    %v2274 = vsel %vm183, %v2271, 0
    %2276 = vmatprep.subr.mxu0 0.0
    %2277 = vmatpush1.xpose.msra.mxu0 %v2274
    %2278 = vmatprep.subr.mxu0 0.0
    %2279 = vmatpush1.xpose.msra.mxu0 0.0
    %2280 = vmatprep.subr.mxu0 0.0
    %2281 = vmatpush1.xpose.msra.mxu0 0.0
    %2282 = vmatprep.subr.mxu0 0.0
    %2283 = vmatpush1.xpose.msra.mxu0 0.0
    %2284 = vmatprep.subr.mxu0 0.0
    %2285 = vmatpush1.xpose.msra.mxu0 0.0
    %2286 = vmatprep.subr.mxu0 0.0
    %2287 = vmatpush1.xpose.msra.mxu0 0.0
    %2288 = vmatprep.subr.mxu0 0.0
    %2289 = vmatpush1.xpose.msra.mxu0 0.0
    %2290 = vmatprep.subr.mxu0 0.0
    %2291 = vmatpush1.xpose.msra.mxu0 0.0
    %2292 = vmatprep.subr.mxu0 0.0
    %2293 = vmatpush1.xpose.msra.mxu0 0.0
    %2294 = vmatprep.subr.mxu0 0.0
    %2295 = vmatpush1.xpose.msra.mxu0 0.0
    %2296 = vmatprep.subr.mxu0 0.0
    %2297 = vmatpush1.xpose.msra.mxu0 0.0
    %2298 = vmatprep.subr.mxu0 0.0
    %2299 = vmatpush1.xpose.msra.mxu0 0.0
    %2300 = vmatprep.subr.mxu0 0.0
    %2301 = vmatpush1.xpose.msra.mxu0 0.0
    %2302 = vmatprep.subr.mxu0 0.0
    %2303 = vmatpush1.xpose.msra.mxu0 0.0
    %2304 = vmatprep.subr.mxu0 0.0
    %2305 = vmatpush1.xpose.msra.mxu0 0.0
    %2306 = vmatprep.subr.mxu0 0.0
    %2307 = vmatpush1.xpose.msra.mxu0 0.0
    %2308 = vmatprep.subr.mxu0 0.0
    %2309 = vmatpush1.xpose.msra.mxu0 0.0
    %2310 = vmatprep.subr.mxu0 0.0
    %2311 = vmatpush1.xpose.msra.mxu0 0.0
    %2312 = vmatprep.subr.mxu0 0.0
    %2313 = vmatpush1.xpose.msra.mxu0 0.0
    %2314 = vmatprep.subr.mxu0 0.0
    %2315 = vmatpush1.xpose.msra.mxu0 0.0
    %2316 = vmatprep.subr.mxu0 0.0
    %2317 = vmatpush1.xpose.msra.mxu0 0.0
    %2318 = vmatprep.subr.mxu0 0.0
    %2319 = vmatpush1.xpose.msra.mxu0 0.0
    %2320 = vmatprep.subr.mxu0 0.0
    %2321 = vmatpush1.xpose.msra.mxu0 0.0
    %2322 = vmatprep.subr.mxu0 0.0
    %2323 = vmatpush1.xpose.msra.mxu0 0.0
    %2324 = vmatprep.subr.mxu0 0.0
    %2325 = vmatpush1.xpose.msra.mxu0 0.0
    %2326 = vmatprep.subr.mxu0 0.0
    %2327 = vmatpush1.xpose.msra.mxu0 0.0
    %2328 = vmatprep.subr.mxu0 0.0
    %2329 = vmatpush1.xpose.msra.mxu0 0.0
    %2330 = vmatprep.subr.mxu0 0.0
    %2331 = vmatpush1.xpose.msra.mxu0 0.0
    %2332 = vmatprep.subr.mxu0 0.0
    %2333 = vmatpush1.xpose.msra.mxu0 0.0
    %2334 = vmatprep.subr.mxu0 0.0
    %2335 = vmatpush1.xpose.msra.mxu0 0.0
    %2336 = vmatprep.subr.mxu0 0.0
    %2337 = vmatpush1.xpose.msra.mxu0 0.0
    %2338 = vmatprep.subr.mxu0 0.0
    %2339 = vmatpush1.xpose.msra.mxu0 0.0
    %2340 = vmatprep.mubr.f32.mxu0 0.0
    %2341 = vmatmul.mubr.f32.gmra.mrb[0].mxu0 %v2272
    %v2342 = vpop.f32.mrb[0].mxu0
    %v2343 = vadd.f32 0.0, %v2342
    %v2344 = vpop.f32.mrb[0].mxu0
    %2345 = vdwg.mxu0
    %v2346 = vmul.f32 %v2265, 0.35355338
    %v2347 = vmul.f32 %v2343, 0.35355338
    %v2348 = vsel %vm183, %v2346, -inf
    %2349 = vmax.xlane.f32.xlu0 %v2348
    %v2350 = vpop.xlane.xlu0 %2349
    %v2351 = vsel %vm183, %v2347, -inf
    %2352 = vmax.xlane.f32.xlu0 %v2351
    %v2353 = vpop.xlane.xlu0 %2352
    %v2354 = vsub.f32 %v2346, %v2350
    %v2355 = vsub.f32 %v2347, %v2353
    %v2356 = vmul.f32 %v2354, 1.442695
    %v2357 = vpow.pop %v2356
    %v2358 = vmul.f32 %v2355, 1.442695
    %v2359 = vpow.pop %v2358
    %v2360 = vsel %vm183, %v2357, 0.0
    %2361 = vadd.xlane.f32.xlu0 %v2360
    %v2362 = vpop.xlane.xlu0 %2361
    %v2363 = vsel %vm183, %v2359, 0.0
    %2364 = vadd.xlane.f32.xlu0 %v2363
    %v2365 = vpop.xlane.xlu0 %2364
    %v2366 = vrcp.pop %v2362
    %v2367 = vrcp.pop %v2365
    %v2368 = vmul.f32 %v2357, %v2366
    %v2369 = vmul.f32 %v2359, %v2367
    %2370 = vrot.lane.b32.xlu0 %v1854, 88
    %v2371 = vpop.permute.xlu0 %2370
    %v2374 = vsel %vm183, %v2368, 0
    %2376 = vmatprep.subr.mxu0 0.0
    %2377 = vmatpush1.msra.mxu0 %v2371
    %2378 = vmatprep.subr.mxu0 0.0
    %2379 = vmatpush1.msra.mxu0 0.0
    %2380 = vmatprep.subr.mxu0 0.0
    %2381 = vmatpush1.msra.mxu0 0.0
    %2382 = vmatprep.subr.mxu0 0.0
    %2383 = vmatpush1.msra.mxu0 0.0
    %2384 = vmatprep.subr.mxu0 0.0
    %2385 = vmatpush1.msra.mxu0 0.0
    %2386 = vmatprep.subr.mxu0 0.0
    %2387 = vmatpush1.msra.mxu0 0.0
    %2388 = vmatprep.subr.mxu0 0.0
    %2389 = vmatpush1.msra.mxu0 0.0
    %2390 = vmatprep.subr.mxu0 0.0
    %2391 = vmatpush1.msra.mxu0 0.0
    %2392 = vmatprep.subr.mxu0 0.0
    %2393 = vmatpush1.msra.mxu0 0.0
    %2394 = vmatprep.subr.mxu0 0.0
    %2395 = vmatpush1.msra.mxu0 0.0
    %2396 = vmatprep.subr.mxu0 0.0
    %2397 = vmatpush1.msra.mxu0 0.0
    %2398 = vmatprep.subr.mxu0 0.0
    %2399 = vmatpush1.msra.mxu0 0.0
    %2400 = vmatprep.subr.mxu0 0.0
    %2401 = vmatpush1.msra.mxu0 0.0
    %2402 = vmatprep.subr.mxu0 0.0
    %2403 = vmatpush1.msra.mxu0 0.0
    %2404 = vmatprep.subr.mxu0 0.0
    %2405 = vmatpush1.msra.mxu0 0.0
    %2406 = vmatprep.subr.mxu0 0.0
    %2407 = vmatpush1.msra.mxu0 0.0
    %2408 = vmatprep.subr.mxu0 0.0
    %2409 = vmatpush1.msra.mxu0 0.0
    %2410 = vmatprep.subr.mxu0 0.0
    %2411 = vmatpush1.msra.mxu0 0.0
    %2412 = vmatprep.subr.mxu0 0.0
    %2413 = vmatpush1.msra.mxu0 0.0
    %2414 = vmatprep.subr.mxu0 0.0
    %2415 = vmatpush1.msra.mxu0 0.0
    %2416 = vmatprep.subr.mxu0 0.0
    %2417 = vmatpush1.msra.mxu0 0.0
    %2418 = vmatprep.subr.mxu0 0.0
    %2419 = vmatpush1.msra.mxu0 0.0
    %2420 = vmatprep.subr.mxu0 0.0
    %2421 = vmatpush1.msra.mxu0 0.0
    %2422 = vmatprep.subr.mxu0 0.0
    %2423 = vmatpush1.msra.mxu0 0.0
    %2424 = vmatprep.subr.mxu0 0.0
    %2425 = vmatpush1.msra.mxu0 0.0
    %2426 = vmatprep.subr.mxu0 0.0
    %2427 = vmatpush1.msra.mxu0 0.0
    %2428 = vmatprep.subr.mxu0 0.0
    %2429 = vmatpush1.msra.mxu0 0.0
    %2430 = vmatprep.subr.mxu0 0.0
    %2431 = vmatpush1.msra.mxu0 0.0
    %2432 = vmatprep.subr.mxu0 0.0
    %2433 = vmatpush1.msra.mxu0 0.0
    %2434 = vmatprep.subr.mxu0 0.0
    %2435 = vmatpush1.msra.mxu0 0.0
    %2436 = vmatprep.subr.mxu0 0.0
    %2437 = vmatpush1.msra.mxu0 0.0
    %2438 = vmatprep.subr.mxu0 0.0
    %2439 = vmatpush1.msra.mxu0 0.0
    %2440 = vmatprep.mubr.f32.mxu0 0.0
    %2441 = vmatmul.mubr.f32.gmra.mrb[0].mxu0 %v2374
    %v2442 = vpop.f32.mrb[0].mxu0
    %v2443 = vadd.f32 0.0, %v2442
    %v2444 = vpop.f32.mrb[0].mxu0
    %2445 = vdwg.mxu0
    %2446 = vrot.lane.b32.xlu0 %v1859, 88
    %v2447 = vpop.permute.xlu0 %2446
    %v2450 = vsel %vm183, %v2369, 0
    %2452 = vmatprep.subr.mxu0 0.0
    %2453 = vmatpush1.msra.mxu0 %v2447
    %2454 = vmatprep.subr.mxu0 0.0
    %2455 = vmatpush1.msra.mxu0 0.0
    %2456 = vmatprep.subr.mxu0 0.0
    %2457 = vmatpush1.msra.mxu0 0.0
    %2458 = vmatprep.subr.mxu0 0.0
    %2459 = vmatpush1.msra.mxu0 0.0
    %2460 = vmatprep.subr.mxu0 0.0
    %2461 = vmatpush1.msra.mxu0 0.0
    %2462 = vmatprep.subr.mxu0 0.0
    %2463 = vmatpush1.msra.mxu0 0.0
    %2464 = vmatprep.subr.mxu0 0.0
    %2465 = vmatpush1.msra.mxu0 0.0
    %2466 = vmatprep.subr.mxu0 0.0
    %2467 = vmatpush1.msra.mxu0 0.0
    %2468 = vmatprep.subr.mxu0 0.0
    %2469 = vmatpush1.msra.mxu0 0.0
    %2470 = vmatprep.subr.mxu0 0.0
    %2471 = vmatpush1.msra.mxu0 0.0
    %2472 = vmatprep.subr.mxu0 0.0
    %2473 = vmatpush1.msra.mxu0 0.0
    %2474 = vmatprep.subr.mxu0 0.0
    %2475 = vmatpush1.msra.mxu0 0.0
    %2476 = vmatprep.subr.mxu0 0.0
    %2477 = vmatpush1.msra.mxu0 0.0
    %2478 = vmatprep.subr.mxu0 0.0
    %2479 = vmatpush1.msra.mxu0 0.0
    %2480 = vmatprep.subr.mxu0 0.0
    %2481 = vmatpush1.msra.mxu0 0.0
    %2482 = vmatprep.subr.mxu0 0.0
    %2483 = vmatpush1.msra.mxu0 0.0
    %2484 = vmatprep.subr.mxu0 0.0
    %2485 = vmatpush1.msra.mxu0 0.0
    %2486 = vmatprep.subr.mxu0 0.0
    %2487 = vmatpush1.msra.mxu0 0.0
    %2488 = vmatprep.subr.mxu0 0.0
    %2489 = vmatpush1.msra.mxu0 0.0
    %2490 = vmatprep.subr.mxu0 0.0
    %2491 = vmatpush1.msra.mxu0 0.0
    %2492 = vmatprep.subr.mxu0 0.0
    %2493 = vmatpush1.msra.mxu0 0.0
    %2494 = vmatprep.subr.mxu0 0.0
    %2495 = vmatpush1.msra.mxu0 0.0
    %2496 = vmatprep.subr.mxu0 0.0
    %2497 = vmatpush1.msra.mxu0 0.0
    %2498 = vmatprep.subr.mxu0 0.0
    %2499 = vmatpush1.msra.mxu0 0.0
    %2500 = vmatprep.subr.mxu0 0.0
    %2501 = vmatpush1.msra.mxu0 0.0
    %2502 = vmatprep.subr.mxu0 0.0
    %2503 = vmatpush1.msra.mxu0 0.0
    %2504 = vmatprep.subr.mxu0 0.0
    %2505 = vmatpush1.msra.mxu0 0.0
    %2506 = vmatprep.subr.mxu0 0.0
    %2507 = vmatpush1.msra.mxu0 0.0
    %2508 = vmatprep.subr.mxu0 0.0
    %2509 = vmatpush1.msra.mxu0 0.0
    %2510 = vmatprep.subr.mxu0 0.0
    %2511 = vmatpush1.msra.mxu0 0.0
    %2512 = vmatprep.subr.mxu0 0.0
    %2513 = vmatpush1.msra.mxu0 0.0
    %2514 = vmatprep.subr.mxu0 0.0
    %2515 = vmatpush1.msra.mxu0 0.0
    %2516 = vmatprep.mubr.f32.mxu0 0.0
    %2517 = vmatmul.mubr.f32.gmra.mrb[0].mxu0 %v2450
    %v2518 = vpop.f32.mrb[0].mxu0
    %v2519 = vadd.f32 0.0, %v2518
    %v2520 = vpop.f32.mrb[0].mxu0
    %2521 = vdwg.mxu0
    %2522 = vrot.lane.b32.xlu0 %v1762, 112
    %v2523 = vpop.permute.xlu0 %2522
    %2524 = vrot.lane.b32.xlu0 %v1854, 112
    %v2525 = vpop.permute.xlu0 %2524
    %v2526 = vsel %vm183, %v2523, 0
    %v2528 = vsel %vm183, %v2525, 0
    %2530 = vmatprep.subr.mxu0 0.0
    %2531 = vmatpush1.xpose.msra.mxu0 %v2528
    %2532 = vmatprep.subr.mxu0 0.0
    %2533 = vmatpush1.xpose.msra.mxu0 0.0
    %2534 = vmatprep.subr.mxu0 0.0
    %2535 = vmatpush1.xpose.msra.mxu0 0.0
    %2536 = vmatprep.subr.mxu0 0.0
    %2537 = vmatpush1.xpose.msra.mxu0 0.0
    %2538 = vmatprep.subr.mxu0 0.0
    %2539 = vmatpush1.xpose.msra.mxu0 0.0
    %2540 = vmatprep.subr.mxu0 0.0
    %2541 = vmatpush1.xpose.msra.mxu0 0.0
    %2542 = vmatprep.subr.mxu0 0.0
    %2543 = vmatpush1.xpose.msra.mxu0 0.0
    %2544 = vmatprep.subr.mxu0 0.0
    %2545 = vmatpush1.xpose.msra.mxu0 0.0
    %2546 = vmatprep.subr.mxu0 0.0
    %2547 = vmatpush1.xpose.msra.mxu0 0.0
    %2548 = vmatprep.subr.mxu0 0.0
    %2549 = vmatpush1.xpose.msra.mxu0 0.0
    %2550 = vmatprep.subr.mxu0 0.0
    %2551 = vmatpush1.xpose.msra.mxu0 0.0
    %2552 = vmatprep.subr.mxu0 0.0
    %2553 = vmatpush1.xpose.msra.mxu0 0.0
    %2554 = vmatprep.subr.mxu0 0.0
    %2555 = vmatpush1.xpose.msra.mxu0 0.0
    %2556 = vmatprep.subr.mxu0 0.0
    %2557 = vmatpush1.xpose.msra.mxu0 0.0
    %2558 = vmatprep.subr.mxu0 0.0
    %2559 = vmatpush1.xpose.msra.mxu0 0.0
    %2560 = vmatprep.subr.mxu0 0.0
    %2561 = vmatpush1.xpose.msra.mxu0 0.0
    %2562 = vmatprep.subr.mxu0 0.0
    %2563 = vmatpush1.xpose.msra.mxu0 0.0
    %2564 = vmatprep.subr.mxu0 0.0
    %2565 = vmatpush1.xpose.msra.mxu0 0.0
    %2566 = vmatprep.subr.mxu0 0.0
    %2567 = vmatpush1.xpose.msra.mxu0 0.0
    %2568 = vmatprep.subr.mxu0 0.0
    %2569 = vmatpush1.xpose.msra.mxu0 0.0
    %2570 = vmatprep.subr.mxu0 0.0
    %2571 = vmatpush1.xpose.msra.mxu0 0.0
    %2572 = vmatprep.subr.mxu0 0.0
    %2573 = vmatpush1.xpose.msra.mxu0 0.0
    %2574 = vmatprep.subr.mxu0 0.0
    %2575 = vmatpush1.xpose.msra.mxu0 0.0
    %2576 = vmatprep.subr.mxu0 0.0
    %2577 = vmatpush1.xpose.msra.mxu0 0.0
    %2578 = vmatprep.subr.mxu0 0.0
    %2579 = vmatpush1.xpose.msra.mxu0 0.0
    %2580 = vmatprep.subr.mxu0 0.0
    %2581 = vmatpush1.xpose.msra.mxu0 0.0
    %2582 = vmatprep.subr.mxu0 0.0
    %2583 = vmatpush1.xpose.msra.mxu0 0.0
    %2584 = vmatprep.subr.mxu0 0.0
    %2585 = vmatpush1.xpose.msra.mxu0 0.0
    %2586 = vmatprep.subr.mxu0 0.0
    %2587 = vmatpush1.xpose.msra.mxu0 0.0
    %2588 = vmatprep.subr.mxu0 0.0
    %2589 = vmatpush1.xpose.msra.mxu0 0.0
    %2590 = vmatprep.subr.mxu0 0.0
    %2591 = vmatpush1.xpose.msra.mxu0 0.0
    %2592 = vmatprep.subr.mxu0 0.0
    %2593 = vmatpush1.xpose.msra.mxu0 0.0
    %2594 = vmatprep.mubr.f32.mxu0 0.0
    %2595 = vmatmul.mubr.f32.gmra.mrb[0].mxu0 %v2526
    %v2596 = vpop.f32.mrb[0].mxu0
    %v2597 = vadd.f32 0.0, %v2596
    %v2598 = vpop.f32.mrb[0].mxu0
    %2599 = vdwg.mxu0
    %2600 = vrot.lane.b32.xlu0 %v1767, 112
    %v2601 = vpop.permute.xlu0 %2600
    %2602 = vrot.lane.b32.xlu0 %v1859, 112
    %v2603 = vpop.permute.xlu0 %2602
    %v2604 = vsel %vm183, %v2601, 0
    %v2606 = vsel %vm183, %v2603, 0
    %2608 = vmatprep.subr.mxu0 0.0
    %2609 = vmatpush1.xpose.msra.mxu0 %v2606
    %2610 = vmatprep.subr.mxu0 0.0
    %2611 = vmatpush1.xpose.msra.mxu0 0.0
    %2612 = vmatprep.subr.mxu0 0.0
    %2613 = vmatpush1.xpose.msra.mxu0 0.0
    %2614 = vmatprep.subr.mxu0 0.0
    %2615 = vmatpush1.xpose.msra.mxu0 0.0
    %2616 = vmatprep.subr.mxu0 0.0
    %2617 = vmatpush1.xpose.msra.mxu0 0.0
    %2618 = vmatprep.subr.mxu0 0.0
    %2619 = vmatpush1.xpose.msra.mxu0 0.0
    %2620 = vmatprep.subr.mxu0 0.0
    %2621 = vmatpush1.xpose.msra.mxu0 0.0
    %2622 = vmatprep.subr.mxu0 0.0
    %2623 = vmatpush1.xpose.msra.mxu0 0.0
    %2624 = vmatprep.subr.mxu0 0.0
    %2625 = vmatpush1.xpose.msra.mxu0 0.0
    %2626 = vmatprep.subr.mxu0 0.0
    %2627 = vmatpush1.xpose.msra.mxu0 0.0
    %2628 = vmatprep.subr.mxu0 0.0
    %2629 = vmatpush1.xpose.msra.mxu0 0.0
    %2630 = vmatprep.subr.mxu0 0.0
    %2631 = vmatpush1.xpose.msra.mxu0 0.0
    %2632 = vmatprep.subr.mxu0 0.0
    %2633 = vmatpush1.xpose.msra.mxu0 0.0
    %2634 = vmatprep.subr.mxu0 0.0
    %2635 = vmatpush1.xpose.msra.mxu0 0.0
    %2636 = vmatprep.subr.mxu0 0.0
    %2637 = vmatpush1.xpose.msra.mxu0 0.0
    %2638 = vmatprep.subr.mxu0 0.0
    %2639 = vmatpush1.xpose.msra.mxu0 0.0
    %2640 = vmatprep.subr.mxu0 0.0
    %2641 = vmatpush1.xpose.msra.mxu0 0.0
    %2642 = vmatprep.subr.mxu0 0.0
    %2643 = vmatpush1.xpose.msra.mxu0 0.0
    %2644 = vmatprep.subr.mxu0 0.0
    %2645 = vmatpush1.xpose.msra.mxu0 0.0
    %2646 = vmatprep.subr.mxu0 0.0
    %2647 = vmatpush1.xpose.msra.mxu0 0.0
    %2648 = vmatprep.subr.mxu0 0.0
    %2649 = vmatpush1.xpose.msra.mxu0 0.0
    %2650 = vmatprep.subr.mxu0 0.0
    %2651 = vmatpush1.xpose.msra.mxu0 0.0
    %2652 = vmatprep.subr.mxu0 0.0
    %2653 = vmatpush1.xpose.msra.mxu0 0.0
    %2654 = vmatprep.subr.mxu0 0.0
    %2655 = vmatpush1.xpose.msra.mxu0 0.0
    %2656 = vmatprep.subr.mxu0 0.0
    %2657 = vmatpush1.xpose.msra.mxu0 0.0
    %2658 = vmatprep.subr.mxu0 0.0
    %2659 = vmatpush1.xpose.msra.mxu0 0.0
    %2660 = vmatprep.subr.mxu0 0.0
    %2661 = vmatpush1.xpose.msra.mxu0 0.0
    %2662 = vmatprep.subr.mxu0 0.0
    %2663 = vmatpush1.xpose.msra.mxu0 0.0
    %2664 = vmatprep.subr.mxu0 0.0
    %2665 = vmatpush1.xpose.msra.mxu0 0.0
    %2666 = vmatprep.subr.mxu0 0.0
    %2667 = vmatpush1.xpose.msra.mxu0 0.0
    %2668 = vmatprep.subr.mxu0 0.0
    %2669 = vmatpush1.xpose.msra.mxu0 0.0
    %2670 = vmatprep.subr.mxu0 0.0
    %2671 = vmatpush1.xpose.msra.mxu0 0.0
    %2672 = vmatprep.mubr.f32.mxu0 0.0
    %2673 = vmatmul.mubr.f32.gmra.mrb[0].mxu0 %v2604
    %v2674 = vpop.f32.mrb[0].mxu0
    %v2675 = vadd.f32 0.0, %v2674
    %v2676 = vpop.f32.mrb[0].mxu0
    %2677 = vdwg.mxu0
    %v2678 = vmul.f32 %v2597, 0.35355338
    %v2679 = vmul.f32 %v2675, 0.35355338
    %v2680 = vsel %vm183, %v2678, -inf
    %2681 = vmax.xlane.f32.xlu0 %v2680
    %v2682 = vpop.xlane.xlu0 %2681
    %v2683 = vsel %vm183, %v2679, -inf
    %2684 = vmax.xlane.f32.xlu0 %v2683
    %v2685 = vpop.xlane.xlu0 %2684
    %v2686 = vsub.f32 %v2678, %v2682
    %v2687 = vsub.f32 %v2679, %v2685
    %v2688 = vmul.f32 %v2686, 1.442695
    %v2689 = vpow.pop %v2688
    %v2690 = vmul.f32 %v2687, 1.442695
    %v2691 = vpow.pop %v2690
    %v2692 = vsel %vm183, %v2689, 0.0
    %2693 = vadd.xlane.f32.xlu0 %v2692
    %v2694 = vpop.xlane.xlu0 %2693
    %v2695 = vsel %vm183, %v2691, 0.0
    %2696 = vadd.xlane.f32.xlu0 %v2695
    %v2697 = vpop.xlane.xlu0 %2696
    %v2698 = vrcp.pop %v2694
    %v2699 = vrcp.pop %v2697
    %v2700 = vmul.f32 %v2689, %v2698
    %v2701 = vmul.f32 %v2691, %v2699
    %2702 = vrot.lane.b32.xlu0 %v1854, 80
    %v2703 = vpop.permute.xlu0 %2702
    %v2706 = vsel %vm183, %v2700, 0
    %2708 = vmatprep.subr.mxu0 0.0
    %2709 = vmatpush1.msra.mxu0 %v2703
    %2710 = vmatprep.subr.mxu0 0.0
    %2711 = vmatpush1.msra.mxu0 0.0
    %2712 = vmatprep.subr.mxu0 0.0
    %2713 = vmatpush1.msra.mxu0 0.0
    %2714 = vmatprep.subr.mxu0 0.0
    %2715 = vmatpush1.msra.mxu0 0.0
    %2716 = vmatprep.subr.mxu0 0.0
    %2717 = vmatpush1.msra.mxu0 0.0
    %2718 = vmatprep.subr.mxu0 0.0
    %2719 = vmatpush1.msra.mxu0 0.0
    %2720 = vmatprep.subr.mxu0 0.0
    %2721 = vmatpush1.msra.mxu0 0.0
    %2722 = vmatprep.subr.mxu0 0.0
    %2723 = vmatpush1.msra.mxu0 0.0
    %2724 = vmatprep.subr.mxu0 0.0
    %2725 = vmatpush1.msra.mxu0 0.0
    %2726 = vmatprep.subr.mxu0 0.0
    %2727 = vmatpush1.msra.mxu0 0.0
    %2728 = vmatprep.subr.mxu0 0.0
    %2729 = vmatpush1.msra.mxu0 0.0
    %2730 = vmatprep.subr.mxu0 0.0
    %2731 = vmatpush1.msra.mxu0 0.0
    %2732 = vmatprep.subr.mxu0 0.0
    %2733 = vmatpush1.msra.mxu0 0.0
    %2734 = vmatprep.subr.mxu0 0.0
    %2735 = vmatpush1.msra.mxu0 0.0
    %2736 = vmatprep.subr.mxu0 0.0
    %2737 = vmatpush1.msra.mxu0 0.0
    %2738 = vmatprep.subr.mxu0 0.0
    %2739 = vmatpush1.msra.mxu0 0.0
    %2740 = vmatprep.subr.mxu0 0.0
    %2741 = vmatpush1.msra.mxu0 0.0
    %2742 = vmatprep.subr.mxu0 0.0
    %2743 = vmatpush1.msra.mxu0 0.0
    %2744 = vmatprep.subr.mxu0 0.0
    %2745 = vmatpush1.msra.mxu0 0.0
    %2746 = vmatprep.subr.mxu0 0.0
    %2747 = vmatpush1.msra.mxu0 0.0
    %2748 = vmatprep.subr.mxu0 0.0
    %2749 = vmatpush1.msra.mxu0 0.0
    %2750 = vmatprep.subr.mxu0 0.0
    %2751 = vmatpush1.msra.mxu0 0.0
    %2752 = vmatprep.subr.mxu0 0.0
    %2753 = vmatpush1.msra.mxu0 0.0
    %2754 = vmatprep.subr.mxu0 0.0
    %2755 = vmatpush1.msra.mxu0 0.0
    %2756 = vmatprep.subr.mxu0 0.0
    %2757 = vmatpush1.msra.mxu0 0.0
    %2758 = vmatprep.subr.mxu0 0.0
    %2759 = vmatpush1.msra.mxu0 0.0
    %2760 = vmatprep.subr.mxu0 0.0
    %2761 = vmatpush1.msra.mxu0 0.0
    %2762 = vmatprep.subr.mxu0 0.0
    %2763 = vmatpush1.msra.mxu0 0.0
    %2764 = vmatprep.subr.mxu0 0.0
    %2765 = vmatpush1.msra.mxu0 0.0
    %2766 = vmatprep.subr.mxu0 0.0
    %2767 = vmatpush1.msra.mxu0 0.0
    %2768 = vmatprep.subr.mxu0 0.0
    %2769 = vmatpush1.msra.mxu0 0.0
    %2770 = vmatprep.subr.mxu0 0.0
    %2771 = vmatpush1.msra.mxu0 0.0
    %2772 = vmatprep.mubr.f32.mxu0 0.0
    %2773 = vmatmul.mubr.f32.gmra.mrb[0].mxu0 %v2706
    %v2774 = vpop.f32.mrb[0].mxu0
    %v2775 = vadd.f32 0.0, %v2774
    %v2776 = vpop.f32.mrb[0].mxu0
    %2777 = vdwg.mxu0
    %2778 = vrot.lane.b32.xlu0 %v1859, 80
    %v2779 = vpop.permute.xlu0 %2778
    %v2782 = vsel %vm183, %v2701, 0
    %2784 = vmatprep.subr.mxu0 0.0
    %2785 = vmatpush1.msra.mxu0 %v2779
    %2786 = vmatprep.subr.mxu0 0.0
    %2787 = vmatpush1.msra.mxu0 0.0
    %2788 = vmatprep.subr.mxu0 0.0
    %2789 = vmatpush1.msra.mxu0 0.0
    %2790 = vmatprep.subr.mxu0 0.0
    %2791 = vmatpush1.msra.mxu0 0.0
    %2792 = vmatprep.subr.mxu0 0.0
    %2793 = vmatpush1.msra.mxu0 0.0
    %2794 = vmatprep.subr.mxu0 0.0
    %2795 = vmatpush1.msra.mxu0 0.0
    %2796 = vmatprep.subr.mxu0 0.0
    %2797 = vmatpush1.msra.mxu0 0.0
    %2798 = vmatprep.subr.mxu0 0.0
    %2799 = vmatpush1.msra.mxu0 0.0
    %2800 = vmatprep.subr.mxu0 0.0
    %2801 = vmatpush1.msra.mxu0 0.0
    %2802 = vmatprep.subr.mxu0 0.0
    %2803 = vmatpush1.msra.mxu0 0.0
    %2804 = vmatprep.subr.mxu0 0.0
    %2805 = vmatpush1.msra.mxu0 0.0
    %2806 = vmatprep.subr.mxu0 0.0
    %2807 = vmatpush1.msra.mxu0 0.0
    %2808 = vmatprep.subr.mxu0 0.0
    %2809 = vmatpush1.msra.mxu0 0.0
    %2810 = vmatprep.subr.mxu0 0.0
    %2811 = vmatpush1.msra.mxu0 0.0
    %2812 = vmatprep.subr.mxu0 0.0
    %2813 = vmatpush1.msra.mxu0 0.0
    %2814 = vmatprep.subr.mxu0 0.0
    %2815 = vmatpush1.msra.mxu0 0.0
    %2816 = vmatprep.subr.mxu0 0.0
    %2817 = vmatpush1.msra.mxu0 0.0
    %2818 = vmatprep.subr.mxu0 0.0
    %2819 = vmatpush1.msra.mxu0 0.0
    %2820 = vmatprep.subr.mxu0 0.0
    %2821 = vmatpush1.msra.mxu0 0.0
    %2822 = vmatprep.subr.mxu0 0.0
    %2823 = vmatpush1.msra.mxu0 0.0
    %2824 = vmatprep.subr.mxu0 0.0
    %2825 = vmatpush1.msra.mxu0 0.0
    %2826 = vmatprep.subr.mxu0 0.0
    %2827 = vmatpush1.msra.mxu0 0.0
    %2828 = vmatprep.subr.mxu0 0.0
    %2829 = vmatpush1.msra.mxu0 0.0
    %2830 = vmatprep.subr.mxu0 0.0
    %2831 = vmatpush1.msra.mxu0 0.0
    %2832 = vmatprep.subr.mxu0 0.0
    %2833 = vmatpush1.msra.mxu0 0.0
    %2834 = vmatprep.subr.mxu0 0.0
    %2835 = vmatpush1.msra.mxu0 0.0
    %2836 = vmatprep.subr.mxu0 0.0
    %2837 = vmatpush1.msra.mxu0 0.0
    %2838 = vmatprep.subr.mxu0 0.0
    %2839 = vmatpush1.msra.mxu0 0.0
    %2840 = vmatprep.subr.mxu0 0.0
    %2841 = vmatpush1.msra.mxu0 0.0
    %2842 = vmatprep.subr.mxu0 0.0
    %2843 = vmatpush1.msra.mxu0 0.0
    %2844 = vmatprep.subr.mxu0 0.0
    %2845 = vmatpush1.msra.mxu0 0.0
    %2846 = vmatprep.subr.mxu0 0.0
    %2847 = vmatpush1.msra.mxu0 0.0
    %2848 = vmatprep.mubr.f32.mxu0 0.0
    %2849 = vmatmul.mubr.f32.gmra.mrb[0].mxu0 %v2782
    %v2850 = vpop.f32.mrb[0].mxu0
    %v2851 = vadd.f32 0.0, %v2850
    %v2852 = vpop.f32.mrb[0].mxu0
    %2853 = vdwg.mxu0
    %2854 = vrot.lane.b32.xlu0 %v1762, 104
    %v2855 = vpop.permute.xlu0 %2854
    %2856 = vrot.lane.b32.xlu0 %v1854, 104
    %v2857 = vpop.permute.xlu0 %2856
    %v2858 = vsel %vm183, %v2855, 0
    %v2860 = vsel %vm183, %v2857, 0
    %2862 = vmatprep.subr.mxu0 0.0
    %2863 = vmatpush1.xpose.msra.mxu0 %v2860
    %2864 = vmatprep.subr.mxu0 0.0
    %2865 = vmatpush1.xpose.msra.mxu0 0.0
    %2866 = vmatprep.subr.mxu0 0.0
    %2867 = vmatpush1.xpose.msra.mxu0 0.0
    %2868 = vmatprep.subr.mxu0 0.0
    %2869 = vmatpush1.xpose.msra.mxu0 0.0
    %2870 = vmatprep.subr.mxu0 0.0
    %2871 = vmatpush1.xpose.msra.mxu0 0.0
    %2872 = vmatprep.subr.mxu0 0.0
    %2873 = vmatpush1.xpose.msra.mxu0 0.0
    %2874 = vmatprep.subr.mxu0 0.0
    %2875 = vmatpush1.xpose.msra.mxu0 0.0
    %2876 = vmatprep.subr.mxu0 0.0
    %2877 = vmatpush1.xpose.msra.mxu0 0.0
    %2878 = vmatprep.subr.mxu0 0.0
    %2879 = vmatpush1.xpose.msra.mxu0 0.0
    %2880 = vmatprep.subr.mxu0 0.0
    %2881 = vmatpush1.xpose.msra.mxu0 0.0
    %2882 = vmatprep.subr.mxu0 0.0
    %2883 = vmatpush1.xpose.msra.mxu0 0.0
    %2884 = vmatprep.subr.mxu0 0.0
    %2885 = vmatpush1.xpose.msra.mxu0 0.0
    %2886 = vmatprep.subr.mxu0 0.0
    %2887 = vmatpush1.xpose.msra.mxu0 0.0
    %2888 = vmatprep.subr.mxu0 0.0
    %2889 = vmatpush1.xpose.msra.mxu0 0.0
    %2890 = vmatprep.subr.mxu0 0.0
    %2891 = vmatpush1.xpose.msra.mxu0 0.0
    %2892 = vmatprep.subr.mxu0 0.0
    %2893 = vmatpush1.xpose.msra.mxu0 0.0
    %2894 = vmatprep.subr.mxu0 0.0
    %2895 = vmatpush1.xpose.msra.mxu0 0.0
    %2896 = vmatprep.subr.mxu0 0.0
    %2897 = vmatpush1.xpose.msra.mxu0 0.0
    %2898 = vmatprep.subr.mxu0 0.0
    %2899 = vmatpush1.xpose.msra.mxu0 0.0
    %2900 = vmatprep.subr.mxu0 0.0
    %2901 = vmatpush1.xpose.msra.mxu0 0.0
    %2902 = vmatprep.subr.mxu0 0.0
    %2903 = vmatpush1.xpose.msra.mxu0 0.0
    %2904 = vmatprep.subr.mxu0 0.0
    %2905 = vmatpush1.xpose.msra.mxu0 0.0
    %2906 = vmatprep.subr.mxu0 0.0
    %2907 = vmatpush1.xpose.msra.mxu0 0.0
    %2908 = vmatprep.subr.mxu0 0.0
    %2909 = vmatpush1.xpose.msra.mxu0 0.0
    %2910 = vmatprep.subr.mxu0 0.0
    %2911 = vmatpush1.xpose.msra.mxu0 0.0
    %2912 = vmatprep.subr.mxu0 0.0
    %2913 = vmatpush1.xpose.msra.mxu0 0.0
    %2914 = vmatprep.subr.mxu0 0.0
    %2915 = vmatpush1.xpose.msra.mxu0 0.0
    %2916 = vmatprep.subr.mxu0 0.0
    %2917 = vmatpush1.xpose.msra.mxu0 0.0
    %2918 = vmatprep.subr.mxu0 0.0
    %2919 = vmatpush1.xpose.msra.mxu0 0.0
    %2920 = vmatprep.subr.mxu0 0.0
    %2921 = vmatpush1.xpose.msra.mxu0 0.0
    %2922 = vmatprep.subr.mxu0 0.0
    %2923 = vmatpush1.xpose.msra.mxu0 0.0
    %2924 = vmatprep.subr.mxu0 0.0
    %2925 = vmatpush1.xpose.msra.mxu0 0.0
    %2926 = vmatprep.mubr.f32.mxu0 0.0
    %2927 = vmatmul.mubr.f32.gmra.mrb[0].mxu0 %v2858
    %v2928 = vpop.f32.mrb[0].mxu0
    %v2929 = vadd.f32 0.0, %v2928
    %v2930 = vpop.f32.mrb[0].mxu0
    %2931 = vdwg.mxu0
    %2932 = vrot.lane.b32.xlu0 %v1767, 104
    %v2933 = vpop.permute.xlu0 %2932
    %2934 = vrot.lane.b32.xlu0 %v1859, 104
    %v2935 = vpop.permute.xlu0 %2934
    %v2936 = vsel %vm183, %v2933, 0
    %v2938 = vsel %vm183, %v2935, 0
    %2940 = vmatprep.subr.mxu0 0.0
    %2941 = vmatpush1.xpose.msra.mxu0 %v2938
    %2942 = vmatprep.subr.mxu0 0.0
    %2943 = vmatpush1.xpose.msra.mxu0 0.0
    %2944 = vmatprep.subr.mxu0 0.0
    %2945 = vmatpush1.xpose.msra.mxu0 0.0
    %2946 = vmatprep.subr.mxu0 0.0
    %2947 = vmatpush1.xpose.msra.mxu0 0.0
    %2948 = vmatprep.subr.mxu0 0.0
    %2949 = vmatpush1.xpose.msra.mxu0 0.0
    %2950 = vmatprep.subr.mxu0 0.0
    %2951 = vmatpush1.xpose.msra.mxu0 0.0
    %2952 = vmatprep.subr.mxu0 0.0
    %2953 = vmatpush1.xpose.msra.mxu0 0.0
    %2954 = vmatprep.subr.mxu0 0.0
    %2955 = vmatpush1.xpose.msra.mxu0 0.0
    %2956 = vmatprep.subr.mxu0 0.0
    %2957 = vmatpush1.xpose.msra.mxu0 0.0
    %2958 = vmatprep.subr.mxu0 0.0
    %2959 = vmatpush1.xpose.msra.mxu0 0.0
    %2960 = vmatprep.subr.mxu0 0.0
    %2961 = vmatpush1.xpose.msra.mxu0 0.0
    %2962 = vmatprep.subr.mxu0 0.0
    %2963 = vmatpush1.xpose.msra.mxu0 0.0
    %2964 = vmatprep.subr.mxu0 0.0
    %2965 = vmatpush1.xpose.msra.mxu0 0.0
    %2966 = vmatprep.subr.mxu0 0.0
    %2967 = vmatpush1.xpose.msra.mxu0 0.0
    %2968 = vmatprep.subr.mxu0 0.0
    %2969 = vmatpush1.xpose.msra.mxu0 0.0
    %2970 = vmatprep.subr.mxu0 0.0
    %2971 = vmatpush1.xpose.msra.mxu0 0.0
    %2972 = vmatprep.subr.mxu0 0.0
    %2973 = vmatpush1.xpose.msra.mxu0 0.0
    %2974 = vmatprep.subr.mxu0 0.0
    %2975 = vmatpush1.xpose.msra.mxu0 0.0
    %2976 = vmatprep.subr.mxu0 0.0
    %2977 = vmatpush1.xpose.msra.mxu0 0.0
    %2978 = vmatprep.subr.mxu0 0.0
    %2979 = vmatpush1.xpose.msra.mxu0 0.0
    %2980 = vmatprep.subr.mxu0 0.0
    %2981 = vmatpush1.xpose.msra.mxu0 0.0
    %2982 = vmatprep.subr.mxu0 0.0
    %2983 = vmatpush1.xpose.msra.mxu0 0.0
    %2984 = vmatprep.subr.mxu0 0.0
    %2985 = vmatpush1.xpose.msra.mxu0 0.0
    %2986 = vmatprep.subr.mxu0 0.0
    %2987 = vmatpush1.xpose.msra.mxu0 0.0
    %2988 = vmatprep.subr.mxu0 0.0
    %2989 = vmatpush1.xpose.msra.mxu0 0.0
    %2990 = vmatprep.subr.mxu0 0.0
    %2991 = vmatpush1.xpose.msra.mxu0 0.0
    %2992 = vmatprep.subr.mxu0 0.0
    %2993 = vmatpush1.xpose.msra.mxu0 0.0
    %2994 = vmatprep.subr.mxu0 0.0
    %2995 = vmatpush1.xpose.msra.mxu0 0.0
    %2996 = vmatprep.subr.mxu0 0.0
    %2997 = vmatpush1.xpose.msra.mxu0 0.0
    %2998 = vmatprep.subr.mxu0 0.0
    %2999 = vmatpush1.xpose.msra.mxu0 0.0
    %3000 = vmatprep.subr.mxu0 0.0
    %3001 = vmatpush1.xpose.msra.mxu0 0.0
    %3002 = vmatprep.subr.mxu0 0.0
    %3003 = vmatpush1.xpose.msra.mxu0 0.0
    %3004 = vmatprep.mubr.f32.mxu0 0.0
    %3005 = vmatmul.mubr.f32.gmra.mrb[0].mxu0 %v2936
    %v3006 = vpop.f32.mrb[0].mxu0
    %v3007 = vadd.f32 0.0, %v3006
    %v3008 = vpop.f32.mrb[0].mxu0
    %3009 = vdwg.mxu0
    %v3010 = vmul.f32 %v2929, 0.35355338
    %v3011 = vmul.f32 %v3007, 0.35355338
    %v3012 = vsel %vm183, %v3010, -inf
    %3013 = vmax.xlane.f32.xlu0 %v3012
    %v3014 = vpop.xlane.xlu0 %3013
    %v3015 = vsel %vm183, %v3011, -inf
    %3016 = vmax.xlane.f32.xlu0 %v3015
    %v3017 = vpop.xlane.xlu0 %3016
    %v3018 = vsub.f32 %v3010, %v3014
    %v3019 = vsub.f32 %v3011, %v3017
    %v3020 = vmul.f32 %v3018, 1.442695
    %v3021 = vpow.pop %v3020
    %v3022 = vmul.f32 %v3019, 1.442695
    %v3023 = vpow.pop %v3022
    %v3024 = vsel %vm183, %v3021, 0.0
    %3025 = vadd.xlane.f32.xlu0 %v3024
    %v3026 = vpop.xlane.xlu0 %3025
    %v3027 = vsel %vm183, %v3023, 0.0
    %3028 = vadd.xlane.f32.xlu0 %v3027
    %v3029 = vpop.xlane.xlu0 %3028
    %v3030 = vrcp.pop %v3026
    %v3031 = vrcp.pop %v3029
    %v3032 = vmul.f32 %v3021, %v3030
    %v3033 = vmul.f32 %v3023, %v3031
    %3034 = vrot.lane.b32.xlu0 %v1854, 72
    %v3035 = vpop.permute.xlu0 %3034
    %v3038 = vsel %vm183, %v3032, 0
    %3040 = vmatprep.subr.mxu0 0.0
    %3041 = vmatpush1.msra.mxu0 %v3035
    %3042 = vmatprep.subr.mxu0 0.0
    %3043 = vmatpush1.msra.mxu0 0.0
    %3044 = vmatprep.subr.mxu0 0.0
    %3045 = vmatpush1.msra.mxu0 0.0
    %3046 = vmatprep.subr.mxu0 0.0
    %3047 = vmatpush1.msra.mxu0 0.0
    %3048 = vmatprep.subr.mxu0 0.0
    %3049 = vmatpush1.msra.mxu0 0.0
    %3050 = vmatprep.subr.mxu0 0.0
    %3051 = vmatpush1.msra.mxu0 0.0
    %3052 = vmatprep.subr.mxu0 0.0
    %3053 = vmatpush1.msra.mxu0 0.0
    %3054 = vmatprep.subr.mxu0 0.0
    %3055 = vmatpush1.msra.mxu0 0.0
    %3056 = vmatprep.subr.mxu0 0.0
    %3057 = vmatpush1.msra.mxu0 0.0
    %3058 = vmatprep.subr.mxu0 0.0
    %3059 = vmatpush1.msra.mxu0 0.0
    %3060 = vmatprep.subr.mxu0 0.0
    %3061 = vmatpush1.msra.mxu0 0.0
    %3062 = vmatprep.subr.mxu0 0.0
    %3063 = vmatpush1.msra.mxu0 0.0
    %3064 = vmatprep.subr.mxu0 0.0
    %3065 = vmatpush1.msra.mxu0 0.0
    %3066 = vmatprep.subr.mxu0 0.0
    %3067 = vmatpush1.msra.mxu0 0.0
    %3068 = vmatprep.subr.mxu0 0.0
    %3069 = vmatpush1.msra.mxu0 0.0
    %3070 = vmatprep.subr.mxu0 0.0
    %3071 = vmatpush1.msra.mxu0 0.0
    %3072 = vmatprep.subr.mxu0 0.0
    %3073 = vmatpush1.msra.mxu0 0.0
    %3074 = vmatprep.subr.mxu0 0.0
    %3075 = vmatpush1.msra.mxu0 0.0
    %3076 = vmatprep.subr.mxu0 0.0
    %3077 = vmatpush1.msra.mxu0 0.0
    %3078 = vmatprep.subr.mxu0 0.0
    %3079 = vmatpush1.msra.mxu0 0.0
    %3080 = vmatprep.subr.mxu0 0.0
    %3081 = vmatpush1.msra.mxu0 0.0
    %3082 = vmatprep.subr.mxu0 0.0
    %3083 = vmatpush1.msra.mxu0 0.0
    %3084 = vmatprep.subr.mxu0 0.0
    %3085 = vmatpush1.msra.mxu0 0.0
    %3086 = vmatprep.subr.mxu0 0.0
    %3087 = vmatpush1.msra.mxu0 0.0
    %3088 = vmatprep.subr.mxu0 0.0
    %3089 = vmatpush1.msra.mxu0 0.0
    %3090 = vmatprep.subr.mxu0 0.0
    %3091 = vmatpush1.msra.mxu0 0.0
    %3092 = vmatprep.subr.mxu0 0.0
    %3093 = vmatpush1.msra.mxu0 0.0
    %3094 = vmatprep.subr.mxu0 0.0
    %3095 = vmatpush1.msra.mxu0 0.0
    %3096 = vmatprep.subr.mxu0 0.0
    %3097 = vmatpush1.msra.mxu0 0.0
    %3098 = vmatprep.subr.mxu0 0.0
    %3099 = vmatpush1.msra.mxu0 0.0
    %3100 = vmatprep.subr.mxu0 0.0
    %3101 = vmatpush1.msra.mxu0 0.0
    %3102 = vmatprep.subr.mxu0 0.0
    %3103 = vmatpush1.msra.mxu0 0.0
    %3104 = vmatprep.mubr.f32.mxu0 0.0
    %3105 = vmatmul.mubr.f32.gmra.mrb[0].mxu0 %v3038
    %v3106 = vpop.f32.mrb[0].mxu0
    %v3107 = vadd.f32 0.0, %v3106
    %v3108 = vpop.f32.mrb[0].mxu0
    %3109 = vdwg.mxu0
    %3110 = vrot.lane.b32.xlu0 %v1859, 72
    %v3111 = vpop.permute.xlu0 %3110
    %v3114 = vsel %vm183, %v3033, 0
    %3116 = vmatprep.subr.mxu0 0.0
    %3117 = vmatpush1.msra.mxu0 %v3111
    %3118 = vmatprep.subr.mxu0 0.0
    %3119 = vmatpush1.msra.mxu0 0.0
    %3120 = vmatprep.subr.mxu0 0.0
    %3121 = vmatpush1.msra.mxu0 0.0
    %3122 = vmatprep.subr.mxu0 0.0
    %3123 = vmatpush1.msra.mxu0 0.0
    %3124 = vmatprep.subr.mxu0 0.0
    %3125 = vmatpush1.msra.mxu0 0.0
    %3126 = vmatprep.subr.mxu0 0.0
    %3127 = vmatpush1.msra.mxu0 0.0
    %3128 = vmatprep.subr.mxu0 0.0
    %3129 = vmatpush1.msra.mxu0 0.0
    %3130 = vmatprep.subr.mxu0 0.0
    %3131 = vmatpush1.msra.mxu0 0.0
    %3132 = vmatprep.subr.mxu0 0.0
    %3133 = vmatpush1.msra.mxu0 0.0
    %3134 = vmatprep.subr.mxu0 0.0
    %3135 = vmatpush1.msra.mxu0 0.0
    %3136 = vmatprep.subr.mxu0 0.0
    %3137 = vmatpush1.msra.mxu0 0.0
    %3138 = vmatprep.subr.mxu0 0.0
    %3139 = vmatpush1.msra.mxu0 0.0
    %3140 = vmatprep.subr.mxu0 0.0
    %3141 = vmatpush1.msra.mxu0 0.0
    %3142 = vmatprep.subr.mxu0 0.0
    %3143 = vmatpush1.msra.mxu0 0.0
    %3144 = vmatprep.subr.mxu0 0.0
    %3145 = vmatpush1.msra.mxu0 0.0
    %3146 = vmatprep.subr.mxu0 0.0
    %3147 = vmatpush1.msra.mxu0 0.0
    %3148 = vmatprep.subr.mxu0 0.0
    %3149 = vmatpush1.msra.mxu0 0.0
    %3150 = vmatprep.subr.mxu0 0.0
    %3151 = vmatpush1.msra.mxu0 0.0
    %3152 = vmatprep.subr.mxu0 0.0
    %3153 = vmatpush1.msra.mxu0 0.0
    %3154 = vmatprep.subr.mxu0 0.0
    %3155 = vmatpush1.msra.mxu0 0.0
    %3156 = vmatprep.subr.mxu0 0.0
    %3157 = vmatpush1.msra.mxu0 0.0
    %3158 = vmatprep.subr.mxu0 0.0
    %3159 = vmatpush1.msra.mxu0 0.0
    %3160 = vmatprep.subr.mxu0 0.0
    %3161 = vmatpush1.msra.mxu0 0.0
    %3162 = vmatprep.subr.mxu0 0.0
    %3163 = vmatpush1.msra.mxu0 0.0
    %3164 = vmatprep.subr.mxu0 0.0
    %3165 = vmatpush1.msra.mxu0 0.0
    %3166 = vmatprep.subr.mxu0 0.0
    %3167 = vmatpush1.msra.mxu0 0.0
    %3168 = vmatprep.subr.mxu0 0.0
    %3169 = vmatpush1.msra.mxu0 0.0
    %3170 = vmatprep.subr.mxu0 0.0
    %3171 = vmatpush1.msra.mxu0 0.0
    %3172 = vmatprep.subr.mxu0 0.0
    %3173 = vmatpush1.msra.mxu0 0.0
    %3174 = vmatprep.subr.mxu0 0.0
    %3175 = vmatpush1.msra.mxu0 0.0
    %3176 = vmatprep.subr.mxu0 0.0
    %3177 = vmatpush1.msra.mxu0 0.0
    %3178 = vmatprep.subr.mxu0 0.0
    %3179 = vmatpush1.msra.mxu0 0.0
    %3180 = vmatprep.mubr.f32.mxu0 0.0
    %3181 = vmatmul.mubr.f32.gmra.mrb[0].mxu0 %v3114
    %v3182 = vpop.f32.mrb[0].mxu0
    %v3183 = vadd.f32 0.0, %v3182
    %v3184 = vpop.f32.mrb[0].mxu0
    %3185 = vdwg.mxu0
    %3188 = vrot.lane.b32.xlu0 %v2443, 8
    %v3189 = vpop.permute.xlu0 %3188
    %3190 = vrot.lane.b32.xlu0 %v2519, 8
    %v3191 = vpop.permute.xlu0 %3190
    %3196 = vrot.lane.b32.xlu0 %v2775, 16
    %v3197 = vpop.permute.xlu0 %3196
    %3198 = vrot.lane.b32.xlu0 %v2851, 16
    %v3199 = vpop.permute.xlu0 %3198
    %3204 = vrot.lane.b32.xlu0 %v3107, 24
    %v3205 = vpop.permute.xlu0 %3204
    %3206 = vrot.lane.b32.xlu0 %v3183, 24
    %v3207 = vpop.permute.xlu0 %3206
    %v3210 = vsel %vm183, %v2111, %v3189
    %v3211 = vsel %vm183, %v2187, %v3191
    %v3212 = vsel %vm1533, %v3210, %v3197
    %v3213 = vsel %vm1533, %v3211, %v3199
    %v3214 = vsel %vm1536, %v3212, %v3205
    %v3215 = vsel %vm1536, %v3213, %v3207
    %v3216 = vld [vmem:[%s12] sm:$0xff]
    %v3217 = vld [vmem:[%s12 + $0x8] sm:$0xff]
    %v3218 = vld [vmem:[%s12 + $0x10] sm:$0xff]
    %v3219 = vld [vmem:[%s12 + $0x18] sm:$0xff]
    %v3220 = vld [vmem:[%s13] sm:$0x1]
    %v3222 = vlaneseq
    %v3223 = vshrl.u32 %v3222, 7
    %v3224 = vsub.s32 0, %v3223
    %v3225 = vrot.slane %v3220, %v3224
    %v3228 = vsel %vm98, %v3214, 0
    %v3231 = vsel %vm98, %v3215, 0
    %3233 = vmatprep.subr.mxu0 0.0
    %3234 = vmatpush1.msra.mxu0 %v3216
    %3235 = vmatprep.subr.mxu0 0.0
    %3236 = vmatpush1.msra.mxu0 %v3217
    %3237 = vmatprep.subr.mxu0 0.0
    %3238 = vmatpush1.msra.mxu0 %v3218
    %3239 = vmatprep.subr.mxu0 0.0
    %3240 = vmatpush1.msra.mxu0 %v3219
    %3241 = vmatprep.subr.mxu0 0.0
    %3242 = vmatpush1.msra.mxu0 0.0
    %3243 = vmatprep.subr.mxu0 0.0
    %3244 = vmatpush1.msra.mxu0 0.0
    %3245 = vmatprep.subr.mxu0 0.0
    %3246 = vmatpush1.msra.mxu0 0.0
    %3247 = vmatprep.subr.mxu0 0.0
    %3248 = vmatpush1.msra.mxu0 0.0
    %3249 = vmatprep.subr.mxu0 0.0
    %3250 = vmatpush1.msra.mxu0 0.0
    %3251 = vmatprep.subr.mxu0 0.0
    %3252 = vmatpush1.msra.mxu0 0.0
    %3253 = vmatprep.subr.mxu0 0.0
    %3254 = vmatpush1.msra.mxu0 0.0
    %3255 = vmatprep.subr.mxu0 0.0
    %3256 = vmatpush1.msra.mxu0 0.0
    %3257 = vmatprep.subr.mxu0 0.0
    %3258 = vmatpush1.msra.mxu0 0.0
    %3259 = vmatprep.subr.mxu0 0.0
    %3260 = vmatpush1.msra.mxu0 0.0
    %3261 = vmatprep.subr.mxu0 0.0
    %3262 = vmatpush1.msra.mxu0 0.0
    %3263 = vmatprep.subr.mxu0 0.0
    %3264 = vmatpush1.msra.mxu0 0.0
    %3265 = vmatprep.subr.mxu0 0.0
    %3266 = vmatpush1.msra.mxu0 0.0
    %3267 = vmatprep.subr.mxu0 0.0
    %3268 = vmatpush1.msra.mxu0 0.0
    %3269 = vmatprep.subr.mxu0 0.0
    %3270 = vmatpush1.msra.mxu0 0.0
    %3271 = vmatprep.subr.mxu0 0.0
    %3272 = vmatpush1.msra.mxu0 0.0
    %3273 = vmatprep.subr.mxu0 0.0
    %3274 = vmatpush1.msra.mxu0 0.0
    %3275 = vmatprep.subr.mxu0 0.0
    %3276 = vmatpush1.msra.mxu0 0.0
    %3277 = vmatprep.subr.mxu0 0.0
    %3278 = vmatpush1.msra.mxu0 0.0
    %3279 = vmatprep.subr.mxu0 0.0
    %3280 = vmatpush1.msra.mxu0 0.0
    %3281 = vmatprep.subr.mxu0 0.0
    %3282 = vmatpush1.msra.mxu0 0.0
    %3283 = vmatprep.subr.mxu0 0.0
    %3284 = vmatpush1.msra.mxu0 0.0
    %3285 = vmatprep.subr.mxu0 0.0
    %3286 = vmatpush1.msra.mxu0 0.0
    %3287 = vmatprep.subr.mxu0 0.0
    %3288 = vmatpush1.msra.mxu0 0.0
    %3289 = vmatprep.subr.mxu0 0.0
    %3290 = vmatpush1.msra.mxu0 0.0
    %3291 = vmatprep.subr.mxu0 0.0
    %3292 = vmatpush1.msra.mxu0 0.0
    %3293 = vmatprep.subr.mxu0 0.0
    %3294 = vmatpush1.msra.mxu0 0.0
    %3295 = vmatprep.subr.mxu0 0.0
    %3296 = vmatpush1.msra.mxu0 0.0
    %3297 = vmatprep.mubr.f32.mxu0 0.0
    %3298 = vmatmul.mubr.f32.gmra.mrb[0].mxu0 %v3228
    %v3299 = vpop.f32.mrb[0].mxu0
    %v3300 = vadd.f32 %v3225, %v3299
    %v3301 = vpop.f32.mrb[0].mxu0
    %3302 = vmatprep.mubr.f32.mxu0 0.0
    %3303 = vmatmul.mubr.f32.gmra.mrb[0].mxu0 %v3231
    %v3304 = vpop.f32.mrb[0].mxu0
    %v3305 = vadd.f32 %v3225, %v3304
    %v3306 = vpop.f32.mrb[0].mxu0
    %3307 = vdwg.mxu0
    %v3308 = vadd.f32 %v1676, %v3300
    %v3309 = vadd.f32 %v1677, %v3305
    %v3310 = vld [vmem:[%s14] sm:$0x1]
    %v3311 = vld [vmem:[%s15] sm:$0x1]
    %v3312 = vsel %vm98, %v3308, 0.0
    %3313 = vadd.xlane.f32.xlu0 %v3312
    %v3314 = vpop.xlane.xlu0 %3313
    %v3315 = vsel %vm98, %v3309, 0.0
    %3316 = vadd.xlane.f32.xlu0 %v3315
    %v3317 = vpop.xlane.xlu0 %3316
    %v3318 = vmul.f32 %v3314, %v1641
    %v3319 = vmul.f32 %v3317, %v1641
    %v3320 = vsub.f32 %v3308, %v3318
    %v3321 = vsub.f32 %v3309, %v3319
    %v3322 = vmul.f32 %v3320, %v3320
    %v3323 = vmul.f32 %v3321, %v3321
    %v3324 = vsel %vm98, %v3322, 0.0
    %3325 = vadd.xlane.f32.xlu0 %v3324
    %v3326 = vpop.xlane.xlu0 %3325
    %v3327 = vsel %vm98, %v3323, 0.0
    %3328 = vadd.xlane.f32.xlu0 %v3327
    %v3329 = vpop.xlane.xlu0 %3328
    %v3330 = vmul.f32 %v3326, %v1641
    %v3331 = vmul.f32 %v3329, %v1641
    %v3332 = vadd.f32 %v3330, 1e-05
    %v3333 = vadd.f32 %v3331, 1e-05
    %v3334 = vrsqrt.pop %v3332
    %v3335 = vrsqrt.pop %v3333
    %v3336 = vmul.f32 %v3320, %v3334
    %v3337 = vmul.f32 %v3321, %v3335
    %v3339 = vlaneseq
    %v3340 = vshrl.u32 %v3339, 7
    %v3341 = vsub.s32 0, %v3340
    %v3342 = vrot.slane %v3310, %v3341
    %v3344 = vmul.f32 %v3336, %v3342
    %v3345 = vmul.f32 %v3337, %v3342
    %v3347 = vlaneseq
    %v3348 = vshrl.u32 %v3347, 7
    %v3349 = vsub.s32 0, %v3348
    %v3350 = vrot.slane %v3311, %v3349
    %v3352 = vadd.f32 %v3344, %v3350
    %v3353 = vadd.f32 %v3345, %v3350
    %v3354 = vld [vmem:[%s16] sm:$0xff]
    %v3355 = vld [vmem:[%s16 + $0x8] sm:$0xff]
    %v3356 = vld [vmem:[%s16 + $0x10] sm:$0xff]
    %v3357 = vld [vmem:[%s16 + $0x18] sm:$0xff]
    %v3358 = vld [vmem:[%s17] sm:$0x1]
    %v3360 = vlaneseq
    %v3361 = vshrl.u32 %v3360, 7
    %v3362 = vsub.s32 0, %v3361
    %v3363 = vrot.slane %v3358, %v3362
    %v3366 = vsel %vm98, %v3352, 0
    %v3369 = vsel %vm98, %v3353, 0
    %3371 = vmatprep.subr.mxu0 0.0
    %3372 = vmatpush1.msra.mxu0 %v3354
    %3373 = vmatprep.subr.mxu0 0.0
    %3374 = vmatpush1.msra.mxu0 %v3355
    %3375 = vmatprep.subr.mxu0 0.0
    %3376 = vmatpush1.msra.mxu0 %v3356
    %3377 = vmatprep.subr.mxu0 0.0
    %3378 = vmatpush1.msra.mxu0 %v3357
    %3379 = vmatprep.subr.mxu0 0.0
    %3380 = vmatpush1.msra.mxu0 0.0
    %3381 = vmatprep.subr.mxu0 0.0
    %3382 = vmatpush1.msra.mxu0 0.0
    %3383 = vmatprep.subr.mxu0 0.0
    %3384 = vmatpush1.msra.mxu0 0.0
    %3385 = vmatprep.subr.mxu0 0.0
    %3386 = vmatpush1.msra.mxu0 0.0
    %3387 = vmatprep.subr.mxu0 0.0
    %3388 = vmatpush1.msra.mxu0 0.0
    %3389 = vmatprep.subr.mxu0 0.0
    %3390 = vmatpush1.msra.mxu0 0.0
    %3391 = vmatprep.subr.mxu0 0.0
    %3392 = vmatpush1.msra.mxu0 0.0
    %3393 = vmatprep.subr.mxu0 0.0
    %3394 = vmatpush1.msra.mxu0 0.0
    %3395 = vmatprep.subr.mxu0 0.0
    %3396 = vmatpush1.msra.mxu0 0.0
    %3397 = vmatprep.subr.mxu0 0.0
    %3398 = vmatpush1.msra.mxu0 0.0
    %3399 = vmatprep.subr.mxu0 0.0
    %3400 = vmatpush1.msra.mxu0 0.0
    %3401 = vmatprep.subr.mxu0 0.0
    %3402 = vmatpush1.msra.mxu0 0.0
    %3403 = vmatprep.subr.mxu0 0.0
    %3404 = vmatpush1.msra.mxu0 0.0
    %3405 = vmatprep.subr.mxu0 0.0
    %3406 = vmatpush1.msra.mxu0 0.0
    %3407 = vmatprep.subr.mxu0 0.0
    %3408 = vmatpush1.msra.mxu0 0.0
    %3409 = vmatprep.subr.mxu0 0.0
    %3410 = vmatpush1.msra.mxu0 0.0
    %3411 = vmatprep.subr.mxu0 0.0
    %3412 = vmatpush1.msra.mxu0 0.0
    %3413 = vmatprep.subr.mxu0 0.0
    %3414 = vmatpush1.msra.mxu0 0.0
    %3415 = vmatprep.subr.mxu0 0.0
    %3416 = vmatpush1.msra.mxu0 0.0
    %3417 = vmatprep.subr.mxu0 0.0
    %3418 = vmatpush1.msra.mxu0 0.0
    %3419 = vmatprep.subr.mxu0 0.0
    %3420 = vmatpush1.msra.mxu0 0.0
    %3421 = vmatprep.subr.mxu0 0.0
    %3422 = vmatpush1.msra.mxu0 0.0
    %3423 = vmatprep.subr.mxu0 0.0
    %3424 = vmatpush1.msra.mxu0 0.0
    %3425 = vmatprep.subr.mxu0 0.0
    %3426 = vmatpush1.msra.mxu0 0.0
    %3427 = vmatprep.subr.mxu0 0.0
    %3428 = vmatpush1.msra.mxu0 0.0
    %3429 = vmatprep.subr.mxu0 0.0
    %3430 = vmatpush1.msra.mxu0 0.0
    %3431 = vmatprep.subr.mxu0 0.0
    %3432 = vmatpush1.msra.mxu0 0.0
    %3433 = vmatprep.subr.mxu0 0.0
    %3434 = vmatpush1.msra.mxu0 0.0
    %3435 = vmatprep.mubr.f32.mxu0 0.0
    %3436 = vmatmul.mubr.f32.gmra.mrb[0].mxu0 %v3366
    %v3437 = vpop.f32.mrb[0].mxu0
    %v3438 = vadd.f32 %v3363, %v3437
    %v3439 = vpop.f32.mrb[0].mxu0
    %3440 = vmatprep.mubr.f32.mxu0 0.0
    %3441 = vmatmul.mubr.f32.gmra.mrb[0].mxu0 %v3369
    %v3442 = vpop.f32.mrb[0].mxu0
    %v3443 = vadd.f32 %v3363, %v3442
    %v3444 = vpop.f32.mrb[0].mxu0
    %3445 = vdwg.mxu0
    %v3446 = vmax.f32 %v3438, 0.0
    %v3447 = vmax.f32 %v3443, 0.0
    %v3448 = vld [vmem:[%s18] sm:$0xff]
    %v3449 = vld [vmem:[%s18 + $0x8] sm:$0xff]
    %v3450 = vld [vmem:[%s18 + $0x10] sm:$0xff]
    %v3451 = vld [vmem:[%s18 + $0x18] sm:$0xff]
    %v3452 = vld [vmem:[%s18 + $0x20] sm:$0xff]
    %v3453 = vld [vmem:[%s18 + $0x28] sm:$0xff]
    %v3454 = vld [vmem:[%s18 + $0x30] sm:$0xff]
    %v3455 = vld [vmem:[%s18 + $0x38] sm:$0xff]
    %v3456 = vld [vmem:[%s19] sm:$0x1]
    %v3458 = vlaneseq
    %v3459 = vshrl.u32 %v3458, 7
    %v3460 = vsub.s32 0, %v3459
    %v3461 = vrot.slane %v3456, %v3460
    %vm3463 = vcmask 523264
    %v3465 = vsel %vm3463, %v3446, 0
    %v3468 = vsel %vm3463, %v3447, 0
    %3470 = vmatprep.subr.mxu0 0.0
    %3471 = vmatpush1.msra.mxu0 %v3448
    %3472 = vmatprep.subr.mxu0 0.0
    %3473 = vmatpush1.msra.mxu0 %v3449
    %3474 = vmatprep.subr.mxu0 0.0
    %3475 = vmatpush1.msra.mxu0 %v3450
    %3476 = vmatprep.subr.mxu0 0.0
    %3477 = vmatpush1.msra.mxu0 %v3451
    %3478 = vmatprep.subr.mxu0 0.0
    %3479 = vmatpush1.msra.mxu0 %v3452
    %3480 = vmatprep.subr.mxu0 0.0
    %3481 = vmatpush1.msra.mxu0 %v3453
    %3482 = vmatprep.subr.mxu0 0.0
    %3483 = vmatpush1.msra.mxu0 %v3454
    %3484 = vmatprep.subr.mxu0 0.0
    %3485 = vmatpush1.msra.mxu0 %v3455
    %3486 = vmatprep.subr.mxu0 0.0
    %3487 = vmatpush1.msra.mxu0 0.0
    %3488 = vmatprep.subr.mxu0 0.0
    %3489 = vmatpush1.msra.mxu0 0.0
    %3490 = vmatprep.subr.mxu0 0.0
    %3491 = vmatpush1.msra.mxu0 0.0
    %3492 = vmatprep.subr.mxu0 0.0
    %3493 = vmatpush1.msra.mxu0 0.0
    %3494 = vmatprep.subr.mxu0 0.0
    %3495 = vmatpush1.msra.mxu0 0.0
    %3496 = vmatprep.subr.mxu0 0.0
    %3497 = vmatpush1.msra.mxu0 0.0
    %3498 = vmatprep.subr.mxu0 0.0
    %3499 = vmatpush1.msra.mxu0 0.0
    %3500 = vmatprep.subr.mxu0 0.0
    %3501 = vmatpush1.msra.mxu0 0.0
    %3502 = vmatprep.subr.mxu0 0.0
    %3503 = vmatpush1.msra.mxu0 0.0
    %3504 = vmatprep.subr.mxu0 0.0
    %3505 = vmatpush1.msra.mxu0 0.0
    %3506 = vmatprep.subr.mxu0 0.0
    %3507 = vmatpush1.msra.mxu0 0.0
    %3508 = vmatprep.subr.mxu0 0.0
    %3509 = vmatpush1.msra.mxu0 0.0
    %3510 = vmatprep.subr.mxu0 0.0
    %3511 = vmatpush1.msra.mxu0 0.0
    %3512 = vmatprep.subr.mxu0 0.0
    %3513 = vmatpush1.msra.mxu0 0.0
    %3514 = vmatprep.subr.mxu0 0.0
    %3515 = vmatpush1.msra.mxu0 0.0
    %3516 = vmatprep.subr.mxu0 0.0
    %3517 = vmatpush1.msra.mxu0 0.0
    %3518 = vmatprep.subr.mxu0 0.0
    %3519 = vmatpush1.msra.mxu0 0.0
    %3520 = vmatprep.subr.mxu0 0.0
    %3521 = vmatpush1.msra.mxu0 0.0
    %3522 = vmatprep.subr.mxu0 0.0
    %3523 = vmatpush1.msra.mxu0 0.0
    %3524 = vmatprep.subr.mxu0 0.0
    %3525 = vmatpush1.msra.mxu0 0.0
    %3526 = vmatprep.subr.mxu0 0.0
    %3527 = vmatpush1.msra.mxu0 0.0
    %3528 = vmatprep.subr.mxu0 0.0
    %3529 = vmatpush1.msra.mxu0 0.0
    %3530 = vmatprep.subr.mxu0 0.0
    %3531 = vmatpush1.msra.mxu0 0.0
    %3532 = vmatprep.subr.mxu0 0.0
    %3533 = vmatpush1.msra.mxu0 0.0
    %3534 = vmatprep.mubr.f32.mxu0 0.0
    %3535 = vmatmul.mubr.f32.gmra.mrb[0].mxu0 %v3465
    %v3536 = vpop.f32.mrb[0].mxu0
    %v3537 = vadd.f32 %v3461, %v3536
    %v3538 = vpop.f32.mrb[0].mxu0
    %3539 = vmatprep.mubr.f32.mxu0 0.0
    %3540 = vmatmul.mubr.f32.gmra.mrb[0].mxu0 %v3468
    %v3541 = vpop.f32.mrb[0].mxu0
    %v3542 = vadd.f32 %v3461, %v3541
    %v3543 = vpop.f32.mrb[0].mxu0
    %3544 = vdwg.mxu0
    %v3545 = vadd.f32 %v3352, %v3537
    %v3546 = vadd.f32 %v3353, %v3542
    %v3547 = vld [vmem:[%s20] sm:$0x1]
    %v3548 = vld [vmem:[#allocation2] sm:$0x1]
    %v3549 = vsel %vm98, %v3545, 0.0
    %3550 = vadd.xlane.f32.xlu0 %v3549
    %v3551 = vpop.xlane.xlu0 %3550
    %v3552 = vsel %vm98, %v3546, 0.0
    %3553 = vadd.xlane.f32.xlu0 %v3552
    %v3554 = vpop.xlane.xlu0 %3553
    %v3555 = vmul.f32 %v3551, %v1641
    %v3556 = vmul.f32 %v3554, %v1641
    %v3557 = vsub.f32 %v3545, %v3555
    %v3558 = vsub.f32 %v3546, %v3556
    %v3559 = vmul.f32 %v3557, %v3557
    %v3560 = vmul.f32 %v3558, %v3558
    %v3561 = vsel %vm98, %v3559, 0.0
    %3562 = vadd.xlane.f32.xlu0 %v3561
    %v3563 = vpop.xlane.xlu0 %3562
    %v3564 = vsel %vm98, %v3560, 0.0
    %3565 = vadd.xlane.f32.xlu0 %v3564
    %v3566 = vpop.xlane.xlu0 %3565
    %v3567 = vmul.f32 %v3563, %v1641
    %v3568 = vmul.f32 %v3566, %v1641
    %v3569 = vadd.f32 %v3567, 1e-05
    %v3570 = vadd.f32 %v3568, 1e-05
    %v3571 = vrsqrt.pop %v3569
    %v3572 = vrsqrt.pop %v3570
    %v3573 = vmul.f32 %v3557, %v3571
    %v3574 = vmul.f32 %v3558, %v3572
    %v3576 = vlaneseq
    %v3577 = vshrl.u32 %v3576, 7
    %v3578 = vsub.s32 0, %v3577
    %v3579 = vrot.slane %v3547, %v3578
    %v3581 = vmul.f32 %v3573, %v3579
    %v3582 = vmul.f32 %v3574, %v3579
    %v3584 = vlaneseq
    %v3585 = vshrl.u32 %v3584, 7
    %v3586 = vsub.s32 0, %v3585
    %v3587 = vrot.slane %v3548, %v3586
    %v3589 = vadd.f32 %v3581, %v3587
    %v3590 = vadd.f32 %v3582, %v3587
    %3591 = vst.msk [vmem:[%s22] sm:$0xff] %vm98, %v3589
    %3592 = vst.msk [vmem:[%s22 + $0x8] sm:$0xff] %vm98, %v3590
    // Predicated region
    $region94: #{transformer_vae_forward.10} parent=1 // pred_check
      _
    $region95: #{transformer_vae_forward.10} parent=1 // pred_check_branch
      %3594 = sbr.rel (0) target = $region97
    $region96: #{transformer_vae_forward.10} parent=1 // pred_region
      _
    $region97: #{transformer_vae_forward.10} parent=1 // pred_fallthru
      _
    // Predicated region
    $region98: #{transformer_vae_forward.10} parent=1 // pred_check
      _
    $region99: #{transformer_vae_forward.10} parent=1 // pred_check_branch
      %3596 = sbr.rel (0) target = $region101
    $region100: #{transformer_vae_forward.10} parent=1 // pred_region
      _
    $region101: #{transformer_vae_forward.10} parent=1 // pred_fallthru
      _
    %3597 = vsyncpa [#allocation3], 1

// kernel: transformer_vae_forward.9
$region0: #{transformer_vae_forward.9}
  #allocation0 [shape = 'u32[]', space=smem, size = 0x4, offset = 0x4, fixed_abs, tag = 'smem constant byte address 0x4 - core index']
  #allocation1 [shape = 'u32[144,128]{1,0:T(1,128)}', space=vmem, size = 0x12000, scoped, tag = 'internal scratch']
  %s0 = inlined_call_operand.vmem [shape: f32[16,32], index: 0, kind: input, shape index: {}, may-alias: {0,1}]
  %s1 = inlined_call_operand.vmem [shape: f32[16,32], index: 1, kind: input, shape index: {}, may-alias: {0,1}]
  %s2 = inlined_call_operand.vmem [shape: f32[32,96], index: 2, kind: input, shape index: {}]
  %s3 = inlined_call_operand.vmem [shape: f32[1,96], index: 3, kind: input, shape index: {}]
  %s4 = inlined_call_operand.vmem [shape: f32[32,32], index: 4, kind: input, shape index: {}]
  %s5 = inlined_call_operand.vmem [shape: f32[1,32], index: 5, kind: input, shape index: {}]
  %s6 = inlined_call_operand.vmem [shape: f32[1,32], index: 6, kind: input, shape index: {}]
  %s7 = inlined_call_operand.vmem [shape: f32[1,32], index: 7, kind: input, shape index: {}]
  %s8 = inlined_call_operand.vmem [shape: f32[32,32], index: 8, kind: input, shape index: {}]
  %s9 = inlined_call_operand.vmem [shape: f32[1,32], index: 9, kind: input, shape index: {}]
  %s10 = inlined_call_operand.vmem [shape: f32[32,64], index: 10, kind: input, shape index: {}]
  %s11 = inlined_call_operand.vmem [shape: f32[1,64], index: 11, kind: input, shape index: {}]
  %s12 = inlined_call_operand.vmem [shape: f32[32,32], index: 12, kind: input, shape index: {}]
  %s13 = inlined_call_operand.vmem [shape: f32[1,32], index: 13, kind: input, shape index: {}]
  %s14 = inlined_call_operand.vmem [shape: f32[1,32], index: 14, kind: input, shape index: {}]
  %s15 = inlined_call_operand.vmem [shape: f32[1,32], index: 15, kind: input, shape index: {}]
  %s16 = inlined_call_operand.vmem [shape: f32[32,64], index: 16, kind: input, shape index: {}]
  %s17 = inlined_call_operand.vmem [shape: f32[1,64], index: 17, kind: input, shape index: {}]
  %s18 = inlined_call_operand.vmem [shape: f32[64,32], index: 18, kind: input, shape index: {}]
  %s19 = inlined_call_operand.vmem [shape: f32[1,32], index: 19, kind: input, shape index: {}]
  %s20 = inlined_call_operand.vmem [shape: f32[1,32], index: 20, kind: input, shape index: {}]
  %s21 = inlined_call_operand.vmem [shape: f32[1,32], index: 21, kind: input, shape index: {}]
  %s22 = inlined_call_operand.vmem [shape: f32[16,32], index: 22, kind: output, shape index: {}]
  %s23 = sld [smem:[#allocation0]]
  $region98: #{transformer_vae_forward.9} parent=0
    _
  %s25 = ssub.s32 1, %s23
  %s26 = scalar_select 0, %s25, %s23
  // Predicated region
  $region2: #{transformer_vae_forward.9} parent=0 // pred_check
    _
  $region3: #{transformer_vae_forward.9} parent=0 // pred_check_branch
    %28 = sbr.rel (0) target = $region5
  $region4: #{transformer_vae_forward.9} parent=0 // pred_region
    _
  $region5: #{transformer_vae_forward.9} parent=0 // pred_fallthru
    _
  // Predicated region
  $region6: #{transformer_vae_forward.9} parent=0 // pred_check
    _
  $region7: #{transformer_vae_forward.9} parent=0 // pred_check_branch
    %30 = sbr.rel (0) target = $region9
  $region8: #{transformer_vae_forward.9} parent=0 // pred_region
    _
  $region9: #{transformer_vae_forward.9} parent=0 // pred_fallthru
    _
  // Predicated region
  $region10: #{transformer_vae_forward.9} parent=0 // pred_check
    _
  $region11: #{transformer_vae_forward.9} parent=0 // pred_check_branch
    %32 = sbr.rel (0) target = $region13
  $region12: #{transformer_vae_forward.9} parent=0 // pred_region
    _
  $region13: #{transformer_vae_forward.9} parent=0 // pred_fallthru
    _
  // Predicated region
  $region14: #{transformer_vae_forward.9} parent=0 // pred_check
    _
  $region15: #{transformer_vae_forward.9} parent=0 // pred_check_branch
    %34 = sbr.rel (0) target = $region17
  $region16: #{transformer_vae_forward.9} parent=0 // pred_region
    _
  $region17: #{transformer_vae_forward.9} parent=0 // pred_fallthru
    _
  // Predicated region
  $region18: #{transformer_vae_forward.9} parent=0 // pred_check
    _
  $region19: #{transformer_vae_forward.9} parent=0 // pred_check_branch
    %36 = sbr.rel (0) target = $region21
  $region20: #{transformer_vae_forward.9} parent=0 // pred_region
    _
  $region21: #{transformer_vae_forward.9} parent=0 // pred_fallthru
    _
  // Predicated region
  $region22: #{transformer_vae_forward.9} parent=0 // pred_check
    _
  $region23: #{transformer_vae_forward.9} parent=0 // pred_check_branch
    %38 = sbr.rel (0) target = $region25
  $region24: #{transformer_vae_forward.9} parent=0 // pred_region
    _
  $region25: #{transformer_vae_forward.9} parent=0 // pred_fallthru
    _
  // Predicated region
  $region26: #{transformer_vae_forward.9} parent=0 // pred_check
    _
  $region27: #{transformer_vae_forward.9} parent=0 // pred_check_branch
    %40 = sbr.rel (0) target = $region29
  $region28: #{transformer_vae_forward.9} parent=0 // pred_region
    _
  $region29: #{transformer_vae_forward.9} parent=0 // pred_fallthru
    _
  // Predicated region
  $region30: #{transformer_vae_forward.9} parent=0 // pred_check
    _
  $region31: #{transformer_vae_forward.9} parent=0 // pred_check_branch
    %42 = sbr.rel (0) target = $region33
  $region32: #{transformer_vae_forward.9} parent=0 // pred_region
    _
  $region33: #{transformer_vae_forward.9} parent=0 // pred_fallthru
    _
  // Predicated region
  $region34: #{transformer_vae_forward.9} parent=0 // pred_check
    _
  $region35: #{transformer_vae_forward.9} parent=0 // pred_check_branch
    %44 = sbr.rel (0) target = $region37
  $region36: #{transformer_vae_forward.9} parent=0 // pred_region
    _
  $region37: #{transformer_vae_forward.9} parent=0 // pred_fallthru
    _
  // Predicated region
  $region38: #{transformer_vae_forward.9} parent=0 // pred_check
    _
  $region39: #{transformer_vae_forward.9} parent=0 // pred_check_branch
    %46 = sbr.rel (0) target = $region41
  $region40: #{transformer_vae_forward.9} parent=0 // pred_region
    _
  $region41: #{transformer_vae_forward.9} parent=0 // pred_fallthru
    _
  // Predicated region
  $region42: #{transformer_vae_forward.9} parent=0 // pred_check
    _
  $region43: #{transformer_vae_forward.9} parent=0 // pred_check_branch
    %48 = sbr.rel (0) target = $region45
  $region44: #{transformer_vae_forward.9} parent=0 // pred_region
    _
  $region45: #{transformer_vae_forward.9} parent=0 // pred_fallthru
    _
  // Predicated region
  $region46: #{transformer_vae_forward.9} parent=0 // pred_check
    _
  $region47: #{transformer_vae_forward.9} parent=0 // pred_check_branch
    %50 = sbr.rel (0) target = $region49
  $region48: #{transformer_vae_forward.9} parent=0 // pred_region
    _
  $region49: #{transformer_vae_forward.9} parent=0 // pred_fallthru
    _
  // Predicated region
  $region50: #{transformer_vae_forward.9} parent=0 // pred_check
    _
  $region51: #{transformer_vae_forward.9} parent=0 // pred_check_branch
    %52 = sbr.rel (0) target = $region53
  $region52: #{transformer_vae_forward.9} parent=0 // pred_region
    _
  $region53: #{transformer_vae_forward.9} parent=0 // pred_fallthru
    _
  // Predicated region
  $region54: #{transformer_vae_forward.9} parent=0 // pred_check
    _
  $region55: #{transformer_vae_forward.9} parent=0 // pred_check_branch
    %54 = sbr.rel (0) target = $region57
  $region56: #{transformer_vae_forward.9} parent=0 // pred_region
    _
  $region57: #{transformer_vae_forward.9} parent=0 // pred_fallthru
    _
  // Predicated region
  $region58: #{transformer_vae_forward.9} parent=0 // pred_check
    _
  $region59: #{transformer_vae_forward.9} parent=0 // pred_check_branch
    %56 = sbr.rel (0) target = $region61
  $region60: #{transformer_vae_forward.9} parent=0 // pred_region
    _
  $region61: #{transformer_vae_forward.9} parent=0 // pred_fallthru
    _
  // Predicated region
  $region62: #{transformer_vae_forward.9} parent=0 // pred_check
    _
  $region63: #{transformer_vae_forward.9} parent=0 // pred_check_branch
    %58 = sbr.rel (0) target = $region65
  $region64: #{transformer_vae_forward.9} parent=0 // pred_region
    _
  $region65: #{transformer_vae_forward.9} parent=0 // pred_fallthru
    _
  // Predicated region
  $region66: #{transformer_vae_forward.9} parent=0 // pred_check
    _
  $region67: #{transformer_vae_forward.9} parent=0 // pred_check_branch
    %60 = sbr.rel (0) target = $region69
  $region68: #{transformer_vae_forward.9} parent=0 // pred_region
    _
  $region69: #{transformer_vae_forward.9} parent=0 // pred_fallthru
    _
  // Predicated region
  $region70: #{transformer_vae_forward.9} parent=0 // pred_check
    _
  $region71: #{transformer_vae_forward.9} parent=0 // pred_check_branch
    %62 = sbr.rel (0) target = $region73
  $region72: #{transformer_vae_forward.9} parent=0 // pred_region
    _
  $region73: #{transformer_vae_forward.9} parent=0 // pred_fallthru
    _
  // Predicated region
  $region74: #{transformer_vae_forward.9} parent=0 // pred_check
    _
  $region75: #{transformer_vae_forward.9} parent=0 // pred_check_branch
    %64 = sbr.rel (0) target = $region77
  $region76: #{transformer_vae_forward.9} parent=0 // pred_region
    _
  $region77: #{transformer_vae_forward.9} parent=0 // pred_fallthru
    _
  // Predicated region
  $region78: #{transformer_vae_forward.9} parent=0 // pred_check
    _
  $region79: #{transformer_vae_forward.9} parent=0 // pred_check_branch
    %66 = sbr.rel (0) target = $region81
  $region80: #{transformer_vae_forward.9} parent=0 // pred_region
    _
  $region81: #{transformer_vae_forward.9} parent=0 // pred_fallthru
    _
  // Predicated region
  $region82: #{transformer_vae_forward.9} parent=0 // pred_check
    _
  $region83: #{transformer_vae_forward.9} parent=0 // pred_check_branch
    %68 = sbr.rel (0) target = $region85
  $region84: #{transformer_vae_forward.9} parent=0 // pred_region
    _
  $region85: #{transformer_vae_forward.9} parent=0 // pred_fallthru
    _
  // Predicated region
  $region86: #{transformer_vae_forward.9} parent=0 // pred_check
    _
  $region87: #{transformer_vae_forward.9} parent=0 // pred_check_branch
    %70 = sbr.rel (0) target = $region89
  $region88: #{transformer_vae_forward.9} parent=0 // pred_region
    _
  $region89: #{transformer_vae_forward.9} parent=0 // pred_fallthru
    _
  %v71 = vld [vmem:[%s0] sm:$0xff]
  %v72 = vld [vmem:[%s0 + $0x8] sm:$0xff]
  %v73 = vld [vmem:[%s1] sm:$0xff]
  %v74 = vld [vmem:[%s1 + $0x8] sm:$0xff]
  %v75 = vld [vmem:[%s2] sm:$0xff]
  %v76 = vld [vmem:[%s2 + $0x8] sm:$0xff]
  %v77 = vld [vmem:[%s2 + $0x10] sm:$0xff]
  %v78 = vld [vmem:[%s2 + $0x18] sm:$0xff]
  %v79 = vld [vmem:[%s3] sm:$0x1]
  %v81 = vlaneseq
  %v82 = vshrl.u32 %v81, 7
  %v83 = vsub.s32 0, %v82
  %v84 = vrot.slane %v79, %v83
  %vm86 = vcmask 261120
  %v88 = vsel %vm86, %v71, 0
  %v91 = vsel %vm86, %v72, 0
  %93 = vmatprep.subr.mxu0 0.0
  %94 = vmatpush1.msra.mxu0 %v75
  %95 = vmatprep.subr.mxu0 0.0
  %96 = vmatpush1.msra.mxu0 %v76
  %97 = vmatprep.subr.mxu0 0.0
  %98 = vmatpush1.msra.mxu0 %v77
  %99 = vmatprep.subr.mxu0 0.0
  %100 = vmatpush1.msra.mxu0 %v78
  %101 = vmatprep.subr.mxu0 0.0
  %102 = vmatpush1.msra.mxu0 0.0
  %103 = vmatprep.subr.mxu0 0.0
  %104 = vmatpush1.msra.mxu0 0.0
  %105 = vmatprep.subr.mxu0 0.0
  %106 = vmatpush1.msra.mxu0 0.0
  %107 = vmatprep.subr.mxu0 0.0
  %108 = vmatpush1.msra.mxu0 0.0
  %109 = vmatprep.subr.mxu0 0.0
  %110 = vmatpush1.msra.mxu0 0.0
  %111 = vmatprep.subr.mxu0 0.0
  %112 = vmatpush1.msra.mxu0 0.0
  %113 = vmatprep.subr.mxu0 0.0
  %114 = vmatpush1.msra.mxu0 0.0
  %115 = vmatprep.subr.mxu0 0.0
  %116 = vmatpush1.msra.mxu0 0.0
  %117 = vmatprep.subr.mxu0 0.0
  %118 = vmatpush1.msra.mxu0 0.0
  %119 = vmatprep.subr.mxu0 0.0
  %120 = vmatpush1.msra.mxu0 0.0
  %121 = vmatprep.subr.mxu0 0.0
  %122 = vmatpush1.msra.mxu0 0.0
  %123 = vmatprep.subr.mxu0 0.0
  %124 = vmatpush1.msra.mxu0 0.0
  %125 = vmatprep.subr.mxu0 0.0
  %126 = vmatpush1.msra.mxu0 0.0
  %127 = vmatprep.subr.mxu0 0.0
  %128 = vmatpush1.msra.mxu0 0.0
  %129 = vmatprep.subr.mxu0 0.0
  %130 = vmatpush1.msra.mxu0 0.0
  %131 = vmatprep.subr.mxu0 0.0
  %132 = vmatpush1.msra.mxu0 0.0
  %133 = vmatprep.subr.mxu0 0.0
  %134 = vmatpush1.msra.mxu0 0.0
  %135 = vmatprep.subr.mxu0 0.0
  %136 = vmatpush1.msra.mxu0 0.0
  %137 = vmatprep.subr.mxu0 0.0
  %138 = vmatpush1.msra.mxu0 0.0
  %139 = vmatprep.subr.mxu0 0.0
  %140 = vmatpush1.msra.mxu0 0.0
  %141 = vmatprep.subr.mxu0 0.0
  %142 = vmatpush1.msra.mxu0 0.0
  %143 = vmatprep.subr.mxu0 0.0
  %144 = vmatpush1.msra.mxu0 0.0
  %145 = vmatprep.subr.mxu0 0.0
  %146 = vmatpush1.msra.mxu0 0.0
  %147 = vmatprep.subr.mxu0 0.0
  %148 = vmatpush1.msra.mxu0 0.0
  %149 = vmatprep.subr.mxu0 0.0
  %150 = vmatpush1.msra.mxu0 0.0
  %151 = vmatprep.subr.mxu0 0.0
  %152 = vmatpush1.msra.mxu0 0.0
  %153 = vmatprep.subr.mxu0 0.0
  %154 = vmatpush1.msra.mxu0 0.0
  %155 = vmatprep.subr.mxu0 0.0
  %156 = vmatpush1.msra.mxu0 0.0
  %157 = vmatprep.mubr.f32.mxu0 0.0
  %158 = vmatmul.mubr.f32.gmra.mrb[0].mxu0 %v88
  %v159 = vpop.f32.mrb[0].mxu0
  %v160 = vadd.f32 %v84, %v159
  %v161 = vpop.f32.mrb[0].mxu0
  %162 = vmatprep.mubr.f32.mxu0 0.0
  %163 = vmatmul.mubr.f32.gmra.mrb[0].mxu0 %v91
  %v164 = vpop.f32.mrb[0].mxu0
  %v165 = vadd.f32 %v84, %v164
  %v166 = vpop.f32.mrb[0].mxu0
  %167 = vdwg.mxu0
  %169 = vrot.lane.b32.xlu0 %v160, 96
  %v170 = vpop.permute.xlu0 %169
  %vm171 = vcmask 64512
  %v172 = vsel %vm171, %v160, 0
  %v174 = vsel %vm171, %v170, 0
  %176 = vmatprep.subr.mxu0 0.0
  %177 = vmatpush1.xpose.msra.mxu0 %v174
  %178 = vmatprep.subr.mxu0 0.0
  %179 = vmatpush1.xpose.msra.mxu0 0.0
  %180 = vmatprep.subr.mxu0 0.0
  %181 = vmatpush1.xpose.msra.mxu0 0.0
  %182 = vmatprep.subr.mxu0 0.0
  %183 = vmatpush1.xpose.msra.mxu0 0.0
  %184 = vmatprep.subr.mxu0 0.0
  %185 = vmatpush1.xpose.msra.mxu0 0.0
  %186 = vmatprep.subr.mxu0 0.0
  %187 = vmatpush1.xpose.msra.mxu0 0.0
  %188 = vmatprep.subr.mxu0 0.0
  %189 = vmatpush1.xpose.msra.mxu0 0.0
  %190 = vmatprep.subr.mxu0 0.0
  %191 = vmatpush1.xpose.msra.mxu0 0.0
  %192 = vmatprep.subr.mxu0 0.0
  %193 = vmatpush1.xpose.msra.mxu0 0.0
  %194 = vmatprep.subr.mxu0 0.0
  %195 = vmatpush1.xpose.msra.mxu0 0.0
  %196 = vmatprep.subr.mxu0 0.0
  %197 = vmatpush1.xpose.msra.mxu0 0.0
  %198 = vmatprep.subr.mxu0 0.0
  %199 = vmatpush1.xpose.msra.mxu0 0.0
  %200 = vmatprep.subr.mxu0 0.0
  %201 = vmatpush1.xpose.msra.mxu0 0.0
  %202 = vmatprep.subr.mxu0 0.0
  %203 = vmatpush1.xpose.msra.mxu0 0.0
  %204 = vmatprep.subr.mxu0 0.0
  %205 = vmatpush1.xpose.msra.mxu0 0.0
  %206 = vmatprep.subr.mxu0 0.0
  %207 = vmatpush1.xpose.msra.mxu0 0.0
  %208 = vmatprep.subr.mxu0 0.0
  %209 = vmatpush1.xpose.msra.mxu0 0.0
  %210 = vmatprep.subr.mxu0 0.0
  %211 = vmatpush1.xpose.msra.mxu0 0.0
  %212 = vmatprep.subr.mxu0 0.0
  %213 = vmatpush1.xpose.msra.mxu0 0.0
  %214 = vmatprep.subr.mxu0 0.0
  %215 = vmatpush1.xpose.msra.mxu0 0.0
  %216 = vmatprep.subr.mxu0 0.0
  %217 = vmatpush1.xpose.msra.mxu0 0.0
  %218 = vmatprep.subr.mxu0 0.0
  %219 = vmatpush1.xpose.msra.mxu0 0.0
  %220 = vmatprep.subr.mxu0 0.0
  %221 = vmatpush1.xpose.msra.mxu0 0.0
  %222 = vmatprep.subr.mxu0 0.0
  %223 = vmatpush1.xpose.msra.mxu0 0.0
  %224 = vmatprep.subr.mxu0 0.0
  %225 = vmatpush1.xpose.msra.mxu0 0.0
  %226 = vmatprep.subr.mxu0 0.0
  %227 = vmatpush1.xpose.msra.mxu0 0.0
  %228 = vmatprep.subr.mxu0 0.0
  %229 = vmatpush1.xpose.msra.mxu0 0.0
  %230 = vmatprep.subr.mxu0 0.0
  %231 = vmatpush1.xpose.msra.mxu0 0.0
  %232 = vmatprep.subr.mxu0 0.0
  %233 = vmatpush1.xpose.msra.mxu0 0.0
  %234 = vmatprep.subr.mxu0 0.0
  %235 = vmatpush1.xpose.msra.mxu0 0.0
  %236 = vmatprep.subr.mxu0 0.0
  %237 = vmatpush1.xpose.msra.mxu0 0.0
  %238 = vmatprep.subr.mxu0 0.0
  %239 = vmatpush1.xpose.msra.mxu0 0.0
  %240 = vmatprep.mubr.f32.mxu0 0.0
  %241 = vmatmul.mubr.f32.gmra.mrb[0].mxu0 %v172
  %v242 = vpop.f32.mrb[0].mxu0
  %v243 = vadd.f32 0.0, %v242
  %v244 = vpop.f32.mrb[0].mxu0
  %245 = vdwg.mxu0
  %247 = vrot.lane.b32.xlu0 %v165, 96
  %v248 = vpop.permute.xlu0 %247
  %v249 = vsel %vm171, %v165, 0
  %v251 = vsel %vm171, %v248, 0
  %253 = vmatprep.subr.mxu0 0.0
  %254 = vmatpush1.xpose.msra.mxu0 %v251
  %255 = vmatprep.subr.mxu0 0.0
  %256 = vmatpush1.xpose.msra.mxu0 0.0
  %257 = vmatprep.subr.mxu0 0.0
  %258 = vmatpush1.xpose.msra.mxu0 0.0
  %259 = vmatprep.subr.mxu0 0.0
  %260 = vmatpush1.xpose.msra.mxu0 0.0
  %261 = vmatprep.subr.mxu0 0.0
  %262 = vmatpush1.xpose.msra.mxu0 0.0
  %263 = vmatprep.subr.mxu0 0.0
  %264 = vmatpush1.xpose.msra.mxu0 0.0
  %265 = vmatprep.subr.mxu0 0.0
  %266 = vmatpush1.xpose.msra.mxu0 0.0
  %267 = vmatprep.subr.mxu0 0.0
  %268 = vmatpush1.xpose.msra.mxu0 0.0
  %269 = vmatprep.subr.mxu0 0.0
  %270 = vmatpush1.xpose.msra.mxu0 0.0
  %271 = vmatprep.subr.mxu0 0.0
  %272 = vmatpush1.xpose.msra.mxu0 0.0
  %273 = vmatprep.subr.mxu0 0.0
  %274 = vmatpush1.xpose.msra.mxu0 0.0
  %275 = vmatprep.subr.mxu0 0.0
  %276 = vmatpush1.xpose.msra.mxu0 0.0
  %277 = vmatprep.subr.mxu0 0.0
  %278 = vmatpush1.xpose.msra.mxu0 0.0
  %279 = vmatprep.subr.mxu0 0.0
  %280 = vmatpush1.xpose.msra.mxu0 0.0
  %281 = vmatprep.subr.mxu0 0.0
  %282 = vmatpush1.xpose.msra.mxu0 0.0
  %283 = vmatprep.subr.mxu0 0.0
  %284 = vmatpush1.xpose.msra.mxu0 0.0
  %285 = vmatprep.subr.mxu0 0.0
  %286 = vmatpush1.xpose.msra.mxu0 0.0
  %287 = vmatprep.subr.mxu0 0.0
  %288 = vmatpush1.xpose.msra.mxu0 0.0
  %289 = vmatprep.subr.mxu0 0.0
  %290 = vmatpush1.xpose.msra.mxu0 0.0
  %291 = vmatprep.subr.mxu0 0.0
  %292 = vmatpush1.xpose.msra.mxu0 0.0
  %293 = vmatprep.subr.mxu0 0.0
  %294 = vmatpush1.xpose.msra.mxu0 0.0
  %295 = vmatprep.subr.mxu0 0.0
  %296 = vmatpush1.xpose.msra.mxu0 0.0
  %297 = vmatprep.subr.mxu0 0.0
  %298 = vmatpush1.xpose.msra.mxu0 0.0
  %299 = vmatprep.subr.mxu0 0.0
  %300 = vmatpush1.xpose.msra.mxu0 0.0
  %301 = vmatprep.subr.mxu0 0.0
  %302 = vmatpush1.xpose.msra.mxu0 0.0
  %303 = vmatprep.subr.mxu0 0.0
  %304 = vmatpush1.xpose.msra.mxu0 0.0
  %305 = vmatprep.subr.mxu0 0.0
  %306 = vmatpush1.xpose.msra.mxu0 0.0
  %307 = vmatprep.subr.mxu0 0.0
  %308 = vmatpush1.xpose.msra.mxu0 0.0
  %309 = vmatprep.subr.mxu0 0.0
  %310 = vmatpush1.xpose.msra.mxu0 0.0
  %311 = vmatprep.subr.mxu0 0.0
  %312 = vmatpush1.xpose.msra.mxu0 0.0
  %313 = vmatprep.subr.mxu0 0.0
  %314 = vmatpush1.xpose.msra.mxu0 0.0
  %315 = vmatprep.subr.mxu0 0.0
  %316 = vmatpush1.xpose.msra.mxu0 0.0
  %317 = vmatprep.mubr.f32.mxu0 0.0
  %318 = vmatmul.mubr.f32.gmra.mrb[0].mxu0 %v249
  %v319 = vpop.f32.mrb[0].mxu0
  %v320 = vadd.f32 0.0, %v319
  %v321 = vpop.f32.mrb[0].mxu0
  %322 = vdwg.mxu0
  %v323 = vmul.f32 %v243, 0.35355338
  %v324 = vmul.f32 %v320, 0.35355338
  %v325 = vsel %vm171, %v323, -inf
  %326 = vmax.xlane.f32.xlu0 %v325
  %v327 = vpop.xlane.xlu0 %326
  %v328 = vsel %vm171, %v324, -inf
  %329 = vmax.xlane.f32.xlu0 %v328
  %v330 = vpop.xlane.xlu0 %329
  %v331 = vsub.f32 %v323, %v327
  %v332 = vsub.f32 %v324, %v330
  %v333 = vmul.f32 %v331, 1.442695
  %v334 = vpow.pop %v333
  %v335 = vmul.f32 %v332, 1.442695
  %v336 = vpow.pop %v335
  %v337 = vsel %vm171, %v334, 0.0
  %338 = vadd.xlane.f32.xlu0 %v337
  %v339 = vpop.xlane.xlu0 %338
  %v340 = vsel %vm171, %v336, 0.0
  %341 = vadd.xlane.f32.xlu0 %v340
  %v342 = vpop.xlane.xlu0 %341
  %v343 = vrcp.pop %v339
  %v344 = vrcp.pop %v342
  %v345 = vmul.f32 %v334, %v343
  %v346 = vmul.f32 %v336, %v344
  %347 = vrot.lane.b32.xlu0 %v160, 64
  %v348 = vpop.permute.xlu0 %347
  %v351 = vsel %vm171, %v345, 0
  %353 = vmatprep.subr.mxu0 0.0
  %354 = vmatpush1.msra.mxu0 %v348
  %355 = vmatprep.subr.mxu0 0.0
  %356 = vmatpush1.msra.mxu0 0.0
  %357 = vmatprep.subr.mxu0 0.0
  %358 = vmatpush1.msra.mxu0 0.0
  %359 = vmatprep.subr.mxu0 0.0
  %360 = vmatpush1.msra.mxu0 0.0
  %361 = vmatprep.subr.mxu0 0.0
  %362 = vmatpush1.msra.mxu0 0.0
  %363 = vmatprep.subr.mxu0 0.0
  %364 = vmatpush1.msra.mxu0 0.0
  %365 = vmatprep.subr.mxu0 0.0
  %366 = vmatpush1.msra.mxu0 0.0
  %367 = vmatprep.subr.mxu0 0.0
  %368 = vmatpush1.msra.mxu0 0.0
  %369 = vmatprep.subr.mxu0 0.0
  %370 = vmatpush1.msra.mxu0 0.0
  %371 = vmatprep.subr.mxu0 0.0
  %372 = vmatpush1.msra.mxu0 0.0
  %373 = vmatprep.subr.mxu0 0.0
  %374 = vmatpush1.msra.mxu0 0.0
  %375 = vmatprep.subr.mxu0 0.0
  %376 = vmatpush1.msra.mxu0 0.0
  %377 = vmatprep.subr.mxu0 0.0
  %378 = vmatpush1.msra.mxu0 0.0
  %379 = vmatprep.subr.mxu0 0.0
  %380 = vmatpush1.msra.mxu0 0.0
  %381 = vmatprep.subr.mxu0 0.0
  %382 = vmatpush1.msra.mxu0 0.0
  %383 = vmatprep.subr.mxu0 0.0
  %384 = vmatpush1.msra.mxu0 0.0
  %385 = vmatprep.subr.mxu0 0.0
  %386 = vmatpush1.msra.mxu0 0.0
  %387 = vmatprep.subr.mxu0 0.0
  %388 = vmatpush1.msra.mxu0 0.0
  %389 = vmatprep.subr.mxu0 0.0
  %390 = vmatpush1.msra.mxu0 0.0
  %391 = vmatprep.subr.mxu0 0.0
  %392 = vmatpush1.msra.mxu0 0.0
  %393 = vmatprep.subr.mxu0 0.0
  %394 = vmatpush1.msra.mxu0 0.0
  %395 = vmatprep.subr.mxu0 0.0
  %396 = vmatpush1.msra.mxu0 0.0
  %397 = vmatprep.subr.mxu0 0.0
  %398 = vmatpush1.msra.mxu0 0.0
  %399 = vmatprep.subr.mxu0 0.0
  %400 = vmatpush1.msra.mxu0 0.0
  %401 = vmatprep.subr.mxu0 0.0
  %402 = vmatpush1.msra.mxu0 0.0
  %403 = vmatprep.subr.mxu0 0.0
  %404 = vmatpush1.msra.mxu0 0.0
  %405 = vmatprep.subr.mxu0 0.0
  %406 = vmatpush1.msra.mxu0 0.0
  %407 = vmatprep.subr.mxu0 0.0
  %408 = vmatpush1.msra.mxu0 0.0
  %409 = vmatprep.subr.mxu0 0.0
  %410 = vmatpush1.msra.mxu0 0.0
  %411 = vmatprep.subr.mxu0 0.0
  %412 = vmatpush1.msra.mxu0 0.0
  %413 = vmatprep.subr.mxu0 0.0
  %414 = vmatpush1.msra.mxu0 0.0
  %415 = vmatprep.subr.mxu0 0.0
  %416 = vmatpush1.msra.mxu0 0.0
  %417 = vmatprep.mubr.f32.mxu0 0.0
  %418 = vmatmul.mubr.f32.gmra.mrb[0].mxu0 %v351
  %v419 = vpop.f32.mrb[0].mxu0
  %v420 = vadd.f32 0.0, %v419
  %v421 = vpop.f32.mrb[0].mxu0
  %422 = vdwg.mxu0
  %423 = vrot.lane.b32.xlu0 %v165, 64
  %v424 = vpop.permute.xlu0 %423
  %v427 = vsel %vm171, %v346, 0
  %429 = vmatprep.subr.mxu0 0.0
  %430 = vmatpush1.msra.mxu0 %v424
  %431 = vmatprep.subr.mxu0 0.0
  %432 = vmatpush1.msra.mxu0 0.0
  %433 = vmatprep.subr.mxu0 0.0
  %434 = vmatpush1.msra.mxu0 0.0
  %435 = vmatprep.subr.mxu0 0.0
  %436 = vmatpush1.msra.mxu0 0.0
  %437 = vmatprep.subr.mxu0 0.0
  %438 = vmatpush1.msra.mxu0 0.0
  %439 = vmatprep.subr.mxu0 0.0
  %440 = vmatpush1.msra.mxu0 0.0
  %441 = vmatprep.subr.mxu0 0.0
  %442 = vmatpush1.msra.mxu0 0.0
  %443 = vmatprep.subr.mxu0 0.0
  %444 = vmatpush1.msra.mxu0 0.0
  %445 = vmatprep.subr.mxu0 0.0
  %446 = vmatpush1.msra.mxu0 0.0
  %447 = vmatprep.subr.mxu0 0.0
  %448 = vmatpush1.msra.mxu0 0.0
  %449 = vmatprep.subr.mxu0 0.0
  %450 = vmatpush1.msra.mxu0 0.0
  %451 = vmatprep.subr.mxu0 0.0
  %452 = vmatpush1.msra.mxu0 0.0
  %453 = vmatprep.subr.mxu0 0.0
  %454 = vmatpush1.msra.mxu0 0.0
  %455 = vmatprep.subr.mxu0 0.0
  %456 = vmatpush1.msra.mxu0 0.0
  %457 = vmatprep.subr.mxu0 0.0
  %458 = vmatpush1.msra.mxu0 0.0
  %459 = vmatprep.subr.mxu0 0.0
  %460 = vmatpush1.msra.mxu0 0.0
  %461 = vmatprep.subr.mxu0 0.0
  %462 = vmatpush1.msra.mxu0 0.0
  %463 = vmatprep.subr.mxu0 0.0
  %464 = vmatpush1.msra.mxu0 0.0
  %465 = vmatprep.subr.mxu0 0.0
  %466 = vmatpush1.msra.mxu0 0.0
  %467 = vmatprep.subr.mxu0 0.0
  %468 = vmatpush1.msra.mxu0 0.0
  %469 = vmatprep.subr.mxu0 0.0
  %470 = vmatpush1.msra.mxu0 0.0
  %471 = vmatprep.subr.mxu0 0.0
  %472 = vmatpush1.msra.mxu0 0.0
  %473 = vmatprep.subr.mxu0 0.0
  %474 = vmatpush1.msra.mxu0 0.0
  %475 = vmatprep.subr.mxu0 0.0
  %476 = vmatpush1.msra.mxu0 0.0
  %477 = vmatprep.subr.mxu0 0.0
  %478 = vmatpush1.msra.mxu0 0.0
  %479 = vmatprep.subr.mxu0 0.0
  %480 = vmatpush1.msra.mxu0 0.0
  %481 = vmatprep.subr.mxu0 0.0
  %482 = vmatpush1.msra.mxu0 0.0
  %483 = vmatprep.subr.mxu0 0.0
  %484 = vmatpush1.msra.mxu0 0.0
  %485 = vmatprep.subr.mxu0 0.0
  %486 = vmatpush1.msra.mxu0 0.0
  %487 = vmatprep.subr.mxu0 0.0
  %488 = vmatpush1.msra.mxu0 0.0
  %489 = vmatprep.subr.mxu0 0.0
  %490 = vmatpush1.msra.mxu0 0.0
  %491 = vmatprep.subr.mxu0 0.0
  %492 = vmatpush1.msra.mxu0 0.0
  %493 = vmatprep.mubr.f32.mxu0 0.0
  %494 = vmatmul.mubr.f32.gmra.mrb[0].mxu0 %v427
  %v495 = vpop.f32.mrb[0].mxu0
  %v496 = vadd.f32 0.0, %v495
  %v497 = vpop.f32.mrb[0].mxu0
  %498 = vdwg.mxu0
  %499 = vrot.lane.b32.xlu0 %v160, 120
  %v500 = vpop.permute.xlu0 %499
  %501 = vrot.lane.b32.xlu0 %v160, 88
  %v502 = vpop.permute.xlu0 %501
  %v503 = vsel %vm171, %v500, 0
  %v505 = vsel %vm171, %v502, 0
  %507 = vmatprep.subr.mxu0 0.0
  %508 = vmatpush1.xpose.msra.mxu0 %v505
  %509 = vmatprep.subr.mxu0 0.0
  %510 = vmatpush1.xpose.msra.mxu0 0.0
  %511 = vmatprep.subr.mxu0 0.0
  %512 = vmatpush1.xpose.msra.mxu0 0.0
  %513 = vmatprep.subr.mxu0 0.0
  %514 = vmatpush1.xpose.msra.mxu0 0.0
  %515 = vmatprep.subr.mxu0 0.0
  %516 = vmatpush1.xpose.msra.mxu0 0.0
  %517 = vmatprep.subr.mxu0 0.0
  %518 = vmatpush1.xpose.msra.mxu0 0.0
  %519 = vmatprep.subr.mxu0 0.0
  %520 = vmatpush1.xpose.msra.mxu0 0.0
  %521 = vmatprep.subr.mxu0 0.0
  %522 = vmatpush1.xpose.msra.mxu0 0.0
  %523 = vmatprep.subr.mxu0 0.0
  %524 = vmatpush1.xpose.msra.mxu0 0.0
  %525 = vmatprep.subr.mxu0 0.0
  %526 = vmatpush1.xpose.msra.mxu0 0.0
  %527 = vmatprep.subr.mxu0 0.0
  %528 = vmatpush1.xpose.msra.mxu0 0.0
  %529 = vmatprep.subr.mxu0 0.0
  %530 = vmatpush1.xpose.msra.mxu0 0.0
  %531 = vmatprep.subr.mxu0 0.0
  %532 = vmatpush1.xpose.msra.mxu0 0.0
  %533 = vmatprep.subr.mxu0 0.0
  %534 = vmatpush1.xpose.msra.mxu0 0.0
  %535 = vmatprep.subr.mxu0 0.0
  %536 = vmatpush1.xpose.msra.mxu0 0.0
  %537 = vmatprep.subr.mxu0 0.0
  %538 = vmatpush1.xpose.msra.mxu0 0.0
  %539 = vmatprep.subr.mxu0 0.0
  %540 = vmatpush1.xpose.msra.mxu0 0.0
  %541 = vmatprep.subr.mxu0 0.0
  %542 = vmatpush1.xpose.msra.mxu0 0.0
  %543 = vmatprep.subr.mxu0 0.0
  %544 = vmatpush1.xpose.msra.mxu0 0.0
  %545 = vmatprep.subr.mxu0 0.0
  %546 = vmatpush1.xpose.msra.mxu0 0.0
  %547 = vmatprep.subr.mxu0 0.0
  %548 = vmatpush1.xpose.msra.mxu0 0.0
  %549 = vmatprep.subr.mxu0 0.0
  %550 = vmatpush1.xpose.msra.mxu0 0.0
  %551 = vmatprep.subr.mxu0 0.0
  %552 = vmatpush1.xpose.msra.mxu0 0.0
  %553 = vmatprep.subr.mxu0 0.0
  %554 = vmatpush1.xpose.msra.mxu0 0.0
  %555 = vmatprep.subr.mxu0 0.0
  %556 = vmatpush1.xpose.msra.mxu0 0.0
  %557 = vmatprep.subr.mxu0 0.0
  %558 = vmatpush1.xpose.msra.mxu0 0.0
  %559 = vmatprep.subr.mxu0 0.0
  %560 = vmatpush1.xpose.msra.mxu0 0.0
  %561 = vmatprep.subr.mxu0 0.0
  %562 = vmatpush1.xpose.msra.mxu0 0.0
  %563 = vmatprep.subr.mxu0 0.0
  %564 = vmatpush1.xpose.msra.mxu0 0.0
  %565 = vmatprep.subr.mxu0 0.0
  %566 = vmatpush1.xpose.msra.mxu0 0.0
  %567 = vmatprep.subr.mxu0 0.0
  %568 = vmatpush1.xpose.msra.mxu0 0.0
  %569 = vmatprep.subr.mxu0 0.0
  %570 = vmatpush1.xpose.msra.mxu0 0.0
  %571 = vmatprep.mubr.f32.mxu0 0.0
  %572 = vmatmul.mubr.f32.gmra.mrb[0].mxu0 %v503
  %v573 = vpop.f32.mrb[0].mxu0
  %v574 = vadd.f32 0.0, %v573
  %v575 = vpop.f32.mrb[0].mxu0
  %576 = vdwg.mxu0
  %577 = vrot.lane.b32.xlu0 %v165, 120
  %v578 = vpop.permute.xlu0 %577
  %579 = vrot.lane.b32.xlu0 %v165, 88
  %v580 = vpop.permute.xlu0 %579
  %v581 = vsel %vm171, %v578, 0
  %v583 = vsel %vm171, %v580, 0
  %585 = vmatprep.subr.mxu0 0.0
  %586 = vmatpush1.xpose.msra.mxu0 %v583
  %587 = vmatprep.subr.mxu0 0.0
  %588 = vmatpush1.xpose.msra.mxu0 0.0
  %589 = vmatprep.subr.mxu0 0.0
  %590 = vmatpush1.xpose.msra.mxu0 0.0
  %591 = vmatprep.subr.mxu0 0.0
  %592 = vmatpush1.xpose.msra.mxu0 0.0
  %593 = vmatprep.subr.mxu0 0.0
  %594 = vmatpush1.xpose.msra.mxu0 0.0
  %595 = vmatprep.subr.mxu0 0.0
  %596 = vmatpush1.xpose.msra.mxu0 0.0
  %597 = vmatprep.subr.mxu0 0.0
  %598 = vmatpush1.xpose.msra.mxu0 0.0
  %599 = vmatprep.subr.mxu0 0.0
  %600 = vmatpush1.xpose.msra.mxu0 0.0
  %601 = vmatprep.subr.mxu0 0.0
  %602 = vmatpush1.xpose.msra.mxu0 0.0
  %603 = vmatprep.subr.mxu0 0.0
  %604 = vmatpush1.xpose.msra.mxu0 0.0
  %605 = vmatprep.subr.mxu0 0.0
  %606 = vmatpush1.xpose.msra.mxu0 0.0
  %607 = vmatprep.subr.mxu0 0.0
  %608 = vmatpush1.xpose.msra.mxu0 0.0
  %609 = vmatprep.subr.mxu0 0.0
  %610 = vmatpush1.xpose.msra.mxu0 0.0
  %611 = vmatprep.subr.mxu0 0.0
  %612 = vmatpush1.xpose.msra.mxu0 0.0
  %613 = vmatprep.subr.mxu0 0.0
  %614 = vmatpush1.xpose.msra.mxu0 0.0
  %615 = vmatprep.subr.mxu0 0.0
  %616 = vmatpush1.xpose.msra.mxu0 0.0
  %617 = vmatprep.subr.mxu0 0.0
  %618 = vmatpush1.xpose.msra.mxu0 0.0
  %619 = vmatprep.subr.mxu0 0.0
  %620 = vmatpush1.xpose.msra.mxu0 0.0
  %621 = vmatprep.subr.mxu0 0.0
  %622 = vmatpush1.xpose.msra.mxu0 0.0
  %623 = vmatprep.subr.mxu0 0.0
  %624 = vmatpush1.xpose.msra.mxu0 0.0
  %625 = vmatprep.subr.mxu0 0.0
  %626 = vmatpush1.xpose.msra.mxu0 0.0
  %627 = vmatprep.subr.mxu0 0.0
  %628 = vmatpush1.xpose.msra.mxu0 0.0
  %629 = vmatprep.subr.mxu0 0.0
  %630 = vmatpush1.xpose.msra.mxu0 0.0
  %631 = vmatprep.subr.mxu0 0.0
  %632 = vmatpush1.xpose.msra.mxu0 0.0
  %633 = vmatprep.subr.mxu0 0.0
  %634 = vmatpush1.xpose.msra.mxu0 0.0
  %635 = vmatprep.subr.mxu0 0.0
  %636 = vmatpush1.xpose.msra.mxu0 0.0
  %637 = vmatprep.subr.mxu0 0.0
  %638 = vmatpush1.xpose.msra.mxu0 0.0
  %639 = vmatprep.subr.mxu0 0.0
  %640 = vmatpush1.xpose.msra.mxu0 0.0
  %641 = vmatprep.subr.mxu0 0.0
  %642 = vmatpush1.xpose.msra.mxu0 0.0
  %643 = vmatprep.subr.mxu0 0.0
  %644 = vmatpush1.xpose.msra.mxu0 0.0
  %645 = vmatprep.subr.mxu0 0.0
  %646 = vmatpush1.xpose.msra.mxu0 0.0
  %647 = vmatprep.subr.mxu0 0.0
  %648 = vmatpush1.xpose.msra.mxu0 0.0
  %649 = vmatprep.mubr.f32.mxu0 0.0
  %650 = vmatmul.mubr.f32.gmra.mrb[0].mxu0 %v581
  %v651 = vpop.f32.mrb[0].mxu0
  %v652 = vadd.f32 0.0, %v651
  %v653 = vpop.f32.mrb[0].mxu0
  %654 = vdwg.mxu0
  %v655 = vmul.f32 %v574, 0.35355338
  %v656 = vmul.f32 %v652, 0.35355338
  %v657 = vsel %vm171, %v655, -inf
  %658 = vmax.xlane.f32.xlu0 %v657
  %v659 = vpop.xlane.xlu0 %658
  %v660 = vsel %vm171, %v656, -inf
  %661 = vmax.xlane.f32.xlu0 %v660
  %v662 = vpop.xlane.xlu0 %661
  %v663 = vsub.f32 %v655, %v659
  %v664 = vsub.f32 %v656, %v662
  %v665 = vmul.f32 %v663, 1.442695
  %v666 = vpow.pop %v665
  %v667 = vmul.f32 %v664, 1.442695
  %v668 = vpow.pop %v667
  %v669 = vsel %vm171, %v666, 0.0
  %670 = vadd.xlane.f32.xlu0 %v669
  %v671 = vpop.xlane.xlu0 %670
  %v672 = vsel %vm171, %v668, 0.0
  %673 = vadd.xlane.f32.xlu0 %v672
  %v674 = vpop.xlane.xlu0 %673
  %v675 = vrcp.pop %v671
  %v676 = vrcp.pop %v674
  %v677 = vmul.f32 %v666, %v675
  %v678 = vmul.f32 %v668, %v676
  %679 = vrot.lane.b32.xlu0 %v160, 56
  %v680 = vpop.permute.xlu0 %679
  %v683 = vsel %vm171, %v677, 0
  %685 = vmatprep.subr.mxu0 0.0
  %686 = vmatpush1.msra.mxu0 %v680
  %687 = vmatprep.subr.mxu0 0.0
  %688 = vmatpush1.msra.mxu0 0.0
  %689 = vmatprep.subr.mxu0 0.0
  %690 = vmatpush1.msra.mxu0 0.0
  %691 = vmatprep.subr.mxu0 0.0
  %692 = vmatpush1.msra.mxu0 0.0
  %693 = vmatprep.subr.mxu0 0.0
  %694 = vmatpush1.msra.mxu0 0.0
  %695 = vmatprep.subr.mxu0 0.0
  %696 = vmatpush1.msra.mxu0 0.0
  %697 = vmatprep.subr.mxu0 0.0
  %698 = vmatpush1.msra.mxu0 0.0
  %699 = vmatprep.subr.mxu0 0.0
  %700 = vmatpush1.msra.mxu0 0.0
  %701 = vmatprep.subr.mxu0 0.0
  %702 = vmatpush1.msra.mxu0 0.0
  %703 = vmatprep.subr.mxu0 0.0
  %704 = vmatpush1.msra.mxu0 0.0
  %705 = vmatprep.subr.mxu0 0.0
  %706 = vmatpush1.msra.mxu0 0.0
  %707 = vmatprep.subr.mxu0 0.0
  %708 = vmatpush1.msra.mxu0 0.0
  %709 = vmatprep.subr.mxu0 0.0
  %710 = vmatpush1.msra.mxu0 0.0
  %711 = vmatprep.subr.mxu0 0.0
  %712 = vmatpush1.msra.mxu0 0.0
  %713 = vmatprep.subr.mxu0 0.0
  %714 = vmatpush1.msra.mxu0 0.0
  %715 = vmatprep.subr.mxu0 0.0
  %716 = vmatpush1.msra.mxu0 0.0
  %717 = vmatprep.subr.mxu0 0.0
  %718 = vmatpush1.msra.mxu0 0.0
  %719 = vmatprep.subr.mxu0 0.0
  %720 = vmatpush1.msra.mxu0 0.0
  %721 = vmatprep.subr.mxu0 0.0
  %722 = vmatpush1.msra.mxu0 0.0
  %723 = vmatprep.subr.mxu0 0.0
  %724 = vmatpush1.msra.mxu0 0.0
  %725 = vmatprep.subr.mxu0 0.0
  %726 = vmatpush1.msra.mxu0 0.0
  %727 = vmatprep.subr.mxu0 0.0
  %728 = vmatpush1.msra.mxu0 0.0
  %729 = vmatprep.subr.mxu0 0.0
  %730 = vmatpush1.msra.mxu0 0.0
  %731 = vmatprep.subr.mxu0 0.0
  %732 = vmatpush1.msra.mxu0 0.0
  %733 = vmatprep.subr.mxu0 0.0
  %734 = vmatpush1.msra.mxu0 0.0
  %735 = vmatprep.subr.mxu0 0.0
  %736 = vmatpush1.msra.mxu0 0.0
  %737 = vmatprep.subr.mxu0 0.0
  %738 = vmatpush1.msra.mxu0 0.0
  %739 = vmatprep.subr.mxu0 0.0
  %740 = vmatpush1.msra.mxu0 0.0
  %741 = vmatprep.subr.mxu0 0.0
  %742 = vmatpush1.msra.mxu0 0.0
  %743 = vmatprep.subr.mxu0 0.0
  %744 = vmatpush1.msra.mxu0 0.0
  %745 = vmatprep.subr.mxu0 0.0
  %746 = vmatpush1.msra.mxu0 0.0
  %747 = vmatprep.subr.mxu0 0.0
  %748 = vmatpush1.msra.mxu0 0.0
  %749 = vmatprep.mubr.f32.mxu0 0.0
  %750 = vmatmul.mubr.f32.gmra.mrb[0].mxu0 %v683
  %v751 = vpop.f32.mrb[0].mxu0
  %v752 = vadd.f32 0.0, %v751
  %v753 = vpop.f32.mrb[0].mxu0
  %754 = vdwg.mxu0
  %755 = vrot.lane.b32.xlu0 %v165, 56
  %v756 = vpop.permute.xlu0 %755
  %v759 = vsel %vm171, %v678, 0
  %761 = vmatprep.subr.mxu0 0.0
  %762 = vmatpush1.msra.mxu0 %v756
  %763 = vmatprep.subr.mxu0 0.0
  %764 = vmatpush1.msra.mxu0 0.0
  %765 = vmatprep.subr.mxu0 0.0
  %766 = vmatpush1.msra.mxu0 0.0
  %767 = vmatprep.subr.mxu0 0.0
  %768 = vmatpush1.msra.mxu0 0.0
  %769 = vmatprep.subr.mxu0 0.0
  %770 = vmatpush1.msra.mxu0 0.0
  %771 = vmatprep.subr.mxu0 0.0
  %772 = vmatpush1.msra.mxu0 0.0
  %773 = vmatprep.subr.mxu0 0.0
  %774 = vmatpush1.msra.mxu0 0.0
  %775 = vmatprep.subr.mxu0 0.0
  %776 = vmatpush1.msra.mxu0 0.0
  %777 = vmatprep.subr.mxu0 0.0
  %778 = vmatpush1.msra.mxu0 0.0
  %779 = vmatprep.subr.mxu0 0.0
  %780 = vmatpush1.msra.mxu0 0.0
  %781 = vmatprep.subr.mxu0 0.0
  %782 = vmatpush1.msra.mxu0 0.0
  %783 = vmatprep.subr.mxu0 0.0
  %784 = vmatpush1.msra.mxu0 0.0
  %785 = vmatprep.subr.mxu0 0.0
  %786 = vmatpush1.msra.mxu0 0.0
  %787 = vmatprep.subr.mxu0 0.0
  %788 = vmatpush1.msra.mxu0 0.0
  %789 = vmatprep.subr.mxu0 0.0
  %790 = vmatpush1.msra.mxu0 0.0
  %791 = vmatprep.subr.mxu0 0.0
  %792 = vmatpush1.msra.mxu0 0.0
  %793 = vmatprep.subr.mxu0 0.0
  %794 = vmatpush1.msra.mxu0 0.0
  %795 = vmatprep.subr.mxu0 0.0
  %796 = vmatpush1.msra.mxu0 0.0
  %797 = vmatprep.subr.mxu0 0.0
  %798 = vmatpush1.msra.mxu0 0.0
  %799 = vmatprep.subr.mxu0 0.0
  %800 = vmatpush1.msra.mxu0 0.0
  %801 = vmatprep.subr.mxu0 0.0
  %802 = vmatpush1.msra.mxu0 0.0
  %803 = vmatprep.subr.mxu0 0.0
  %804 = vmatpush1.msra.mxu0 0.0
  %805 = vmatprep.subr.mxu0 0.0
  %806 = vmatpush1.msra.mxu0 0.0
  %807 = vmatprep.subr.mxu0 0.0
  %808 = vmatpush1.msra.mxu0 0.0
  %809 = vmatprep.subr.mxu0 0.0
  %810 = vmatpush1.msra.mxu0 0.0
  %811 = vmatprep.subr.mxu0 0.0
  %812 = vmatpush1.msra.mxu0 0.0
  %813 = vmatprep.subr.mxu0 0.0
  %814 = vmatpush1.msra.mxu0 0.0
  %815 = vmatprep.subr.mxu0 0.0
  %816 = vmatpush1.msra.mxu0 0.0
  %817 = vmatprep.subr.mxu0 0.0
  %818 = vmatpush1.msra.mxu0 0.0
  %819 = vmatprep.subr.mxu0 0.0
  %820 = vmatpush1.msra.mxu0 0.0
  %821 = vmatprep.subr.mxu0 0.0
  %822 = vmatpush1.msra.mxu0 0.0
  %823 = vmatprep.subr.mxu0 0.0
  %824 = vmatpush1.msra.mxu0 0.0
  %825 = vmatprep.mubr.f32.mxu0 0.0
  %826 = vmatmul.mubr.f32.gmra.mrb[0].mxu0 %v759
  %v827 = vpop.f32.mrb[0].mxu0
  %v828 = vadd.f32 0.0, %v827
  %v829 = vpop.f32.mrb[0].mxu0
  %830 = vdwg.mxu0
  %831 = vrot.lane.b32.xlu0 %v160, 112
  %v832 = vpop.permute.xlu0 %831
  %833 = vrot.lane.b32.xlu0 %v160, 80
  %v834 = vpop.permute.xlu0 %833
  %v835 = vsel %vm171, %v832, 0
  %v837 = vsel %vm171, %v834, 0
  %839 = vmatprep.subr.mxu0 0.0
  %840 = vmatpush1.xpose.msra.mxu0 %v837
  %841 = vmatprep.subr.mxu0 0.0
  %842 = vmatpush1.xpose.msra.mxu0 0.0
  %843 = vmatprep.subr.mxu0 0.0
  %844 = vmatpush1.xpose.msra.mxu0 0.0
  %845 = vmatprep.subr.mxu0 0.0
  %846 = vmatpush1.xpose.msra.mxu0 0.0
  %847 = vmatprep.subr.mxu0 0.0
  %848 = vmatpush1.xpose.msra.mxu0 0.0
  %849 = vmatprep.subr.mxu0 0.0
  %850 = vmatpush1.xpose.msra.mxu0 0.0
  %851 = vmatprep.subr.mxu0 0.0
  %852 = vmatpush1.xpose.msra.mxu0 0.0
  %853 = vmatprep.subr.mxu0 0.0
  %854 = vmatpush1.xpose.msra.mxu0 0.0
  %855 = vmatprep.subr.mxu0 0.0
  %856 = vmatpush1.xpose.msra.mxu0 0.0
  %857 = vmatprep.subr.mxu0 0.0
  %858 = vmatpush1.xpose.msra.mxu0 0.0
  %859 = vmatprep.subr.mxu0 0.0
  %860 = vmatpush1.xpose.msra.mxu0 0.0
  %861 = vmatprep.subr.mxu0 0.0
  %862 = vmatpush1.xpose.msra.mxu0 0.0
  %863 = vmatprep.subr.mxu0 0.0
  %864 = vmatpush1.xpose.msra.mxu0 0.0
  %865 = vmatprep.subr.mxu0 0.0
  %866 = vmatpush1.xpose.msra.mxu0 0.0
  %867 = vmatprep.subr.mxu0 0.0
  %868 = vmatpush1.xpose.msra.mxu0 0.0
  %869 = vmatprep.subr.mxu0 0.0
  %870 = vmatpush1.xpose.msra.mxu0 0.0
  %871 = vmatprep.subr.mxu0 0.0
  %872 = vmatpush1.xpose.msra.mxu0 0.0
  %873 = vmatprep.subr.mxu0 0.0
  %874 = vmatpush1.xpose.msra.mxu0 0.0
  %875 = vmatprep.subr.mxu0 0.0
  %876 = vmatpush1.xpose.msra.mxu0 0.0
  %877 = vmatprep.subr.mxu0 0.0
  %878 = vmatpush1.xpose.msra.mxu0 0.0
  %879 = vmatprep.subr.mxu0 0.0
  %880 = vmatpush1.xpose.msra.mxu0 0.0
  %881 = vmatprep.subr.mxu0 0.0
  %882 = vmatpush1.xpose.msra.mxu0 0.0
  %883 = vmatprep.subr.mxu0 0.0
  %884 = vmatpush1.xpose.msra.mxu0 0.0
  %885 = vmatprep.subr.mxu0 0.0
  %886 = vmatpush1.xpose.msra.mxu0 0.0
  %887 = vmatprep.subr.mxu0 0.0
  %888 = vmatpush1.xpose.msra.mxu0 0.0
  %889 = vmatprep.subr.mxu0 0.0
  %890 = vmatpush1.xpose.msra.mxu0 0.0
  %891 = vmatprep.subr.mxu0 0.0
  %892 = vmatpush1.xpose.msra.mxu0 0.0
  %893 = vmatprep.subr.mxu0 0.0
  %894 = vmatpush1.xpose.msra.mxu0 0.0
  %895 = vmatprep.subr.mxu0 0.0
  %896 = vmatpush1.xpose.msra.mxu0 0.0
  %897 = vmatprep.subr.mxu0 0.0
  %898 = vmatpush1.xpose.msra.mxu0 0.0
  %899 = vmatprep.subr.mxu0 0.0
  %900 = vmatpush1.xpose.msra.mxu0 0.0
  %901 = vmatprep.subr.mxu0 0.0
  %902 = vmatpush1.xpose.msra.mxu0 0.0
  %903 = vmatprep.mubr.f32.mxu0 0.0
  %904 = vmatmul.mubr.f32.gmra.mrb[0].mxu0 %v835
  %v905 = vpop.f32.mrb[0].mxu0
  %v906 = vadd.f32 0.0, %v905
  %v907 = vpop.f32.mrb[0].mxu0
  %908 = vdwg.mxu0
  %909 = vrot.lane.b32.xlu0 %v165, 112
  %v910 = vpop.permute.xlu0 %909
  %911 = vrot.lane.b32.xlu0 %v165, 80
  %v912 = vpop.permute.xlu0 %911
  %v913 = vsel %vm171, %v910, 0
  %v915 = vsel %vm171, %v912, 0
  %917 = vmatprep.subr.mxu0 0.0
  %918 = vmatpush1.xpose.msra.mxu0 %v915
  %919 = vmatprep.subr.mxu0 0.0
  %920 = vmatpush1.xpose.msra.mxu0 0.0
  %921 = vmatprep.subr.mxu0 0.0
  %922 = vmatpush1.xpose.msra.mxu0 0.0
  %923 = vmatprep.subr.mxu0 0.0
  %924 = vmatpush1.xpose.msra.mxu0 0.0
  %925 = vmatprep.subr.mxu0 0.0
  %926 = vmatpush1.xpose.msra.mxu0 0.0
  %927 = vmatprep.subr.mxu0 0.0
  %928 = vmatpush1.xpose.msra.mxu0 0.0
  %929 = vmatprep.subr.mxu0 0.0
  %930 = vmatpush1.xpose.msra.mxu0 0.0
  %931 = vmatprep.subr.mxu0 0.0
  %932 = vmatpush1.xpose.msra.mxu0 0.0
  %933 = vmatprep.subr.mxu0 0.0
  %934 = vmatpush1.xpose.msra.mxu0 0.0
  %935 = vmatprep.subr.mxu0 0.0
  %936 = vmatpush1.xpose.msra.mxu0 0.0
  %937 = vmatprep.subr.mxu0 0.0
  %938 = vmatpush1.xpose.msra.mxu0 0.0
  %939 = vmatprep.subr.mxu0 0.0
  %940 = vmatpush1.xpose.msra.mxu0 0.0
  %941 = vmatprep.subr.mxu0 0.0
  %942 = vmatpush1.xpose.msra.mxu0 0.0
  %943 = vmatprep.subr.mxu0 0.0
  %944 = vmatpush1.xpose.msra.mxu0 0.0
  %945 = vmatprep.subr.mxu0 0.0
  %946 = vmatpush1.xpose.msra.mxu0 0.0
  %947 = vmatprep.subr.mxu0 0.0
  %948 = vmatpush1.xpose.msra.mxu0 0.0
  %949 = vmatprep.subr.mxu0 0.0
  %950 = vmatpush1.xpose.msra.mxu0 0.0
  %951 = vmatprep.subr.mxu0 0.0
  %952 = vmatpush1.xpose.msra.mxu0 0.0
  %953 = vmatprep.subr.mxu0 0.0
  %954 = vmatpush1.xpose.msra.mxu0 0.0
  %955 = vmatprep.subr.mxu0 0.0
  %956 = vmatpush1.xpose.msra.mxu0 0.0
  %957 = vmatprep.subr.mxu0 0.0
  %958 = vmatpush1.xpose.msra.mxu0 0.0
  %959 = vmatprep.subr.mxu0 0.0
  %960 = vmatpush1.xpose.msra.mxu0 0.0
  %961 = vmatprep.subr.mxu0 0.0
  %962 = vmatpush1.xpose.msra.mxu0 0.0
  %963 = vmatprep.subr.mxu0 0.0
  %964 = vmatpush1.xpose.msra.mxu0 0.0
  %965 = vmatprep.subr.mxu0 0.0
  %966 = vmatpush1.xpose.msra.mxu0 0.0
  %967 = vmatprep.subr.mxu0 0.0
  %968 = vmatpush1.xpose.msra.mxu0 0.0
  %969 = vmatprep.subr.mxu0 0.0
  %970 = vmatpush1.xpose.msra.mxu0 0.0
  %971 = vmatprep.subr.mxu0 0.0
  %972 = vmatpush1.xpose.msra.mxu0 0.0
  %973 = vmatprep.subr.mxu0 0.0
  %974 = vmatpush1.xpose.msra.mxu0 0.0
  %975 = vmatprep.subr.mxu0 0.0
  %976 = vmatpush1.xpose.msra.mxu0 0.0
  %977 = vmatprep.subr.mxu0 0.0
  %978 = vmatpush1.xpose.msra.mxu0 0.0
  %979 = vmatprep.subr.mxu0 0.0
  %980 = vmatpush1.xpose.msra.mxu0 0.0
  %981 = vmatprep.mubr.f32.mxu0 0.0
  %982 = vmatmul.mubr.f32.gmra.mrb[0].mxu0 %v913
  %v983 = vpop.f32.mrb[0].mxu0
  %v984 = vadd.f32 0.0, %v983
  %v985 = vpop.f32.mrb[0].mxu0
  %986 = vdwg.mxu0
  %v987 = vmul.f32 %v906, 0.35355338
  %v988 = vmul.f32 %v984, 0.35355338
  %v989 = vsel %vm171, %v987, -inf
  %990 = vmax.xlane.f32.xlu0 %v989
  %v991 = vpop.xlane.xlu0 %990
  %v992 = vsel %vm171, %v988, -inf
  %993 = vmax.xlane.f32.xlu0 %v992
  %v994 = vpop.xlane.xlu0 %993
  %v995 = vsub.f32 %v987, %v991
  %v996 = vsub.f32 %v988, %v994
  %v997 = vmul.f32 %v995, 1.442695
  %v998 = vpow.pop %v997
  %v999 = vmul.f32 %v996, 1.442695
  %v1000 = vpow.pop %v999
  %v1001 = vsel %vm171, %v998, 0.0
  %1002 = vadd.xlane.f32.xlu0 %v1001
  %v1003 = vpop.xlane.xlu0 %1002
  %v1004 = vsel %vm171, %v1000, 0.0
  %1005 = vadd.xlane.f32.xlu0 %v1004
  %v1006 = vpop.xlane.xlu0 %1005
  %v1007 = vrcp.pop %v1003
  %v1008 = vrcp.pop %v1006
  %v1009 = vmul.f32 %v998, %v1007
  %v1010 = vmul.f32 %v1000, %v1008
  %1011 = vrot.lane.b32.xlu0 %v160, 48
  %v1012 = vpop.permute.xlu0 %1011
  %v1015 = vsel %vm171, %v1009, 0
  %1017 = vmatprep.subr.mxu0 0.0
  %1018 = vmatpush1.msra.mxu0 %v1012
  %1019 = vmatprep.subr.mxu0 0.0
  %1020 = vmatpush1.msra.mxu0 0.0
  %1021 = vmatprep.subr.mxu0 0.0
  %1022 = vmatpush1.msra.mxu0 0.0
  %1023 = vmatprep.subr.mxu0 0.0
  %1024 = vmatpush1.msra.mxu0 0.0
  %1025 = vmatprep.subr.mxu0 0.0
  %1026 = vmatpush1.msra.mxu0 0.0
  %1027 = vmatprep.subr.mxu0 0.0
  %1028 = vmatpush1.msra.mxu0 0.0
  %1029 = vmatprep.subr.mxu0 0.0
  %1030 = vmatpush1.msra.mxu0 0.0
  %1031 = vmatprep.subr.mxu0 0.0
  %1032 = vmatpush1.msra.mxu0 0.0
  %1033 = vmatprep.subr.mxu0 0.0
  %1034 = vmatpush1.msra.mxu0 0.0
  %1035 = vmatprep.subr.mxu0 0.0
  %1036 = vmatpush1.msra.mxu0 0.0
  %1037 = vmatprep.subr.mxu0 0.0
  %1038 = vmatpush1.msra.mxu0 0.0
  %1039 = vmatprep.subr.mxu0 0.0
  %1040 = vmatpush1.msra.mxu0 0.0
  %1041 = vmatprep.subr.mxu0 0.0
  %1042 = vmatpush1.msra.mxu0 0.0
  %1043 = vmatprep.subr.mxu0 0.0
  %1044 = vmatpush1.msra.mxu0 0.0
  %1045 = vmatprep.subr.mxu0 0.0
  %1046 = vmatpush1.msra.mxu0 0.0
  %1047 = vmatprep.subr.mxu0 0.0
  %1048 = vmatpush1.msra.mxu0 0.0
  %1049 = vmatprep.subr.mxu0 0.0
  %1050 = vmatpush1.msra.mxu0 0.0
  %1051 = vmatprep.subr.mxu0 0.0
  %1052 = vmatpush1.msra.mxu0 0.0
  %1053 = vmatprep.subr.mxu0 0.0
  %1054 = vmatpush1.msra.mxu0 0.0
  %1055 = vmatprep.subr.mxu0 0.0
  %1056 = vmatpush1.msra.mxu0 0.0
  %1057 = vmatprep.subr.mxu0 0.0
  %1058 = vmatpush1.msra.mxu0 0.0
  %1059 = vmatprep.subr.mxu0 0.0
  %1060 = vmatpush1.msra.mxu0 0.0
  %1061 = vmatprep.subr.mxu0 0.0
  %1062 = vmatpush1.msra.mxu0 0.0
  %1063 = vmatprep.subr.mxu0 0.0
  %1064 = vmatpush1.msra.mxu0 0.0
  %1065 = vmatprep.subr.mxu0 0.0
  %1066 = vmatpush1.msra.mxu0 0.0
  %1067 = vmatprep.subr.mxu0 0.0
  %1068 = vmatpush1.msra.mxu0 0.0
  %1069 = vmatprep.subr.mxu0 0.0
  %1070 = vmatpush1.msra.mxu0 0.0
  %1071 = vmatprep.subr.mxu0 0.0
  %1072 = vmatpush1.msra.mxu0 0.0
  %1073 = vmatprep.subr.mxu0 0.0
  %1074 = vmatpush1.msra.mxu0 0.0
  %1075 = vmatprep.subr.mxu0 0.0
  %1076 = vmatpush1.msra.mxu0 0.0
  %1077 = vmatprep.subr.mxu0 0.0
  %1078 = vmatpush1.msra.mxu0 0.0
  %1079 = vmatprep.subr.mxu0 0.0
  %1080 = vmatpush1.msra.mxu0 0.0
  %1081 = vmatprep.mubr.f32.mxu0 0.0
  %1082 = vmatmul.mubr.f32.gmra.mrb[0].mxu0 %v1015
  %v1083 = vpop.f32.mrb[0].mxu0
  %v1084 = vadd.f32 0.0, %v1083
  %v1085 = vpop.f32.mrb[0].mxu0
  %1086 = vdwg.mxu0
  %1087 = vrot.lane.b32.xlu0 %v165, 48
  %v1088 = vpop.permute.xlu0 %1087
  %v1091 = vsel %vm171, %v1010, 0
  %1093 = vmatprep.subr.mxu0 0.0
  %1094 = vmatpush1.msra.mxu0 %v1088
  %1095 = vmatprep.subr.mxu0 0.0
  %1096 = vmatpush1.msra.mxu0 0.0
  %1097 = vmatprep.subr.mxu0 0.0
  %1098 = vmatpush1.msra.mxu0 0.0
  %1099 = vmatprep.subr.mxu0 0.0
  %1100 = vmatpush1.msra.mxu0 0.0
  %1101 = vmatprep.subr.mxu0 0.0
  %1102 = vmatpush1.msra.mxu0 0.0
  %1103 = vmatprep.subr.mxu0 0.0
  %1104 = vmatpush1.msra.mxu0 0.0
  %1105 = vmatprep.subr.mxu0 0.0
  %1106 = vmatpush1.msra.mxu0 0.0
  %1107 = vmatprep.subr.mxu0 0.0
  %1108 = vmatpush1.msra.mxu0 0.0
  %1109 = vmatprep.subr.mxu0 0.0
  %1110 = vmatpush1.msra.mxu0 0.0
  %1111 = vmatprep.subr.mxu0 0.0
  %1112 = vmatpush1.msra.mxu0 0.0
  %1113 = vmatprep.subr.mxu0 0.0
  %1114 = vmatpush1.msra.mxu0 0.0
  %1115 = vmatprep.subr.mxu0 0.0
  %1116 = vmatpush1.msra.mxu0 0.0
  %1117 = vmatprep.subr.mxu0 0.0
  %1118 = vmatpush1.msra.mxu0 0.0
  %1119 = vmatprep.subr.mxu0 0.0
  %1120 = vmatpush1.msra.mxu0 0.0
  %1121 = vmatprep.subr.mxu0 0.0
  %1122 = vmatpush1.msra.mxu0 0.0
  %1123 = vmatprep.subr.mxu0 0.0
  %1124 = vmatpush1.msra.mxu0 0.0
  %1125 = vmatprep.subr.mxu0 0.0
  %1126 = vmatpush1.msra.mxu0 0.0
  %1127 = vmatprep.subr.mxu0 0.0
  %1128 = vmatpush1.msra.mxu0 0.0
  %1129 = vmatprep.subr.mxu0 0.0
  %1130 = vmatpush1.msra.mxu0 0.0
  %1131 = vmatprep.subr.mxu0 0.0
  %1132 = vmatpush1.msra.mxu0 0.0
  %1133 = vmatprep.subr.mxu0 0.0
  %1134 = vmatpush1.msra.mxu0 0.0
  %1135 = vmatprep.subr.mxu0 0.0
  %1136 = vmatpush1.msra.mxu0 0.0
  %1137 = vmatprep.subr.mxu0 0.0
  %1138 = vmatpush1.msra.mxu0 0.0
  %1139 = vmatprep.subr.mxu0 0.0
  %1140 = vmatpush1.msra.mxu0 0.0
  %1141 = vmatprep.subr.mxu0 0.0
  %1142 = vmatpush1.msra.mxu0 0.0
  %1143 = vmatprep.subr.mxu0 0.0
  %1144 = vmatpush1.msra.mxu0 0.0
  %1145 = vmatprep.subr.mxu0 0.0
  %1146 = vmatpush1.msra.mxu0 0.0
  %1147 = vmatprep.subr.mxu0 0.0
  %1148 = vmatpush1.msra.mxu0 0.0
  %1149 = vmatprep.subr.mxu0 0.0
  %1150 = vmatpush1.msra.mxu0 0.0
  %1151 = vmatprep.subr.mxu0 0.0
  %1152 = vmatpush1.msra.mxu0 0.0
  %1153 = vmatprep.subr.mxu0 0.0
  %1154 = vmatpush1.msra.mxu0 0.0
  %1155 = vmatprep.subr.mxu0 0.0
  %1156 = vmatpush1.msra.mxu0 0.0
  %1157 = vmatprep.mubr.f32.mxu0 0.0
  %1158 = vmatmul.mubr.f32.gmra.mrb[0].mxu0 %v1091
  %v1159 = vpop.f32.mrb[0].mxu0
  %v1160 = vadd.f32 0.0, %v1159
  %v1161 = vpop.f32.mrb[0].mxu0
  %1162 = vdwg.mxu0
  %1163 = vrot.lane.b32.xlu0 %v160, 104
  %v1164 = vpop.permute.xlu0 %1163
  %1165 = vrot.lane.b32.xlu0 %v160, 72
  %v1166 = vpop.permute.xlu0 %1165
  %v1167 = vsel %vm171, %v1164, 0
  %v1169 = vsel %vm171, %v1166, 0
  %1171 = vmatprep.subr.mxu0 0.0
  %1172 = vmatpush1.xpose.msra.mxu0 %v1169
  %1173 = vmatprep.subr.mxu0 0.0
  %1174 = vmatpush1.xpose.msra.mxu0 0.0
  %1175 = vmatprep.subr.mxu0 0.0
  %1176 = vmatpush1.xpose.msra.mxu0 0.0
  %1177 = vmatprep.subr.mxu0 0.0
  %1178 = vmatpush1.xpose.msra.mxu0 0.0
  %1179 = vmatprep.subr.mxu0 0.0
  %1180 = vmatpush1.xpose.msra.mxu0 0.0
  %1181 = vmatprep.subr.mxu0 0.0
  %1182 = vmatpush1.xpose.msra.mxu0 0.0
  %1183 = vmatprep.subr.mxu0 0.0
  %1184 = vmatpush1.xpose.msra.mxu0 0.0
  %1185 = vmatprep.subr.mxu0 0.0
  %1186 = vmatpush1.xpose.msra.mxu0 0.0
  %1187 = vmatprep.subr.mxu0 0.0
  %1188 = vmatpush1.xpose.msra.mxu0 0.0
  %1189 = vmatprep.subr.mxu0 0.0
  %1190 = vmatpush1.xpose.msra.mxu0 0.0
  %1191 = vmatprep.subr.mxu0 0.0
  %1192 = vmatpush1.xpose.msra.mxu0 0.0
  %1193 = vmatprep.subr.mxu0 0.0
  %1194 = vmatpush1.xpose.msra.mxu0 0.0
  %1195 = vmatprep.subr.mxu0 0.0
  %1196 = vmatpush1.xpose.msra.mxu0 0.0
  %1197 = vmatprep.subr.mxu0 0.0
  %1198 = vmatpush1.xpose.msra.mxu0 0.0
  %1199 = vmatprep.subr.mxu0 0.0
  %1200 = vmatpush1.xpose.msra.mxu0 0.0
  %1201 = vmatprep.subr.mxu0 0.0
  %1202 = vmatpush1.xpose.msra.mxu0 0.0
  %1203 = vmatprep.subr.mxu0 0.0
  %1204 = vmatpush1.xpose.msra.mxu0 0.0
  %1205 = vmatprep.subr.mxu0 0.0
  %1206 = vmatpush1.xpose.msra.mxu0 0.0
  %1207 = vmatprep.subr.mxu0 0.0
  %1208 = vmatpush1.xpose.msra.mxu0 0.0
  %1209 = vmatprep.subr.mxu0 0.0
  %1210 = vmatpush1.xpose.msra.mxu0 0.0
  %1211 = vmatprep.subr.mxu0 0.0
  %1212 = vmatpush1.xpose.msra.mxu0 0.0
  %1213 = vmatprep.subr.mxu0 0.0
  %1214 = vmatpush1.xpose.msra.mxu0 0.0
  %1215 = vmatprep.subr.mxu0 0.0
  %1216 = vmatpush1.xpose.msra.mxu0 0.0
  %1217 = vmatprep.subr.mxu0 0.0
  %1218 = vmatpush1.xpose.msra.mxu0 0.0
  %1219 = vmatprep.subr.mxu0 0.0
  %1220 = vmatpush1.xpose.msra.mxu0 0.0
  %1221 = vmatprep.subr.mxu0 0.0
  %1222 = vmatpush1.xpose.msra.mxu0 0.0
  %1223 = vmatprep.subr.mxu0 0.0
  %1224 = vmatpush1.xpose.msra.mxu0 0.0
  %1225 = vmatprep.subr.mxu0 0.0
  %1226 = vmatpush1.xpose.msra.mxu0 0.0
  %1227 = vmatprep.subr.mxu0 0.0
  %1228 = vmatpush1.xpose.msra.mxu0 0.0
  %1229 = vmatprep.subr.mxu0 0.0
  %1230 = vmatpush1.xpose.msra.mxu0 0.0
  %1231 = vmatprep.subr.mxu0 0.0
  %1232 = vmatpush1.xpose.msra.mxu0 0.0
  %1233 = vmatprep.subr.mxu0 0.0
  %1234 = vmatpush1.xpose.msra.mxu0 0.0
  %1235 = vmatprep.mubr.f32.mxu0 0.0
  %1236 = vmatmul.mubr.f32.gmra.mrb[0].mxu0 %v1167
  %v1237 = vpop.f32.mrb[0].mxu0
  %v1238 = vadd.f32 0.0, %v1237
  %v1239 = vpop.f32.mrb[0].mxu0
  %1240 = vdwg.mxu0
  %1241 = vrot.lane.b32.xlu0 %v165, 104
  %v1242 = vpop.permute.xlu0 %1241
  %1243 = vrot.lane.b32.xlu0 %v165, 72
  %v1244 = vpop.permute.xlu0 %1243
  %v1245 = vsel %vm171, %v1242, 0
  %v1247 = vsel %vm171, %v1244, 0
  %1249 = vmatprep.subr.mxu0 0.0
  %1250 = vmatpush1.xpose.msra.mxu0 %v1247
  %1251 = vmatprep.subr.mxu0 0.0
  %1252 = vmatpush1.xpose.msra.mxu0 0.0
  %1253 = vmatprep.subr.mxu0 0.0
  %1254 = vmatpush1.xpose.msra.mxu0 0.0
  %1255 = vmatprep.subr.mxu0 0.0
  %1256 = vmatpush1.xpose.msra.mxu0 0.0
  %1257 = vmatprep.subr.mxu0 0.0
  %1258 = vmatpush1.xpose.msra.mxu0 0.0
  %1259 = vmatprep.subr.mxu0 0.0
  %1260 = vmatpush1.xpose.msra.mxu0 0.0
  %1261 = vmatprep.subr.mxu0 0.0
  %1262 = vmatpush1.xpose.msra.mxu0 0.0
  %1263 = vmatprep.subr.mxu0 0.0
  %1264 = vmatpush1.xpose.msra.mxu0 0.0
  %1265 = vmatprep.subr.mxu0 0.0
  %1266 = vmatpush1.xpose.msra.mxu0 0.0
  %1267 = vmatprep.subr.mxu0 0.0
  %1268 = vmatpush1.xpose.msra.mxu0 0.0
  %1269 = vmatprep.subr.mxu0 0.0
  %1270 = vmatpush1.xpose.msra.mxu0 0.0
  %1271 = vmatprep.subr.mxu0 0.0
  %1272 = vmatpush1.xpose.msra.mxu0 0.0
  %1273 = vmatprep.subr.mxu0 0.0
  %1274 = vmatpush1.xpose.msra.mxu0 0.0
  %1275 = vmatprep.subr.mxu0 0.0
  %1276 = vmatpush1.xpose.msra.mxu0 0.0
  %1277 = vmatprep.subr.mxu0 0.0
  %1278 = vmatpush1.xpose.msra.mxu0 0.0
  %1279 = vmatprep.subr.mxu0 0.0
  %1280 = vmatpush1.xpose.msra.mxu0 0.0
  %1281 = vmatprep.subr.mxu0 0.0
  %1282 = vmatpush1.xpose.msra.mxu0 0.0
  %1283 = vmatprep.subr.mxu0 0.0
  %1284 = vmatpush1.xpose.msra.mxu0 0.0
  %1285 = vmatprep.subr.mxu0 0.0
  %1286 = vmatpush1.xpose.msra.mxu0 0.0
  %1287 = vmatprep.subr.mxu0 0.0
  %1288 = vmatpush1.xpose.msra.mxu0 0.0
  %1289 = vmatprep.subr.mxu0 0.0
  %1290 = vmatpush1.xpose.msra.mxu0 0.0
  %1291 = vmatprep.subr.mxu0 0.0
  %1292 = vmatpush1.xpose.msra.mxu0 0.0
  %1293 = vmatprep.subr.mxu0 0.0
  %1294 = vmatpush1.xpose.msra.mxu0 0.0
  %1295 = vmatprep.subr.mxu0 0.0
  %1296 = vmatpush1.xpose.msra.mxu0 0.0
  %1297 = vmatprep.subr.mxu0 0.0
  %1298 = vmatpush1.xpose.msra.mxu0 0.0
  %1299 = vmatprep.subr.mxu0 0.0
  %1300 = vmatpush1.xpose.msra.mxu0 0.0
  %1301 = vmatprep.subr.mxu0 0.0
  %1302 = vmatpush1.xpose.msra.mxu0 0.0
  %1303 = vmatprep.subr.mxu0 0.0
  %1304 = vmatpush1.xpose.msra.mxu0 0.0
  %1305 = vmatprep.subr.mxu0 0.0
  %1306 = vmatpush1.xpose.msra.mxu0 0.0
  %1307 = vmatprep.subr.mxu0 0.0
  %1308 = vmatpush1.xpose.msra.mxu0 0.0
  %1309 = vmatprep.subr.mxu0 0.0
  %1310 = vmatpush1.xpose.msra.mxu0 0.0
  %1311 = vmatprep.subr.mxu0 0.0
  %1312 = vmatpush1.xpose.msra.mxu0 0.0
  %1313 = vmatprep.mubr.f32.mxu0 0.0
  %1314 = vmatmul.mubr.f32.gmra.mrb[0].mxu0 %v1245
  %v1315 = vpop.f32.mrb[0].mxu0
  %v1316 = vadd.f32 0.0, %v1315
  %v1317 = vpop.f32.mrb[0].mxu0
  %1318 = vdwg.mxu0
  %v1319 = vmul.f32 %v1238, 0.35355338
  %v1320 = vmul.f32 %v1316, 0.35355338
  %v1321 = vsel %vm171, %v1319, -inf
  %1322 = vmax.xlane.f32.xlu0 %v1321
  %v1323 = vpop.xlane.xlu0 %1322
  %v1324 = vsel %vm171, %v1320, -inf
  %1325 = vmax.xlane.f32.xlu0 %v1324
  %v1326 = vpop.xlane.xlu0 %1325
  %v1327 = vsub.f32 %v1319, %v1323
  %v1328 = vsub.f32 %v1320, %v1326
  %v1329 = vmul.f32 %v1327, 1.442695
  %v1330 = vpow.pop %v1329
  %v1331 = vmul.f32 %v1328, 1.442695
  %v1332 = vpow.pop %v1331
  %v1333 = vsel %vm171, %v1330, 0.0
  %1334 = vadd.xlane.f32.xlu0 %v1333
  %v1335 = vpop.xlane.xlu0 %1334
  %v1336 = vsel %vm171, %v1332, 0.0
  %1337 = vadd.xlane.f32.xlu0 %v1336
  %v1338 = vpop.xlane.xlu0 %1337
  %v1339 = vrcp.pop %v1335
  %v1340 = vrcp.pop %v1338
  %v1341 = vmul.f32 %v1330, %v1339
  %v1342 = vmul.f32 %v1332, %v1340
  %1343 = vrot.lane.b32.xlu0 %v160, 40
  %v1344 = vpop.permute.xlu0 %1343
  %v1347 = vsel %vm171, %v1341, 0
  %1349 = vmatprep.subr.mxu0 0.0
  %1350 = vmatpush1.msra.mxu0 %v1344
  %1351 = vmatprep.subr.mxu0 0.0
  %1352 = vmatpush1.msra.mxu0 0.0
  %1353 = vmatprep.subr.mxu0 0.0
  %1354 = vmatpush1.msra.mxu0 0.0
  %1355 = vmatprep.subr.mxu0 0.0
  %1356 = vmatpush1.msra.mxu0 0.0
  %1357 = vmatprep.subr.mxu0 0.0
  %1358 = vmatpush1.msra.mxu0 0.0
  %1359 = vmatprep.subr.mxu0 0.0
  %1360 = vmatpush1.msra.mxu0 0.0
  %1361 = vmatprep.subr.mxu0 0.0
  %1362 = vmatpush1.msra.mxu0 0.0
  %1363 = vmatprep.subr.mxu0 0.0
  %1364 = vmatpush1.msra.mxu0 0.0
  %1365 = vmatprep.subr.mxu0 0.0
  %1366 = vmatpush1.msra.mxu0 0.0
  %1367 = vmatprep.subr.mxu0 0.0
  %1368 = vmatpush1.msra.mxu0 0.0
  %1369 = vmatprep.subr.mxu0 0.0
  %1370 = vmatpush1.msra.mxu0 0.0
  %1371 = vmatprep.subr.mxu0 0.0
  %1372 = vmatpush1.msra.mxu0 0.0
  %1373 = vmatprep.subr.mxu0 0.0
  %1374 = vmatpush1.msra.mxu0 0.0
  %1375 = vmatprep.subr.mxu0 0.0
  %1376 = vmatpush1.msra.mxu0 0.0
  %1377 = vmatprep.subr.mxu0 0.0
  %1378 = vmatpush1.msra.mxu0 0.0
  %1379 = vmatprep.subr.mxu0 0.0
  %1380 = vmatpush1.msra.mxu0 0.0
  %1381 = vmatprep.subr.mxu0 0.0
  %1382 = vmatpush1.msra.mxu0 0.0
  %1383 = vmatprep.subr.mxu0 0.0
  %1384 = vmatpush1.msra.mxu0 0.0
  %1385 = vmatprep.subr.mxu0 0.0
  %1386 = vmatpush1.msra.mxu0 0.0
  %1387 = vmatprep.subr.mxu0 0.0
  %1388 = vmatpush1.msra.mxu0 0.0
  %1389 = vmatprep.subr.mxu0 0.0
  %1390 = vmatpush1.msra.mxu0 0.0
  %1391 = vmatprep.subr.mxu0 0.0
  %1392 = vmatpush1.msra.mxu0 0.0
  %1393 = vmatprep.subr.mxu0 0.0
  %1394 = vmatpush1.msra.mxu0 0.0
  %1395 = vmatprep.subr.mxu0 0.0
  %1396 = vmatpush1.msra.mxu0 0.0
  %1397 = vmatprep.subr.mxu0 0.0
  %1398 = vmatpush1.msra.mxu0 0.0
  %1399 = vmatprep.subr.mxu0 0.0
  %1400 = vmatpush1.msra.mxu0 0.0
  %1401 = vmatprep.subr.mxu0 0.0
  %1402 = vmatpush1.msra.mxu0 0.0
  %1403 = vmatprep.subr.mxu0 0.0
  %1404 = vmatpush1.msra.mxu0 0.0
  %1405 = vmatprep.subr.mxu0 0.0
  %1406 = vmatpush1.msra.mxu0 0.0
  %1407 = vmatprep.subr.mxu0 0.0
  %1408 = vmatpush1.msra.mxu0 0.0
  %1409 = vmatprep.subr.mxu0 0.0
  %1410 = vmatpush1.msra.mxu0 0.0
  %1411 = vmatprep.subr.mxu0 0.0
  %1412 = vmatpush1.msra.mxu0 0.0
  %1413 = vmatprep.mubr.f32.mxu0 0.0
  %1414 = vmatmul.mubr.f32.gmra.mrb[0].mxu0 %v1347
  %v1415 = vpop.f32.mrb[0].mxu0
  %v1416 = vadd.f32 0.0, %v1415
  %v1417 = vpop.f32.mrb[0].mxu0
  %1418 = vdwg.mxu0
  %1419 = vrot.lane.b32.xlu0 %v165, 40
  %v1420 = vpop.permute.xlu0 %1419
  %v1423 = vsel %vm171, %v1342, 0
  %1425 = vmatprep.subr.mxu0 0.0
  %1426 = vmatpush1.msra.mxu0 %v1420
  %1427 = vmatprep.subr.mxu0 0.0
  %1428 = vmatpush1.msra.mxu0 0.0
  %1429 = vmatprep.subr.mxu0 0.0
  %1430 = vmatpush1.msra.mxu0 0.0
  %1431 = vmatprep.subr.mxu0 0.0
  %1432 = vmatpush1.msra.mxu0 0.0
  %1433 = vmatprep.subr.mxu0 0.0
  %1434 = vmatpush1.msra.mxu0 0.0
  %1435 = vmatprep.subr.mxu0 0.0
  %1436 = vmatpush1.msra.mxu0 0.0
  %1437 = vmatprep.subr.mxu0 0.0
  %1438 = vmatpush1.msra.mxu0 0.0
  %1439 = vmatprep.subr.mxu0 0.0
  %1440 = vmatpush1.msra.mxu0 0.0
  %1441 = vmatprep.subr.mxu0 0.0
  %1442 = vmatpush1.msra.mxu0 0.0
  %1443 = vmatprep.subr.mxu0 0.0
  %1444 = vmatpush1.msra.mxu0 0.0
  %1445 = vmatprep.subr.mxu0 0.0
  %1446 = vmatpush1.msra.mxu0 0.0
  %1447 = vmatprep.subr.mxu0 0.0
  %1448 = vmatpush1.msra.mxu0 0.0
  %1449 = vmatprep.subr.mxu0 0.0
  %1450 = vmatpush1.msra.mxu0 0.0
  %1451 = vmatprep.subr.mxu0 0.0
  %1452 = vmatpush1.msra.mxu0 0.0
  %1453 = vmatprep.subr.mxu0 0.0
  %1454 = vmatpush1.msra.mxu0 0.0
  %1455 = vmatprep.subr.mxu0 0.0
  %1456 = vmatpush1.msra.mxu0 0.0
  %1457 = vmatprep.subr.mxu0 0.0
  %1458 = vmatpush1.msra.mxu0 0.0
  %1459 = vmatprep.subr.mxu0 0.0
  %1460 = vmatpush1.msra.mxu0 0.0
  %1461 = vmatprep.subr.mxu0 0.0
  %1462 = vmatpush1.msra.mxu0 0.0
  %1463 = vmatprep.subr.mxu0 0.0
  %1464 = vmatpush1.msra.mxu0 0.0
  %1465 = vmatprep.subr.mxu0 0.0
  %1466 = vmatpush1.msra.mxu0 0.0
  %1467 = vmatprep.subr.mxu0 0.0
  %1468 = vmatpush1.msra.mxu0 0.0
  %1469 = vmatprep.subr.mxu0 0.0
  %1470 = vmatpush1.msra.mxu0 0.0
  %1471 = vmatprep.subr.mxu0 0.0
  %1472 = vmatpush1.msra.mxu0 0.0
  %1473 = vmatprep.subr.mxu0 0.0
  %1474 = vmatpush1.msra.mxu0 0.0
  %1475 = vmatprep.subr.mxu0 0.0
  %1476 = vmatpush1.msra.mxu0 0.0
  %1477 = vmatprep.subr.mxu0 0.0
  %1478 = vmatpush1.msra.mxu0 0.0
  %1479 = vmatprep.subr.mxu0 0.0
  %1480 = vmatpush1.msra.mxu0 0.0
  %1481 = vmatprep.subr.mxu0 0.0
  %1482 = vmatpush1.msra.mxu0 0.0
  %1483 = vmatprep.subr.mxu0 0.0
  %1484 = vmatpush1.msra.mxu0 0.0
  %1485 = vmatprep.subr.mxu0 0.0
  %1486 = vmatpush1.msra.mxu0 0.0
  %1487 = vmatprep.subr.mxu0 0.0
  %1488 = vmatpush1.msra.mxu0 0.0
  %1489 = vmatprep.mubr.f32.mxu0 0.0
  %1490 = vmatmul.mubr.f32.gmra.mrb[0].mxu0 %v1423
  %v1491 = vpop.f32.mrb[0].mxu0
  %v1492 = vadd.f32 0.0, %v1491
  %v1493 = vpop.f32.mrb[0].mxu0
  %1494 = vdwg.mxu0
  %1497 = vrot.lane.b32.xlu0 %v752, 8
  %v1498 = vpop.permute.xlu0 %1497
  %1499 = vrot.lane.b32.xlu0 %v828, 8
  %v1500 = vpop.permute.xlu0 %1499
  %1505 = vrot.lane.b32.xlu0 %v1084, 16
  %v1506 = vpop.permute.xlu0 %1505
  %1507 = vrot.lane.b32.xlu0 %v1160, 16
  %v1508 = vpop.permute.xlu0 %1507
  %1513 = vrot.lane.b32.xlu0 %v1416, 24
  %v1514 = vpop.permute.xlu0 %1513
  %1515 = vrot.lane.b32.xlu0 %v1492, 24
  %v1516 = vpop.permute.xlu0 %1515
  %v1519 = vsel %vm171, %v420, %v1498
  %v1520 = vsel %vm171, %v496, %v1500
  %vm1521 = vcmask 130048
  %v1522 = vsel %vm1521, %v1519, %v1506
  %v1523 = vsel %vm1521, %v1520, %v1508
  %vm1524 = vcmask 195584
  %v1525 = vsel %vm1524, %v1522, %v1514
  %v1526 = vsel %vm1524, %v1523, %v1516
  %v1527 = vld [vmem:[%s4] sm:$0xff]
  %v1528 = vld [vmem:[%s4 + $0x8] sm:$0xff]
  %v1529 = vld [vmem:[%s4 + $0x10] sm:$0xff]
  %v1530 = vld [vmem:[%s4 + $0x18] sm:$0xff]
  %v1531 = vld [vmem:[%s5] sm:$0x1]
  %v1533 = vlaneseq
  %v1534 = vshrl.u32 %v1533, 7
  %v1535 = vsub.s32 0, %v1534
  %v1536 = vrot.slane %v1531, %v1535
  %v1539 = vsel %vm86, %v1525, 0
  %v1542 = vsel %vm86, %v1526, 0
  %1544 = vmatprep.subr.mxu0 0.0
  %1545 = vmatpush1.msra.mxu0 %v1527
  %1546 = vmatprep.subr.mxu0 0.0
  %1547 = vmatpush1.msra.mxu0 %v1528
  %1548 = vmatprep.subr.mxu0 0.0
  %1549 = vmatpush1.msra.mxu0 %v1529
  %1550 = vmatprep.subr.mxu0 0.0
  %1551 = vmatpush1.msra.mxu0 %v1530
  %1552 = vmatprep.subr.mxu0 0.0
  %1553 = vmatpush1.msra.mxu0 0.0
  %1554 = vmatprep.subr.mxu0 0.0
  %1555 = vmatpush1.msra.mxu0 0.0
  %1556 = vmatprep.subr.mxu0 0.0
  %1557 = vmatpush1.msra.mxu0 0.0
  %1558 = vmatprep.subr.mxu0 0.0
  %1559 = vmatpush1.msra.mxu0 0.0
  %1560 = vmatprep.subr.mxu0 0.0
  %1561 = vmatpush1.msra.mxu0 0.0
  %1562 = vmatprep.subr.mxu0 0.0
  %1563 = vmatpush1.msra.mxu0 0.0
  %1564 = vmatprep.subr.mxu0 0.0
  %1565 = vmatpush1.msra.mxu0 0.0
  %1566 = vmatprep.subr.mxu0 0.0
  %1567 = vmatpush1.msra.mxu0 0.0
  %1568 = vmatprep.subr.mxu0 0.0
  %1569 = vmatpush1.msra.mxu0 0.0
  %1570 = vmatprep.subr.mxu0 0.0
  %1571 = vmatpush1.msra.mxu0 0.0
  %1572 = vmatprep.subr.mxu0 0.0
  %1573 = vmatpush1.msra.mxu0 0.0
  %1574 = vmatprep.subr.mxu0 0.0
  %1575 = vmatpush1.msra.mxu0 0.0
  %1576 = vmatprep.subr.mxu0 0.0
  %1577 = vmatpush1.msra.mxu0 0.0
  %1578 = vmatprep.subr.mxu0 0.0
  %1579 = vmatpush1.msra.mxu0 0.0
  %1580 = vmatprep.subr.mxu0 0.0
  %1581 = vmatpush1.msra.mxu0 0.0
  %1582 = vmatprep.subr.mxu0 0.0
  %1583 = vmatpush1.msra.mxu0 0.0
  %1584 = vmatprep.subr.mxu0 0.0
  %1585 = vmatpush1.msra.mxu0 0.0
  %1586 = vmatprep.subr.mxu0 0.0
  %1587 = vmatpush1.msra.mxu0 0.0
  %1588 = vmatprep.subr.mxu0 0.0
  %1589 = vmatpush1.msra.mxu0 0.0
  %1590 = vmatprep.subr.mxu0 0.0
  %1591 = vmatpush1.msra.mxu0 0.0
  %1592 = vmatprep.subr.mxu0 0.0
  %1593 = vmatpush1.msra.mxu0 0.0
  %1594 = vmatprep.subr.mxu0 0.0
  %1595 = vmatpush1.msra.mxu0 0.0
  %1596 = vmatprep.subr.mxu0 0.0
  %1597 = vmatpush1.msra.mxu0 0.0
  %1598 = vmatprep.subr.mxu0 0.0
  %1599 = vmatpush1.msra.mxu0 0.0
  %1600 = vmatprep.subr.mxu0 0.0
  %1601 = vmatpush1.msra.mxu0 0.0
  %1602 = vmatprep.subr.mxu0 0.0
  %1603 = vmatpush1.msra.mxu0 0.0
  %1604 = vmatprep.subr.mxu0 0.0
  %1605 = vmatpush1.msra.mxu0 0.0
  %1606 = vmatprep.subr.mxu0 0.0
  %1607 = vmatpush1.msra.mxu0 0.0
  %1608 = vmatprep.mubr.f32.mxu0 0.0
  %1609 = vmatmul.mubr.f32.gmra.mrb[0].mxu0 %v1539
  %v1610 = vpop.f32.mrb[0].mxu0
  %v1611 = vadd.f32 %v1536, %v1610
  %v1612 = vpop.f32.mrb[0].mxu0
  %1613 = vmatprep.mubr.f32.mxu0 0.0
  %1614 = vmatmul.mubr.f32.gmra.mrb[0].mxu0 %v1542
  %v1615 = vpop.f32.mrb[0].mxu0
  %v1616 = vadd.f32 %v1536, %v1615
  %v1617 = vpop.f32.mrb[0].mxu0
  %1618 = vdwg.mxu0
  %v1619 = vadd.f32 %v71, %v1611
  %v1620 = vadd.f32 %v72, %v1616
  %v1621 = vld [vmem:[%s6] sm:$0x1]
  %v1622 = vld [vmem:[%s7] sm:$0x1]
  %v1623 = vsel %vm86, %v1619, 0.0
  %1624 = vadd.xlane.f32.xlu0 %v1623
  %v1625 = vpop.xlane.xlu0 %1624
  %v1626 = vsel %vm86, %v1620, 0.0
  %1627 = vadd.xlane.f32.xlu0 %v1626
  %v1628 = vpop.xlane.xlu0 %1627
  %v1629 = vrcp.pop 32.0
  %v1630 = vmul.f32 %v1625, %v1629
  %v1631 = vmul.f32 %v1628, %v1629
  %v1632 = vsub.f32 %v1619, %v1630
  %v1633 = vsub.f32 %v1620, %v1631
  %v1634 = vmul.f32 %v1632, %v1632
  %v1635 = vmul.f32 %v1633, %v1633
  %v1636 = vsel %vm86, %v1634, 0.0
  %1637 = vadd.xlane.f32.xlu0 %v1636
  %v1638 = vpop.xlane.xlu0 %1637
  %v1639 = vsel %vm86, %v1635, 0.0
  %1640 = vadd.xlane.f32.xlu0 %v1639
  %v1641 = vpop.xlane.xlu0 %1640
  %v1642 = vmul.f32 %v1638, %v1629
  %v1643 = vmul.f32 %v1641, %v1629
  %v1644 = vadd.f32 %v1642, 1e-05
  %v1645 = vadd.f32 %v1643, 1e-05
  %v1646 = vrsqrt.pop %v1644
  %v1647 = vrsqrt.pop %v1645
  %v1648 = vmul.f32 %v1632, %v1646
  %v1649 = vmul.f32 %v1633, %v1647
  %v1651 = vlaneseq
  %v1652 = vshrl.u32 %v1651, 7
  %v1653 = vsub.s32 0, %v1652
  %v1654 = vrot.slane %v1621, %v1653
  %v1656 = vmul.f32 %v1648, %v1654
  %v1657 = vmul.f32 %v1649, %v1654
  %v1659 = vlaneseq
  %v1660 = vshrl.u32 %v1659, 7
  %v1661 = vsub.s32 0, %v1660
  %v1662 = vrot.slane %v1622, %v1661
  %v1664 = vadd.f32 %v1656, %v1662
  %v1665 = vadd.f32 %v1657, %v1662
  %v1666 = vld [vmem:[%s8] sm:$0xff]
  %v1667 = vld [vmem:[%s8 + $0x8] sm:$0xff]
  %v1668 = vld [vmem:[%s8 + $0x10] sm:$0xff]
  %v1669 = vld [vmem:[%s8 + $0x18] sm:$0xff]
  %v1670 = vld [vmem:[%s9] sm:$0x1]
  %v1672 = vlaneseq
  %v1673 = vshrl.u32 %v1672, 7
  %v1674 = vsub.s32 0, %v1673
  %v1675 = vrot.slane %v1670, %v1674
  %v1678 = vsel %vm86, %v1664, 0
  %v1681 = vsel %vm86, %v1665, 0
  %1683 = vmatprep.subr.mxu0 0.0
  %1684 = vmatpush1.msra.mxu0 %v1666
  %1685 = vmatprep.subr.mxu0 0.0
  %1686 = vmatpush1.msra.mxu0 %v1667
  %1687 = vmatprep.subr.mxu0 0.0
  %1688 = vmatpush1.msra.mxu0 %v1668
  %1689 = vmatprep.subr.mxu0 0.0
  %1690 = vmatpush1.msra.mxu0 %v1669
  %1691 = vmatprep.subr.mxu0 0.0
  %1692 = vmatpush1.msra.mxu0 0.0
  %1693 = vmatprep.subr.mxu0 0.0
  %1694 = vmatpush1.msra.mxu0 0.0
  %1695 = vmatprep.subr.mxu0 0.0
  %1696 = vmatpush1.msra.mxu0 0.0
  %1697 = vmatprep.subr.mxu0 0.0
  %1698 = vmatpush1.msra.mxu0 0.0
  %1699 = vmatprep.subr.mxu0 0.0
  %1700 = vmatpush1.msra.mxu0 0.0
  %1701 = vmatprep.subr.mxu0 0.0
  %1702 = vmatpush1.msra.mxu0 0.0
  %1703 = vmatprep.subr.mxu0 0.0
  %1704 = vmatpush1.msra.mxu0 0.0
  %1705 = vmatprep.subr.mxu0 0.0
  %1706 = vmatpush1.msra.mxu0 0.0
  %1707 = vmatprep.subr.mxu0 0.0
  %1708 = vmatpush1.msra.mxu0 0.0
  %1709 = vmatprep.subr.mxu0 0.0
  %1710 = vmatpush1.msra.mxu0 0.0
  %1711 = vmatprep.subr.mxu0 0.0
  %1712 = vmatpush1.msra.mxu0 0.0
  %1713 = vmatprep.subr.mxu0 0.0
  %1714 = vmatpush1.msra.mxu0 0.0
  %1715 = vmatprep.subr.mxu0 0.0
  %1716 = vmatpush1.msra.mxu0 0.0
  %1717 = vmatprep.subr.mxu0 0.0
  %1718 = vmatpush1.msra.mxu0 0.0
  %1719 = vmatprep.subr.mxu0 0.0
  %1720 = vmatpush1.msra.mxu0 0.0
  %1721 = vmatprep.subr.mxu0 0.0
  %1722 = vmatpush1.msra.mxu0 0.0
  %1723 = vmatprep.subr.mxu0 0.0
  %1724 = vmatpush1.msra.mxu0 0.0
  %1725 = vmatprep.subr.mxu0 0.0
  %1726 = vmatpush1.msra.mxu0 0.0
  %1727 = vmatprep.subr.mxu0 0.0
  %1728 = vmatpush1.msra.mxu0 0.0
  %1729 = vmatprep.subr.mxu0 0.0
  %1730 = vmatpush1.msra.mxu0 0.0
  %1731 = vmatprep.subr.mxu0 0.0
  %1732 = vmatpush1.msra.mxu0 0.0
  %1733 = vmatprep.subr.mxu0 0.0
  %1734 = vmatpush1.msra.mxu0 0.0
  %1735 = vmatprep.subr.mxu0 0.0
  %1736 = vmatpush1.msra.mxu0 0.0
  %1737 = vmatprep.subr.mxu0 0.0
  %1738 = vmatpush1.msra.mxu0 0.0
  %1739 = vmatprep.subr.mxu0 0.0
  %1740 = vmatpush1.msra.mxu0 0.0
  %1741 = vmatprep.subr.mxu0 0.0
  %1742 = vmatpush1.msra.mxu0 0.0
  %1743 = vmatprep.subr.mxu0 0.0
  %1744 = vmatpush1.msra.mxu0 0.0
  %1745 = vmatprep.subr.mxu0 0.0
  %1746 = vmatpush1.msra.mxu0 0.0
  %1747 = vmatprep.mubr.f32.mxu0 0.0
  %1748 = vmatmul.mubr.f32.gmra.mrb[0].mxu0 %v1678
  %v1749 = vpop.f32.mrb[0].mxu0
  %v1750 = vadd.f32 %v1675, %v1749
  %v1751 = vpop.f32.mrb[0].mxu0
  %1752 = vmatprep.mubr.f32.mxu0 0.0
  %1753 = vmatmul.mubr.f32.gmra.mrb[0].mxu0 %v1681
  %v1754 = vpop.f32.mrb[0].mxu0
  %v1755 = vadd.f32 %v1675, %v1754
  %v1756 = vpop.f32.mrb[0].mxu0
  %1757 = vdwg.mxu0
  %v1758 = vld [vmem:[%s10] sm:$0xff]
  %v1759 = vld [vmem:[%s10 + $0x8] sm:$0xff]
  %v1760 = vld [vmem:[%s10 + $0x10] sm:$0xff]
  %v1761 = vld [vmem:[%s10 + $0x18] sm:$0xff]
  %v1762 = vld [vmem:[%s11] sm:$0x1]
  %v1764 = vlaneseq
  %v1765 = vshrl.u32 %v1764, 7
  %v1766 = vsub.s32 0, %v1765
  %v1767 = vrot.slane %v1762, %v1766
  %v1770 = vsel %vm86, %v73, 0
  %v1773 = vsel %vm86, %v74, 0
  %1775 = vmatprep.subr.mxu0 0.0
  %1776 = vmatpush1.msra.mxu0 %v1758
  %1777 = vmatprep.subr.mxu0 0.0
  %1778 = vmatpush1.msra.mxu0 %v1759
  %1779 = vmatprep.subr.mxu0 0.0
  %1780 = vmatpush1.msra.mxu0 %v1760
  %1781 = vmatprep.subr.mxu0 0.0
  %1782 = vmatpush1.msra.mxu0 %v1761
  %1783 = vmatprep.subr.mxu0 0.0
  %1784 = vmatpush1.msra.mxu0 0.0
  %1785 = vmatprep.subr.mxu0 0.0
  %1786 = vmatpush1.msra.mxu0 0.0
  %1787 = vmatprep.subr.mxu0 0.0
  %1788 = vmatpush1.msra.mxu0 0.0
  %1789 = vmatprep.subr.mxu0 0.0
  %1790 = vmatpush1.msra.mxu0 0.0
  %1791 = vmatprep.subr.mxu0 0.0
  %1792 = vmatpush1.msra.mxu0 0.0
  %1793 = vmatprep.subr.mxu0 0.0
  %1794 = vmatpush1.msra.mxu0 0.0
  %1795 = vmatprep.subr.mxu0 0.0
  %1796 = vmatpush1.msra.mxu0 0.0
  %1797 = vmatprep.subr.mxu0 0.0
  %1798 = vmatpush1.msra.mxu0 0.0
  %1799 = vmatprep.subr.mxu0 0.0
  %1800 = vmatpush1.msra.mxu0 0.0
  %1801 = vmatprep.subr.mxu0 0.0
  %1802 = vmatpush1.msra.mxu0 0.0
  %1803 = vmatprep.subr.mxu0 0.0
  %1804 = vmatpush1.msra.mxu0 0.0
  %1805 = vmatprep.subr.mxu0 0.0
  %1806 = vmatpush1.msra.mxu0 0.0
  %1807 = vmatprep.subr.mxu0 0.0
  %1808 = vmatpush1.msra.mxu0 0.0
  %1809 = vmatprep.subr.mxu0 0.0
  %1810 = vmatpush1.msra.mxu0 0.0
  %1811 = vmatprep.subr.mxu0 0.0
  %1812 = vmatpush1.msra.mxu0 0.0
  %1813 = vmatprep.subr.mxu0 0.0
  %1814 = vmatpush1.msra.mxu0 0.0
  %1815 = vmatprep.subr.mxu0 0.0
  %1816 = vmatpush1.msra.mxu0 0.0
  %1817 = vmatprep.subr.mxu0 0.0
  %1818 = vmatpush1.msra.mxu0 0.0
  %1819 = vmatprep.subr.mxu0 0.0
  %1820 = vmatpush1.msra.mxu0 0.0
  %1821 = vmatprep.subr.mxu0 0.0
  %1822 = vmatpush1.msra.mxu0 0.0
  %1823 = vmatprep.subr.mxu0 0.0
  %1824 = vmatpush1.msra.mxu0 0.0
  %1825 = vmatprep.subr.mxu0 0.0
  %1826 = vmatpush1.msra.mxu0 0.0
  %1827 = vmatprep.subr.mxu0 0.0
  %1828 = vmatpush1.msra.mxu0 0.0
  %1829 = vmatprep.subr.mxu0 0.0
  %1830 = vmatpush1.msra.mxu0 0.0
  %1831 = vmatprep.subr.mxu0 0.0
  %1832 = vmatpush1.msra.mxu0 0.0
  %1833 = vmatprep.subr.mxu0 0.0
  %1834 = vmatpush1.msra.mxu0 0.0
  %1835 = vmatprep.subr.mxu0 0.0
  %1836 = vmatpush1.msra.mxu0 0.0
  %1837 = vmatprep.subr.mxu0 0.0
  %1838 = vmatpush1.msra.mxu0 0.0
  %1839 = vmatprep.mubr.f32.mxu0 0.0
  %1840 = vmatmul.mubr.f32.gmra.mrb[0].mxu0 %v1770
  %v1841 = vpop.f32.mrb[0].mxu0
  %v1842 = vadd.f32 %v1767, %v1841
  %v1843 = vpop.f32.mrb[0].mxu0
  %1844 = vmatprep.mubr.f32.mxu0 0.0
  %1845 = vmatmul.mubr.f32.gmra.mrb[0].mxu0 %v1773
  %v1846 = vpop.f32.mrb[0].mxu0
  %v1847 = vadd.f32 %v1767, %v1846
  %v1848 = vpop.f32.mrb[0].mxu0
  %1849 = vdwg.mxu0
  %v1851 = vsel %vm171, %v1750, 0
  %v1854 = vsel %vm171, %v1842, 0
  %1856 = vmatprep.subr.mxu0 0.0
  %1857 = vmatpush1.xpose.msra.mxu0 %v1854
  %1858 = vmatprep.subr.mxu0 0.0
  %1859 = vmatpush1.xpose.msra.mxu0 0.0
  %1860 = vmatprep.subr.mxu0 0.0
  %1861 = vmatpush1.xpose.msra.mxu0 0.0
  %1862 = vmatprep.subr.mxu0 0.0
  %1863 = vmatpush1.xpose.msra.mxu0 0.0
  %1864 = vmatprep.subr.mxu0 0.0
  %1865 = vmatpush1.xpose.msra.mxu0 0.0
  %1866 = vmatprep.subr.mxu0 0.0
  %1867 = vmatpush1.xpose.msra.mxu0 0.0
  %1868 = vmatprep.subr.mxu0 0.0
  %1869 = vmatpush1.xpose.msra.mxu0 0.0
  %1870 = vmatprep.subr.mxu0 0.0
  %1871 = vmatpush1.xpose.msra.mxu0 0.0
  %1872 = vmatprep.subr.mxu0 0.0
  %1873 = vmatpush1.xpose.msra.mxu0 0.0
  %1874 = vmatprep.subr.mxu0 0.0
  %1875 = vmatpush1.xpose.msra.mxu0 0.0
  %1876 = vmatprep.subr.mxu0 0.0
  %1877 = vmatpush1.xpose.msra.mxu0 0.0
  %1878 = vmatprep.subr.mxu0 0.0
  %1879 = vmatpush1.xpose.msra.mxu0 0.0
  %1880 = vmatprep.subr.mxu0 0.0
  %1881 = vmatpush1.xpose.msra.mxu0 0.0
  %1882 = vmatprep.subr.mxu0 0.0
  %1883 = vmatpush1.xpose.msra.mxu0 0.0
  %1884 = vmatprep.subr.mxu0 0.0
  %1885 = vmatpush1.xpose.msra.mxu0 0.0
  %1886 = vmatprep.subr.mxu0 0.0
  %1887 = vmatpush1.xpose.msra.mxu0 0.0
  %1888 = vmatprep.subr.mxu0 0.0
  %1889 = vmatpush1.xpose.msra.mxu0 0.0
  %1890 = vmatprep.subr.mxu0 0.0
  %1891 = vmatpush1.xpose.msra.mxu0 0.0
  %1892 = vmatprep.subr.mxu0 0.0
  %1893 = vmatpush1.xpose.msra.mxu0 0.0
  %1894 = vmatprep.subr.mxu0 0.0
  %1895 = vmatpush1.xpose.msra.mxu0 0.0
  %1896 = vmatprep.subr.mxu0 0.0
  %1897 = vmatpush1.xpose.msra.mxu0 0.0
  %1898 = vmatprep.subr.mxu0 0.0
  %1899 = vmatpush1.xpose.msra.mxu0 0.0
  %1900 = vmatprep.subr.mxu0 0.0
  %1901 = vmatpush1.xpose.msra.mxu0 0.0
  %1902 = vmatprep.subr.mxu0 0.0
  %1903 = vmatpush1.xpose.msra.mxu0 0.0
  %1904 = vmatprep.subr.mxu0 0.0
  %1905 = vmatpush1.xpose.msra.mxu0 0.0
  %1906 = vmatprep.subr.mxu0 0.0
  %1907 = vmatpush1.xpose.msra.mxu0 0.0
  %1908 = vmatprep.subr.mxu0 0.0
  %1909 = vmatpush1.xpose.msra.mxu0 0.0
  %1910 = vmatprep.subr.mxu0 0.0
  %1911 = vmatpush1.xpose.msra.mxu0 0.0
  %1912 = vmatprep.subr.mxu0 0.0
  %1913 = vmatpush1.xpose.msra.mxu0 0.0
  %1914 = vmatprep.subr.mxu0 0.0
  %1915 = vmatpush1.xpose.msra.mxu0 0.0
  %1916 = vmatprep.subr.mxu0 0.0
  %1917 = vmatpush1.xpose.msra.mxu0 0.0
  %1918 = vmatprep.subr.mxu0 0.0
  %1919 = vmatpush1.xpose.msra.mxu0 0.0
  %1920 = vmatprep.mubr.f32.mxu0 0.0
  %1921 = vmatmul.mubr.f32.gmra.mrb[0].mxu0 %v1851
  %v1922 = vpop.f32.mrb[0].mxu0
  %v1923 = vadd.f32 0.0, %v1922
  %v1924 = vpop.f32.mrb[0].mxu0
  %1925 = vdwg.mxu0
  %v1927 = vsel %vm171, %v1755, 0
  %v1930 = vsel %vm171, %v1847, 0
  %1932 = vmatprep.subr.mxu0 0.0
  %1933 = vmatpush1.xpose.msra.mxu0 %v1930
  %1934 = vmatprep.subr.mxu0 0.0
  %1935 = vmatpush1.xpose.msra.mxu0 0.0
  %1936 = vmatprep.subr.mxu0 0.0
  %1937 = vmatpush1.xpose.msra.mxu0 0.0
  %1938 = vmatprep.subr.mxu0 0.0
  %1939 = vmatpush1.xpose.msra.mxu0 0.0
  %1940 = vmatprep.subr.mxu0 0.0
  %1941 = vmatpush1.xpose.msra.mxu0 0.0
  %1942 = vmatprep.subr.mxu0 0.0
  %1943 = vmatpush1.xpose.msra.mxu0 0.0
  %1944 = vmatprep.subr.mxu0 0.0
  %1945 = vmatpush1.xpose.msra.mxu0 0.0
  %1946 = vmatprep.subr.mxu0 0.0
  %1947 = vmatpush1.xpose.msra.mxu0 0.0
  %1948 = vmatprep.subr.mxu0 0.0
  %1949 = vmatpush1.xpose.msra.mxu0 0.0
  %1950 = vmatprep.subr.mxu0 0.0
  %1951 = vmatpush1.xpose.msra.mxu0 0.0
  %1952 = vmatprep.subr.mxu0 0.0
  %1953 = vmatpush1.xpose.msra.mxu0 0.0
  %1954 = vmatprep.subr.mxu0 0.0
  %1955 = vmatpush1.xpose.msra.mxu0 0.0
  %1956 = vmatprep.subr.mxu0 0.0
  %1957 = vmatpush1.xpose.msra.mxu0 0.0
  %1958 = vmatprep.subr.mxu0 0.0
  %1959 = vmatpush1.xpose.msra.mxu0 0.0
  %1960 = vmatprep.subr.mxu0 0.0
  %1961 = vmatpush1.xpose.msra.mxu0 0.0
  %1962 = vmatprep.subr.mxu0 0.0
  %1963 = vmatpush1.xpose.msra.mxu0 0.0
  %1964 = vmatprep.subr.mxu0 0.0
  %1965 = vmatpush1.xpose.msra.mxu0 0.0
  %1966 = vmatprep.subr.mxu0 0.0
  %1967 = vmatpush1.xpose.msra.mxu0 0.0
  %1968 = vmatprep.subr.mxu0 0.0
  %1969 = vmatpush1.xpose.msra.mxu0 0.0
  %1970 = vmatprep.subr.mxu0 0.0
  %1971 = vmatpush1.xpose.msra.mxu0 0.0
  %1972 = vmatprep.subr.mxu0 0.0
  %1973 = vmatpush1.xpose.msra.mxu0 0.0
  %1974 = vmatprep.subr.mxu0 0.0
  %1975 = vmatpush1.xpose.msra.mxu0 0.0
  %1976 = vmatprep.subr.mxu0 0.0
  %1977 = vmatpush1.xpose.msra.mxu0 0.0
  %1978 = vmatprep.subr.mxu0 0.0
  %1979 = vmatpush1.xpose.msra.mxu0 0.0
  %1980 = vmatprep.subr.mxu0 0.0
  %1981 = vmatpush1.xpose.msra.mxu0 0.0
  %1982 = vmatprep.subr.mxu0 0.0
  %1983 = vmatpush1.xpose.msra.mxu0 0.0
  %1984 = vmatprep.subr.mxu0 0.0
  %1985 = vmatpush1.xpose.msra.mxu0 0.0
  %1986 = vmatprep.subr.mxu0 0.0
  %1987 = vmatpush1.xpose.msra.mxu0 0.0
  %1988 = vmatprep.subr.mxu0 0.0
  %1989 = vmatpush1.xpose.msra.mxu0 0.0
  %1990 = vmatprep.subr.mxu0 0.0
  %1991 = vmatpush1.xpose.msra.mxu0 0.0
  %1992 = vmatprep.subr.mxu0 0.0
  %1993 = vmatpush1.xpose.msra.mxu0 0.0
  %1994 = vmatprep.subr.mxu0 0.0
  %1995 = vmatpush1.xpose.msra.mxu0 0.0
  %1996 = vmatprep.mubr.f32.mxu0 0.0
  %1997 = vmatmul.mubr.f32.gmra.mrb[0].mxu0 %v1927
  %v1998 = vpop.f32.mrb[0].mxu0
  %v1999 = vadd.f32 0.0, %v1998
  %v2000 = vpop.f32.mrb[0].mxu0
  %2001 = vdwg.mxu0
  %v2002 = vmul.f32 %v1923, 0.35355338
  %v2003 = vmul.f32 %v1999, 0.35355338
  %v2004 = vsel %vm171, %v2002, -inf
  %2005 = vmax.xlane.f32.xlu0 %v2004
  %v2006 = vpop.xlane.xlu0 %2005
  %v2007 = vsel %vm171, %v2003, -inf
  %2008 = vmax.xlane.f32.xlu0 %v2007
  %v2009 = vpop.xlane.xlu0 %2008
  %v2010 = vsub.f32 %v2002, %v2006
  %v2011 = vsub.f32 %v2003, %v2009
  %v2012 = vmul.f32 %v2010, 1.442695
  %v2013 = vpow.pop %v2012
  %v2014 = vmul.f32 %v2011, 1.442695
  %v2015 = vpow.pop %v2014
  %v2016 = vsel %vm171, %v2013, 0.0
  %2017 = vadd.xlane.f32.xlu0 %v2016
  %v2018 = vpop.xlane.xlu0 %2017
  %v2019 = vsel %vm171, %v2015, 0.0
  %2020 = vadd.xlane.f32.xlu0 %v2019
  %v2021 = vpop.xlane.xlu0 %2020
  %v2022 = vrcp.pop %v2018
  %v2023 = vrcp.pop %v2021
  %v2024 = vmul.f32 %v2013, %v2022
  %v2025 = vmul.f32 %v2015, %v2023
  %2026 = vrot.lane.b32.xlu0 %v1842, 96
  %v2027 = vpop.permute.xlu0 %2026
  %v2030 = vsel %vm171, %v2024, 0
  %2032 = vmatprep.subr.mxu0 0.0
  %2033 = vmatpush1.msra.mxu0 %v2027
  %2034 = vmatprep.subr.mxu0 0.0
  %2035 = vmatpush1.msra.mxu0 0.0
  %2036 = vmatprep.subr.mxu0 0.0
  %2037 = vmatpush1.msra.mxu0 0.0
  %2038 = vmatprep.subr.mxu0 0.0
  %2039 = vmatpush1.msra.mxu0 0.0
  %2040 = vmatprep.subr.mxu0 0.0
  %2041 = vmatpush1.msra.mxu0 0.0
  %2042 = vmatprep.subr.mxu0 0.0
  %2043 = vmatpush1.msra.mxu0 0.0
  %2044 = vmatprep.subr.mxu0 0.0
  %2045 = vmatpush1.msra.mxu0 0.0
  %2046 = vmatprep.subr.mxu0 0.0
  %2047 = vmatpush1.msra.mxu0 0.0
  %2048 = vmatprep.subr.mxu0 0.0
  %2049 = vmatpush1.msra.mxu0 0.0
  %2050 = vmatprep.subr.mxu0 0.0
  %2051 = vmatpush1.msra.mxu0 0.0
  %2052 = vmatprep.subr.mxu0 0.0
  %2053 = vmatpush1.msra.mxu0 0.0
  %2054 = vmatprep.subr.mxu0 0.0
  %2055 = vmatpush1.msra.mxu0 0.0
  %2056 = vmatprep.subr.mxu0 0.0
  %2057 = vmatpush1.msra.mxu0 0.0
  %2058 = vmatprep.subr.mxu0 0.0
  %2059 = vmatpush1.msra.mxu0 0.0
  %2060 = vmatprep.subr.mxu0 0.0
  %2061 = vmatpush1.msra.mxu0 0.0
  %2062 = vmatprep.subr.mxu0 0.0
  %2063 = vmatpush1.msra.mxu0 0.0
  %2064 = vmatprep.subr.mxu0 0.0
  %2065 = vmatpush1.msra.mxu0 0.0
  %2066 = vmatprep.subr.mxu0 0.0
  %2067 = vmatpush1.msra.mxu0 0.0
  %2068 = vmatprep.subr.mxu0 0.0
  %2069 = vmatpush1.msra.mxu0 0.0
  %2070 = vmatprep.subr.mxu0 0.0
  %2071 = vmatpush1.msra.mxu0 0.0
  %2072 = vmatprep.subr.mxu0 0.0
  %2073 = vmatpush1.msra.mxu0 0.0
  %2074 = vmatprep.subr.mxu0 0.0
  %2075 = vmatpush1.msra.mxu0 0.0
  %2076 = vmatprep.subr.mxu0 0.0
  %2077 = vmatpush1.msra.mxu0 0.0
  %2078 = vmatprep.subr.mxu0 0.0
  %2079 = vmatpush1.msra.mxu0 0.0
  %2080 = vmatprep.subr.mxu0 0.0
  %2081 = vmatpush1.msra.mxu0 0.0
  %2082 = vmatprep.subr.mxu0 0.0
  %2083 = vmatpush1.msra.mxu0 0.0
  %2084 = vmatprep.subr.mxu0 0.0
  %2085 = vmatpush1.msra.mxu0 0.0
  %2086 = vmatprep.subr.mxu0 0.0
  %2087 = vmatpush1.msra.mxu0 0.0
  %2088 = vmatprep.subr.mxu0 0.0
  %2089 = vmatpush1.msra.mxu0 0.0
  %2090 = vmatprep.subr.mxu0 0.0
  %2091 = vmatpush1.msra.mxu0 0.0
  %2092 = vmatprep.subr.mxu0 0.0
  %2093 = vmatpush1.msra.mxu0 0.0
  %2094 = vmatprep.subr.mxu0 0.0
  %2095 = vmatpush1.msra.mxu0 0.0
  %2096 = vmatprep.mubr.f32.mxu0 0.0
  %2097 = vmatmul.mubr.f32.gmra.mrb[0].mxu0 %v2030
  %v2098 = vpop.f32.mrb[0].mxu0
  %v2099 = vadd.f32 0.0, %v2098
  %v2100 = vpop.f32.mrb[0].mxu0
  %2101 = vdwg.mxu0
  %2102 = vrot.lane.b32.xlu0 %v1847, 96
  %v2103 = vpop.permute.xlu0 %2102
  %v2106 = vsel %vm171, %v2025, 0
  %2108 = vmatprep.subr.mxu0 0.0
  %2109 = vmatpush1.msra.mxu0 %v2103
  %2110 = vmatprep.subr.mxu0 0.0
  %2111 = vmatpush1.msra.mxu0 0.0
  %2112 = vmatprep.subr.mxu0 0.0
  %2113 = vmatpush1.msra.mxu0 0.0
  %2114 = vmatprep.subr.mxu0 0.0
  %2115 = vmatpush1.msra.mxu0 0.0
  %2116 = vmatprep.subr.mxu0 0.0
  %2117 = vmatpush1.msra.mxu0 0.0
  %2118 = vmatprep.subr.mxu0 0.0
  %2119 = vmatpush1.msra.mxu0 0.0
  %2120 = vmatprep.subr.mxu0 0.0
  %2121 = vmatpush1.msra.mxu0 0.0
  %2122 = vmatprep.subr.mxu0 0.0
  %2123 = vmatpush1.msra.mxu0 0.0
  %2124 = vmatprep.subr.mxu0 0.0
  %2125 = vmatpush1.msra.mxu0 0.0
  %2126 = vmatprep.subr.mxu0 0.0
  %2127 = vmatpush1.msra.mxu0 0.0
  %2128 = vmatprep.subr.mxu0 0.0
  %2129 = vmatpush1.msra.mxu0 0.0
  %2130 = vmatprep.subr.mxu0 0.0
  %2131 = vmatpush1.msra.mxu0 0.0
  %2132 = vmatprep.subr.mxu0 0.0
  %2133 = vmatpush1.msra.mxu0 0.0
  %2134 = vmatprep.subr.mxu0 0.0
  %2135 = vmatpush1.msra.mxu0 0.0
  %2136 = vmatprep.subr.mxu0 0.0
  %2137 = vmatpush1.msra.mxu0 0.0
  %2138 = vmatprep.subr.mxu0 0.0
  %2139 = vmatpush1.msra.mxu0 0.0
  %2140 = vmatprep.subr.mxu0 0.0
  %2141 = vmatpush1.msra.mxu0 0.0
  %2142 = vmatprep.subr.mxu0 0.0
  %2143 = vmatpush1.msra.mxu0 0.0
  %2144 = vmatprep.subr.mxu0 0.0
  %2145 = vmatpush1.msra.mxu0 0.0
  %2146 = vmatprep.subr.mxu0 0.0
  %2147 = vmatpush1.msra.mxu0 0.0
  %2148 = vmatprep.subr.mxu0 0.0
  %2149 = vmatpush1.msra.mxu0 0.0
  %2150 = vmatprep.subr.mxu0 0.0
  %2151 = vmatpush1.msra.mxu0 0.0
  %2152 = vmatprep.subr.mxu0 0.0
  %2153 = vmatpush1.msra.mxu0 0.0
  %2154 = vmatprep.subr.mxu0 0.0
  %2155 = vmatpush1.msra.mxu0 0.0
  %2156 = vmatprep.subr.mxu0 0.0
  %2157 = vmatpush1.msra.mxu0 0.0
  %2158 = vmatprep.subr.mxu0 0.0
  %2159 = vmatpush1.msra.mxu0 0.0
  %2160 = vmatprep.subr.mxu0 0.0
  %2161 = vmatpush1.msra.mxu0 0.0
  %2162 = vmatprep.subr.mxu0 0.0
  %2163 = vmatpush1.msra.mxu0 0.0
  %2164 = vmatprep.subr.mxu0 0.0
  %2165 = vmatpush1.msra.mxu0 0.0
  %2166 = vmatprep.subr.mxu0 0.0
  %2167 = vmatpush1.msra.mxu0 0.0
  %2168 = vmatprep.subr.mxu0 0.0
  %2169 = vmatpush1.msra.mxu0 0.0
  %2170 = vmatprep.subr.mxu0 0.0
  %2171 = vmatpush1.msra.mxu0 0.0
  %2172 = vmatprep.mubr.f32.mxu0 0.0
  %2173 = vmatmul.mubr.f32.gmra.mrb[0].mxu0 %v2106
  %v2174 = vpop.f32.mrb[0].mxu0
  %v2175 = vadd.f32 0.0, %v2174
  %v2176 = vpop.f32.mrb[0].mxu0
  %2177 = vdwg.mxu0
  %2178 = vrot.lane.b32.xlu0 %v1750, 120
  %v2179 = vpop.permute.xlu0 %2178
  %2180 = vrot.lane.b32.xlu0 %v1842, 120
  %v2181 = vpop.permute.xlu0 %2180
  %v2182 = vsel %vm171, %v2179, 0
  %v2184 = vsel %vm171, %v2181, 0
  %2186 = vmatprep.subr.mxu0 0.0
  %2187 = vmatpush1.xpose.msra.mxu0 %v2184
  %2188 = vmatprep.subr.mxu0 0.0
  %2189 = vmatpush1.xpose.msra.mxu0 0.0
  %2190 = vmatprep.subr.mxu0 0.0
  %2191 = vmatpush1.xpose.msra.mxu0 0.0
  %2192 = vmatprep.subr.mxu0 0.0
  %2193 = vmatpush1.xpose.msra.mxu0 0.0
  %2194 = vmatprep.subr.mxu0 0.0
  %2195 = vmatpush1.xpose.msra.mxu0 0.0
  %2196 = vmatprep.subr.mxu0 0.0
  %2197 = vmatpush1.xpose.msra.mxu0 0.0
  %2198 = vmatprep.subr.mxu0 0.0
  %2199 = vmatpush1.xpose.msra.mxu0 0.0
  %2200 = vmatprep.subr.mxu0 0.0
  %2201 = vmatpush1.xpose.msra.mxu0 0.0
  %2202 = vmatprep.subr.mxu0 0.0
  %2203 = vmatpush1.xpose.msra.mxu0 0.0
  %2204 = vmatprep.subr.mxu0 0.0
  %2205 = vmatpush1.xpose.msra.mxu0 0.0
  %2206 = vmatprep.subr.mxu0 0.0
  %2207 = vmatpush1.xpose.msra.mxu0 0.0
  %2208 = vmatprep.subr.mxu0 0.0
  %2209 = vmatpush1.xpose.msra.mxu0 0.0
  %2210 = vmatprep.subr.mxu0 0.0
  %2211 = vmatpush1.xpose.msra.mxu0 0.0
  %2212 = vmatprep.subr.mxu0 0.0
  %2213 = vmatpush1.xpose.msra.mxu0 0.0
  %2214 = vmatprep.subr.mxu0 0.0
  %2215 = vmatpush1.xpose.msra.mxu0 0.0
  %2216 = vmatprep.subr.mxu0 0.0
  %2217 = vmatpush1.xpose.msra.mxu0 0.0
  %2218 = vmatprep.subr.mxu0 0.0
  %2219 = vmatpush1.xpose.msra.mxu0 0.0
  %2220 = vmatprep.subr.mxu0 0.0
  %2221 = vmatpush1.xpose.msra.mxu0 0.0
  %2222 = vmatprep.subr.mxu0 0.0
  %2223 = vmatpush1.xpose.msra.mxu0 0.0
  %2224 = vmatprep.subr.mxu0 0.0
  %2225 = vmatpush1.xpose.msra.mxu0 0.0
  %2226 = vmatprep.subr.mxu0 0.0
  %2227 = vmatpush1.xpose.msra.mxu0 0.0
  %2228 = vmatprep.subr.mxu0 0.0
  %2229 = vmatpush1.xpose.msra.mxu0 0.0
  %2230 = vmatprep.subr.mxu0 0.0
  %2231 = vmatpush1.xpose.msra.mxu0 0.0
  %2232 = vmatprep.subr.mxu0 0.0
  %2233 = vmatpush1.xpose.msra.mxu0 0.0
  %2234 = vmatprep.subr.mxu0 0.0
  %2235 = vmatpush1.xpose.msra.mxu0 0.0
  %2236 = vmatprep.subr.mxu0 0.0
  %2237 = vmatpush1.xpose.msra.mxu0 0.0
  %2238 = vmatprep.subr.mxu0 0.0
  %2239 = vmatpush1.xpose.msra.mxu0 0.0
  %2240 = vmatprep.subr.mxu0 0.0
  %2241 = vmatpush1.xpose.msra.mxu0 0.0
  %2242 = vmatprep.subr.mxu0 0.0
  %2243 = vmatpush1.xpose.msra.mxu0 0.0
  %2244 = vmatprep.subr.mxu0 0.0
  %2245 = vmatpush1.xpose.msra.mxu0 0.0
  %2246 = vmatprep.subr.mxu0 0.0
  %2247 = vmatpush1.xpose.msra.mxu0 0.0
  %2248 = vmatprep.subr.mxu0 0.0
  %2249 = vmatpush1.xpose.msra.mxu0 0.0
  %2250 = vmatprep.mubr.f32.mxu0 0.0
  %2251 = vmatmul.mubr.f32.gmra.mrb[0].mxu0 %v2182
  %v2252 = vpop.f32.mrb[0].mxu0
  %v2253 = vadd.f32 0.0, %v2252
  %v2254 = vpop.f32.mrb[0].mxu0
  %2255 = vdwg.mxu0
  %2256 = vrot.lane.b32.xlu0 %v1755, 120
  %v2257 = vpop.permute.xlu0 %2256
  %2258 = vrot.lane.b32.xlu0 %v1847, 120
  %v2259 = vpop.permute.xlu0 %2258
  %v2260 = vsel %vm171, %v2257, 0
  %v2262 = vsel %vm171, %v2259, 0
  %2264 = vmatprep.subr.mxu0 0.0
  %2265 = vmatpush1.xpose.msra.mxu0 %v2262
  %2266 = vmatprep.subr.mxu0 0.0
  %2267 = vmatpush1.xpose.msra.mxu0 0.0
  %2268 = vmatprep.subr.mxu0 0.0
  %2269 = vmatpush1.xpose.msra.mxu0 0.0
  %2270 = vmatprep.subr.mxu0 0.0
  %2271 = vmatpush1.xpose.msra.mxu0 0.0
  %2272 = vmatprep.subr.mxu0 0.0
  %2273 = vmatpush1.xpose.msra.mxu0 0.0
  %2274 = vmatprep.subr.mxu0 0.0
  %2275 = vmatpush1.xpose.msra.mxu0 0.0
  %2276 = vmatprep.subr.mxu0 0.0
  %2277 = vmatpush1.xpose.msra.mxu0 0.0
  %2278 = vmatprep.subr.mxu0 0.0
  %2279 = vmatpush1.xpose.msra.mxu0 0.0
  %2280 = vmatprep.subr.mxu0 0.0
  %2281 = vmatpush1.xpose.msra.mxu0 0.0
  %2282 = vmatprep.subr.mxu0 0.0
  %2283 = vmatpush1.xpose.msra.mxu0 0.0
  %2284 = vmatprep.subr.mxu0 0.0
  %2285 = vmatpush1.xpose.msra.mxu0 0.0
  %2286 = vmatprep.subr.mxu0 0.0
  %2287 = vmatpush1.xpose.msra.mxu0 0.0
  %2288 = vmatprep.subr.mxu0 0.0
  %2289 = vmatpush1.xpose.msra.mxu0 0.0
  %2290 = vmatprep.subr.mxu0 0.0
  %2291 = vmatpush1.xpose.msra.mxu0 0.0
  %2292 = vmatprep.subr.mxu0 0.0
  %2293 = vmatpush1.xpose.msra.mxu0 0.0
  %2294 = vmatprep.subr.mxu0 0.0
  %2295 = vmatpush1.xpose.msra.mxu0 0.0
  %2296 = vmatprep.subr.mxu0 0.0
  %2297 = vmatpush1.xpose.msra.mxu0 0.0
  %2298 = vmatprep.subr.mxu0 0.0
  %2299 = vmatpush1.xpose.msra.mxu0 0.0
  %2300 = vmatprep.subr.mxu0 0.0
  %2301 = vmatpush1.xpose.msra.mxu0 0.0
  %2302 = vmatprep.subr.mxu0 0.0
  %2303 = vmatpush1.xpose.msra.mxu0 0.0
  %2304 = vmatprep.subr.mxu0 0.0
  %2305 = vmatpush1.xpose.msra.mxu0 0.0
  %2306 = vmatprep.subr.mxu0 0.0
  %2307 = vmatpush1.xpose.msra.mxu0 0.0
  %2308 = vmatprep.subr.mxu0 0.0
  %2309 = vmatpush1.xpose.msra.mxu0 0.0
  %2310 = vmatprep.subr.mxu0 0.0
  %2311 = vmatpush1.xpose.msra.mxu0 0.0
  %2312 = vmatprep.subr.mxu0 0.0
  %2313 = vmatpush1.xpose.msra.mxu0 0.0
  %2314 = vmatprep.subr.mxu0 0.0
  %2315 = vmatpush1.xpose.msra.mxu0 0.0
  %2316 = vmatprep.subr.mxu0 0.0
  %2317 = vmatpush1.xpose.msra.mxu0 0.0
  %2318 = vmatprep.subr.mxu0 0.0
  %2319 = vmatpush1.xpose.msra.mxu0 0.0
  %2320 = vmatprep.subr.mxu0 0.0
  %2321 = vmatpush1.xpose.msra.mxu0 0.0
  %2322 = vmatprep.subr.mxu0 0.0
  %2323 = vmatpush1.xpose.msra.mxu0 0.0
  %2324 = vmatprep.subr.mxu0 0.0
  %2325 = vmatpush1.xpose.msra.mxu0 0.0
  %2326 = vmatprep.subr.mxu0 0.0
  %2327 = vmatpush1.xpose.msra.mxu0 0.0
  %2328 = vmatprep.mubr.f32.mxu0 0.0
  %2329 = vmatmul.mubr.f32.gmra.mrb[0].mxu0 %v2260
  %v2330 = vpop.f32.mrb[0].mxu0
  %v2331 = vadd.f32 0.0, %v2330
  %v2332 = vpop.f32.mrb[0].mxu0
  %2333 = vdwg.mxu0
  %v2334 = vmul.f32 %v2253, 0.35355338
  %v2335 = vmul.f32 %v2331, 0.35355338
  %v2336 = vsel %vm171, %v2334, -inf
  %2337 = vmax.xlane.f32.xlu0 %v2336
  %v2338 = vpop.xlane.xlu0 %2337
  %v2339 = vsel %vm171, %v2335, -inf
  %2340 = vmax.xlane.f32.xlu0 %v2339
  %v2341 = vpop.xlane.xlu0 %2340
  %v2342 = vsub.f32 %v2334, %v2338
  %v2343 = vsub.f32 %v2335, %v2341
  %v2344 = vmul.f32 %v2342, 1.442695
  %v2345 = vpow.pop %v2344
  %v2346 = vmul.f32 %v2343, 1.442695
  %v2347 = vpow.pop %v2346
  %v2348 = vsel %vm171, %v2345, 0.0
  %2349 = vadd.xlane.f32.xlu0 %v2348
  %v2350 = vpop.xlane.xlu0 %2349
  %v2351 = vsel %vm171, %v2347, 0.0
  %2352 = vadd.xlane.f32.xlu0 %v2351
  %v2353 = vpop.xlane.xlu0 %2352
  %v2354 = vrcp.pop %v2350
  %v2355 = vrcp.pop %v2353
  %v2356 = vmul.f32 %v2345, %v2354
  %v2357 = vmul.f32 %v2347, %v2355
  %2358 = vrot.lane.b32.xlu0 %v1842, 88
  %v2359 = vpop.permute.xlu0 %2358
  %v2362 = vsel %vm171, %v2356, 0
  %2364 = vmatprep.subr.mxu0 0.0
  %2365 = vmatpush1.msra.mxu0 %v2359
  %2366 = vmatprep.subr.mxu0 0.0
  %2367 = vmatpush1.msra.mxu0 0.0
  %2368 = vmatprep.subr.mxu0 0.0
  %2369 = vmatpush1.msra.mxu0 0.0
  %2370 = vmatprep.subr.mxu0 0.0
  %2371 = vmatpush1.msra.mxu0 0.0
  %2372 = vmatprep.subr.mxu0 0.0
  %2373 = vmatpush1.msra.mxu0 0.0
  %2374 = vmatprep.subr.mxu0 0.0
  %2375 = vmatpush1.msra.mxu0 0.0
  %2376 = vmatprep.subr.mxu0 0.0
  %2377 = vmatpush1.msra.mxu0 0.0
  %2378 = vmatprep.subr.mxu0 0.0
  %2379 = vmatpush1.msra.mxu0 0.0
  %2380 = vmatprep.subr.mxu0 0.0
  %2381 = vmatpush1.msra.mxu0 0.0
  %2382 = vmatprep.subr.mxu0 0.0
  %2383 = vmatpush1.msra.mxu0 0.0
  %2384 = vmatprep.subr.mxu0 0.0
  %2385 = vmatpush1.msra.mxu0 0.0
  %2386 = vmatprep.subr.mxu0 0.0
  %2387 = vmatpush1.msra.mxu0 0.0
  %2388 = vmatprep.subr.mxu0 0.0
  %2389 = vmatpush1.msra.mxu0 0.0
  %2390 = vmatprep.subr.mxu0 0.0
  %2391 = vmatpush1.msra.mxu0 0.0
  %2392 = vmatprep.subr.mxu0 0.0
  %2393 = vmatpush1.msra.mxu0 0.0
  %2394 = vmatprep.subr.mxu0 0.0
  %2395 = vmatpush1.msra.mxu0 0.0
  %2396 = vmatprep.subr.mxu0 0.0
  %2397 = vmatpush1.msra.mxu0 0.0
  %2398 = vmatprep.subr.mxu0 0.0
  %2399 = vmatpush1.msra.mxu0 0.0
  %2400 = vmatprep.subr.mxu0 0.0
  %2401 = vmatpush1.msra.mxu0 0.0
  %2402 = vmatprep.subr.mxu0 0.0
  %2403 = vmatpush1.msra.mxu0 0.0
  %2404 = vmatprep.subr.mxu0 0.0
  %2405 = vmatpush1.msra.mxu0 0.0
  %2406 = vmatprep.subr.mxu0 0.0
  %2407 = vmatpush1.msra.mxu0 0.0
  %2408 = vmatprep.subr.mxu0 0.0
  %2409 = vmatpush1.msra.mxu0 0.0
  %2410 = vmatprep.subr.mxu0 0.0
  %2411 = vmatpush1.msra.mxu0 0.0
  %2412 = vmatprep.subr.mxu0 0.0
  %2413 = vmatpush1.msra.mxu0 0.0
  %2414 = vmatprep.subr.mxu0 0.0
  %2415 = vmatpush1.msra.mxu0 0.0
  %2416 = vmatprep.subr.mxu0 0.0
  %2417 = vmatpush1.msra.mxu0 0.0
  %2418 = vmatprep.subr.mxu0 0.0
  %2419 = vmatpush1.msra.mxu0 0.0
  %2420 = vmatprep.subr.mxu0 0.0
  %2421 = vmatpush1.msra.mxu0 0.0
  %2422 = vmatprep.subr.mxu0 0.0
  %2423 = vmatpush1.msra.mxu0 0.0
  %2424 = vmatprep.subr.mxu0 0.0
  %2425 = vmatpush1.msra.mxu0 0.0
  %2426 = vmatprep.subr.mxu0 0.0
  %2427 = vmatpush1.msra.mxu0 0.0
  %2428 = vmatprep.mubr.f32.mxu0 0.0
  %2429 = vmatmul.mubr.f32.gmra.mrb[0].mxu0 %v2362
  %v2430 = vpop.f32.mrb[0].mxu0
  %v2431 = vadd.f32 0.0, %v2430
  %v2432 = vpop.f32.mrb[0].mxu0
  %2433 = vdwg.mxu0
  %2434 = vrot.lane.b32.xlu0 %v1847, 88
  %v2435 = vpop.permute.xlu0 %2434
  %v2438 = vsel %vm171, %v2357, 0
  %2440 = vmatprep.subr.mxu0 0.0
  %2441 = vmatpush1.msra.mxu0 %v2435
  %2442 = vmatprep.subr.mxu0 0.0
  %2443 = vmatpush1.msra.mxu0 0.0
  %2444 = vmatprep.subr.mxu0 0.0
  %2445 = vmatpush1.msra.mxu0 0.0
  %2446 = vmatprep.subr.mxu0 0.0
  %2447 = vmatpush1.msra.mxu0 0.0
  %2448 = vmatprep.subr.mxu0 0.0
  %2449 = vmatpush1.msra.mxu0 0.0
  %2450 = vmatprep.subr.mxu0 0.0
  %2451 = vmatpush1.msra.mxu0 0.0
  %2452 = vmatprep.subr.mxu0 0.0
  %2453 = vmatpush1.msra.mxu0 0.0
  %2454 = vmatprep.subr.mxu0 0.0
  %2455 = vmatpush1.msra.mxu0 0.0
  %2456 = vmatprep.subr.mxu0 0.0
  %2457 = vmatpush1.msra.mxu0 0.0
  %2458 = vmatprep.subr.mxu0 0.0
  %2459 = vmatpush1.msra.mxu0 0.0
  %2460 = vmatprep.subr.mxu0 0.0
  %2461 = vmatpush1.msra.mxu0 0.0
  %2462 = vmatprep.subr.mxu0 0.0
  %2463 = vmatpush1.msra.mxu0 0.0
  %2464 = vmatprep.subr.mxu0 0.0
  %2465 = vmatpush1.msra.mxu0 0.0
  %2466 = vmatprep.subr.mxu0 0.0
  %2467 = vmatpush1.msra.mxu0 0.0
  %2468 = vmatprep.subr.mxu0 0.0
  %2469 = vmatpush1.msra.mxu0 0.0
  %2470 = vmatprep.subr.mxu0 0.0
  %2471 = vmatpush1.msra.mxu0 0.0
  %2472 = vmatprep.subr.mxu0 0.0
  %2473 = vmatpush1.msra.mxu0 0.0
  %2474 = vmatprep.subr.mxu0 0.0
  %2475 = vmatpush1.msra.mxu0 0.0
  %2476 = vmatprep.subr.mxu0 0.0
  %2477 = vmatpush1.msra.mxu0 0.0
  %2478 = vmatprep.subr.mxu0 0.0
  %2479 = vmatpush1.msra.mxu0 0.0
  %2480 = vmatprep.subr.mxu0 0.0
  %2481 = vmatpush1.msra.mxu0 0.0
  %2482 = vmatprep.subr.mxu0 0.0
  %2483 = vmatpush1.msra.mxu0 0.0
  %2484 = vmatprep.subr.mxu0 0.0
  %2485 = vmatpush1.msra.mxu0 0.0
  %2486 = vmatprep.subr.mxu0 0.0
  %2487 = vmatpush1.msra.mxu0 0.0
  %2488 = vmatprep.subr.mxu0 0.0
  %2489 = vmatpush1.msra.mxu0 0.0
  %2490 = vmatprep.subr.mxu0 0.0
  %2491 = vmatpush1.msra.mxu0 0.0
  %2492 = vmatprep.subr.mxu0 0.0
  %2493 = vmatpush1.msra.mxu0 0.0
  %2494 = vmatprep.subr.mxu0 0.0
  %2495 = vmatpush1.msra.mxu0 0.0
  %2496 = vmatprep.subr.mxu0 0.0
  %2497 = vmatpush1.msra.mxu0 0.0
  %2498 = vmatprep.subr.mxu0 0.0
  %2499 = vmatpush1.msra.mxu0 0.0
  %2500 = vmatprep.subr.mxu0 0.0
  %2501 = vmatpush1.msra.mxu0 0.0
  %2502 = vmatprep.subr.mxu0 0.0
  %2503 = vmatpush1.msra.mxu0 0.0
  %2504 = vmatprep.mubr.f32.mxu0 0.0
  %2505 = vmatmul.mubr.f32.gmra.mrb[0].mxu0 %v2438
  %v2506 = vpop.f32.mrb[0].mxu0
  %v2507 = vadd.f32 0.0, %v2506
  %v2508 = vpop.f32.mrb[0].mxu0
  %2509 = vdwg.mxu0
  %2510 = vrot.lane.b32.xlu0 %v1750, 112
  %v2511 = vpop.permute.xlu0 %2510
  %2512 = vrot.lane.b32.xlu0 %v1842, 112
  %v2513 = vpop.permute.xlu0 %2512
  %v2514 = vsel %vm171, %v2511, 0
  %v2516 = vsel %vm171, %v2513, 0
  %2518 = vmatprep.subr.mxu0 0.0
  %2519 = vmatpush1.xpose.msra.mxu0 %v2516
  %2520 = vmatprep.subr.mxu0 0.0
  %2521 = vmatpush1.xpose.msra.mxu0 0.0
  %2522 = vmatprep.subr.mxu0 0.0
  %2523 = vmatpush1.xpose.msra.mxu0 0.0
  %2524 = vmatprep.subr.mxu0 0.0
  %2525 = vmatpush1.xpose.msra.mxu0 0.0
  %2526 = vmatprep.subr.mxu0 0.0
  %2527 = vmatpush1.xpose.msra.mxu0 0.0
  %2528 = vmatprep.subr.mxu0 0.0
  %2529 = vmatpush1.xpose.msra.mxu0 0.0
  %2530 = vmatprep.subr.mxu0 0.0
  %2531 = vmatpush1.xpose.msra.mxu0 0.0
  %2532 = vmatprep.subr.mxu0 0.0
  %2533 = vmatpush1.xpose.msra.mxu0 0.0
  %2534 = vmatprep.subr.mxu0 0.0
  %2535 = vmatpush1.xpose.msra.mxu0 0.0
  %2536 = vmatprep.subr.mxu0 0.0
  %2537 = vmatpush1.xpose.msra.mxu0 0.0
  %2538 = vmatprep.subr.mxu0 0.0
  %2539 = vmatpush1.xpose.msra.mxu0 0.0
  %2540 = vmatprep.subr.mxu0 0.0
  %2541 = vmatpush1.xpose.msra.mxu0 0.0
  %2542 = vmatprep.subr.mxu0 0.0
  %2543 = vmatpush1.xpose.msra.mxu0 0.0
  %2544 = vmatprep.subr.mxu0 0.0
  %2545 = vmatpush1.xpose.msra.mxu0 0.0
  %2546 = vmatprep.subr.mxu0 0.0
  %2547 = vmatpush1.xpose.msra.mxu0 0.0
  %2548 = vmatprep.subr.mxu0 0.0
  %2549 = vmatpush1.xpose.msra.mxu0 0.0
  %2550 = vmatprep.subr.mxu0 0.0
  %2551 = vmatpush1.xpose.msra.mxu0 0.0
  %2552 = vmatprep.subr.mxu0 0.0
  %2553 = vmatpush1.xpose.msra.mxu0 0.0
  %2554 = vmatprep.subr.mxu0 0.0
  %2555 = vmatpush1.xpose.msra.mxu0 0.0
  %2556 = vmatprep.subr.mxu0 0.0
  %2557 = vmatpush1.xpose.msra.mxu0 0.0
  %2558 = vmatprep.subr.mxu0 0.0
  %2559 = vmatpush1.xpose.msra.mxu0 0.0
  %2560 = vmatprep.subr.mxu0 0.0
  %2561 = vmatpush1.xpose.msra.mxu0 0.0
  %2562 = vmatprep.subr.mxu0 0.0
  %2563 = vmatpush1.xpose.msra.mxu0 0.0
  %2564 = vmatprep.subr.mxu0 0.0
  %2565 = vmatpush1.xpose.msra.mxu0 0.0
  %2566 = vmatprep.subr.mxu0 0.0
  %2567 = vmatpush1.xpose.msra.mxu0 0.0
  %2568 = vmatprep.subr.mxu0 0.0
  %2569 = vmatpush1.xpose.msra.mxu0 0.0
  %2570 = vmatprep.subr.mxu0 0.0
  %2571 = vmatpush1.xpose.msra.mxu0 0.0
  %2572 = vmatprep.subr.mxu0 0.0
  %2573 = vmatpush1.xpose.msra.mxu0 0.0
  %2574 = vmatprep.subr.mxu0 0.0
  %2575 = vmatpush1.xpose.msra.mxu0 0.0
  %2576 = vmatprep.subr.mxu0 0.0
  %2577 = vmatpush1.xpose.msra.mxu0 0.0
  %2578 = vmatprep.subr.mxu0 0.0
  %2579 = vmatpush1.xpose.msra.mxu0 0.0
  %2580 = vmatprep.subr.mxu0 0.0
  %2581 = vmatpush1.xpose.msra.mxu0 0.0
  %2582 = vmatprep.mubr.f32.mxu0 0.0
  %2583 = vmatmul.mubr.f32.gmra.mrb[0].mxu0 %v2514
  %v2584 = vpop.f32.mrb[0].mxu0
  %v2585 = vadd.f32 0.0, %v2584
  %v2586 = vpop.f32.mrb[0].mxu0
  %2587 = vdwg.mxu0
  %2588 = vrot.lane.b32.xlu0 %v1755, 112
  %v2589 = vpop.permute.xlu0 %2588
  %2590 = vrot.lane.b32.xlu0 %v1847, 112
  %v2591 = vpop.permute.xlu0 %2590
  %v2592 = vsel %vm171, %v2589, 0
  %v2594 = vsel %vm171, %v2591, 0
  %2596 = vmatprep.subr.mxu0 0.0
  %2597 = vmatpush1.xpose.msra.mxu0 %v2594
  %2598 = vmatprep.subr.mxu0 0.0
  %2599 = vmatpush1.xpose.msra.mxu0 0.0
  %2600 = vmatprep.subr.mxu0 0.0
  %2601 = vmatpush1.xpose.msra.mxu0 0.0
  %2602 = vmatprep.subr.mxu0 0.0
  %2603 = vmatpush1.xpose.msra.mxu0 0.0
  %2604 = vmatprep.subr.mxu0 0.0
  %2605 = vmatpush1.xpose.msra.mxu0 0.0
  %2606 = vmatprep.subr.mxu0 0.0
  %2607 = vmatpush1.xpose.msra.mxu0 0.0
  %2608 = vmatprep.subr.mxu0 0.0
  %2609 = vmatpush1.xpose.msra.mxu0 0.0
  %2610 = vmatprep.subr.mxu0 0.0
  %2611 = vmatpush1.xpose.msra.mxu0 0.0
  %2612 = vmatprep.subr.mxu0 0.0
  %2613 = vmatpush1.xpose.msra.mxu0 0.0
  %2614 = vmatprep.subr.mxu0 0.0
  %2615 = vmatpush1.xpose.msra.mxu0 0.0
  %2616 = vmatprep.subr.mxu0 0.0
  %2617 = vmatpush1.xpose.msra.mxu0 0.0
  %2618 = vmatprep.subr.mxu0 0.0
  %2619 = vmatpush1.xpose.msra.mxu0 0.0
  %2620 = vmatprep.subr.mxu0 0.0
  %2621 = vmatpush1.xpose.msra.mxu0 0.0
  %2622 = vmatprep.subr.mxu0 0.0
  %2623 = vmatpush1.xpose.msra.mxu0 0.0
  %2624 = vmatprep.subr.mxu0 0.0
  %2625 = vmatpush1.xpose.msra.mxu0 0.0
  %2626 = vmatprep.subr.mxu0 0.0
  %2627 = vmatpush1.xpose.msra.mxu0 0.0
  %2628 = vmatprep.subr.mxu0 0.0
  %2629 = vmatpush1.xpose.msra.mxu0 0.0
  %2630 = vmatprep.subr.mxu0 0.0
  %2631 = vmatpush1.xpose.msra.mxu0 0.0
  %2632 = vmatprep.subr.mxu0 0.0
  %2633 = vmatpush1.xpose.msra.mxu0 0.0
  %2634 = vmatprep.subr.mxu0 0.0
  %2635 = vmatpush1.xpose.msra.mxu0 0.0
  %2636 = vmatprep.subr.mxu0 0.0
  %2637 = vmatpush1.xpose.msra.mxu0 0.0
  %2638 = vmatprep.subr.mxu0 0.0
  %2639 = vmatpush1.xpose.msra.mxu0 0.0
  %2640 = vmatprep.subr.mxu0 0.0
  %2641 = vmatpush1.xpose.msra.mxu0 0.0
  %2642 = vmatprep.subr.mxu0 0.0
  %2643 = vmatpush1.xpose.msra.mxu0 0.0
  %2644 = vmatprep.subr.mxu0 0.0
  %2645 = vmatpush1.xpose.msra.mxu0 0.0
  %2646 = vmatprep.subr.mxu0 0.0
  %2647 = vmatpush1.xpose.msra.mxu0 0.0
  %2648 = vmatprep.subr.mxu0 0.0
  %2649 = vmatpush1.xpose.msra.mxu0 0.0
  %2650 = vmatprep.subr.mxu0 0.0
  %2651 = vmatpush1.xpose.msra.mxu0 0.0
  %2652 = vmatprep.subr.mxu0 0.0
  %2653 = vmatpush1.xpose.msra.mxu0 0.0
  %2654 = vmatprep.subr.mxu0 0.0
  %2655 = vmatpush1.xpose.msra.mxu0 0.0
  %2656 = vmatprep.subr.mxu0 0.0
  %2657 = vmatpush1.xpose.msra.mxu0 0.0
  %2658 = vmatprep.subr.mxu0 0.0
  %2659 = vmatpush1.xpose.msra.mxu0 0.0
  %2660 = vmatprep.mubr.f32.mxu0 0.0
  %2661 = vmatmul.mubr.f32.gmra.mrb[0].mxu0 %v2592
  %v2662 = vpop.f32.mrb[0].mxu0
  %v2663 = vadd.f32 0.0, %v2662
  %v2664 = vpop.f32.mrb[0].mxu0
  %2665 = vdwg.mxu0
  %v2666 = vmul.f32 %v2585, 0.35355338
  %v2667 = vmul.f32 %v2663, 0.35355338
  %v2668 = vsel %vm171, %v2666, -inf
  %2669 = vmax.xlane.f32.xlu0 %v2668
  %v2670 = vpop.xlane.xlu0 %2669
  %v2671 = vsel %vm171, %v2667, -inf
  %2672 = vmax.xlane.f32.xlu0 %v2671
  %v2673 = vpop.xlane.xlu0 %2672
  %v2674 = vsub.f32 %v2666, %v2670
  %v2675 = vsub.f32 %v2667, %v2673
  %v2676 = vmul.f32 %v2674, 1.442695
  %v2677 = vpow.pop %v2676
  %v2678 = vmul.f32 %v2675, 1.442695
  %v2679 = vpow.pop %v2678
  %v2680 = vsel %vm171, %v2677, 0.0
  %2681 = vadd.xlane.f32.xlu0 %v2680
  %v2682 = vpop.xlane.xlu0 %2681
  %v2683 = vsel %vm171, %v2679, 0.0
  %2684 = vadd.xlane.f32.xlu0 %v2683
  %v2685 = vpop.xlane.xlu0 %2684
  %v2686 = vrcp.pop %v2682
  %v2687 = vrcp.pop %v2685
  %v2688 = vmul.f32 %v2677, %v2686
  %v2689 = vmul.f32 %v2679, %v2687
  %2690 = vrot.lane.b32.xlu0 %v1842, 80
  %v2691 = vpop.permute.xlu0 %2690
  %v2694 = vsel %vm171, %v2688, 0
  %2696 = vmatprep.subr.mxu0 0.0
  %2697 = vmatpush1.msra.mxu0 %v2691
  %2698 = vmatprep.subr.mxu0 0.0
  %2699 = vmatpush1.msra.mxu0 0.0
  %2700 = vmatprep.subr.mxu0 0.0
  %2701 = vmatpush1.msra.mxu0 0.0
  %2702 = vmatprep.subr.mxu0 0.0
  %2703 = vmatpush1.msra.mxu0 0.0
  %2704 = vmatprep.subr.mxu0 0.0
  %2705 = vmatpush1.msra.mxu0 0.0
  %2706 = vmatprep.subr.mxu0 0.0
  %2707 = vmatpush1.msra.mxu0 0.0
  %2708 = vmatprep.subr.mxu0 0.0
  %2709 = vmatpush1.msra.mxu0 0.0
  %2710 = vmatprep.subr.mxu0 0.0
  %2711 = vmatpush1.msra.mxu0 0.0
  %2712 = vmatprep.subr.mxu0 0.0
  %2713 = vmatpush1.msra.mxu0 0.0
  %2714 = vmatprep.subr.mxu0 0.0
  %2715 = vmatpush1.msra.mxu0 0.0
  %2716 = vmatprep.subr.mxu0 0.0
  %2717 = vmatpush1.msra.mxu0 0.0
  %2718 = vmatprep.subr.mxu0 0.0
  %2719 = vmatpush1.msra.mxu0 0.0
  %2720 = vmatprep.subr.mxu0 0.0
  %2721 = vmatpush1.msra.mxu0 0.0
  %2722 = vmatprep.subr.mxu0 0.0
  %2723 = vmatpush1.msra.mxu0 0.0
  %2724 = vmatprep.subr.mxu0 0.0
  %2725 = vmatpush1.msra.mxu0 0.0
  %2726 = vmatprep.subr.mxu0 0.0
  %2727 = vmatpush1.msra.mxu0 0.0
  %2728 = vmatprep.subr.mxu0 0.0
  %2729 = vmatpush1.msra.mxu0 0.0
  %2730 = vmatprep.subr.mxu0 0.0
  %2731 = vmatpush1.msra.mxu0 0.0
  %2732 = vmatprep.subr.mxu0 0.0
  %2733 = vmatpush1.msra.mxu0 0.0
  %2734 = vmatprep.subr.mxu0 0.0
  %2735 = vmatpush1.msra.mxu0 0.0
  %2736 = vmatprep.subr.mxu0 0.0
  %2737 = vmatpush1.msra.mxu0 0.0
  %2738 = vmatprep.subr.mxu0 0.0
  %2739 = vmatpush1.msra.mxu0 0.0
  %2740 = vmatprep.subr.mxu0 0.0
  %2741 = vmatpush1.msra.mxu0 0.0
  %2742 = vmatprep.subr.mxu0 0.0
  %2743 = vmatpush1.msra.mxu0 0.0
  %2744 = vmatprep.subr.mxu0 0.0
  %2745 = vmatpush1.msra.mxu0 0.0
  %2746 = vmatprep.subr.mxu0 0.0
  %2747 = vmatpush1.msra.mxu0 0.0
  %2748 = vmatprep.subr.mxu0 0.0
  %2749 = vmatpush1.msra.mxu0 0.0
  %2750 = vmatprep.subr.mxu0 0.0
  %2751 = vmatpush1.msra.mxu0 0.0
  %2752 = vmatprep.subr.mxu0 0.0
  %2753 = vmatpush1.msra.mxu0 0.0
  %2754 = vmatprep.subr.mxu0 0.0
  %2755 = vmatpush1.msra.mxu0 0.0
  %2756 = vmatprep.subr.mxu0 0.0
  %2757 = vmatpush1.msra.mxu0 0.0
  %2758 = vmatprep.subr.mxu0 0.0
  %2759 = vmatpush1.msra.mxu0 0.0
  %2760 = vmatprep.mubr.f32.mxu0 0.0
  %2761 = vmatmul.mubr.f32.gmra.mrb[0].mxu0 %v2694
  %v2762 = vpop.f32.mrb[0].mxu0
  %v2763 = vadd.f32 0.0, %v2762
  %v2764 = vpop.f32.mrb[0].mxu0
  %2765 = vdwg.mxu0
  %2766 = vrot.lane.b32.xlu0 %v1847, 80
  %v2767 = vpop.permute.xlu0 %2766
  %v2770 = vsel %vm171, %v2689, 0
  %2772 = vmatprep.subr.mxu0 0.0
  %2773 = vmatpush1.msra.mxu0 %v2767
  %2774 = vmatprep.subr.mxu0 0.0
  %2775 = vmatpush1.msra.mxu0 0.0
  %2776 = vmatprep.subr.mxu0 0.0
  %2777 = vmatpush1.msra.mxu0 0.0
  %2778 = vmatprep.subr.mxu0 0.0
  %2779 = vmatpush1.msra.mxu0 0.0
  %2780 = vmatprep.subr.mxu0 0.0
  %2781 = vmatpush1.msra.mxu0 0.0
  %2782 = vmatprep.subr.mxu0 0.0
  %2783 = vmatpush1.msra.mxu0 0.0
  %2784 = vmatprep.subr.mxu0 0.0
  %2785 = vmatpush1.msra.mxu0 0.0
  %2786 = vmatprep.subr.mxu0 0.0
  %2787 = vmatpush1.msra.mxu0 0.0
  %2788 = vmatprep.subr.mxu0 0.0
  %2789 = vmatpush1.msra.mxu0 0.0
  %2790 = vmatprep.subr.mxu0 0.0
  %2791 = vmatpush1.msra.mxu0 0.0
  %2792 = vmatprep.subr.mxu0 0.0
  %2793 = vmatpush1.msra.mxu0 0.0
  %2794 = vmatprep.subr.mxu0 0.0
  %2795 = vmatpush1.msra.mxu0 0.0
  %2796 = vmatprep.subr.mxu0 0.0
  %2797 = vmatpush1.msra.mxu0 0.0
  %2798 = vmatprep.subr.mxu0 0.0
  %2799 = vmatpush1.msra.mxu0 0.0
  %2800 = vmatprep.subr.mxu0 0.0
  %2801 = vmatpush1.msra.mxu0 0.0
  %2802 = vmatprep.subr.mxu0 0.0
  %2803 = vmatpush1.msra.mxu0 0.0
  %2804 = vmatprep.subr.mxu0 0.0
  %2805 = vmatpush1.msra.mxu0 0.0
  %2806 = vmatprep.subr.mxu0 0.0
  %2807 = vmatpush1.msra.mxu0 0.0
  %2808 = vmatprep.subr.mxu0 0.0
  %2809 = vmatpush1.msra.mxu0 0.0
  %2810 = vmatprep.subr.mxu0 0.0
  %2811 = vmatpush1.msra.mxu0 0.0
  %2812 = vmatprep.subr.mxu0 0.0
  %2813 = vmatpush1.msra.mxu0 0.0
  %2814 = vmatprep.subr.mxu0 0.0
  %2815 = vmatpush1.msra.mxu0 0.0
  %2816 = vmatprep.subr.mxu0 0.0
  %2817 = vmatpush1.msra.mxu0 0.0
  %2818 = vmatprep.subr.mxu0 0.0
  %2819 = vmatpush1.msra.mxu0 0.0
  %2820 = vmatprep.subr.mxu0 0.0
  %2821 = vmatpush1.msra.mxu0 0.0
  %2822 = vmatprep.subr.mxu0 0.0
  %2823 = vmatpush1.msra.mxu0 0.0
  %2824 = vmatprep.subr.mxu0 0.0
  %2825 = vmatpush1.msra.mxu0 0.0
  %2826 = vmatprep.subr.mxu0 0.0
  %2827 = vmatpush1.msra.mxu0 0.0
  %2828 = vmatprep.subr.mxu0 0.0
  %2829 = vmatpush1.msra.mxu0 0.0
  %2830 = vmatprep.subr.mxu0 0.0
  %2831 = vmatpush1.msra.mxu0 0.0
  %2832 = vmatprep.subr.mxu0 0.0
  %2833 = vmatpush1.msra.mxu0 0.0
  %2834 = vmatprep.subr.mxu0 0.0
  %2835 = vmatpush1.msra.mxu0 0.0
  %2836 = vmatprep.mubr.f32.mxu0 0.0
  %2837 = vmatmul.mubr.f32.gmra.mrb[0].mxu0 %v2770
  %v2838 = vpop.f32.mrb[0].mxu0
  %v2839 = vadd.f32 0.0, %v2838
  %v2840 = vpop.f32.mrb[0].mxu0
  %2841 = vdwg.mxu0
  %2842 = vrot.lane.b32.xlu0 %v1750, 104
  %v2843 = vpop.permute.xlu0 %2842
  %2844 = vrot.lane.b32.xlu0 %v1842, 104
  %v2845 = vpop.permute.xlu0 %2844
  %v2846 = vsel %vm171, %v2843, 0
  %v2848 = vsel %vm171, %v2845, 0
  %2850 = vmatprep.subr.mxu0 0.0
  %2851 = vmatpush1.xpose.msra.mxu0 %v2848
  %2852 = vmatprep.subr.mxu0 0.0
  %2853 = vmatpush1.xpose.msra.mxu0 0.0
  %2854 = vmatprep.subr.mxu0 0.0
  %2855 = vmatpush1.xpose.msra.mxu0 0.0
  %2856 = vmatprep.subr.mxu0 0.0
  %2857 = vmatpush1.xpose.msra.mxu0 0.0
  %2858 = vmatprep.subr.mxu0 0.0
  %2859 = vmatpush1.xpose.msra.mxu0 0.0
  %2860 = vmatprep.subr.mxu0 0.0
  %2861 = vmatpush1.xpose.msra.mxu0 0.0
  %2862 = vmatprep.subr.mxu0 0.0
  %2863 = vmatpush1.xpose.msra.mxu0 0.0
  %2864 = vmatprep.subr.mxu0 0.0
  %2865 = vmatpush1.xpose.msra.mxu0 0.0
  %2866 = vmatprep.subr.mxu0 0.0
  %2867 = vmatpush1.xpose.msra.mxu0 0.0
  %2868 = vmatprep.subr.mxu0 0.0
  %2869 = vmatpush1.xpose.msra.mxu0 0.0
  %2870 = vmatprep.subr.mxu0 0.0
  %2871 = vmatpush1.xpose.msra.mxu0 0.0
  %2872 = vmatprep.subr.mxu0 0.0
  %2873 = vmatpush1.xpose.msra.mxu0 0.0
  %2874 = vmatprep.subr.mxu0 0.0
  %2875 = vmatpush1.xpose.msra.mxu0 0.0
  %2876 = vmatprep.subr.mxu0 0.0
  %2877 = vmatpush1.xpose.msra.mxu0 0.0
  %2878 = vmatprep.subr.mxu0 0.0
  %2879 = vmatpush1.xpose.msra.mxu0 0.0
  %2880 = vmatprep.subr.mxu0 0.0
  %2881 = vmatpush1.xpose.msra.mxu0 0.0
  %2882 = vmatprep.subr.mxu0 0.0
  %2883 = vmatpush1.xpose.msra.mxu0 0.0
  %2884 = vmatprep.subr.mxu0 0.0
  %2885 = vmatpush1.xpose.msra.mxu0 0.0
  %2886 = vmatprep.subr.mxu0 0.0
  %2887 = vmatpush1.xpose.msra.mxu0 0.0
  %2888 = vmatprep.subr.mxu0 0.0
  %2889 = vmatpush1.xpose.msra.mxu0 0.0
  %2890 = vmatprep.subr.mxu0 0.0
  %2891 = vmatpush1.xpose.msra.mxu0 0.0
  %2892 = vmatprep.subr.mxu0 0.0
  %2893 = vmatpush1.xpose.msra.mxu0 0.0
  %2894 = vmatprep.subr.mxu0 0.0
  %2895 = vmatpush1.xpose.msra.mxu0 0.0
  %2896 = vmatprep.subr.mxu0 0.0
  %2897 = vmatpush1.xpose.msra.mxu0 0.0
  %2898 = vmatprep.subr.mxu0 0.0
  %2899 = vmatpush1.xpose.msra.mxu0 0.0
  %2900 = vmatprep.subr.mxu0 0.0
  %2901 = vmatpush1.xpose.msra.mxu0 0.0
  %2902 = vmatprep.subr.mxu0 0.0
  %2903 = vmatpush1.xpose.msra.mxu0 0.0
  %2904 = vmatprep.subr.mxu0 0.0
  %2905 = vmatpush1.xpose.msra.mxu0 0.0
  %2906 = vmatprep.subr.mxu0 0.0
  %2907 = vmatpush1.xpose.msra.mxu0 0.0
  %2908 = vmatprep.subr.mxu0 0.0
  %2909 = vmatpush1.xpose.msra.mxu0 0.0
  %2910 = vmatprep.subr.mxu0 0.0
  %2911 = vmatpush1.xpose.msra.mxu0 0.0
  %2912 = vmatprep.subr.mxu0 0.0
  %2913 = vmatpush1.xpose.msra.mxu0 0.0
  %2914 = vmatprep.mubr.f32.mxu0 0.0
  %2915 = vmatmul.mubr.f32.gmra.mrb[0].mxu0 %v2846
  %v2916 = vpop.f32.mrb[0].mxu0
  %v2917 = vadd.f32 0.0, %v2916
  %v2918 = vpop.f32.mrb[0].mxu0
  %2919 = vdwg.mxu0
  %2920 = vrot.lane.b32.xlu0 %v1755, 104
  %v2921 = vpop.permute.xlu0 %2920
  %2922 = vrot.lane.b32.xlu0 %v1847, 104
  %v2923 = vpop.permute.xlu0 %2922
  %v2924 = vsel %vm171, %v2921, 0
  %v2926 = vsel %vm171, %v2923, 0
  %2928 = vmatprep.subr.mxu0 0.0
  %2929 = vmatpush1.xpose.msra.mxu0 %v2926
  %2930 = vmatprep.subr.mxu0 0.0
  %2931 = vmatpush1.xpose.msra.mxu0 0.0
  %2932 = vmatprep.subr.mxu0 0.0
  %2933 = vmatpush1.xpose.msra.mxu0 0.0
  %2934 = vmatprep.subr.mxu0 0.0
  %2935 = vmatpush1.xpose.msra.mxu0 0.0
  %2936 = vmatprep.subr.mxu0 0.0
  %2937 = vmatpush1.xpose.msra.mxu0 0.0
  %2938 = vmatprep.subr.mxu0 0.0
  %2939 = vmatpush1.xpose.msra.mxu0 0.0
  %2940 = vmatprep.subr.mxu0 0.0
  %2941 = vmatpush1.xpose.msra.mxu0 0.0
  %2942 = vmatprep.subr.mxu0 0.0
  %2943 = vmatpush1.xpose.msra.mxu0 0.0
  %2944 = vmatprep.subr.mxu0 0.0
  %2945 = vmatpush1.xpose.msra.mxu0 0.0
  %2946 = vmatprep.subr.mxu0 0.0
  %2947 = vmatpush1.xpose.msra.mxu0 0.0
  %2948 = vmatprep.subr.mxu0 0.0
  %2949 = vmatpush1.xpose.msra.mxu0 0.0
  %2950 = vmatprep.subr.mxu0 0.0
  %2951 = vmatpush1.xpose.msra.mxu0 0.0
  %2952 = vmatprep.subr.mxu0 0.0
  %2953 = vmatpush1.xpose.msra.mxu0 0.0
  %2954 = vmatprep.subr.mxu0 0.0
  %2955 = vmatpush1.xpose.msra.mxu0 0.0
  %2956 = vmatprep.subr.mxu0 0.0
  %2957 = vmatpush1.xpose.msra.mxu0 0.0
  %2958 = vmatprep.subr.mxu0 0.0
  %2959 = vmatpush1.xpose.msra.mxu0 0.0
  %2960 = vmatprep.subr.mxu0 0.0
  %2961 = vmatpush1.xpose.msra.mxu0 0.0
  %2962 = vmatprep.subr.mxu0 0.0
  %2963 = vmatpush1.xpose.msra.mxu0 0.0
  %2964 = vmatprep.subr.mxu0 0.0
  %2965 = vmatpush1.xpose.msra.mxu0 0.0
  %2966 = vmatprep.subr.mxu0 0.0
  %2967 = vmatpush1.xpose.msra.mxu0 0.0
  %2968 = vmatprep.subr.mxu0 0.0
  %2969 = vmatpush1.xpose.msra.mxu0 0.0
  %2970 = vmatprep.subr.mxu0 0.0
  %2971 = vmatpush1.xpose.msra.mxu0 0.0
  %2972 = vmatprep.subr.mxu0 0.0
  %2973 = vmatpush1.xpose.msra.mxu0 0.0
  %2974 = vmatprep.subr.mxu0 0.0
  %2975 = vmatpush1.xpose.msra.mxu0 0.0
  %2976 = vmatprep.subr.mxu0 0.0
  %2977 = vmatpush1.xpose.msra.mxu0 0.0
  %2978 = vmatprep.subr.mxu0 0.0
  %2979 = vmatpush1.xpose.msra.mxu0 0.0
  %2980 = vmatprep.subr.mxu0 0.0
  %2981 = vmatpush1.xpose.msra.mxu0 0.0
  %2982 = vmatprep.subr.mxu0 0.0
  %2983 = vmatpush1.xpose.msra.mxu0 0.0
  %2984 = vmatprep.subr.mxu0 0.0
  %2985 = vmatpush1.xpose.msra.mxu0 0.0
  %2986 = vmatprep.subr.mxu0 0.0
  %2987 = vmatpush1.xpose.msra.mxu0 0.0
  %2988 = vmatprep.subr.mxu0 0.0
  %2989 = vmatpush1.xpose.msra.mxu0 0.0
  %2990 = vmatprep.subr.mxu0 0.0
  %2991 = vmatpush1.xpose.msra.mxu0 0.0
  %2992 = vmatprep.mubr.f32.mxu0 0.0
  %2993 = vmatmul.mubr.f32.gmra.mrb[0].mxu0 %v2924
  %v2994 = vpop.f32.mrb[0].mxu0
  %v2995 = vadd.f32 0.0, %v2994
  %v2996 = vpop.f32.mrb[0].mxu0
  %2997 = vdwg.mxu0
  %v2998 = vmul.f32 %v2917, 0.35355338
  %v2999 = vmul.f32 %v2995, 0.35355338
  %v3000 = vsel %vm171, %v2998, -inf
  %3001 = vmax.xlane.f32.xlu0 %v3000
  %v3002 = vpop.xlane.xlu0 %3001
  %v3003 = vsel %vm171, %v2999, -inf
  %3004 = vmax.xlane.f32.xlu0 %v3003
  %v3005 = vpop.xlane.xlu0 %3004
  %v3006 = vsub.f32 %v2998, %v3002
  %v3007 = vsub.f32 %v2999, %v3005
  %v3008 = vmul.f32 %v3006, 1.442695
  %v3009 = vpow.pop %v3008
  %v3010 = vmul.f32 %v3007, 1.442695
  %v3011 = vpow.pop %v3010
  %v3012 = vsel %vm171, %v3009, 0.0
  %3013 = vadd.xlane.f32.xlu0 %v3012
  %v3014 = vpop.xlane.xlu0 %3013
  %v3015 = vsel %vm171, %v3011, 0.0
  %3016 = vadd.xlane.f32.xlu0 %v3015
  %v3017 = vpop.xlane.xlu0 %3016
  %v3018 = vrcp.pop %v3014
  %v3019 = vrcp.pop %v3017
  %v3020 = vmul.f32 %v3009, %v3018
  %v3021 = vmul.f32 %v3011, %v3019
  %3022 = vrot.lane.b32.xlu0 %v1842, 72
  %v3023 = vpop.permute.xlu0 %3022
  %v3026 = vsel %vm171, %v3020, 0
  %3028 = vmatprep.subr.mxu0 0.0
  %3029 = vmatpush1.msra.mxu0 %v3023
  %3030 = vmatprep.subr.mxu0 0.0
  %3031 = vmatpush1.msra.mxu0 0.0
  %3032 = vmatprep.subr.mxu0 0.0
  %3033 = vmatpush1.msra.mxu0 0.0
  %3034 = vmatprep.subr.mxu0 0.0
  %3035 = vmatpush1.msra.mxu0 0.0
  %3036 = vmatprep.subr.mxu0 0.0
  %3037 = vmatpush1.msra.mxu0 0.0
  %3038 = vmatprep.subr.mxu0 0.0
  %3039 = vmatpush1.msra.mxu0 0.0
  %3040 = vmatprep.subr.mxu0 0.0
  %3041 = vmatpush1.msra.mxu0 0.0
  %3042 = vmatprep.subr.mxu0 0.0
  %3043 = vmatpush1.msra.mxu0 0.0
  %3044 = vmatprep.subr.mxu0 0.0
  %3045 = vmatpush1.msra.mxu0 0.0
  %3046 = vmatprep.subr.mxu0 0.0
  %3047 = vmatpush1.msra.mxu0 0.0
  %3048 = vmatprep.subr.mxu0 0.0
  %3049 = vmatpush1.msra.mxu0 0.0
  %3050 = vmatprep.subr.mxu0 0.0
  %3051 = vmatpush1.msra.mxu0 0.0
  %3052 = vmatprep.subr.mxu0 0.0
  %3053 = vmatpush1.msra.mxu0 0.0
  %3054 = vmatprep.subr.mxu0 0.0
  %3055 = vmatpush1.msra.mxu0 0.0
  %3056 = vmatprep.subr.mxu0 0.0
  %3057 = vmatpush1.msra.mxu0 0.0
  %3058 = vmatprep.subr.mxu0 0.0
  %3059 = vmatpush1.msra.mxu0 0.0
  %3060 = vmatprep.subr.mxu0 0.0
  %3061 = vmatpush1.msra.mxu0 0.0
  %3062 = vmatprep.subr.mxu0 0.0
  %3063 = vmatpush1.msra.mxu0 0.0
  %3064 = vmatprep.subr.mxu0 0.0
  %3065 = vmatpush1.msra.mxu0 0.0
  %3066 = vmatprep.subr.mxu0 0.0
  %3067 = vmatpush1.msra.mxu0 0.0
  %3068 = vmatprep.subr.mxu0 0.0
  %3069 = vmatpush1.msra.mxu0 0.0
  %3070 = vmatprep.subr.mxu0 0.0
  %3071 = vmatpush1.msra.mxu0 0.0
  %3072 = vmatprep.subr.mxu0 0.0
  %3073 = vmatpush1.msra.mxu0 0.0
  %3074 = vmatprep.subr.mxu0 0.0
  %3075 = vmatpush1.msra.mxu0 0.0
  %3076 = vmatprep.subr.mxu0 0.0
  %3077 = vmatpush1.msra.mxu0 0.0
  %3078 = vmatprep.subr.mxu0 0.0
  %3079 = vmatpush1.msra.mxu0 0.0
  %3080 = vmatprep.subr.mxu0 0.0
  %3081 = vmatpush1.msra.mxu0 0.0
  %3082 = vmatprep.subr.mxu0 0.0
  %3083 = vmatpush1.msra.mxu0 0.0
  %3084 = vmatprep.subr.mxu0 0.0
  %3085 = vmatpush1.msra.mxu0 0.0
  %3086 = vmatprep.subr.mxu0 0.0
  %3087 = vmatpush1.msra.mxu0 0.0
  %3088 = vmatprep.subr.mxu0 0.0
  %3089 = vmatpush1.msra.mxu0 0.0
  %3090 = vmatprep.subr.mxu0 0.0
  %3091 = vmatpush1.msra.mxu0 0.0
  %3092 = vmatprep.mubr.f32.mxu0 0.0
  %3093 = vmatmul.mubr.f32.gmra.mrb[0].mxu0 %v3026
  %v3094 = vpop.f32.mrb[0].mxu0
  %v3095 = vadd.f32 0.0, %v3094
  %v3096 = vpop.f32.mrb[0].mxu0
  %3097 = vdwg.mxu0
  %3098 = vrot.lane.b32.xlu0 %v1847, 72
  %v3099 = vpop.permute.xlu0 %3098
  %v3102 = vsel %vm171, %v3021, 0
  %3104 = vmatprep.subr.mxu0 0.0
  %3105 = vmatpush1.msra.mxu0 %v3099
  %3106 = vmatprep.subr.mxu0 0.0
  %3107 = vmatpush1.msra.mxu0 0.0
  %3108 = vmatprep.subr.mxu0 0.0
  %3109 = vmatpush1.msra.mxu0 0.0
  %3110 = vmatprep.subr.mxu0 0.0
  %3111 = vmatpush1.msra.mxu0 0.0
  %3112 = vmatprep.subr.mxu0 0.0
  %3113 = vmatpush1.msra.mxu0 0.0
  %3114 = vmatprep.subr.mxu0 0.0
  %3115 = vmatpush1.msra.mxu0 0.0
  %3116 = vmatprep.subr.mxu0 0.0
  %3117 = vmatpush1.msra.mxu0 0.0
  %3118 = vmatprep.subr.mxu0 0.0
  %3119 = vmatpush1.msra.mxu0 0.0
  %3120 = vmatprep.subr.mxu0 0.0
  %3121 = vmatpush1.msra.mxu0 0.0
  %3122 = vmatprep.subr.mxu0 0.0
  %3123 = vmatpush1.msra.mxu0 0.0
  %3124 = vmatprep.subr.mxu0 0.0
  %3125 = vmatpush1.msra.mxu0 0.0
  %3126 = vmatprep.subr.mxu0 0.0
  %3127 = vmatpush1.msra.mxu0 0.0
  %3128 = vmatprep.subr.mxu0 0.0
  %3129 = vmatpush1.msra.mxu0 0.0
  %3130 = vmatprep.subr.mxu0 0.0
  %3131 = vmatpush1.msra.mxu0 0.0
  %3132 = vmatprep.subr.mxu0 0.0
  %3133 = vmatpush1.msra.mxu0 0.0
  %3134 = vmatprep.subr.mxu0 0.0
  %3135 = vmatpush1.msra.mxu0 0.0
  %3136 = vmatprep.subr.mxu0 0.0
  %3137 = vmatpush1.msra.mxu0 0.0
  %3138 = vmatprep.subr.mxu0 0.0
  %3139 = vmatpush1.msra.mxu0 0.0
  %3140 = vmatprep.subr.mxu0 0.0
  %3141 = vmatpush1.msra.mxu0 0.0
  %3142 = vmatprep.subr.mxu0 0.0
  %3143 = vmatpush1.msra.mxu0 0.0
  %3144 = vmatprep.subr.mxu0 0.0
  %3145 = vmatpush1.msra.mxu0 0.0
  %3146 = vmatprep.subr.mxu0 0.0
  %3147 = vmatpush1.msra.mxu0 0.0
  %3148 = vmatprep.subr.mxu0 0.0
  %3149 = vmatpush1.msra.mxu0 0.0
  %3150 = vmatprep.subr.mxu0 0.0
  %3151 = vmatpush1.msra.mxu0 0.0
  %3152 = vmatprep.subr.mxu0 0.0
  %3153 = vmatpush1.msra.mxu0 0.0
  %3154 = vmatprep.subr.mxu0 0.0
  %3155 = vmatpush1.msra.mxu0 0.0
  %3156 = vmatprep.subr.mxu0 0.0
  %3157 = vmatpush1.msra.mxu0 0.0
  %3158 = vmatprep.subr.mxu0 0.0
  %3159 = vmatpush1.msra.mxu0 0.0
  %3160 = vmatprep.subr.mxu0 0.0
  %3161 = vmatpush1.msra.mxu0 0.0
  %3162 = vmatprep.subr.mxu0 0.0
  %3163 = vmatpush1.msra.mxu0 0.0
  %3164 = vmatprep.subr.mxu0 0.0
  %3165 = vmatpush1.msra.mxu0 0.0
  %3166 = vmatprep.subr.mxu0 0.0
  %3167 = vmatpush1.msra.mxu0 0.0
  %3168 = vmatprep.mubr.f32.mxu0 0.0
  %3169 = vmatmul.mubr.f32.gmra.mrb[0].mxu0 %v3102
  %v3170 = vpop.f32.mrb[0].mxu0
  %v3171 = vadd.f32 0.0, %v3170
  %v3172 = vpop.f32.mrb[0].mxu0
  %3173 = vdwg.mxu0
  %3176 = vrot.lane.b32.xlu0 %v2431, 8
  %v3177 = vpop.permute.xlu0 %3176
  %3178 = vrot.lane.b32.xlu0 %v2507, 8
  %v3179 = vpop.permute.xlu0 %3178
  %3184 = vrot.lane.b32.xlu0 %v2763, 16
  %v3185 = vpop.permute.xlu0 %3184
  %3186 = vrot.lane.b32.xlu0 %v2839, 16
  %v3187 = vpop.permute.xlu0 %3186
  %3192 = vrot.lane.b32.xlu0 %v3095, 24
  %v3193 = vpop.permute.xlu0 %3192
  %3194 = vrot.lane.b32.xlu0 %v3171, 24
  %v3195 = vpop.permute.xlu0 %3194
  %v3198 = vsel %vm171, %v2099, %v3177
  %v3199 = vsel %vm171, %v2175, %v3179
  %v3200 = vsel %vm1521, %v3198, %v3185
  %v3201 = vsel %vm1521, %v3199, %v3187
  %v3202 = vsel %vm1524, %v3200, %v3193
  %v3203 = vsel %vm1524, %v3201, %v3195
  %v3204 = vld [vmem:[%s12] sm:$0xff]
  %v3205 = vld [vmem:[%s12 + $0x8] sm:$0xff]
  %v3206 = vld [vmem:[%s12 + $0x10] sm:$0xff]
  %v3207 = vld [vmem:[%s12 + $0x18] sm:$0xff]
  %v3208 = vld [vmem:[%s13] sm:$0x1]
  %v3210 = vlaneseq
  %v3211 = vshrl.u32 %v3210, 7
  %v3212 = vsub.s32 0, %v3211
  %v3213 = vrot.slane %v3208, %v3212
  %v3216 = vsel %vm86, %v3202, 0
  %v3219 = vsel %vm86, %v3203, 0
  %3221 = vmatprep.subr.mxu0 0.0
  %3222 = vmatpush1.msra.mxu0 %v3204
  %3223 = vmatprep.subr.mxu0 0.0
  %3224 = vmatpush1.msra.mxu0 %v3205
  %3225 = vmatprep.subr.mxu0 0.0
  %3226 = vmatpush1.msra.mxu0 %v3206
  %3227 = vmatprep.subr.mxu0 0.0
  %3228 = vmatpush1.msra.mxu0 %v3207
  %3229 = vmatprep.subr.mxu0 0.0
  %3230 = vmatpush1.msra.mxu0 0.0
  %3231 = vmatprep.subr.mxu0 0.0
  %3232 = vmatpush1.msra.mxu0 0.0
  %3233 = vmatprep.subr.mxu0 0.0
  %3234 = vmatpush1.msra.mxu0 0.0
  %3235 = vmatprep.subr.mxu0 0.0
  %3236 = vmatpush1.msra.mxu0 0.0
  %3237 = vmatprep.subr.mxu0 0.0
  %3238 = vmatpush1.msra.mxu0 0.0
  %3239 = vmatprep.subr.mxu0 0.0
  %3240 = vmatpush1.msra.mxu0 0.0
  %3241 = vmatprep.subr.mxu0 0.0
  %3242 = vmatpush1.msra.mxu0 0.0
  %3243 = vmatprep.subr.mxu0 0.0
  %3244 = vmatpush1.msra.mxu0 0.0
  %3245 = vmatprep.subr.mxu0 0.0
  %3246 = vmatpush1.msra.mxu0 0.0
  %3247 = vmatprep.subr.mxu0 0.0
  %3248 = vmatpush1.msra.mxu0 0.0
  %3249 = vmatprep.subr.mxu0 0.0
  %3250 = vmatpush1.msra.mxu0 0.0
  %3251 = vmatprep.subr.mxu0 0.0
  %3252 = vmatpush1.msra.mxu0 0.0
  %3253 = vmatprep.subr.mxu0 0.0
  %3254 = vmatpush1.msra.mxu0 0.0
  %3255 = vmatprep.subr.mxu0 0.0
  %3256 = vmatpush1.msra.mxu0 0.0
  %3257 = vmatprep.subr.mxu0 0.0
  %3258 = vmatpush1.msra.mxu0 0.0
  %3259 = vmatprep.subr.mxu0 0.0
  %3260 = vmatpush1.msra.mxu0 0.0
  %3261 = vmatprep.subr.mxu0 0.0
  %3262 = vmatpush1.msra.mxu0 0.0
  %3263 = vmatprep.subr.mxu0 0.0
  %3264 = vmatpush1.msra.mxu0 0.0
  %3265 = vmatprep.subr.mxu0 0.0
  %3266 = vmatpush1.msra.mxu0 0.0
  %3267 = vmatprep.subr.mxu0 0.0
  %3268 = vmatpush1.msra.mxu0 0.0
  %3269 = vmatprep.subr.mxu0 0.0
  %3270 = vmatpush1.msra.mxu0 0.0
  %3271 = vmatprep.subr.mxu0 0.0
  %3272 = vmatpush1.msra.mxu0 0.0
  %3273 = vmatprep.subr.mxu0 0.0
  %3274 = vmatpush1.msra.mxu0 0.0
  %3275 = vmatprep.subr.mxu0 0.0
  %3276 = vmatpush1.msra.mxu0 0.0
  %3277 = vmatprep.subr.mxu0 0.0
  %3278 = vmatpush1.msra.mxu0 0.0
  %3279 = vmatprep.subr.mxu0 0.0
  %3280 = vmatpush1.msra.mxu0 0.0
  %3281 = vmatprep.subr.mxu0 0.0
  %3282 = vmatpush1.msra.mxu0 0.0
  %3283 = vmatprep.subr.mxu0 0.0
  %3284 = vmatpush1.msra.mxu0 0.0
  %3285 = vmatprep.mubr.f32.mxu0 0.0
  %3286 = vmatmul.mubr.f32.gmra.mrb[0].mxu0 %v3216
  %v3287 = vpop.f32.mrb[0].mxu0
  %v3288 = vadd.f32 %v3213, %v3287
  %v3289 = vpop.f32.mrb[0].mxu0
  %3290 = vmatprep.mubr.f32.mxu0 0.0
  %3291 = vmatmul.mubr.f32.gmra.mrb[0].mxu0 %v3219
  %v3292 = vpop.f32.mrb[0].mxu0
  %v3293 = vadd.f32 %v3213, %v3292
  %v3294 = vpop.f32.mrb[0].mxu0
  %3295 = vdwg.mxu0
  %v3296 = vadd.f32 %v1664, %v3288
  %v3297 = vadd.f32 %v1665, %v3293
  %v3298 = vld [vmem:[%s14] sm:$0x1]
  %v3299 = vld [vmem:[%s15] sm:$0x1]
  %v3300 = vsel %vm86, %v3296, 0.0
  %3301 = vadd.xlane.f32.xlu0 %v3300
  %v3302 = vpop.xlane.xlu0 %3301
  %v3303 = vsel %vm86, %v3297, 0.0
  %3304 = vadd.xlane.f32.xlu0 %v3303
  %v3305 = vpop.xlane.xlu0 %3304
  %v3306 = vmul.f32 %v3302, %v1629
  %v3307 = vmul.f32 %v3305, %v1629
  %v3308 = vsub.f32 %v3296, %v3306
  %v3309 = vsub.f32 %v3297, %v3307
  %v3310 = vmul.f32 %v3308, %v3308
  %v3311 = vmul.f32 %v3309, %v3309
  %v3312 = vsel %vm86, %v3310, 0.0
  %3313 = vadd.xlane.f32.xlu0 %v3312
  %v3314 = vpop.xlane.xlu0 %3313
  %v3315 = vsel %vm86, %v3311, 0.0
  %3316 = vadd.xlane.f32.xlu0 %v3315
  %v3317 = vpop.xlane.xlu0 %3316
  %v3318 = vmul.f32 %v3314, %v1629
  %v3319 = vmul.f32 %v3317, %v1629
  %v3320 = vadd.f32 %v3318, 1e-05
  %v3321 = vadd.f32 %v3319, 1e-05
  %v3322 = vrsqrt.pop %v3320
  %v3323 = vrsqrt.pop %v3321
  %v3324 = vmul.f32 %v3308, %v3322
  %v3325 = vmul.f32 %v3309, %v3323
  %v3327 = vlaneseq
  %v3328 = vshrl.u32 %v3327, 7
  %v3329 = vsub.s32 0, %v3328
  %v3330 = vrot.slane %v3298, %v3329
  %v3332 = vmul.f32 %v3324, %v3330
  %v3333 = vmul.f32 %v3325, %v3330
  %v3335 = vlaneseq
  %v3336 = vshrl.u32 %v3335, 7
  %v3337 = vsub.s32 0, %v3336
  %v3338 = vrot.slane %v3299, %v3337
  %v3340 = vadd.f32 %v3332, %v3338
  %v3341 = vadd.f32 %v3333, %v3338
  %v3342 = vld [vmem:[%s16] sm:$0xff]
  %v3343 = vld [vmem:[%s16 + $0x8] sm:$0xff]
  %v3344 = vld [vmem:[%s16 + $0x10] sm:$0xff]
  %v3345 = vld [vmem:[%s16 + $0x18] sm:$0xff]
  %v3346 = vld [vmem:[%s17] sm:$0x1]
  %v3348 = vlaneseq
  %v3349 = vshrl.u32 %v3348, 7
  %v3350 = vsub.s32 0, %v3349
  %v3351 = vrot.slane %v3346, %v3350
  %v3354 = vsel %vm86, %v3340, 0
  %v3357 = vsel %vm86, %v3341, 0
  %3359 = vmatprep.subr.mxu0 0.0
  %3360 = vmatpush1.msra.mxu0 %v3342
  %3361 = vmatprep.subr.mxu0 0.0
  %3362 = vmatpush1.msra.mxu0 %v3343
  %3363 = vmatprep.subr.mxu0 0.0
  %3364 = vmatpush1.msra.mxu0 %v3344
  %3365 = vmatprep.subr.mxu0 0.0
  %3366 = vmatpush1.msra.mxu0 %v3345
  %3367 = vmatprep.subr.mxu0 0.0
  %3368 = vmatpush1.msra.mxu0 0.0
  %3369 = vmatprep.subr.mxu0 0.0
  %3370 = vmatpush1.msra.mxu0 0.0
  %3371 = vmatprep.subr.mxu0 0.0
  %3372 = vmatpush1.msra.mxu0 0.0
  %3373 = vmatprep.subr.mxu0 0.0
  %3374 = vmatpush1.msra.mxu0 0.0
  %3375 = vmatprep.subr.mxu0 0.0
  %3376 = vmatpush1.msra.mxu0 0.0
  %3377 = vmatprep.subr.mxu0 0.0
  %3378 = vmatpush1.msra.mxu0 0.0
  %3379 = vmatprep.subr.mxu0 0.0
  %3380 = vmatpush1.msra.mxu0 0.0
  %3381 = vmatprep.subr.mxu0 0.0
  %3382 = vmatpush1.msra.mxu0 0.0
  %3383 = vmatprep.subr.mxu0 0.0
  %3384 = vmatpush1.msra.mxu0 0.0
  %3385 = vmatprep.subr.mxu0 0.0
  %3386 = vmatpush1.msra.mxu0 0.0
  %3387 = vmatprep.subr.mxu0 0.0
  %3388 = vmatpush1.msra.mxu0 0.0
  %3389 = vmatprep.subr.mxu0 0.0
  %3390 = vmatpush1.msra.mxu0 0.0
  %3391 = vmatprep.subr.mxu0 0.0
  %3392 = vmatpush1.msra.mxu0 0.0
  %3393 = vmatprep.subr.mxu0 0.0
  %3394 = vmatpush1.msra.mxu0 0.0
  %3395 = vmatprep.subr.mxu0 0.0
  %3396 = vmatpush1.msra.mxu0 0.0
  %3397 = vmatprep.subr.mxu0 0.0
  %3398 = vmatpush1.msra.mxu0 0.0
  %3399 = vmatprep.subr.mxu0 0.0
  %3400 = vmatpush1.msra.mxu0 0.0
  %3401 = vmatprep.subr.mxu0 0.0
  %3402 = vmatpush1.msra.mxu0 0.0
  %3403 = vmatprep.subr.mxu0 0.0
  %3404 = vmatpush1.msra.mxu0 0.0
  %3405 = vmatprep.subr.mxu0 0.0
  %3406 = vmatpush1.msra.mxu0 0.0
  %3407 = vmatprep.subr.mxu0 0.0
  %3408 = vmatpush1.msra.mxu0 0.0
  %3409 = vmatprep.subr.mxu0 0.0
  %3410 = vmatpush1.msra.mxu0 0.0
  %3411 = vmatprep.subr.mxu0 0.0
  %3412 = vmatpush1.msra.mxu0 0.0
  %3413 = vmatprep.subr.mxu0 0.0
  %3414 = vmatpush1.msra.mxu0 0.0
  %3415 = vmatprep.subr.mxu0 0.0
  %3416 = vmatpush1.msra.mxu0 0.0
  %3417 = vmatprep.subr.mxu0 0.0
  %3418 = vmatpush1.msra.mxu0 0.0
  %3419 = vmatprep.subr.mxu0 0.0
  %3420 = vmatpush1.msra.mxu0 0.0
  %3421 = vmatprep.subr.mxu0 0.0
  %3422 = vmatpush1.msra.mxu0 0.0
  %3423 = vmatprep.mubr.f32.mxu0 0.0
  %3424 = vmatmul.mubr.f32.gmra.mrb[0].mxu0 %v3354
  %v3425 = vpop.f32.mrb[0].mxu0
  %v3426 = vadd.f32 %v3351, %v3425
  %v3427 = vpop.f32.mrb[0].mxu0
  %3428 = vmatprep.mubr.f32.mxu0 0.0
  %3429 = vmatmul.mubr.f32.gmra.mrb[0].mxu0 %v3357
  %v3430 = vpop.f32.mrb[0].mxu0
  %v3431 = vadd.f32 %v3351, %v3430
  %v3432 = vpop.f32.mrb[0].mxu0
  %3433 = vdwg.mxu0
  %v3434 = vmax.f32 %v3426, 0.0
  %v3435 = vmax.f32 %v3431, 0.0
  %v3436 = vld [vmem:[%s18] sm:$0xff]
  %v3437 = vld [vmem:[%s18 + $0x8] sm:$0xff]
  %v3438 = vld [vmem:[%s18 + $0x10] sm:$0xff]
  %v3439 = vld [vmem:[%s18 + $0x18] sm:$0xff]
  %v3440 = vld [vmem:[%s18 + $0x20] sm:$0xff]
  %v3441 = vld [vmem:[%s18 + $0x28] sm:$0xff]
  %v3442 = vld [vmem:[%s18 + $0x30] sm:$0xff]
  %v3443 = vld [vmem:[%s18 + $0x38] sm:$0xff]
  %v3444 = vld [vmem:[%s19] sm:$0x1]
  %v3446 = vlaneseq
  %v3447 = vshrl.u32 %v3446, 7
  %v3448 = vsub.s32 0, %v3447
  %v3449 = vrot.slane %v3444, %v3448
  %vm3451 = vcmask 523264
  %v3453 = vsel %vm3451, %v3434, 0
  %v3456 = vsel %vm3451, %v3435, 0
  %3458 = vmatprep.subr.mxu0 0.0
  %3459 = vmatpush1.msra.mxu0 %v3436
  %3460 = vmatprep.subr.mxu0 0.0
  %3461 = vmatpush1.msra.mxu0 %v3437
  %3462 = vmatprep.subr.mxu0 0.0
  %3463 = vmatpush1.msra.mxu0 %v3438
  %3464 = vmatprep.subr.mxu0 0.0
  %3465 = vmatpush1.msra.mxu0 %v3439
  %3466 = vmatprep.subr.mxu0 0.0
  %3467 = vmatpush1.msra.mxu0 %v3440
  %3468 = vmatprep.subr.mxu0 0.0
  %3469 = vmatpush1.msra.mxu0 %v3441
  %3470 = vmatprep.subr.mxu0 0.0
  %3471 = vmatpush1.msra.mxu0 %v3442
  %3472 = vmatprep.subr.mxu0 0.0
  %3473 = vmatpush1.msra.mxu0 %v3443
  %3474 = vmatprep.subr.mxu0 0.0
  %3475 = vmatpush1.msra.mxu0 0.0
  %3476 = vmatprep.subr.mxu0 0.0
  %3477 = vmatpush1.msra.mxu0 0.0
  %3478 = vmatprep.subr.mxu0 0.0
  %3479 = vmatpush1.msra.mxu0 0.0
  %3480 = vmatprep.subr.mxu0 0.0
  %3481 = vmatpush1.msra.mxu0 0.0
  %3482 = vmatprep.subr.mxu0 0.0
  %3483 = vmatpush1.msra.mxu0 0.0
  %3484 = vmatprep.subr.mxu0 0.0
  %3485 = vmatpush1.msra.mxu0 0.0
  %3486 = vmatprep.subr.mxu0 0.0
  %3487 = vmatpush1.msra.mxu0 0.0
  %3488 = vmatprep.subr.mxu0 0.0
  %3489 = vmatpush1.msra.mxu0 0.0
  %3490 = vmatprep.subr.mxu0 0.0
  %3491 = vmatpush1.msra.mxu0 0.0
  %3492 = vmatprep.subr.mxu0 0.0
  %3493 = vmatpush1.msra.mxu0 0.0
  %3494 = vmatprep.subr.mxu0 0.0
  %3495 = vmatpush1.msra.mxu0 0.0
  %3496 = vmatprep.subr.mxu0 0.0
  %3497 = vmatpush1.msra.mxu0 0.0
  %3498 = vmatprep.subr.mxu0 0.0
  %3499 = vmatpush1.msra.mxu0 0.0
  %3500 = vmatprep.subr.mxu0 0.0
  %3501 = vmatpush1.msra.mxu0 0.0
  %3502 = vmatprep.subr.mxu0 0.0
  %3503 = vmatpush1.msra.mxu0 0.0
  %3504 = vmatprep.subr.mxu0 0.0
  %3505 = vmatpush1.msra.mxu0 0.0
  %3506 = vmatprep.subr.mxu0 0.0
  %3507 = vmatpush1.msra.mxu0 0.0
  %3508 = vmatprep.subr.mxu0 0.0
  %3509 = vmatpush1.msra.mxu0 0.0
  %3510 = vmatprep.subr.mxu0 0.0
  %3511 = vmatpush1.msra.mxu0 0.0
  %3512 = vmatprep.subr.mxu0 0.0
  %3513 = vmatpush1.msra.mxu0 0.0
  %3514 = vmatprep.subr.mxu0 0.0
  %3515 = vmatpush1.msra.mxu0 0.0
  %3516 = vmatprep.subr.mxu0 0.0
  %3517 = vmatpush1.msra.mxu0 0.0
  %3518 = vmatprep.subr.mxu0 0.0
  %3519 = vmatpush1.msra.mxu0 0.0
  %3520 = vmatprep.subr.mxu0 0.0
  %3521 = vmatpush1.msra.mxu0 0.0
  %3522 = vmatprep.mubr.f32.mxu0 0.0
  %3523 = vmatmul.mubr.f32.gmra.mrb[0].mxu0 %v3453
  %v3524 = vpop.f32.mrb[0].mxu0
  %v3525 = vadd.f32 %v3449, %v3524
  %v3526 = vpop.f32.mrb[0].mxu0
  %3527 = vmatprep.mubr.f32.mxu0 0.0
  %3528 = vmatmul.mubr.f32.gmra.mrb[0].mxu0 %v3456
  %v3529 = vpop.f32.mrb[0].mxu0
  %v3530 = vadd.f32 %v3449, %v3529
  %v3531 = vpop.f32.mrb[0].mxu0
  %3532 = vdwg.mxu0
  %v3533 = vadd.f32 %v3340, %v3525
  %v3534 = vadd.f32 %v3341, %v3530
  %v3535 = vld [vmem:[%s20] sm:$0x1]
  %v3536 = vld [vmem:[%s21] sm:$0x1]
  %v3537 = vsel %vm86, %v3533, 0.0
  %3538 = vadd.xlane.f32.xlu0 %v3537
  %v3539 = vpop.xlane.xlu0 %3538
  %v3540 = vsel %vm86, %v3534, 0.0
  %3541 = vadd.xlane.f32.xlu0 %v3540
  %v3542 = vpop.xlane.xlu0 %3541
  %v3543 = vmul.f32 %v3539, %v1629
  %v3544 = vmul.f32 %v3542, %v1629
  %v3545 = vsub.f32 %v3533, %v3543
  %v3546 = vsub.f32 %v3534, %v3544
  %v3547 = vmul.f32 %v3545, %v3545
  %v3548 = vmul.f32 %v3546, %v3546
  %v3549 = vsel %vm86, %v3547, 0.0
  %3550 = vadd.xlane.f32.xlu0 %v3549
  %v3551 = vpop.xlane.xlu0 %3550
  %v3552 = vsel %vm86, %v3548, 0.0
  %3553 = vadd.xlane.f32.xlu0 %v3552
  %v3554 = vpop.xlane.xlu0 %3553
  %v3555 = vmul.f32 %v3551, %v1629
  %v3556 = vmul.f32 %v3554, %v1629
  %v3557 = vadd.f32 %v3555, 1e-05
  %v3558 = vadd.f32 %v3556, 1e-05
  %v3559 = vrsqrt.pop %v3557
  %v3560 = vrsqrt.pop %v3558
  %v3561 = vmul.f32 %v3545, %v3559
  %v3562 = vmul.f32 %v3546, %v3560
  %v3564 = vlaneseq
  %v3565 = vshrl.u32 %v3564, 7
  %v3566 = vsub.s32 0, %v3565
  %v3567 = vrot.slane %v3535, %v3566
  %v3569 = vmul.f32 %v3561, %v3567
  %v3570 = vmul.f32 %v3562, %v3567
  %v3572 = vlaneseq
  %v3573 = vshrl.u32 %v3572, 7
  %v3574 = vsub.s32 0, %v3573
  %v3575 = vrot.slane %v3536, %v3574
  %v3577 = vadd.f32 %v3569, %v3575
  %v3578 = vadd.f32 %v3570, %v3575
  %3579 = vst.msk [vmem:[%s22] sm:$0xff] %vm86, %v3577
  %3580 = vst.msk [vmem:[%s22 + $0x8] sm:$0xff] %vm86, %v3578
  // Predicated region
  $region90: #{transformer_vae_forward.9} parent=0 // pred_check
    _
  $region91: #{transformer_vae_forward.9} parent=0 // pred_check_branch
    %3582 = sbr.rel (0) target = $region93
  $region92: #{transformer_vae_forward.9} parent=0 // pred_region
    _
  $region93: #{transformer_vae_forward.9} parent=0 // pred_fallthru
    _
  // Predicated region
  $region94: #{transformer_vae_forward.9} parent=0 // pred_check
    _
  $region95: #{transformer_vae_forward.9} parent=0 // pred_check_branch
    %3584 = sbr.rel (0) target = $region97
  $region96: #{transformer_vae_forward.9} parent=0 // pred_region
    _
  $region97: #{transformer_vae_forward.9} parent=0 // pred_fallthru
    _

</llo_original>
